<compile_context>
chip_gen: v7x
topology: tpu7x:2x2x1
jax: 0.10.0
libtpu: 0.0.40
codegen_flags: <defaults>
</compile_context>

<pallas_src>
import math
import functools

import jax
import jax.numpy as jnp
from jax import lax
from jax.experimental import pallas as pl
from jax.experimental.pallas import tpu as pltpu


def _round_up(x, m):
    return (x + m - 1) // m * m


def _tpu_config():
    """Physical VMEM capacity and whether bf16 elementwise math is native."""
    vmem_cap = 64 << 20                       # conservative fallback (v7x per-TC)
    try:
        vmem_cap = int(getattr(pltpu.get_tpu_info(), "vmem_capacity_bytes",
                               vmem_cap))
    except Exception:
        pass
    bf16_ew = False
    try:
        kind = jax.devices()[0].device_kind.lower()
        # v6e / v7x have bf16 VPU/EUP; v5e and older do not -> keep f32 there.
        bf16_ew = ("v6" in kind) or ("v7" in kind)
    except Exception:
        pass
    return vmem_cap, bf16_ew


def _sar_decode_kernel(
    attn_key_ref,   # (B, HW, K)    bf16  conv3x3_1(feat) + bk + bq (precomputed)
    feat2_ref,      # (B*HW, C)     mxu   flattened feature map
    bdmask_ref,     # (B, B*HW)     mxu   block-diagonal pooling selector
    mask_ref,       # (B, HW)       f32   attention mask (0 / -inf) + b2c
    genc1_ref,      # (B, 4D)       f32   LSTM1 gates at i=-1: out_enc @ wih1 + b1
    w1_ref,         # (NCp+D, 4D)   mxu   fused [emb@wih1 + b1 ; whh1]
    w2f_ref,        # (2D+1, 4D)    mxu   fused [wih2 ; whh2 ; b2]
    wq_ref,         # (D, K)        mxu   conv1x1_1 weight (bias folded into key)
    watt_ref,       # (1, K)        f32   conv1x1_2 weight (bias folded into mask)
    wp_ref,         # (C, Pp)       mxu   prediction Linear (cols zero-padded)
    bp_ref,         # (1, Pp)       f32   prediction bias (-1e30 in padded cols)
    out_ref,        # (L, B, Pp)    f32   per-step softmax probabilities
    x1_s,           # (B, NCp+D)    mxu   scratch: [one-hot feedback | h1 state]
    x2_s,           # (B, 2D+1)     mxu   scratch: [h1 | h2 state | constant 1]
    c1_s, c2_s,     # (B, D)        f32   scratch: LSTM cell states
    *, start_idx, ew_dtype,
):
    f32 = jnp.float32
    B, HW = mask_ref.shape
    D = c1_s.shape[-1]
    NCp = x1_s.shape[-1] - D
    seq_len, _, Pp = out_ref.shape            # Pp == NCp (enforced by wrapper)
    mxu = x1_s.dtype

    def gates_to_hc(g, c_prev):
        # PyTorch nn.LSTMCell gate order [i, f, g, o]; biases folded into g.
        i = jax.nn.sigmoid(g[:, 0 * D:1 * D])
        f = jax.nn.sigmoid(g[:, 1 * D:2 * D])
        gg = jnp.tanh(g[:, 2 * D:3 * D])
        o = jax.nn.sigmoid(g[:, 3 * D:4 * D])
        c = f * c_prev + i * gg
        h = o * jnp.tanh(c)
        return h, c

    zero_d = jnp.zeros((B, D), f32)

    # ---------------- i == -1 : holistic feature step (zero initial states) ----
    # x2_s layout [h1 | h2_prev | 1]: h2_prev = 0, ones column drives the b2 row.
    x2_s[...] = (lax.broadcasted_iota(jnp.int32, (B, 2 * D + 1), 1)
                 == 2 * D).astype(mxu)
    h1, c1 = gates_to_hc(genc1_ref[...], zero_d)
    h1m = h1.astype(mxu)
    x2_s[:, 0:D] = h1m
    g2 = jnp.dot(x2_s[...], w2f_ref[...], preferred_element_type=f32)
    h2, c2 = gates_to_hc(g2, zero_d)
    x2_s[:, D:2 * D] = h2.astype(mxu)
    c1_s[...] = c1
    c2_s[...] = c2
    # x1_s layout [one-hot feedback | h1]; first decoder input = <start> token.
    x1_s[:, 0:NCp] = (lax.broadcasted_iota(jnp.int32, (B, NCp), 1)
                      == jnp.int32(start_idx)).astype(mxu)
    x1_s[:, NCp:] = h1m

    # ---------------- greedy sequential decode ---------------------------------
    def step(t):
        # LSTM cell 1 (single fused matmul; b1 folded into the one-hot rows).
        g1 = jnp.dot(x1_s[...], w1_ref[...], preferred_element_type=f32)
        h1, c1 = gates_to_hc(g1, c1_s[...])
        c1_s[...] = c1
        h1m = h1.astype(mxu)
        x1_s[:, NCp:] = h1m
        x2_s[:, 0:D] = h1m

        # LSTM cell 2 (single fused matmul; b2 via the ones column).
        g2 = jnp.dot(x2_s[...], w2f_ref[...], preferred_element_type=f32)
        h2, c2 = gates_to_hc(g2, c2_s[...])
        c2_s[...] = c2
        h2m = h2.astype(mxu)
        x2_s[:, D:2 * D] = h2m

        # 2-D attention (bq folded into attn_key, b2c folded into mask).
        q = jnp.dot(h2m, wq_ref[...], preferred_element_type=f32)        # (B, K)
        e = jnp.tanh(attn_key_ref[...].astype(ew_dtype)
                     + q.astype(ew_dtype)[:, None, :])                   # (B,HW,K)
        score = jnp.sum(e * watt_ref[...], axis=-1) + mask_ref[...]      # (B,HW) f32
        # NOTE: a fully-masked row (valid_ratio == 0) yields NaN, same as PyTorch.
        m = jnp.max(score, axis=-1, keepdims=True)
        expw = jnp.exp(score - m)
        attn_w = expw * pl.reciprocal(jnp.sum(expw, axis=-1, keepdims=True),
                                      approx=True)                       # (B, HW)

        # Pooling as a single MXU matmul via block-diagonal attention weights.
        aw_bd = jnp.tile(attn_w.astype(mxu), (1, B)) * bdmask_ref[...]   # (B,B*HW)
        attn_feat = jnp.dot(aw_bd, feat2_ref[...],
                            preferred_element_type=f32)                  # (B, C)

        # Prediction logits (padded class cols carry a -1e30 bias).
        logits = (jnp.dot(attn_feat.astype(mxu), wp_ref[...],
                          preferred_element_type=f32) + bp_ref[...])     # (B, Pp)

        # Greedy feedback one-hot straight from the logits max (softmax is
        # monotone; exact f32 ties are vanishingly unlikely -- first-max
        # tiebreak dropped per perf review to shorten the feedback path).
        lmax = jnp.max(logits, axis=-1, keepdims=True)
        x1_s[:, 0:NCp] = (logits == lmax).astype(mxu)

        # Stored probabilities: exact softmax (off the feedback path).
        le = jnp.exp(logits - lmax)
        out_ref[t, :, :] = le / jnp.sum(le, axis=-1, keepdims=True)

    if seq_len <= 16:
        # Full unroll: the scheduler overlaps step t's output-softmax/store tail
        # with step t+1's LSTM matmuls.
        for t in range(seq_len):
            step(t)
    else:
        def body(t, carry):
            step(t)
            return carry
        lax.fori_loop(0, seq_len, body, 0, unroll=4)


def sequential_sar_decoder(feat_nchw, out_enc, params, *, max_seq_len,
                           start_idx=0, valid_ratios=None,
                           mxu_dtype=jnp.bfloat16):
    """Pallas implementation of SequentialSARDecoder.forward_test."""
    B, C, H, W = feat_nchw.shape
    D = out_enc.shape[-1]
    nc = params["emb"].shape[0]
    P = params["wp"].shape[-1]
    K = params["wq"].shape[-1]
    HW = H * W
    NCp = _round_up(nc, 128)
    Pp = NCp                 # shared padded class dim -> one-hot == (logits == max)
    assert P <= Pp
    f32 = jnp.float32

    vmem_cap, bf16_ew = _tpu_config()
    ew_dtype = jnp.bfloat16 if bf16_ew else f32

    feat_nhwc = jnp.transpose(feat_nchw.astype(f32), (0, 2, 3, 1))      # (B,H,W,C)

    # Loop-invariant attention key: conv3x3_1(feat) + bk, query bias bq folded in.
    # Stored bf16: largest resident tensor -> halves VMEM residency & vld traffic.
    attn_key = lax.conv_general_dilated(
        feat_nhwc, params["wk"].astype(f32), window_strides=(1, 1),
        padding=((1, 1), (1, 1)),
        dimension_numbers=("NHWC", "HWIO", "NHWC")) + params["bk"] + params["bq"]
    attn_key = attn_key.reshape(B, HW, K).astype(jnp.bfloat16)

    feat2 = feat_nhwc.reshape(B * HW, C).astype(mxu_dtype)

    # Block-diagonal selector: pooling becomes ONE (B, B*HW) @ (B*HW, C) matmul.
    bd_mask = (jnp.arange(B, dtype=jnp.int32)[:, None]
               == (jnp.arange(B * HW, dtype=jnp.int32)[None, :] // HW)
               ).astype(mxu_dtype)

    # Attention mask (0 / -inf) with the conv1x1_2 bias b2c folded in.
    if valid_ratios is None:
        mask = jnp.zeros((B, HW), f32)
    else:
        vw = jnp.array([min(W, math.ceil(W * vr)) for vr in valid_ratios],
                       jnp.int32)
        col = jnp.arange(W, dtype=jnp.int32)
        invalid = col[None, :] >= vw[:, None]                            # (B, W)
        mask = jnp.where(jnp.broadcast_to(invalid[:, None, :], (B, H, W)),
                         -jnp.inf, 0.0).astype(f32).reshape(B, HW)
    mask = mask + params["b2c"].astype(f32)

    # i == -1 LSTM1 gates (holistic feature), loop invariant.
    genc1 = (jnp.dot(out_enc.astype(f32), params["wih1"]) + params["b1"]).astype(f32)

    # Fused LSTM1 weight: [emb @ wih1 + b1 ; whh1]  (one-hot rows sum to 1 -> exact).
    w1 = jnp.zeros((NCp + D, 4 * D), f32)
    w1 = w1.at[:nc].set(jnp.dot(params["emb"], params["wih1"]) + params["b1"])
    w1 = w1.at[NCp:].set(params["whh1"]).astype(mxu_dtype)
    # Fused LSTM2 weight with bias row (driven by the ones column in the state).
    w2f = jnp.concatenate([params["wih2"], params["whh2"], params["b2"]],
                          axis=0).astype(mxu_dtype)

    # Lane-dense class dim: zero-padded weights, -1e30 bias on padded columns.
    wp_pad = jnp.zeros((C, Pp), f32).at[:, :P].set(params["wp"]).astype(mxu_dtype)
    bp_pad = jnp.full((1, Pp), -1e30, f32).at[:, :P].set(params["bp"])

    inputs = (
        attn_key, feat2, bd_mask, mask, genc1, w1, w2f,
        params["wq"].astype(mxu_dtype), params["w2"].astype(f32),
        wp_pad, bp_pad,
    )

    # Generation-aware VMEM budget: residency + elementwise temporaries, capped
    # at 3/4 of physical per-core VMEM (64 MiB on v7x, 128 MiB on v5e/v6e).
    itemsize = jnp.dtype(mxu_dtype).itemsize
    in_bytes = sum(int(a.size) * a.dtype.itemsize for a in inputs)
    out_bytes = max_seq_len * B * Pp * 4
    scratch_bytes = (B * (NCp + D) + B * (2 * D + 1)) * itemsize + 2 * B * D * 4
    temp_bytes = 4 * B * HW * K * 4            # e / score / softmax temporaries
    need = in_bytes + out_bytes + scratch_bytes + temp_bytes
    cap = int(vmem_cap * 3 // 4)
    vmem_limit = int(min(cap, max(32 << 20, 2 * need + (4 << 20))))

    kernel = functools.partial(_sar_decode_kernel, start_idx=start_idx,
                               ew_dtype=ew_dtype)
    vmem = pl.BlockSpec(memory_space=pltpu.MemorySpace.VMEM)

    out_time_major = pl.pallas_call(
        kernel,
        out_shape=jax.ShapeDtypeStruct((max_seq_len, B, Pp), f32),
        in_specs=[vmem] * len(inputs),
        out_specs=vmem,
        scratch_shapes=[pltpu.VMEM((B, NCp + D), mxu_dtype),
                        pltpu.VMEM((B, 2 * D + 1), mxu_dtype),
                        pltpu.VMEM((B, D), f32),
                        pltpu.VMEM((B, D), f32)],
        compiler_params=pltpu.CompilerParams(vmem_limit_bytes=vmem_limit),
    )(*inputs)

    # (L, B, Pp) -> (B, L, P)
    return jnp.transpose(out_time_major, (1, 0, 2))[:, :, :P]


def init_params(key, *, num_classes, d_model, d_enc, d_k, padding_idx=None):
    """Deterministic synthetic parameters with the module's shapes."""
    D = d_enc                       # encoder_rnn_out_size (enc_bi_rnn=False)
    P = num_classes - 1             # prediction ignores padding class
    ks = jax.random.split(key, 15)

    def normal(k, shape, scale):
        return (scale * jax.random.normal(k, shape)).astype(jnp.float32)

    # LSTMCell(D, D): weight_ih (4D,D), weight_hh (4D,D) stored transposed;
    # biases combined (b_ih + b_hh) -> identical math.
    wih1 = normal(ks[0], (D, 4 * D), 0.1)
    whh1 = normal(ks[1], (D, 4 * D), 0.1)
    b1 = normal(ks[2], (1, 4 * D), 0.1)
    wih2 = normal(ks[3], (D, 4 * D), 0.1)
    whh2 = normal(ks[4], (D, 4 * D), 0.1)
    b2 = normal(ks[5], (1, 4 * D), 0.1)
    # conv1x1_1: Conv2d(D, d_k, 1)  -> (D, d_k)
    wq = normal(ks[6], (D, d_k), 0.2)
    bq = normal(ks[7], (1, d_k), 0.1)
    # conv3x3_1: Conv2d(d_model, d_k, 3, padding=1); torch (d_k, C, 3, 3) -> HWIO.
    wk_torch = normal(ks[8], (d_k, d_model, 3, 3), 0.1)
    wk = jnp.transpose(wk_torch, (2, 3, 1, 0))              # (3, 3, C, d_k)
    bk = normal(ks[9], (1, d_k), 0.1)
    # conv1x1_2: Conv2d(d_k, 1, 1)
    w2 = normal(ks[10], (1, d_k), 0.3)
    b2c = normal(ks[11], (1, 1), 0.1)
    # prediction: Linear(d_model, num_classes - 1)  (pred_concat=False)
    wp = normal(ks[12], (d_model, P), 0.2)
    bp = normal(ks[13], (1, P), 0.1)
    # embedding: (num_classes, D), padding row zeroed like nn.Embedding(padding_idx=...)
    emb = normal(ks[14], (num_classes, D), 0.5)
    if padding_idx is not None:
        emb = emb.at[padding_idx].set(0.0)

    return dict(wih1=wih1, whh1=whh1, b1=b1, wih2=wih2, whh2=whh2, b2=b2,
                wq=wq, bq=bq, wk=wk, bk=bk, w2=w2, b2c=b2c, wp=wp, bp=bp,
                emb=emb)


if __name__ == "__main__":
    key = jax.random.PRNGKey(0)
    B, d_model, d_enc, d_k = 2, 32, 32, 16
    H = W = 8
    num_classes, max_seq_len, start_idx = 10, 6, 0

    kf, ke, kp = jax.random.split(key, 3)
    feat = jax.random.normal(kf, (B, d_model, H, W), jnp.float32)   # NCHW
    out_enc = jax.random.normal(ke, (B, d_enc), jnp.float32)
    params = init_params(kp, num_classes=num_classes, d_model=d_model,
                         d_enc=d_enc, d_k=d_k, padding_idx=num_classes - 1)

    out = sequential_sar_decoder(feat, out_enc, params,
                                 max_seq_len=max_seq_len,
                                 start_idx=start_idx,
                                 valid_ratios=[1.0, 0.75])
    out = jax.block_until_ready(out)

    assert out.shape == (B, max_seq_len, num_classes - 1), out.shape
    assert bool(jnp.all(jnp.isfinite(out)))
    row_sums = jnp.sum(out, axis=-1)          # per-step softmax must sum to 1
    assert bool(jnp.all(jnp.abs(row_sums - 1.0) < 1e-3))
    print("KERNEL_OK")
</pallas_src>

<mosaic_0001>
module attributes {stable_mosaic.version = 11 : i64} {
  func.func @_sar_decode_kernel(%arg0: memref<2x64x16xbf16, #tpu.memory_space<vmem>>, %arg1: memref<128x32xbf16, #tpu.memory_space<vmem>>, %arg2: memref<2x128xbf16, #tpu.memory_space<vmem>>, %arg3: memref<2x64xf32, #tpu.memory_space<vmem>>, %arg4: memref<2x128xf32, #tpu.memory_space<vmem>>, %arg5: memref<160x128xbf16, #tpu.memory_space<vmem>>, %arg6: memref<65x128xbf16, #tpu.memory_space<vmem>>, %arg7: memref<32x16xbf16, #tpu.memory_space<vmem>>, %arg8: memref<1x16xf32, #tpu.memory_space<vmem>>, %arg9: memref<32x128xbf16, #tpu.memory_space<vmem>>, %arg10: memref<1x128xf32, #tpu.memory_space<vmem>>, %arg11: memref<6x2x128xf32, #tpu.memory_space<vmem>>, %arg12: memref<2x160xbf16, #tpu.memory_space<vmem>>, %arg13: memref<2x65xbf16, #tpu.memory_space<vmem>>, %arg14: memref<2x32xf32, #tpu.memory_space<vmem>>, %arg15: memref<2x32xf32, #tpu.memory_space<vmem>>) attributes {dimension_semantics = [], scalar_prefetch = 0 : i64, scratch_operands = 4 : i64, tpu.core_type = #tpu.core_type<tc>} {
    %cst = arith.constant 0.000000e+00 : f32
    %0 = vector.broadcast %cst : f32 to vector<2x32xf32>
    %1 = tpu.iota {dimensions = array<i32: 1>} : vector<2x65xi32>
    %c64_i32 = arith.constant 64 : i32
    %2 = vector.broadcast %c64_i32 : i32 to vector<2x65xi32>
    %3 = arith.cmpi eq, %1, %2 : vector<2x65xi32>
    %4 = arith.extui %3 : vector<2x65xi1> to vector<2x65xi32>
    %5 = arith.sitofp %4 : vector<2x65xi32> to vector<2x65xf32>
    %6 = arith.truncf %5 : vector<2x65xf32> to vector<2x65xbf16>
    %c0 = arith.constant 0 : index
    %c0_0 = arith.constant 0 : index
    %7 = vector.load %arg13[%c0, %c0_0] : memref<2x65xbf16, #tpu.memory_space<vmem>>, vector<2x65xbf16>
    tpu.vector_store %arg13[%c0, %c0_0], %6 {strides = array<i32>} : memref<2x65xbf16, #tpu.memory_space<vmem>>, vector<2x65xbf16>,
    %c0_1 = arith.constant 0 : index
    %c0_2 = arith.constant 0 : index
    %8 = vector.load %arg4[%c0_1, %c0_2] : memref<2x128xf32, #tpu.memory_space<vmem>>, vector<2x128xf32>
    %9 = vector.extract_strided_slice %8 {offsets = [0, 0], sizes = [2, 32], strides = [1, 1]} : vector<2x128xf32> to vector<2x32xf32>
    %10 = arith.negf %9 : vector<2x32xf32>
    %11 = math.exp %10 : vector<2x32xf32>
    %cst_3 = arith.constant 1.000000e+00 : f32
    %12 = vector.broadcast %cst_3 : f32 to vector<2x32xf32>
    %13 = arith.addf %12, %11 : vector<2x32xf32>
    %14 = arith.divf %12, %13 : vector<2x32xf32>
    %15 = vector.extract_strided_slice %8 {offsets = [0, 32], sizes = [2, 32], strides = [1, 1]} : vector<2x128xf32> to vector<2x32xf32>
    %16 = arith.negf %15 : vector<2x32xf32>
    %17 = math.exp %16 : vector<2x32xf32>
    %cst_4 = arith.constant 1.000000e+00 : f32
    %18 = vector.broadcast %cst_4 : f32 to vector<2x32xf32>
    %19 = arith.addf %18, %17 : vector<2x32xf32>
    %20 = arith.divf %18, %19 : vector<2x32xf32>
    %21 = vector.extract_strided_slice %8 {offsets = [0, 64], sizes = [2, 32], strides = [1, 1]} : vector<2x128xf32> to vector<2x32xf32>
    %22 = math.tanh %21 : vector<2x32xf32>
    %23 = vector.extract_strided_slice %8 {offsets = [0, 96], sizes = [2, 32], strides = [1, 1]} : vector<2x128xf32> to vector<2x32xf32>
    %24 = arith.negf %23 : vector<2x32xf32>
    %25 = math.exp %24 : vector<2x32xf32>
    %cst_5 = arith.constant 1.000000e+00 : f32
    %26 = vector.broadcast %cst_5 : f32 to vector<2x32xf32>
    %27 = arith.addf %26, %25 : vector<2x32xf32>
    %28 = arith.divf %26, %27 : vector<2x32xf32>
    %29 = arith.mulf %20, %0 : vector<2x32xf32>
    %30 = arith.mulf %14, %22 : vector<2x32xf32>
    %31 = arith.addf %29, %30 : vector<2x32xf32>
    %32 = math.tanh %31 : vector<2x32xf32>
    %33 = arith.mulf %28, %32 : vector<2x32xf32>
    %34 = arith.truncf %33 : vector<2x32xf32> to vector<2x32xbf16>
    %c0_6 = arith.constant 0 : index
    %c0_7 = arith.constant 0 : index
    %35 = vector.load %arg13[%c0_6, %c0_7] : memref<2x65xbf16, #tpu.memory_space<vmem>>, vector<2x32xbf16>
    tpu.vector_store %arg13[%c0_6, %c0_7], %34 {strides = array<i32>} : memref<2x65xbf16, #tpu.memory_space<vmem>>, vector<2x32xbf16>,
    %c0_8 = arith.constant 0 : index
    %c0_9 = arith.constant 0 : index
    %36 = vector.load %arg13[%c0_8, %c0_9] : memref<2x65xbf16, #tpu.memory_space<vmem>>, vector<2x65xbf16>
    %c0_10 = arith.constant 0 : index
    %c0_11 = arith.constant 0 : index
    %37 = vector.load %arg6[%c0_10, %c0_11] : memref<65x128xbf16, #tpu.memory_space<vmem>>, vector<65x128xbf16>
    %cst_12 = arith.constant dense<0.000000e+00> : vector<2x128xf32>
    %38 = tpu.matmul %36, %37, %cst_12 {dimension_numbers = #tpu.dot_dimension_numbers<[1], [0], [0], [1], [0, 0, 1, 1], [], []>} : vector<2x65xbf16>, vector<65x128xbf16>, vector<2x128xf32> -> vector<2x128xf32>
    %39 = vector.extract_strided_slice %38 {offsets = [0, 0], sizes = [2, 32], strides = [1, 1]} : vector<2x128xf32> to vector<2x32xf32>
    %40 = arith.negf %39 : vector<2x32xf32>
    %41 = math.exp %40 : vector<2x32xf32>
    %cst_13 = arith.constant 1.000000e+00 : f32
    %42 = vector.broadcast %cst_13 : f32 to vector<2x32xf32>
    %43 = arith.addf %42, %41 : vector<2x32xf32>
    %44 = arith.divf %42, %43 : vector<2x32xf32>
    %45 = vector.extract_strided_slice %38 {offsets = [0, 32], sizes = [2, 32], strides = [1, 1]} : vector<2x128xf32> to vector<2x32xf32>
    %46 = arith.negf %45 : vector<2x32xf32>
    %47 = math.exp %46 : vector<2x32xf32>
    %cst_14 = arith.constant 1.000000e+00 : f32
    %48 = vector.broadcast %cst_14 : f32 to vector<2x32xf32>
    %49 = arith.addf %48, %47 : vector<2x32xf32>
    %50 = arith.divf %48, %49 : vector<2x32xf32>
    %51 = vector.extract_strided_slice %38 {offsets = [0, 64], sizes = [2, 32], strides = [1, 1]} : vector<2x128xf32> to vector<2x32xf32>
    %52 = math.tanh %51 : vector<2x32xf32>
    %53 = vector.extract_strided_slice %38 {offsets = [0, 96], sizes = [2, 32], strides = [1, 1]} : vector<2x128xf32> to vector<2x32xf32>
    %54 = arith.negf %53 : vector<2x32xf32>
    %55 = math.exp %54 : vector<2x32xf32>
    %cst_15 = arith.constant 1.000000e+00 : f32
    %56 = vector.broadcast %cst_15 : f32 to vector<2x32xf32>
    %57 = arith.addf %56, %55 : vector<2x32xf32>
    %58 = arith.divf %56, %57 : vector<2x32xf32>
    %59 = arith.mulf %50, %0 : vector<2x32xf32>
    %60 = arith.mulf %44, %52 : vector<2x32xf32>
    %61 = arith.addf %59, %60 : vector<2x32xf32>
    %62 = math.tanh %61 : vector<2x32xf32>
    %63 = arith.mulf %58, %62 : vector<2x32xf32>
    %64 = arith.truncf %63 : vector<2x32xf32> to vector<2x32xbf16>
    %c0_16 = arith.constant 0 : index
    %c32 = arith.constant 32 : index
    %65 = vector.load %arg13[%c0_16, %c32] : memref<2x65xbf16, #tpu.memory_space<vmem>>, vector<2x32xbf16>
    tpu.vector_store %arg13[%c0_16, %c32], %64 {strides = array<i32>} : memref<2x65xbf16, #tpu.memory_space<vmem>>, vector<2x32xbf16>,
    %c0_17 = arith.constant 0 : index
    %c0_18 = arith.constant 0 : index
    %66 = vector.load %arg14[%c0_17, %c0_18] : memref<2x32xf32, #tpu.memory_space<vmem>>, vector<2x32xf32>
    tpu.vector_store %arg14[%c0_17, %c0_18], %31 {strides = array<i32>} : memref<2x32xf32, #tpu.memory_space<vmem>>, vector<2x32xf32>,
    %c0_19 = arith.constant 0 : index
    %c0_20 = arith.constant 0 : index
    %67 = vector.load %arg15[%c0_19, %c0_20] : memref<2x32xf32, #tpu.memory_space<vmem>>, vector<2x32xf32>
    tpu.vector_store %arg15[%c0_19, %c0_20], %61 {strides = array<i32>} : memref<2x32xf32, #tpu.memory_space<vmem>>, vector<2x32xf32>,
    %68 = tpu.iota {dimensions = array<i32: 1>} : vector<2x128xi32>
    %c0_i32 = arith.constant 0 : i32
    %69 = vector.broadcast %c0_i32 : i32 to vector<2x128xi32>
    %70 = arith.cmpi eq, %68, %69 : vector<2x128xi32>
    %71 = arith.extui %70 : vector<2x128xi1> to vector<2x128xi32>
    %72 = arith.sitofp %71 : vector<2x128xi32> to vector<2x128xf32>
    %73 = arith.truncf %72 : vector<2x128xf32> to vector<2x128xbf16>
    %c0_21 = arith.constant 0 : index
    %c0_22 = arith.constant 0 : index
    %74 = vector.load %arg12[%c0_21, %c0_22] : memref<2x160xbf16, #tpu.memory_space<vmem>>, vector<2x128xbf16>
    tpu.vector_store %arg12[%c0_21, %c0_22], %73 {strides = array<i32>} : memref<2x160xbf16, #tpu.memory_space<vmem>>, vector<2x128xbf16>,
    %c0_23 = arith.constant 0 : index
    %c128 = arith.constant 128 : index
    %75 = vector.load %arg12[%c0_23, %c128] : memref<2x160xbf16, #tpu.memory_space<vmem>>, vector<2x32xbf16>
    tpu.vector_store %arg12[%c0_23, %c128], %34 {strides = array<i32>} : memref<2x160xbf16, #tpu.memory_space<vmem>>, vector<2x32xbf16>,
    %c0_24 = arith.constant 0 : index
    %c0_25 = arith.constant 0 : index
    %76 = vector.load %arg12[%c0_24, %c0_25] : memref<2x160xbf16, #tpu.memory_space<vmem>>, vector<2x160xbf16>
    %c0_26 = arith.constant 0 : index
    %c0_27 = arith.constant 0 : index
    %77 = vector.load %arg5[%c0_26, %c0_27] : memref<160x128xbf16, #tpu.memory_space<vmem>>, vector<160x128xbf16>
    %cst_28 = arith.constant dense<0.000000e+00> : vector<2x128xf32>
    %78 = tpu.matmul %76, %77, %cst_28 {dimension_numbers = #tpu.dot_dimension_numbers<[1], [0], [0], [1], [0, 0, 1, 1], [], []>} : vector<2x160xbf16>, vector<160x128xbf16>, vector<2x128xf32> -> vector<2x128xf32>
    %c0_29 = arith.constant 0 : index
    %c0_30 = arith.constant 0 : index
    %79 = vector.load %arg14[%c0_29, %c0_30] : memref<2x32xf32, #tpu.memory_space<vmem>>, vector<2x32xf32>
    %80 = vector.extract_strided_slice %78 {offsets = [0, 0], sizes = [2, 32], strides = [1, 1]} : vector<2x128xf32> to vector<2x32xf32>
    %81 = arith.negf %80 : vector<2x32xf32>
    %82 = math.exp %81 : vector<2x32xf32>
    %cst_31 = arith.constant 1.000000e+00 : f32
    %83 = vector.broadcast %cst_31 : f32 to vector<2x32xf32>
    %84 = arith.addf %83, %82 : vector<2x32xf32>
    %85 = arith.divf %83, %84 : vector<2x32xf32>
    %86 = vector.extract_strided_slice %78 {offsets = [0, 32], sizes = [2, 32], strides = [1, 1]} : vector<2x128xf32> to vector<2x32xf32>
    %87 = arith.negf %86 : vector<2x32xf32>
    %88 = math.exp %87 : vector<2x32xf32>
    %cst_32 = arith.constant 1.000000e+00 : f32
    %89 = vector.broadcast %cst_32 : f32 to vector<2x32xf32>
    %90 = arith.addf %89, %88 : vector<2x32xf32>
    %91 = arith.divf %89, %90 : vector<2x32xf32>
    %92 = vector.extract_strided_slice %78 {offsets = [0, 64], sizes = [2, 32], strides = [1, 1]} : vector<2x128xf32> to vector<2x32xf32>
    %93 = math.tanh %92 : vector<2x32xf32>
    %94 = vector.extract_strided_slice %78 {offsets = [0, 96], sizes = [2, 32], strides = [1, 1]} : vector<2x128xf32> to vector<2x32xf32>
    %95 = arith.negf %94 : vector<2x32xf32>
    %96 = math.exp %95 : vector<2x32xf32>
    %cst_33 = arith.constant 1.000000e+00 : f32
    %97 = vector.broadcast %cst_33 : f32 to vector<2x32xf32>
    %98 = arith.addf %97, %96 : vector<2x32xf32>
    %99 = arith.divf %97, %98 : vector<2x32xf32>
    %100 = arith.mulf %91, %79 : vector<2x32xf32>
    %101 = arith.mulf %85, %93 : vector<2x32xf32>
    %102 = arith.addf %100, %101 : vector<2x32xf32>
    %103 = math.tanh %102 : vector<2x32xf32>
    %104 = arith.mulf %99, %103 : vector<2x32xf32>
    %c0_34 = arith.constant 0 : index
    %c0_35 = arith.constant 0 : index
    %105 = vector.load %arg14[%c0_34, %c0_35] : memref<2x32xf32, #tpu.memory_space<vmem>>, vector<2x32xf32>
    tpu.vector_store %arg14[%c0_34, %c0_35], %102 {strides = array<i32>} : memref<2x32xf32, #tpu.memory_space<vmem>>, vector<2x32xf32>,
    %106 = arith.truncf %104 : vector<2x32xf32> to vector<2x32xbf16>
    %c0_36 = arith.constant 0 : index
    %c128_37 = arith.constant 128 : index
    %107 = vector.load %arg12[%c0_36, %c128_37] : memref<2x160xbf16, #tpu.memory_space<vmem>>, vector<2x32xbf16>
    tpu.vector_store %arg12[%c0_36, %c128_37], %106 {strides = array<i32>} : memref<2x160xbf16, #tpu.memory_space<vmem>>, vector<2x32xbf16>,
    %c0_38 = arith.constant 0 : index
    %c0_39 = arith.constant 0 : index
    %108 = vector.load %arg13[%c0_38, %c0_39] : memref<2x65xbf16, #tpu.memory_space<vmem>>, vector<2x32xbf16>
    tpu.vector_store %arg13[%c0_38, %c0_39], %106 {strides = array<i32>} : memref<2x65xbf16, #tpu.memory_space<vmem>>, vector<2x32xbf16>,
    %c0_40 = arith.constant 0 : index
    %c0_41 = arith.constant 0 : index
    %109 = vector.load %arg13[%c0_40, %c0_41] : memref<2x65xbf16, #tpu.memory_space<vmem>>, vector<2x65xbf16>
    %c0_42 = arith.constant 0 : index
    %c0_43 = arith.constant 0 : index
    %110 = vector.load %arg6[%c0_42, %c0_43] : memref<65x128xbf16, #tpu.memory_space<vmem>>, vector<65x128xbf16>
    %cst_44 = arith.constant dense<0.000000e+00> : vector<2x128xf32>
    %111 = tpu.matmul %109, %110, %cst_44 {dimension_numbers = #tpu.dot_dimension_numbers<[1], [0], [0], [1], [0, 0, 1, 1], [], []>} : vector<2x65xbf16>, vector<65x128xbf16>, vector<2x128xf32> -> vector<2x128xf32>
    %c0_45 = arith.constant 0 : index
    %c0_46 = arith.constant 0 : index
    %112 = vector.load %arg15[%c0_45, %c0_46] : memref<2x32xf32, #tpu.memory_space<vmem>>, vector<2x32xf32>
    %113 = vector.extract_strided_slice %111 {offsets = [0, 0], sizes = [2, 32], strides = [1, 1]} : vector<2x128xf32> to vector<2x32xf32>
    %114 = arith.negf %113 : vector<2x32xf32>
    %115 = math.exp %114 : vector<2x32xf32>
    %cst_47 = arith.constant 1.000000e+00 : f32
    %116 = vector.broadcast %cst_47 : f32 to vector<2x32xf32>
    %117 = arith.addf %116, %115 : vector<2x32xf32>
    %118 = arith.divf %116, %117 : vector<2x32xf32>
    %119 = vector.extract_strided_slice %111 {offsets = [0, 32], sizes = [2, 32], strides = [1, 1]} : vector<2x128xf32> to vector<2x32xf32>
    %120 = arith.negf %119 : vector<2x32xf32>
    %121 = math.exp %120 : vector<2x32xf32>
    %cst_48 = arith.constant 1.000000e+00 : f32
    %122 = vector.broadcast %cst_48 : f32 to vector<2x32xf32>
    %123 = arith.addf %122, %121 : vector<2x32xf32>
    %124 = arith.divf %122, %123 : vector<2x32xf32>
    %125 = vector.extract_strided_slice %111 {offsets = [0, 64], sizes = [2, 32], strides = [1, 1]} : vector<2x128xf32> to vector<2x32xf32>
    %126 = math.tanh %125 : vector<2x32xf32>
    %127 = vector.extract_strided_slice %111 {offsets = [0, 96], sizes = [2, 32], strides = [1, 1]} : vector<2x128xf32> to vector<2x32xf32>
    %128 = arith.negf %127 : vector<2x32xf32>
    %129 = math.exp %128 : vector<2x32xf32>
    %cst_49 = arith.constant 1.000000e+00 : f32
    %130 = vector.broadcast %cst_49 : f32 to vector<2x32xf32>
    %131 = arith.addf %130, %129 : vector<2x32xf32>
    %132 = arith.divf %130, %131 : vector<2x32xf32>
    %133 = arith.mulf %124, %112 : vector<2x32xf32>
    %134 = arith.mulf %118, %126 : vector<2x32xf32>
    %135 = arith.addf %133, %134 : vector<2x32xf32>
    %136 = math.tanh %135 : vector<2x32xf32>
    %137 = arith.mulf %132, %136 : vector<2x32xf32>
    %c0_50 = arith.constant 0 : index
    %c0_51 = arith.constant 0 : index
    %138 = vector.load %arg15[%c0_50, %c0_51] : memref<2x32xf32, #tpu.memory_space<vmem>>, vector<2x32xf32>
    tpu.vector_store %arg15[%c0_50, %c0_51], %135 {strides = array<i32>} : memref<2x32xf32, #tpu.memory_space<vmem>>, vector<2x32xf32>,
    %139 = arith.truncf %137 : vector<2x32xf32> to vector<2x32xbf16>
    %c0_52 = arith.constant 0 : index
    %c32_53 = arith.constant 32 : index
    %140 = vector.load %arg13[%c0_52, %c32_53] : memref<2x65xbf16, #tpu.memory_space<vmem>>, vector<2x32xbf16>
    tpu.vector_store %arg13[%c0_52, %c32_53], %139 {strides = array<i32>} : memref<2x65xbf16, #tpu.memory_space<vmem>>, vector<2x32xbf16>,
    %c0_54 = arith.constant 0 : index
    %c0_55 = arith.constant 0 : index
    %141 = vector.load %arg7[%c0_54, %c0_55] : memref<32x16xbf16, #tpu.memory_space<vmem>>, vector<32x16xbf16>
    %cst_56 = arith.constant dense<0.000000e+00> : vector<2x16xf32>
    %142 = tpu.matmul %139, %141, %cst_56 {dimension_numbers = #tpu.dot_dimension_numbers<[1], [0], [0], [1], [0, 0, 1, 1], [], []>} : vector<2x32xbf16>, vector<32x16xbf16>, vector<2x16xf32> -> vector<2x16xf32>
    %c0_57 = arith.constant 0 : index
    %c0_58 = arith.constant 0 : index
    %c0_59 = arith.constant 0 : index
    %143 = vector.load %arg0[%c0_57, %c0_58, %c0_59] : memref<2x64x16xbf16, #tpu.memory_space<vmem>>, vector<2x64x16xbf16>
    %144 = arith.extf %143 : vector<2x64x16xbf16> to vector<2x64x16xf32>
    %145 = vector.shape_cast %142 : vector<2x16xf32> to vector<2x1x16xf32>
    %146 = vector.broadcast %145 : vector<2x1x16xf32> to vector<2x64x16xf32>
    %147 = arith.addf %144, %146 : vector<2x64x16xf32>
    %148 = math.tanh %147 : vector<2x64x16xf32>
    %c0_60 = arith.constant 0 : index
    %c0_61 = arith.constant 0 : index
    %149 = vector.load %arg8[%c0_60, %c0_61] : memref<1x16xf32, #tpu.memory_space<vmem>>, vector<1x16xf32>
    %150 = vector.shape_cast %149 : vector<1x16xf32> to vector<1x1x16xf32>
    %151 = vector.broadcast %150 : vector<1x1x16xf32> to vector<2x64x16xf32>
    %152 = arith.mulf %148, %151 : vector<2x64x16xf32>
    %cst_62 = arith.constant dense<0.000000e+00> : vector<2x64xf32>
    %153 = vector.multi_reduction <add>, %152, %cst_62 [2] : vector<2x64x16xf32> to vector<2x64xf32>
    %c0_63 = arith.constant 0 : index
    %c0_64 = arith.constant 0 : index
    %154 = vector.load %arg3[%c0_63, %c0_64] : memref<2x64xf32, #tpu.memory_space<vmem>>, vector<2x64xf32>
    %155 = arith.addf %153, %154 : vector<2x64xf32>
    %cst_65 = arith.constant dense<0xFF800000> : vector<2xf32>
    %156 = vector.multi_reduction <maximumf>, %155, %cst_65 [1] : vector<2x64xf32> to vector<2xf32>
    %157 = vector.shape_cast %156 : vector<2xf32> to vector<2x1xf32>
    %158 = vector.broadcast %157 : vector<2x1xf32> to vector<2x64xf32>
    %159 = arith.subf %155, %158 : vector<2x64xf32>
    %160 = math.exp %159 : vector<2x64xf32>
    %cst_66 = arith.constant dense<0.000000e+00> : vector<2xf32>
    %161 = vector.multi_reduction <add>, %160, %cst_66 [1] : vector<2x64xf32> to vector<2xf32>
    %162 = vector.shape_cast %161 : vector<2xf32> to vector<2x1xf32>
    %163 = tpu.reciprocal %162 {approx = true} : vector<2x1xf32> -> vector<2x1xf32>
    %164 = vector.broadcast %163 : vector<2x1xf32> to vector<2x64xf32>
    %165 = arith.mulf %160, %164 : vector<2x64xf32>
    %166 = arith.truncf %165 : vector<2x64xf32> to vector<2x64xbf16>
    %167 = tpu.concatenate %166, %166 in 1 : vector<2x64xbf16>, vector<2x64xbf16> -> vector<2x128xbf16>
    %c0_67 = arith.constant 0 : index
    %c0_68 = arith.constant 0 : index
    %168 = vector.load %arg2[%c0_67, %c0_68] : memref<2x128xbf16, #tpu.memory_space<vmem>>, vector<2x128xbf16>
    %169 = arith.mulf %167, %168 : vector<2x128xbf16>
    %c0_69 = arith.constant 0 : index
    %c0_70 = arith.constant 0 : index
    %170 = vector.load %arg1[%c0_69, %c0_70] : memref<128x32xbf16, #tpu.memory_space<vmem>>, vector<128x32xbf16>
    %cst_71 = arith.constant dense<0.000000e+00> : vector<2x32xf32>
    %171 = tpu.matmul %169, %170, %cst_71 {dimension_numbers = #tpu.dot_dimension_numbers<[1], [0], [0], [1], [0, 0, 1, 1], [], []>} : vector<2x128xbf16>, vector<128x32xbf16>, vector<2x32xf32> -> vector<2x32xf32>
    %172 = arith.truncf %171 : vector<2x32xf32> to vector<2x32xbf16>
    %c0_72 = arith.constant 0 : index
    %c0_73 = arith.constant 0 : index
    %173 = vector.load %arg9[%c0_72, %c0_73] : memref<32x128xbf16, #tpu.memory_space<vmem>>, vector<32x128xbf16>
    %cst_74 = arith.constant dense<0.000000e+00> : vector<2x128xf32>
    %174 = tpu.matmul %172, %173, %cst_74 {dimension_numbers = #tpu.dot_dimension_numbers<[1], [0], [0], [1], [0, 0, 1, 1], [], []>} : vector<2x32xbf16>, vector<32x128xbf16>, vector<2x128xf32> -> vector<2x128xf32>
    %c0_75 = arith.constant 0 : index
    %c0_76 = arith.constant 0 : index
    %175 = vector.load %arg10[%c0_75, %c0_76] : memref<1x128xf32, #tpu.memory_space<vmem>>, vector<1x128xf32>
    %176 = vector.broadcast %175 : vector<1x128xf32> to vector<2x128xf32>
    %177 = arith.addf %174, %176 : vector<2x128xf32>
    %cst_77 = arith.constant dense<0xFF800000> : vector<2xf32>
    %178 = vector.multi_reduction <maximumf>, %177, %cst_77 [1] : vector<2x128xf32> to vector<2xf32>
    %179 = vector.shape_cast %178 : vector<2xf32> to vector<2x1xf32>
    %180 = vector.broadcast %179 : vector<2x1xf32> to vector<2x128xf32>
    %181 = arith.cmpf oeq, %177, %180 : vector<2x128xf32>
    %182 = arith.extui %181 : vector<2x128xi1> to vector<2x128xi32>
    %183 = arith.sitofp %182 : vector<2x128xi32> to vector<2x128xf32>
    %184 = arith.truncf %183 : vector<2x128xf32> to vector<2x128xbf16>
    %c0_78 = arith.constant 0 : index
    %c0_79 = arith.constant 0 : index
    %185 = vector.load %arg12[%c0_78, %c0_79] : memref<2x160xbf16, #tpu.memory_space<vmem>>, vector<2x128xbf16>
    tpu.vector_store %arg12[%c0_78, %c0_79], %184 {strides = array<i32>} : memref<2x160xbf16, #tpu.memory_space<vmem>>, vector<2x128xbf16>,
    %186 = vector.broadcast %179 : vector<2x1xf32> to vector<2x128xf32>
    %187 = arith.subf %177, %186 : vector<2x128xf32>
    %188 = math.exp %187 : vector<2x128xf32>
    %cst_80 = arith.constant dense<0.000000e+00> : vector<2xf32>
    %189 = vector.multi_reduction <add>, %188, %cst_80 [1] : vector<2x128xf32> to vector<2xf32>
    %190 = vector.shape_cast %189 : vector<2xf32> to vector<2x1xf32>
    %191 = vector.broadcast %190 : vector<2x1xf32> to vector<2x128xf32>
    %192 = arith.divf %188, %191 : vector<2x128xf32>
    %c0_81 = arith.constant 0 : index
    %c0_82 = arith.constant 0 : index
    %c0_83 = arith.constant 0 : index
    %193 = vector.load %arg11[%c0_81, %c0_82, %c0_83] : memref<6x2x128xf32, #tpu.memory_space<vmem>>, vector<1x2x128xf32>
    %194 = vector.shape_cast %193 : vector<1x2x128xf32> to vector<2x128xf32>
    %195 = vector.shape_cast %192 : vector<2x128xf32> to vector<1x2x128xf32>
    tpu.vector_store %arg11[%c0_81, %c0_82, %c0_83], %195 {strides = array<i32>} : memref<6x2x128xf32, #tpu.memory_space<vmem>>, vector<1x2x128xf32>,
    %c0_84 = arith.constant 0 : index
    %c0_85 = arith.constant 0 : index
    %196 = vector.load %arg12[%c0_84, %c0_85] : memref<2x160xbf16, #tpu.memory_space<vmem>>, vector<2x160xbf16>
    %c0_86 = arith.constant 0 : index
    %c0_87 = arith.constant 0 : index
    %197 = vector.load %arg5[%c0_86, %c0_87] : memref<160x128xbf16, #tpu.memory_space<vmem>>, vector<160x128xbf16>
    %cst_88 = arith.constant dense<0.000000e+00> : vector<2x128xf32>
    %198 = tpu.matmul %196, %197, %cst_88 {dimension_numbers = #tpu.dot_dimension_numbers<[1], [0], [0], [1], [0, 0, 1, 1], [], []>} : vector<2x160xbf16>, vector<160x128xbf16>, vector<2x128xf32> -> vector<2x128xf32>
    %c0_89 = arith.constant 0 : index
    %c0_90 = arith.constant 0 : index
    %199 = vector.load %arg14[%c0_89, %c0_90] : memref<2x32xf32, #tpu.memory_space<vmem>>, vector<2x32xf32>
    %200 = vector.extract_strided_slice %198 {offsets = [0, 0], sizes = [2, 32], strides = [1, 1]} : vector<2x128xf32> to vector<2x32xf32>
    %201 = arith.negf %200 : vector<2x32xf32>
    %202 = math.exp %201 : vector<2x32xf32>
    %cst_91 = arith.constant 1.000000e+00 : f32
    %203 = vector.broadcast %cst_91 : f32 to vector<2x32xf32>
    %204 = arith.addf %203, %202 : vector<2x32xf32>
    %205 = arith.divf %203, %204 : vector<2x32xf32>
    %206 = vector.extract_strided_slice %198 {offsets = [0, 32], sizes = [2, 32], strides = [1, 1]} : vector<2x128xf32> to vector<2x32xf32>
    %207 = arith.negf %206 : vector<2x32xf32>
    %208 = math.exp %207 : vector<2x32xf32>
    %cst_92 = arith.constant 1.000000e+00 : f32
    %209 = vector.broadcast %cst_92 : f32 to vector<2x32xf32>
    %210 = arith.addf %209, %208 : vector<2x32xf32>
    %211 = arith.divf %209, %210 : vector<2x32xf32>
    %212 = vector.extract_strided_slice %198 {offsets = [0, 64], sizes = [2, 32], strides = [1, 1]} : vector<2x128xf32> to vector<2x32xf32>
    %213 = math.tanh %212 : vector<2x32xf32>
    %214 = vector.extract_strided_slice %198 {offsets = [0, 96], sizes = [2, 32], strides = [1, 1]} : vector<2x128xf32> to vector<2x32xf32>
    %215 = arith.negf %214 : vector<2x32xf32>
    %216 = math.exp %215 : vector<2x32xf32>
    %cst_93 = arith.constant 1.000000e+00 : f32
    %217 = vector.broadcast %cst_93 : f32 to vector<2x32xf32>
    %218 = arith.addf %217, %216 : vector<2x32xf32>
    %219 = arith.divf %217, %218 : vector<2x32xf32>
    %220 = arith.mulf %211, %199 : vector<2x32xf32>
    %221 = arith.mulf %205, %213 : vector<2x32xf32>
    %222 = arith.addf %220, %221 : vector<2x32xf32>
    %223 = math.tanh %222 : vector<2x32xf32>
    %224 = arith.mulf %219, %223 : vector<2x32xf32>
    %c0_94 = arith.constant 0 : index
    %c0_95 = arith.constant 0 : index
    %225 = vector.load %arg14[%c0_94, %c0_95] : memref<2x32xf32, #tpu.memory_space<vmem>>, vector<2x32xf32>
    tpu.vector_store %arg14[%c0_94, %c0_95], %222 {strides = array<i32>} : memref<2x32xf32, #tpu.memory_space<vmem>>, vector<2x32xf32>,
    %226 = arith.truncf %224 : vector<2x32xf32> to vector<2x32xbf16>
    %c0_96 = arith.constant 0 : index
    %c128_97 = arith.constant 128 : index
    %227 = vector.load %arg12[%c0_96, %c128_97] : memref<2x160xbf16, #tpu.memory_space<vmem>>, vector<2x32xbf16>
    tpu.vector_store %arg12[%c0_96, %c128_97], %226 {strides = array<i32>} : memref<2x160xbf16, #tpu.memory_space<vmem>>, vector<2x32xbf16>,
    %c0_98 = arith.constant 0 : index
    %c0_99 = arith.constant 0 : index
    %228 = vector.load %arg13[%c0_98, %c0_99] : memref<2x65xbf16, #tpu.memory_space<vmem>>, vector<2x32xbf16>
    tpu.vector_store %arg13[%c0_98, %c0_99], %226 {strides = array<i32>} : memref<2x65xbf16, #tpu.memory_space<vmem>>, vector<2x32xbf16>,
    %c0_100 = arith.constant 0 : index
    %c0_101 = arith.constant 0 : index
    %229 = vector.load %arg13[%c0_100, %c0_101] : memref<2x65xbf16, #tpu.memory_space<vmem>>, vector<2x65xbf16>
    %c0_102 = arith.constant 0 : index
    %c0_103 = arith.constant 0 : index
    %230 = vector.load %arg6[%c0_102, %c0_103] : memref<65x128xbf16, #tpu.memory_space<vmem>>, vector<65x128xbf16>
    %cst_104 = arith.constant dense<0.000000e+00> : vector<2x128xf32>
    %231 = tpu.matmul %229, %230, %cst_104 {dimension_numbers = #tpu.dot_dimension_numbers<[1], [0], [0], [1], [0, 0, 1, 1], [], []>} : vector<2x65xbf16>, vector<65x128xbf16>, vector<2x128xf32> -> vector<2x128xf32>
    %c0_105 = arith.constant 0 : index
    %c0_106 = arith.constant 0 : index
    %232 = vector.load %arg15[%c0_105, %c0_106] : memref<2x32xf32, #tpu.memory_space<vmem>>, vector<2x32xf32>
    %233 = vector.extract_strided_slice %231 {offsets = [0, 0], sizes = [2, 32], strides = [1, 1]} : vector<2x128xf32> to vector<2x32xf32>
    %234 = arith.negf %233 : vector<2x32xf32>
    %235 = math.exp %234 : vector<2x32xf32>
    %cst_107 = arith.constant 1.000000e+00 : f32
    %236 = vector.broadcast %cst_107 : f32 to vector<2x32xf32>
    %237 = arith.addf %236, %235 : vector<2x32xf32>
    %238 = arith.divf %236, %237 : vector<2x32xf32>
    %239 = vector.extract_strided_slice %231 {offsets = [0, 32], sizes = [2, 32], strides = [1, 1]} : vector<2x128xf32> to vector<2x32xf32>
    %240 = arith.negf %239 : vector<2x32xf32>
    %241 = math.exp %240 : vector<2x32xf32>
    %cst_108 = arith.constant 1.000000e+00 : f32
    %242 = vector.broadcast %cst_108 : f32 to vector<2x32xf32>
    %243 = arith.addf %242, %241 : vector<2x32xf32>
    %244 = arith.divf %242, %243 : vector<2x32xf32>
    %245 = vector.extract_strided_slice %231 {offsets = [0, 64], sizes = [2, 32], strides = [1, 1]} : vector<2x128xf32> to vector<2x32xf32>
    %246 = math.tanh %245 : vector<2x32xf32>
    %247 = vector.extract_strided_slice %231 {offsets = [0, 96], sizes = [2, 32], strides = [1, 1]} : vector<2x128xf32> to vector<2x32xf32>
    %248 = arith.negf %247 : vector<2x32xf32>
    %249 = math.exp %248 : vector<2x32xf32>
    %cst_109 = arith.constant 1.000000e+00 : f32
    %250 = vector.broadcast %cst_109 : f32 to vector<2x32xf32>
    %251 = arith.addf %250, %249 : vector<2x32xf32>
    %252 = arith.divf %250, %251 : vector<2x32xf32>
    %253 = arith.mulf %244, %232 : vector<2x32xf32>
    %254 = arith.mulf %238, %246 : vector<2x32xf32>
    %255 = arith.addf %253, %254 : vector<2x32xf32>
    %256 = math.tanh %255 : vector<2x32xf32>
    %257 = arith.mulf %252, %256 : vector<2x32xf32>
    %c0_110 = arith.constant 0 : index
    %c0_111 = arith.constant 0 : index
    %258 = vector.load %arg15[%c0_110, %c0_111] : memref<2x32xf32, #tpu.memory_space<vmem>>, vector<2x32xf32>
    tpu.vector_store %arg15[%c0_110, %c0_111], %255 {strides = array<i32>} : memref<2x32xf32, #tpu.memory_space<vmem>>, vector<2x32xf32>,
    %259 = arith.truncf %257 : vector<2x32xf32> to vector<2x32xbf16>
    %c0_112 = arith.constant 0 : index
    %c32_113 = arith.constant 32 : index
    %260 = vector.load %arg13[%c0_112, %c32_113] : memref<2x65xbf16, #tpu.memory_space<vmem>>, vector<2x32xbf16>
    tpu.vector_store %arg13[%c0_112, %c32_113], %259 {strides = array<i32>} : memref<2x65xbf16, #tpu.memory_space<vmem>>, vector<2x32xbf16>,
    %c0_114 = arith.constant 0 : index
    %c0_115 = arith.constant 0 : index
    %261 = vector.load %arg7[%c0_114, %c0_115] : memref<32x16xbf16, #tpu.memory_space<vmem>>, vector<32x16xbf16>
    %cst_116 = arith.constant dense<0.000000e+00> : vector<2x16xf32>
    %262 = tpu.matmul %259, %261, %cst_116 {dimension_numbers = #tpu.dot_dimension_numbers<[1], [0], [0], [1], [0, 0, 1, 1], [], []>} : vector<2x32xbf16>, vector<32x16xbf16>, vector<2x16xf32> -> vector<2x16xf32>
    %c0_117 = arith.constant 0 : index
    %c0_118 = arith.constant 0 : index
    %c0_119 = arith.constant 0 : index
    %263 = vector.load %arg0[%c0_117, %c0_118, %c0_119] : memref<2x64x16xbf16, #tpu.memory_space<vmem>>, vector<2x64x16xbf16>
    %264 = arith.extf %263 : vector<2x64x16xbf16> to vector<2x64x16xf32>
    %265 = vector.shape_cast %262 : vector<2x16xf32> to vector<2x1x16xf32>
    %266 = vector.broadcast %265 : vector<2x1x16xf32> to vector<2x64x16xf32>
    %267 = arith.addf %264, %266 : vector<2x64x16xf32>
    %268 = math.tanh %267 : vector<2x64x16xf32>
    %c0_120 = arith.constant 0 : index
    %c0_121 = arith.constant 0 : index
    %269 = vector.load %arg8[%c0_120, %c0_121] : memref<1x16xf32, #tpu.memory_space<vmem>>, vector<1x16xf32>
    %270 = vector.shape_cast %269 : vector<1x16xf32> to vector<1x1x16xf32>
    %271 = vector.broadcast %270 : vector<1x1x16xf32> to vector<2x64x16xf32>
    %272 = arith.mulf %268, %271 : vector<2x64x16xf32>
    %cst_122 = arith.constant dense<0.000000e+00> : vector<2x64xf32>
    %273 = vector.multi_reduction <add>, %272, %cst_122 [2] : vector<2x64x16xf32> to vector<2x64xf32>
    %c0_123 = arith.constant 0 : index
    %c0_124 = arith.constant 0 : index
    %274 = vector.load %arg3[%c0_123, %c0_124] : memref<2x64xf32, #tpu.memory_space<vmem>>, vector<2x64xf32>
    %275 = arith.addf %273, %274 : vector<2x64xf32>
    %cst_125 = arith.constant dense<0xFF800000> : vector<2xf32>
    %276 = vector.multi_reduction <maximumf>, %275, %cst_125 [1] : vector<2x64xf32> to vector<2xf32>
    %277 = vector.shape_cast %276 : vector<2xf32> to vector<2x1xf32>
    %278 = vector.broadcast %277 : vector<2x1xf32> to vector<2x64xf32>
    %279 = arith.subf %275, %278 : vector<2x64xf32>
    %280 = math.exp %279 : vector<2x64xf32>
    %cst_126 = arith.constant dense<0.000000e+00> : vector<2xf32>
    %281 = vector.multi_reduction <add>, %280, %cst_126 [1] : vector<2x64xf32> to vector<2xf32>
    %282 = vector.shape_cast %281 : vector<2xf32> to vector<2x1xf32>
    %283 = tpu.reciprocal %282 {approx = true} : vector<2x1xf32> -> vector<2x1xf32>
    %284 = vector.broadcast %283 : vector<2x1xf32> to vector<2x64xf32>
    %285 = arith.mulf %280, %284 : vector<2x64xf32>
    %286 = arith.truncf %285 : vector<2x64xf32> to vector<2x64xbf16>
    %287 = tpu.concatenate %286, %286 in 1 : vector<2x64xbf16>, vector<2x64xbf16> -> vector<2x128xbf16>
    %c0_127 = arith.constant 0 : index
    %c0_128 = arith.constant 0 : index
    %288 = vector.load %arg2[%c0_127, %c0_128] : memref<2x128xbf16, #tpu.memory_space<vmem>>, vector<2x128xbf16>
    %289 = arith.mulf %287, %288 : vector<2x128xbf16>
    %c0_129 = arith.constant 0 : index
    %c0_130 = arith.constant 0 : index
    %290 = vector.load %arg1[%c0_129, %c0_130] : memref<128x32xbf16, #tpu.memory_space<vmem>>, vector<128x32xbf16>
    %cst_131 = arith.constant dense<0.000000e+00> : vector<2x32xf32>
    %291 = tpu.matmul %289, %290, %cst_131 {dimension_numbers = #tpu.dot_dimension_numbers<[1], [0], [0], [1], [0, 0, 1, 1], [], []>} : vector<2x128xbf16>, vector<128x32xbf16>, vector<2x32xf32> -> vector<2x32xf32>
    %292 = arith.truncf %291 : vector<2x32xf32> to vector<2x32xbf16>
    %c0_132 = arith.constant 0 : index
    %c0_133 = arith.constant 0 : index
    %293 = vector.load %arg9[%c0_132, %c0_133] : memref<32x128xbf16, #tpu.memory_space<vmem>>, vector<32x128xbf16>
    %cst_134 = arith.constant dense<0.000000e+00> : vector<2x128xf32>
    %294 = tpu.matmul %292, %293, %cst_134 {dimension_numbers = #tpu.dot_dimension_numbers<[1], [0], [0], [1], [0, 0, 1, 1], [], []>} : vector<2x32xbf16>, vector<32x128xbf16>, vector<2x128xf32> -> vector<2x128xf32>
    %c0_135 = arith.constant 0 : index
    %c0_136 = arith.constant 0 : index
    %295 = vector.load %arg10[%c0_135, %c0_136] : memref<1x128xf32, #tpu.memory_space<vmem>>, vector<1x128xf32>
    %296 = vector.broadcast %295 : vector<1x128xf32> to vector<2x128xf32>
    %297 = arith.addf %294, %296 : vector<2x128xf32>
    %cst_137 = arith.constant dense<0xFF800000> : vector<2xf32>
    %298 = vector.multi_reduction <maximumf>, %297, %cst_137 [1] : vector<2x128xf32> to vector<2xf32>
    %299 = vector.shape_cast %298 : vector<2xf32> to vector<2x1xf32>
    %300 = vector.broadcast %299 : vector<2x1xf32> to vector<2x128xf32>
    %301 = arith.cmpf oeq, %297, %300 : vector<2x128xf32>
    %302 = arith.extui %301 : vector<2x128xi1> to vector<2x128xi32>
    %303 = arith.sitofp %302 : vector<2x128xi32> to vector<2x128xf32>
    %304 = arith.truncf %303 : vector<2x128xf32> to vector<2x128xbf16>
    %c0_138 = arith.constant 0 : index
    %c0_139 = arith.constant 0 : index
    %305 = vector.load %arg12[%c0_138, %c0_139] : memref<2x160xbf16, #tpu.memory_space<vmem>>, vector<2x128xbf16>
    tpu.vector_store %arg12[%c0_138, %c0_139], %304 {strides = array<i32>} : memref<2x160xbf16, #tpu.memory_space<vmem>>, vector<2x128xbf16>,
    %306 = vector.broadcast %299 : vector<2x1xf32> to vector<2x128xf32>
    %307 = arith.subf %297, %306 : vector<2x128xf32>
    %308 = math.exp %307 : vector<2x128xf32>
    %cst_140 = arith.constant dense<0.000000e+00> : vector<2xf32>
    %309 = vector.multi_reduction <add>, %308, %cst_140 [1] : vector<2x128xf32> to vector<2xf32>
    %310 = vector.shape_cast %309 : vector<2xf32> to vector<2x1xf32>
    %311 = vector.broadcast %310 : vector<2x1xf32> to vector<2x128xf32>
    %312 = arith.divf %308, %311 : vector<2x128xf32>
    %c1 = arith.constant 1 : index
    %c0_141 = arith.constant 0 : index
    %c0_142 = arith.constant 0 : index
    %313 = vector.load %arg11[%c1, %c0_141, %c0_142] : memref<6x2x128xf32, #tpu.memory_space<vmem>>, vector<1x2x128xf32>
    %314 = vector.shape_cast %313 : vector<1x2x128xf32> to vector<2x128xf32>
    %315 = vector.shape_cast %312 : vector<2x128xf32> to vector<1x2x128xf32>
    tpu.vector_store %arg11[%c1, %c0_141, %c0_142], %315 {strides = array<i32>} : memref<6x2x128xf32, #tpu.memory_space<vmem>>, vector<1x2x128xf32>,
    %c0_143 = arith.constant 0 : index
    %c0_144 = arith.constant 0 : index
    %316 = vector.load %arg12[%c0_143, %c0_144] : memref<2x160xbf16, #tpu.memory_space<vmem>>, vector<2x160xbf16>
    %c0_145 = arith.constant 0 : index
    %c0_146 = arith.constant 0 : index
    %317 = vector.load %arg5[%c0_145, %c0_146] : memref<160x128xbf16, #tpu.memory_space<vmem>>, vector<160x128xbf16>
    %cst_147 = arith.constant dense<0.000000e+00> : vector<2x128xf32>
    %318 = tpu.matmul %316, %317, %cst_147 {dimension_numbers = #tpu.dot_dimension_numbers<[1], [0], [0], [1], [0, 0, 1, 1], [], []>} : vector<2x160xbf16>, vector<160x128xbf16>, vector<2x128xf32> -> vector<2x128xf32>
    %c0_148 = arith.constant 0 : index
    %c0_149 = arith.constant 0 : index
    %319 = vector.load %arg14[%c0_148, %c0_149] : memref<2x32xf32, #tpu.memory_space<vmem>>, vector<2x32xf32>
    %320 = vector.extract_strided_slice %318 {offsets = [0, 0], sizes = [2, 32], strides = [1, 1]} : vector<2x128xf32> to vector<2x32xf32>
    %321 = arith.negf %320 : vector<2x32xf32>
    %322 = math.exp %321 : vector<2x32xf32>
    %cst_150 = arith.constant 1.000000e+00 : f32
    %323 = vector.broadcast %cst_150 : f32 to vector<2x32xf32>
    %324 = arith.addf %323, %322 : vector<2x32xf32>
    %325 = arith.divf %323, %324 : vector<2x32xf32>
    %326 = vector.extract_strided_slice %318 {offsets = [0, 32], sizes = [2, 32], strides = [1, 1]} : vector<2x128xf32> to vector<2x32xf32>
    %327 = arith.negf %326 : vector<2x32xf32>
    %328 = math.exp %327 : vector<2x32xf32>
    %cst_151 = arith.constant 1.000000e+00 : f32
    %329 = vector.broadcast %cst_151 : f32 to vector<2x32xf32>
    %330 = arith.addf %329, %328 : vector<2x32xf32>
    %331 = arith.divf %329, %330 : vector<2x32xf32>
    %332 = vector.extract_strided_slice %318 {offsets = [0, 64], sizes = [2, 32], strides = [1, 1]} : vector<2x128xf32> to vector<2x32xf32>
    %333 = math.tanh %332 : vector<2x32xf32>
    %334 = vector.extract_strided_slice %318 {offsets = [0, 96], sizes = [2, 32], strides = [1, 1]} : vector<2x128xf32> to vector<2x32xf32>
    %335 = arith.negf %334 : vector<2x32xf32>
    %336 = math.exp %335 : vector<2x32xf32>
    %cst_152 = arith.constant 1.000000e+00 : f32
    %337 = vector.broadcast %cst_152 : f32 to vector<2x32xf32>
    %338 = arith.addf %337, %336 : vector<2x32xf32>
    %339 = arith.divf %337, %338 : vector<2x32xf32>
    %340 = arith.mulf %331, %319 : vector<2x32xf32>
    %341 = arith.mulf %325, %333 : vector<2x32xf32>
    %342 = arith.addf %340, %341 : vector<2x32xf32>
    %343 = math.tanh %342 : vector<2x32xf32>
    %344 = arith.mulf %339, %343 : vector<2x32xf32>
    %c0_153 = arith.constant 0 : index
    %c0_154 = arith.constant 0 : index
    %345 = vector.load %arg14[%c0_153, %c0_154] : memref<2x32xf32, #tpu.memory_space<vmem>>, vector<2x32xf32>
    tpu.vector_store %arg14[%c0_153, %c0_154], %342 {strides = array<i32>} : memref<2x32xf32, #tpu.memory_space<vmem>>, vector<2x32xf32>,
    %346 = arith.truncf %344 : vector<2x32xf32> to vector<2x32xbf16>
    %c0_155 = arith.constant 0 : index
    %c128_156 = arith.constant 128 : index
    %347 = vector.load %arg12[%c0_155, %c128_156] : memref<2x160xbf16, #tpu.memory_space<vmem>>, vector<2x32xbf16>
    tpu.vector_store %arg12[%c0_155, %c128_156], %346 {strides = array<i32>} : memref<2x160xbf16, #tpu.memory_space<vmem>>, vector<2x32xbf16>,
    %c0_157 = arith.constant 0 : index
    %c0_158 = arith.constant 0 : index
    %348 = vector.load %arg13[%c0_157, %c0_158] : memref<2x65xbf16, #tpu.memory_space<vmem>>, vector<2x32xbf16>
    tpu.vector_store %arg13[%c0_157, %c0_158], %346 {strides = array<i32>} : memref<2x65xbf16, #tpu.memory_space<vmem>>, vector<2x32xbf16>,
    %c0_159 = arith.constant 0 : index
    %c0_160 = arith.constant 0 : index
    %349 = vector.load %arg13[%c0_159, %c0_160] : memref<2x65xbf16, #tpu.memory_space<vmem>>, vector<2x65xbf16>
    %c0_161 = arith.constant 0 : index
    %c0_162 = arith.constant 0 : index
    %350 = vector.load %arg6[%c0_161, %c0_162] : memref<65x128xbf16, #tpu.memory_space<vmem>>, vector<65x128xbf16>
    %cst_163 = arith.constant dense<0.000000e+00> : vector<2x128xf32>
    %351 = tpu.matmul %349, %350, %cst_163 {dimension_numbers = #tpu.dot_dimension_numbers<[1], [0], [0], [1], [0, 0, 1, 1], [], []>} : vector<2x65xbf16>, vector<65x128xbf16>, vector<2x128xf32> -> vector<2x128xf32>
    %c0_164 = arith.constant 0 : index
    %c0_165 = arith.constant 0 : index
    %352 = vector.load %arg15[%c0_164, %c0_165] : memref<2x32xf32, #tpu.memory_space<vmem>>, vector<2x32xf32>
    %353 = vector.extract_strided_slice %351 {offsets = [0, 0], sizes = [2, 32], strides = [1, 1]} : vector<2x128xf32> to vector<2x32xf32>
    %354 = arith.negf %353 : vector<2x32xf32>
    %355 = math.exp %354 : vector<2x32xf32>
    %cst_166 = arith.constant 1.000000e+00 : f32
    %356 = vector.broadcast %cst_166 : f32 to vector<2x32xf32>
    %357 = arith.addf %356, %355 : vector<2x32xf32>
    %358 = arith.divf %356, %357 : vector<2x32xf32>
    %359 = vector.extract_strided_slice %351 {offsets = [0, 32], sizes = [2, 32], strides = [1, 1]} : vector<2x128xf32> to vector<2x32xf32>
    %360 = arith.negf %359 : vector<2x32xf32>
    %361 = math.exp %360 : vector<2x32xf32>
    %cst_167 = arith.constant 1.000000e+00 : f32
    %362 = vector.broadcast %cst_167 : f32 to vector<2x32xf32>
    %363 = arith.addf %362, %361 : vector<2x32xf32>
    %364 = arith.divf %362, %363 : vector<2x32xf32>
    %365 = vector.extract_strided_slice %351 {offsets = [0, 64], sizes = [2, 32], strides = [1, 1]} : vector<2x128xf32> to vector<2x32xf32>
    %366 = math.tanh %365 : vector<2x32xf32>
    %367 = vector.extract_strided_slice %351 {offsets = [0, 96], sizes = [2, 32], strides = [1, 1]} : vector<2x128xf32> to vector<2x32xf32>
    %368 = arith.negf %367 : vector<2x32xf32>
    %369 = math.exp %368 : vector<2x32xf32>
    %cst_168 = arith.constant 1.000000e+00 : f32
    %370 = vector.broadcast %cst_168 : f32 to vector<2x32xf32>
    %371 = arith.addf %370, %369 : vector<2x32xf32>
    %372 = arith.divf %370, %371 : vector<2x32xf32>
    %373 = arith.mulf %364, %352 : vector<2x32xf32>
    %374 = arith.mulf %358, %366 : vector<2x32xf32>
    %375 = arith.addf %373, %374 : vector<2x32xf32>
    %376 = math.tanh %375 : vector<2x32xf32>
    %377 = arith.mulf %372, %376 : vector<2x32xf32>
    %c0_169 = arith.constant 0 : index
    %c0_170 = arith.constant 0 : index
    %378 = vector.load %arg15[%c0_169, %c0_170] : memref<2x32xf32, #tpu.memory_space<vmem>>, vector<2x32xf32>
    tpu.vector_store %arg15[%c0_169, %c0_170], %375 {strides = array<i32>} : memref<2x32xf32, #tpu.memory_space<vmem>>, vector<2x32xf32>,
    %379 = arith.truncf %377 : vector<2x32xf32> to vector<2x32xbf16>
    %c0_171 = arith.constant 0 : index
    %c32_172 = arith.constant 32 : index
    %380 = vector.load %arg13[%c0_171, %c32_172] : memref<2x65xbf16, #tpu.memory_space<vmem>>, vector<2x32xbf16>
    tpu.vector_store %arg13[%c0_171, %c32_172], %379 {strides = array<i32>} : memref<2x65xbf16, #tpu.memory_space<vmem>>, vector<2x32xbf16>,
    %c0_173 = arith.constant 0 : index
    %c0_174 = arith.constant 0 : index
    %381 = vector.load %arg7[%c0_173, %c0_174] : memref<32x16xbf16, #tpu.memory_space<vmem>>, vector<32x16xbf16>
    %cst_175 = arith.constant dense<0.000000e+00> : vector<2x16xf32>
    %382 = tpu.matmul %379, %381, %cst_175 {dimension_numbers = #tpu.dot_dimension_numbers<[1], [0], [0], [1], [0, 0, 1, 1], [], []>} : vector<2x32xbf16>, vector<32x16xbf16>, vector<2x16xf32> -> vector<2x16xf32>
    %c0_176 = arith.constant 0 : index
    %c0_177 = arith.constant 0 : index
    %c0_178 = arith.constant 0 : index
    %383 = vector.load %arg0[%c0_176, %c0_177, %c0_178] : memref<2x64x16xbf16, #tpu.memory_space<vmem>>, vector<2x64x16xbf16>
    %384 = arith.extf %383 : vector<2x64x16xbf16> to vector<2x64x16xf32>
    %385 = vector.shape_cast %382 : vector<2x16xf32> to vector<2x1x16xf32>
    %386 = vector.broadcast %385 : vector<2x1x16xf32> to vector<2x64x16xf32>
    %387 = arith.addf %384, %386 : vector<2x64x16xf32>
    %388 = math.tanh %387 : vector<2x64x16xf32>
    %c0_179 = arith.constant 0 : index
    %c0_180 = arith.constant 0 : index
    %389 = vector.load %arg8[%c0_179, %c0_180] : memref<1x16xf32, #tpu.memory_space<vmem>>, vector<1x16xf32>
    %390 = vector.shape_cast %389 : vector<1x16xf32> to vector<1x1x16xf32>
    %391 = vector.broadcast %390 : vector<1x1x16xf32> to vector<2x64x16xf32>
    %392 = arith.mulf %388, %391 : vector<2x64x16xf32>
    %cst_181 = arith.constant dense<0.000000e+00> : vector<2x64xf32>
    %393 = vector.multi_reduction <add>, %392, %cst_181 [2] : vector<2x64x16xf32> to vector<2x64xf32>
    %c0_182 = arith.constant 0 : index
    %c0_183 = arith.constant 0 : index
    %394 = vector.load %arg3[%c0_182, %c0_183] : memref<2x64xf32, #tpu.memory_space<vmem>>, vector<2x64xf32>
    %395 = arith.addf %393, %394 : vector<2x64xf32>
    %cst_184 = arith.constant dense<0xFF800000> : vector<2xf32>
    %396 = vector.multi_reduction <maximumf>, %395, %cst_184 [1] : vector<2x64xf32> to vector<2xf32>
    %397 = vector.shape_cast %396 : vector<2xf32> to vector<2x1xf32>
    %398 = vector.broadcast %397 : vector<2x1xf32> to vector<2x64xf32>
    %399 = arith.subf %395, %398 : vector<2x64xf32>
    %400 = math.exp %399 : vector<2x64xf32>
    %cst_185 = arith.constant dense<0.000000e+00> : vector<2xf32>
    %401 = vector.multi_reduction <add>, %400, %cst_185 [1] : vector<2x64xf32> to vector<2xf32>
    %402 = vector.shape_cast %401 : vector<2xf32> to vector<2x1xf32>
    %403 = tpu.reciprocal %402 {approx = true} : vector<2x1xf32> -> vector<2x1xf32>
    %404 = vector.broadcast %403 : vector<2x1xf32> to vector<2x64xf32>
    %405 = arith.mulf %400, %404 : vector<2x64xf32>
    %406 = arith.truncf %405 : vector<2x64xf32> to vector<2x64xbf16>
    %407 = tpu.concatenate %406, %406 in 1 : vector<2x64xbf16>, vector<2x64xbf16> -> vector<2x128xbf16>
    %c0_186 = arith.constant 0 : index
    %c0_187 = arith.constant 0 : index
    %408 = vector.load %arg2[%c0_186, %c0_187] : memref<2x128xbf16, #tpu.memory_space<vmem>>, vector<2x128xbf16>
    %409 = arith.mulf %407, %408 : vector<2x128xbf16>
    %c0_188 = arith.constant 0 : index
    %c0_189 = arith.constant 0 : index
    %410 = vector.load %arg1[%c0_188, %c0_189] : memref<128x32xbf16, #tpu.memory_space<vmem>>, vector<128x32xbf16>
    %cst_190 = arith.constant dense<0.000000e+00> : vector<2x32xf32>
    %411 = tpu.matmul %409, %410, %cst_190 {dimension_numbers = #tpu.dot_dimension_numbers<[1], [0], [0], [1], [0, 0, 1, 1], [], []>} : vector<2x128xbf16>, vector<128x32xbf16>, vector<2x32xf32> -> vector<2x32xf32>
    %412 = arith.truncf %411 : vector<2x32xf32> to vector<2x32xbf16>
    %c0_191 = arith.constant 0 : index
    %c0_192 = arith.constant 0 : index
    %413 = vector.load %arg9[%c0_191, %c0_192] : memref<32x128xbf16, #tpu.memory_space<vmem>>, vector<32x128xbf16>
    %cst_193 = arith.constant dense<0.000000e+00> : vector<2x128xf32>
    %414 = tpu.matmul %412, %413, %cst_193 {dimension_numbers = #tpu.dot_dimension_numbers<[1], [0], [0], [1], [0, 0, 1, 1], [], []>} : vector<2x32xbf16>, vector<32x128xbf16>, vector<2x128xf32> -> vector<2x128xf32>
    %c0_194 = arith.constant 0 : index
    %c0_195 = arith.constant 0 : index
    %415 = vector.load %arg10[%c0_194, %c0_195] : memref<1x128xf32, #tpu.memory_space<vmem>>, vector<1x128xf32>
    %416 = vector.broadcast %415 : vector<1x128xf32> to vector<2x128xf32>
    %417 = arith.addf %414, %416 : vector<2x128xf32>
    %cst_196 = arith.constant dense<0xFF800000> : vector<2xf32>
    %418 = vector.multi_reduction <maximumf>, %417, %cst_196 [1] : vector<2x128xf32> to vector<2xf32>
    %419 = vector.shape_cast %418 : vector<2xf32> to vector<2x1xf32>
    %420 = vector.broadcast %419 : vector<2x1xf32> to vector<2x128xf32>
    %421 = arith.cmpf oeq, %417, %420 : vector<2x128xf32>
    %422 = arith.extui %421 : vector<2x128xi1> to vector<2x128xi32>
    %423 = arith.sitofp %422 : vector<2x128xi32> to vector<2x128xf32>
    %424 = arith.truncf %423 : vector<2x128xf32> to vector<2x128xbf16>
    %c0_197 = arith.constant 0 : index
    %c0_198 = arith.constant 0 : index
    %425 = vector.load %arg12[%c0_197, %c0_198] : memref<2x160xbf16, #tpu.memory_space<vmem>>, vector<2x128xbf16>
    tpu.vector_store %arg12[%c0_197, %c0_198], %424 {strides = array<i32>} : memref<2x160xbf16, #tpu.memory_space<vmem>>, vector<2x128xbf16>,
    %426 = vector.broadcast %419 : vector<2x1xf32> to vector<2x128xf32>
    %427 = arith.subf %417, %426 : vector<2x128xf32>
    %428 = math.exp %427 : vector<2x128xf32>
    %cst_199 = arith.constant dense<0.000000e+00> : vector<2xf32>
    %429 = vector.multi_reduction <add>, %428, %cst_199 [1] : vector<2x128xf32> to vector<2xf32>
    %430 = vector.shape_cast %429 : vector<2xf32> to vector<2x1xf32>
    %431 = vector.broadcast %430 : vector<2x1xf32> to vector<2x128xf32>
    %432 = arith.divf %428, %431 : vector<2x128xf32>
    %c2 = arith.constant 2 : index
    %c0_200 = arith.constant 0 : index
    %c0_201 = arith.constant 0 : index
    %433 = vector.load %arg11[%c2, %c0_200, %c0_201] : memref<6x2x128xf32, #tpu.memory_space<vmem>>, vector<1x2x128xf32>
    %434 = vector.shape_cast %433 : vector<1x2x128xf32> to vector<2x128xf32>
    %435 = vector.shape_cast %432 : vector<2x128xf32> to vector<1x2x128xf32>
    tpu.vector_store %arg11[%c2, %c0_200, %c0_201], %435 {strides = array<i32>} : memref<6x2x128xf32, #tpu.memory_space<vmem>>, vector<1x2x128xf32>,
    %c0_202 = arith.constant 0 : index
    %c0_203 = arith.constant 0 : index
    %436 = vector.load %arg12[%c0_202, %c0_203] : memref<2x160xbf16, #tpu.memory_space<vmem>>, vector<2x160xbf16>
    %c0_204 = arith.constant 0 : index
    %c0_205 = arith.constant 0 : index
    %437 = vector.load %arg5[%c0_204, %c0_205] : memref<160x128xbf16, #tpu.memory_space<vmem>>, vector<160x128xbf16>
    %cst_206 = arith.constant dense<0.000000e+00> : vector<2x128xf32>
    %438 = tpu.matmul %436, %437, %cst_206 {dimension_numbers = #tpu.dot_dimension_numbers<[1], [0], [0], [1], [0, 0, 1, 1], [], []>} : vector<2x160xbf16>, vector<160x128xbf16>, vector<2x128xf32> -> vector<2x128xf32>
    %c0_207 = arith.constant 0 : index
    %c0_208 = arith.constant 0 : index
    %439 = vector.load %arg14[%c0_207, %c0_208] : memref<2x32xf32, #tpu.memory_space<vmem>>, vector<2x32xf32>
    %440 = vector.extract_strided_slice %438 {offsets = [0, 0], sizes = [2, 32], strides = [1, 1]} : vector<2x128xf32> to vector<2x32xf32>
    %441 = arith.negf %440 : vector<2x32xf32>
    %442 = math.exp %441 : vector<2x32xf32>
    %cst_209 = arith.constant 1.000000e+00 : f32
    %443 = vector.broadcast %cst_209 : f32 to vector<2x32xf32>
    %444 = arith.addf %443, %442 : vector<2x32xf32>
    %445 = arith.divf %443, %444 : vector<2x32xf32>
    %446 = vector.extract_strided_slice %438 {offsets = [0, 32], sizes = [2, 32], strides = [1, 1]} : vector<2x128xf32> to vector<2x32xf32>
    %447 = arith.negf %446 : vector<2x32xf32>
    %448 = math.exp %447 : vector<2x32xf32>
    %cst_210 = arith.constant 1.000000e+00 : f32
    %449 = vector.broadcast %cst_210 : f32 to vector<2x32xf32>
    %450 = arith.addf %449, %448 : vector<2x32xf32>
    %451 = arith.divf %449, %450 : vector<2x32xf32>
    %452 = vector.extract_strided_slice %438 {offsets = [0, 64], sizes = [2, 32], strides = [1, 1]} : vector<2x128xf32> to vector<2x32xf32>
    %453 = math.tanh %452 : vector<2x32xf32>
    %454 = vector.extract_strided_slice %438 {offsets = [0, 96], sizes = [2, 32], strides = [1, 1]} : vector<2x128xf32> to vector<2x32xf32>
    %455 = arith.negf %454 : vector<2x32xf32>
    %456 = math.exp %455 : vector<2x32xf32>
    %cst_211 = arith.constant 1.000000e+00 : f32
    %457 = vector.broadcast %cst_211 : f32 to vector<2x32xf32>
    %458 = arith.addf %457, %456 : vector<2x32xf32>
    %459 = arith.divf %457, %458 : vector<2x32xf32>
    %460 = arith.mulf %451, %439 : vector<2x32xf32>
    %461 = arith.mulf %445, %453 : vector<2x32xf32>
    %462 = arith.addf %460, %461 : vector<2x32xf32>
    %463 = math.tanh %462 : vector<2x32xf32>
    %464 = arith.mulf %459, %463 : vector<2x32xf32>
    %c0_212 = arith.constant 0 : index
    %c0_213 = arith.constant 0 : index
    %465 = vector.load %arg14[%c0_212, %c0_213] : memref<2x32xf32, #tpu.memory_space<vmem>>, vector<2x32xf32>
    tpu.vector_store %arg14[%c0_212, %c0_213], %462 {strides = array<i32>} : memref<2x32xf32, #tpu.memory_space<vmem>>, vector<2x32xf32>,
    %466 = arith.truncf %464 : vector<2x32xf32> to vector<2x32xbf16>
    %c0_214 = arith.constant 0 : index
    %c128_215 = arith.constant 128 : index
    %467 = vector.load %arg12[%c0_214, %c128_215] : memref<2x160xbf16, #tpu.memory_space<vmem>>, vector<2x32xbf16>
    tpu.vector_store %arg12[%c0_214, %c128_215], %466 {strides = array<i32>} : memref<2x160xbf16, #tpu.memory_space<vmem>>, vector<2x32xbf16>,
    %c0_216 = arith.constant 0 : index
    %c0_217 = arith.constant 0 : index
    %468 = vector.load %arg13[%c0_216, %c0_217] : memref<2x65xbf16, #tpu.memory_space<vmem>>, vector<2x32xbf16>
    tpu.vector_store %arg13[%c0_216, %c0_217], %466 {strides = array<i32>} : memref<2x65xbf16, #tpu.memory_space<vmem>>, vector<2x32xbf16>,
    %c0_218 = arith.constant 0 : index
    %c0_219 = arith.constant 0 : index
    %469 = vector.load %arg13[%c0_218, %c0_219] : memref<2x65xbf16, #tpu.memory_space<vmem>>, vector<2x65xbf16>
    %c0_220 = arith.constant 0 : index
    %c0_221 = arith.constant 0 : index
    %470 = vector.load %arg6[%c0_220, %c0_221] : memref<65x128xbf16, #tpu.memory_space<vmem>>, vector<65x128xbf16>
    %cst_222 = arith.constant dense<0.000000e+00> : vector<2x128xf32>
    %471 = tpu.matmul %469, %470, %cst_222 {dimension_numbers = #tpu.dot_dimension_numbers<[1], [0], [0], [1], [0, 0, 1, 1], [], []>} : vector<2x65xbf16>, vector<65x128xbf16>, vector<2x128xf32> -> vector<2x128xf32>
    %c0_223 = arith.constant 0 : index
    %c0_224 = arith.constant 0 : index
    %472 = vector.load %arg15[%c0_223, %c0_224] : memref<2x32xf32, #tpu.memory_space<vmem>>, vector<2x32xf32>
    %473 = vector.extract_strided_slice %471 {offsets = [0, 0], sizes = [2, 32], strides = [1, 1]} : vector<2x128xf32> to vector<2x32xf32>
    %474 = arith.negf %473 : vector<2x32xf32>
    %475 = math.exp %474 : vector<2x32xf32>
    %cst_225 = arith.constant 1.000000e+00 : f32
    %476 = vector.broadcast %cst_225 : f32 to vector<2x32xf32>
    %477 = arith.addf %476, %475 : vector<2x32xf32>
    %478 = arith.divf %476, %477 : vector<2x32xf32>
    %479 = vector.extract_strided_slice %471 {offsets = [0, 32], sizes = [2, 32], strides = [1, 1]} : vector<2x128xf32> to vector<2x32xf32>
    %480 = arith.negf %479 : vector<2x32xf32>
    %481 = math.exp %480 : vector<2x32xf32>
    %cst_226 = arith.constant 1.000000e+00 : f32
    %482 = vector.broadcast %cst_226 : f32 to vector<2x32xf32>
    %483 = arith.addf %482, %481 : vector<2x32xf32>
    %484 = arith.divf %482, %483 : vector<2x32xf32>
    %485 = vector.extract_strided_slice %471 {offsets = [0, 64], sizes = [2, 32], strides = [1, 1]} : vector<2x128xf32> to vector<2x32xf32>
    %486 = math.tanh %485 : vector<2x32xf32>
    %487 = vector.extract_strided_slice %471 {offsets = [0, 96], sizes = [2, 32], strides = [1, 1]} : vector<2x128xf32> to vector<2x32xf32>
    %488 = arith.negf %487 : vector<2x32xf32>
    %489 = math.exp %488 : vector<2x32xf32>
    %cst_227 = arith.constant 1.000000e+00 : f32
    %490 = vector.broadcast %cst_227 : f32 to vector<2x32xf32>
    %491 = arith.addf %490, %489 : vector<2x32xf32>
    %492 = arith.divf %490, %491 : vector<2x32xf32>
    %493 = arith.mulf %484, %472 : vector<2x32xf32>
    %494 = arith.mulf %478, %486 : vector<2x32xf32>
    %495 = arith.addf %493, %494 : vector<2x32xf32>
    %496 = math.tanh %495 : vector<2x32xf32>
    %497 = arith.mulf %492, %496 : vector<2x32xf32>
    %c0_228 = arith.constant 0 : index
    %c0_229 = arith.constant 0 : index
    %498 = vector.load %arg15[%c0_228, %c0_229] : memref<2x32xf32, #tpu.memory_space<vmem>>, vector<2x32xf32>
    tpu.vector_store %arg15[%c0_228, %c0_229], %495 {strides = array<i32>} : memref<2x32xf32, #tpu.memory_space<vmem>>, vector<2x32xf32>,
    %499 = arith.truncf %497 : vector<2x32xf32> to vector<2x32xbf16>
    %c0_230 = arith.constant 0 : index
    %c32_231 = arith.constant 32 : index
    %500 = vector.load %arg13[%c0_230, %c32_231] : memref<2x65xbf16, #tpu.memory_space<vmem>>, vector<2x32xbf16>
    tpu.vector_store %arg13[%c0_230, %c32_231], %499 {strides = array<i32>} : memref<2x65xbf16, #tpu.memory_space<vmem>>, vector<2x32xbf16>,
    %c0_232 = arith.constant 0 : index
    %c0_233 = arith.constant 0 : index
    %501 = vector.load %arg7[%c0_232, %c0_233] : memref<32x16xbf16, #tpu.memory_space<vmem>>, vector<32x16xbf16>
    %cst_234 = arith.constant dense<0.000000e+00> : vector<2x16xf32>
    %502 = tpu.matmul %499, %501, %cst_234 {dimension_numbers = #tpu.dot_dimension_numbers<[1], [0], [0], [1], [0, 0, 1, 1], [], []>} : vector<2x32xbf16>, vector<32x16xbf16>, vector<2x16xf32> -> vector<2x16xf32>
    %c0_235 = arith.constant 0 : index
    %c0_236 = arith.constant 0 : index
    %c0_237 = arith.constant 0 : index
    %503 = vector.load %arg0[%c0_235, %c0_236, %c0_237] : memref<2x64x16xbf16, #tpu.memory_space<vmem>>, vector<2x64x16xbf16>
    %504 = arith.extf %503 : vector<2x64x16xbf16> to vector<2x64x16xf32>
    %505 = vector.shape_cast %502 : vector<2x16xf32> to vector<2x1x16xf32>
    %506 = vector.broadcast %505 : vector<2x1x16xf32> to vector<2x64x16xf32>
    %507 = arith.addf %504, %506 : vector<2x64x16xf32>
    %508 = math.tanh %507 : vector<2x64x16xf32>
    %c0_238 = arith.constant 0 : index
    %c0_239 = arith.constant 0 : index
    %509 = vector.load %arg8[%c0_238, %c0_239] : memref<1x16xf32, #tpu.memory_space<vmem>>, vector<1x16xf32>
    %510 = vector.shape_cast %509 : vector<1x16xf32> to vector<1x1x16xf32>
    %511 = vector.broadcast %510 : vector<1x1x16xf32> to vector<2x64x16xf32>
    %512 = arith.mulf %508, %511 : vector<2x64x16xf32>
    %cst_240 = arith.constant dense<0.000000e+00> : vector<2x64xf32>
    %513 = vector.multi_reduction <add>, %512, %cst_240 [2] : vector<2x64x16xf32> to vector<2x64xf32>
    %c0_241 = arith.constant 0 : index
    %c0_242 = arith.constant 0 : index
    %514 = vector.load %arg3[%c0_241, %c0_242] : memref<2x64xf32, #tpu.memory_space<vmem>>, vector<2x64xf32>
    %515 = arith.addf %513, %514 : vector<2x64xf32>
    %cst_243 = arith.constant dense<0xFF800000> : vector<2xf32>
    %516 = vector.multi_reduction <maximumf>, %515, %cst_243 [1] : vector<2x64xf32> to vector<2xf32>
    %517 = vector.shape_cast %516 : vector<2xf32> to vector<2x1xf32>
    %518 = vector.broadcast %517 : vector<2x1xf32> to vector<2x64xf32>
    %519 = arith.subf %515, %518 : vector<2x64xf32>
    %520 = math.exp %519 : vector<2x64xf32>
    %cst_244 = arith.constant dense<0.000000e+00> : vector<2xf32>
    %521 = vector.multi_reduction <add>, %520, %cst_244 [1] : vector<2x64xf32> to vector<2xf32>
    %522 = vector.shape_cast %521 : vector<2xf32> to vector<2x1xf32>
    %523 = tpu.reciprocal %522 {approx = true} : vector<2x1xf32> -> vector<2x1xf32>
    %524 = vector.broadcast %523 : vector<2x1xf32> to vector<2x64xf32>
    %525 = arith.mulf %520, %524 : vector<2x64xf32>
    %526 = arith.truncf %525 : vector<2x64xf32> to vector<2x64xbf16>
    %527 = tpu.concatenate %526, %526 in 1 : vector<2x64xbf16>, vector<2x64xbf16> -> vector<2x128xbf16>
    %c0_245 = arith.constant 0 : index
    %c0_246 = arith.constant 0 : index
    %528 = vector.load %arg2[%c0_245, %c0_246] : memref<2x128xbf16, #tpu.memory_space<vmem>>, vector<2x128xbf16>
    %529 = arith.mulf %527, %528 : vector<2x128xbf16>
    %c0_247 = arith.constant 0 : index
    %c0_248 = arith.constant 0 : index
    %530 = vector.load %arg1[%c0_247, %c0_248] : memref<128x32xbf16, #tpu.memory_space<vmem>>, vector<128x32xbf16>
    %cst_249 = arith.constant dense<0.000000e+00> : vector<2x32xf32>
    %531 = tpu.matmul %529, %530, %cst_249 {dimension_numbers = #tpu.dot_dimension_numbers<[1], [0], [0], [1], [0, 0, 1, 1], [], []>} : vector<2x128xbf16>, vector<128x32xbf16>, vector<2x32xf32> -> vector<2x32xf32>
    %532 = arith.truncf %531 : vector<2x32xf32> to vector<2x32xbf16>
    %c0_250 = arith.constant 0 : index
    %c0_251 = arith.constant 0 : index
    %533 = vector.load %arg9[%c0_250, %c0_251] : memref<32x128xbf16, #tpu.memory_space<vmem>>, vector<32x128xbf16>
    %cst_252 = arith.constant dense<0.000000e+00> : vector<2x128xf32>
    %534 = tpu.matmul %532, %533, %cst_252 {dimension_numbers = #tpu.dot_dimension_numbers<[1], [0], [0], [1], [0, 0, 1, 1], [], []>} : vector<2x32xbf16>, vector<32x128xbf16>, vector<2x128xf32> -> vector<2x128xf32>
    %c0_253 = arith.constant 0 : index
    %c0_254 = arith.constant 0 : index
    %535 = vector.load %arg10[%c0_253, %c0_254] : memref<1x128xf32, #tpu.memory_space<vmem>>, vector<1x128xf32>
    %536 = vector.broadcast %535 : vector<1x128xf32> to vector<2x128xf32>
    %537 = arith.addf %534, %536 : vector<2x128xf32>
    %cst_255 = arith.constant dense<0xFF800000> : vector<2xf32>
    %538 = vector.multi_reduction <maximumf>, %537, %cst_255 [1] : vector<2x128xf32> to vector<2xf32>
    %539 = vector.shape_cast %538 : vector<2xf32> to vector<2x1xf32>
    %540 = vector.broadcast %539 : vector<2x1xf32> to vector<2x128xf32>
    %541 = arith.cmpf oeq, %537, %540 : vector<2x128xf32>
    %542 = arith.extui %541 : vector<2x128xi1> to vector<2x128xi32>
    %543 = arith.sitofp %542 : vector<2x128xi32> to vector<2x128xf32>
    %544 = arith.truncf %543 : vector<2x128xf32> to vector<2x128xbf16>
    %c0_256 = arith.constant 0 : index
    %c0_257 = arith.constant 0 : index
    %545 = vector.load %arg12[%c0_256, %c0_257] : memref<2x160xbf16, #tpu.memory_space<vmem>>, vector<2x128xbf16>
    tpu.vector_store %arg12[%c0_256, %c0_257], %544 {strides = array<i32>} : memref<2x160xbf16, #tpu.memory_space<vmem>>, vector<2x128xbf16>,
    %546 = vector.broadcast %539 : vector<2x1xf32> to vector<2x128xf32>
    %547 = arith.subf %537, %546 : vector<2x128xf32>
    %548 = math.exp %547 : vector<2x128xf32>
    %cst_258 = arith.constant dense<0.000000e+00> : vector<2xf32>
    %549 = vector.multi_reduction <add>, %548, %cst_258 [1] : vector<2x128xf32> to vector<2xf32>
    %550 = vector.shape_cast %549 : vector<2xf32> to vector<2x1xf32>
    %551 = vector.broadcast %550 : vector<2x1xf32> to vector<2x128xf32>
    %552 = arith.divf %548, %551 : vector<2x128xf32>
    %c3 = arith.constant 3 : index
    %c0_259 = arith.constant 0 : index
    %c0_260 = arith.constant 0 : index
    %553 = vector.load %arg11[%c3, %c0_259, %c0_260] : memref<6x2x128xf32, #tpu.memory_space<vmem>>, vector<1x2x128xf32>
    %554 = vector.shape_cast %553 : vector<1x2x128xf32> to vector<2x128xf32>
    %555 = vector.shape_cast %552 : vector<2x128xf32> to vector<1x2x128xf32>
    tpu.vector_store %arg11[%c3, %c0_259, %c0_260], %555 {strides = array<i32>} : memref<6x2x128xf32, #tpu.memory_space<vmem>>, vector<1x2x128xf32>,
    %c0_261 = arith.constant 0 : index
    %c0_262 = arith.constant 0 : index
    %556 = vector.load %arg12[%c0_261, %c0_262] : memref<2x160xbf16, #tpu.memory_space<vmem>>, vector<2x160xbf16>
    %c0_263 = arith.constant 0 : index
    %c0_264 = arith.constant 0 : index
    %557 = vector.load %arg5[%c0_263, %c0_264] : memref<160x128xbf16, #tpu.memory_space<vmem>>, vector<160x128xbf16>
    %cst_265 = arith.constant dense<0.000000e+00> : vector<2x128xf32>
    %558 = tpu.matmul %556, %557, %cst_265 {dimension_numbers = #tpu.dot_dimension_numbers<[1], [0], [0], [1], [0, 0, 1, 1], [], []>} : vector<2x160xbf16>, vector<160x128xbf16>, vector<2x128xf32> -> vector<2x128xf32>
    %c0_266 = arith.constant 0 : index
    %c0_267 = arith.constant 0 : index
    %559 = vector.load %arg14[%c0_266, %c0_267] : memref<2x32xf32, #tpu.memory_space<vmem>>, vector<2x32xf32>
    %560 = vector.extract_strided_slice %558 {offsets = [0, 0], sizes = [2, 32], strides = [1, 1]} : vector<2x128xf32> to vector<2x32xf32>
    %561 = arith.negf %560 : vector<2x32xf32>
    %562 = math.exp %561 : vector<2x32xf32>
    %cst_268 = arith.constant 1.000000e+00 : f32
    %563 = vector.broadcast %cst_268 : f32 to vector<2x32xf32>
    %564 = arith.addf %563, %562 : vector<2x32xf32>
    %565 = arith.divf %563, %564 : vector<2x32xf32>
    %566 = vector.extract_strided_slice %558 {offsets = [0, 32], sizes = [2, 32], strides = [1, 1]} : vector<2x128xf32> to vector<2x32xf32>
    %567 = arith.negf %566 : vector<2x32xf32>
    %568 = math.exp %567 : vector<2x32xf32>
    %cst_269 = arith.constant 1.000000e+00 : f32
    %569 = vector.broadcast %cst_269 : f32 to vector<2x32xf32>
    %570 = arith.addf %569, %568 : vector<2x32xf32>
    %571 = arith.divf %569, %570 : vector<2x32xf32>
    %572 = vector.extract_strided_slice %558 {offsets = [0, 64], sizes = [2, 32], strides = [1, 1]} : vector<2x128xf32> to vector<2x32xf32>
    %573 = math.tanh %572 : vector<2x32xf32>
    %574 = vector.extract_strided_slice %558 {offsets = [0, 96], sizes = [2, 32], strides = [1, 1]} : vector<2x128xf32> to vector<2x32xf32>
    %575 = arith.negf %574 : vector<2x32xf32>
    %576 = math.exp %575 : vector<2x32xf32>
    %cst_270 = arith.constant 1.000000e+00 : f32
    %577 = vector.broadcast %cst_270 : f32 to vector<2x32xf32>
    %578 = arith.addf %577, %576 : vector<2x32xf32>
    %579 = arith.divf %577, %578 : vector<2x32xf32>
    %580 = arith.mulf %571, %559 : vector<2x32xf32>
    %581 = arith.mulf %565, %573 : vector<2x32xf32>
    %582 = arith.addf %580, %581 : vector<2x32xf32>
    %583 = math.tanh %582 : vector<2x32xf32>
    %584 = arith.mulf %579, %583 : vector<2x32xf32>
    %c0_271 = arith.constant 0 : index
    %c0_272 = arith.constant 0 : index
    %585 = vector.load %arg14[%c0_271, %c0_272] : memref<2x32xf32, #tpu.memory_space<vmem>>, vector<2x32xf32>
    tpu.vector_store %arg14[%c0_271, %c0_272], %582 {strides = array<i32>} : memref<2x32xf32, #tpu.memory_space<vmem>>, vector<2x32xf32>,
    %586 = arith.truncf %584 : vector<2x32xf32> to vector<2x32xbf16>
    %c0_273 = arith.constant 0 : index
    %c128_274 = arith.constant 128 : index
    %587 = vector.load %arg12[%c0_273, %c128_274] : memref<2x160xbf16, #tpu.memory_space<vmem>>, vector<2x32xbf16>
    tpu.vector_store %arg12[%c0_273, %c128_274], %586 {strides = array<i32>} : memref<2x160xbf16, #tpu.memory_space<vmem>>, vector<2x32xbf16>,
    %c0_275 = arith.constant 0 : index
    %c0_276 = arith.constant 0 : index
    %588 = vector.load %arg13[%c0_275, %c0_276] : memref<2x65xbf16, #tpu.memory_space<vmem>>, vector<2x32xbf16>
    tpu.vector_store %arg13[%c0_275, %c0_276], %586 {strides = array<i32>} : memref<2x65xbf16, #tpu.memory_space<vmem>>, vector<2x32xbf16>,
    %c0_277 = arith.constant 0 : index
    %c0_278 = arith.constant 0 : index
    %589 = vector.load %arg13[%c0_277, %c0_278] : memref<2x65xbf16, #tpu.memory_space<vmem>>, vector<2x65xbf16>
    %c0_279 = arith.constant 0 : index
    %c0_280 = arith.constant 0 : index
    %590 = vector.load %arg6[%c0_279, %c0_280] : memref<65x128xbf16, #tpu.memory_space<vmem>>, vector<65x128xbf16>
    %cst_281 = arith.constant dense<0.000000e+00> : vector<2x128xf32>
    %591 = tpu.matmul %589, %590, %cst_281 {dimension_numbers = #tpu.dot_dimension_numbers<[1], [0], [0], [1], [0, 0, 1, 1], [], []>} : vector<2x65xbf16>, vector<65x128xbf16>, vector<2x128xf32> -> vector<2x128xf32>
    %c0_282 = arith.constant 0 : index
    %c0_283 = arith.constant 0 : index
    %592 = vector.load %arg15[%c0_282, %c0_283] : memref<2x32xf32, #tpu.memory_space<vmem>>, vector<2x32xf32>
    %593 = vector.extract_strided_slice %591 {offsets = [0, 0], sizes = [2, 32], strides = [1, 1]} : vector<2x128xf32> to vector<2x32xf32>
    %594 = arith.negf %593 : vector<2x32xf32>
    %595 = math.exp %594 : vector<2x32xf32>
    %cst_284 = arith.constant 1.000000e+00 : f32
    %596 = vector.broadcast %cst_284 : f32 to vector<2x32xf32>
    %597 = arith.addf %596, %595 : vector<2x32xf32>
    %598 = arith.divf %596, %597 : vector<2x32xf32>
    %599 = vector.extract_strided_slice %591 {offsets = [0, 32], sizes = [2, 32], strides = [1, 1]} : vector<2x128xf32> to vector<2x32xf32>
    %600 = arith.negf %599 : vector<2x32xf32>
    %601 = math.exp %600 : vector<2x32xf32>
    %cst_285 = arith.constant 1.000000e+00 : f32
    %602 = vector.broadcast %cst_285 : f32 to vector<2x32xf32>
    %603 = arith.addf %602, %601 : vector<2x32xf32>
    %604 = arith.divf %602, %603 : vector<2x32xf32>
    %605 = vector.extract_strided_slice %591 {offsets = [0, 64], sizes = [2, 32], strides = [1, 1]} : vector<2x128xf32> to vector<2x32xf32>
    %606 = math.tanh %605 : vector<2x32xf32>
    %607 = vector.extract_strided_slice %591 {offsets = [0, 96], sizes = [2, 32], strides = [1, 1]} : vector<2x128xf32> to vector<2x32xf32>
    %608 = arith.negf %607 : vector<2x32xf32>
    %609 = math.exp %608 : vector<2x32xf32>
    %cst_286 = arith.constant 1.000000e+00 : f32
    %610 = vector.broadcast %cst_286 : f32 to vector<2x32xf32>
    %611 = arith.addf %610, %609 : vector<2x32xf32>
    %612 = arith.divf %610, %611 : vector<2x32xf32>
    %613 = arith.mulf %604, %592 : vector<2x32xf32>
    %614 = arith.mulf %598, %606 : vector<2x32xf32>
    %615 = arith.addf %613, %614 : vector<2x32xf32>
    %616 = math.tanh %615 : vector<2x32xf32>
    %617 = arith.mulf %612, %616 : vector<2x32xf32>
    %c0_287 = arith.constant 0 : index
    %c0_288 = arith.constant 0 : index
    %618 = vector.load %arg15[%c0_287, %c0_288] : memref<2x32xf32, #tpu.memory_space<vmem>>, vector<2x32xf32>
    tpu.vector_store %arg15[%c0_287, %c0_288], %615 {strides = array<i32>} : memref<2x32xf32, #tpu.memory_space<vmem>>, vector<2x32xf32>,
    %619 = arith.truncf %617 : vector<2x32xf32> to vector<2x32xbf16>
    %c0_289 = arith.constant 0 : index
    %c32_290 = arith.constant 32 : index
    %620 = vector.load %arg13[%c0_289, %c32_290] : memref<2x65xbf16, #tpu.memory_space<vmem>>, vector<2x32xbf16>
    tpu.vector_store %arg13[%c0_289, %c32_290], %619 {strides = array<i32>} : memref<2x65xbf16, #tpu.memory_space<vmem>>, vector<2x32xbf16>,
    %c0_291 = arith.constant 0 : index
    %c0_292 = arith.constant 0 : index
    %621 = vector.load %arg7[%c0_291, %c0_292] : memref<32x16xbf16, #tpu.memory_space<vmem>>, vector<32x16xbf16>
    %cst_293 = arith.constant dense<0.000000e+00> : vector<2x16xf32>
    %622 = tpu.matmul %619, %621, %cst_293 {dimension_numbers = #tpu.dot_dimension_numbers<[1], [0], [0], [1], [0, 0, 1, 1], [], []>} : vector<2x32xbf16>, vector<32x16xbf16>, vector<2x16xf32> -> vector<2x16xf32>
    %c0_294 = arith.constant 0 : index
    %c0_295 = arith.constant 0 : index
    %c0_296 = arith.constant 0 : index
    %623 = vector.load %arg0[%c0_294, %c0_295, %c0_296] : memref<2x64x16xbf16, #tpu.memory_space<vmem>>, vector<2x64x16xbf16>
    %624 = arith.extf %623 : vector<2x64x16xbf16> to vector<2x64x16xf32>
    %625 = vector.shape_cast %622 : vector<2x16xf32> to vector<2x1x16xf32>
    %626 = vector.broadcast %625 : vector<2x1x16xf32> to vector<2x64x16xf32>
    %627 = arith.addf %624, %626 : vector<2x64x16xf32>
    %628 = math.tanh %627 : vector<2x64x16xf32>
    %c0_297 = arith.constant 0 : index
    %c0_298 = arith.constant 0 : index
    %629 = vector.load %arg8[%c0_297, %c0_298] : memref<1x16xf32, #tpu.memory_space<vmem>>, vector<1x16xf32>
    %630 = vector.shape_cast %629 : vector<1x16xf32> to vector<1x1x16xf32>
    %631 = vector.broadcast %630 : vector<1x1x16xf32> to vector<2x64x16xf32>
    %632 = arith.mulf %628, %631 : vector<2x64x16xf32>
    %cst_299 = arith.constant dense<0.000000e+00> : vector<2x64xf32>
    %633 = vector.multi_reduction <add>, %632, %cst_299 [2] : vector<2x64x16xf32> to vector<2x64xf32>
    %c0_300 = arith.constant 0 : index
    %c0_301 = arith.constant 0 : index
    %634 = vector.load %arg3[%c0_300, %c0_301] : memref<2x64xf32, #tpu.memory_space<vmem>>, vector<2x64xf32>
    %635 = arith.addf %633, %634 : vector<2x64xf32>
    %cst_302 = arith.constant dense<0xFF800000> : vector<2xf32>
    %636 = vector.multi_reduction <maximumf>, %635, %cst_302 [1] : vector<2x64xf32> to vector<2xf32>
    %637 = vector.shape_cast %636 : vector<2xf32> to vector<2x1xf32>
    %638 = vector.broadcast %637 : vector<2x1xf32> to vector<2x64xf32>
    %639 = arith.subf %635, %638 : vector<2x64xf32>
    %640 = math.exp %639 : vector<2x64xf32>
    %cst_303 = arith.constant dense<0.000000e+00> : vector<2xf32>
    %641 = vector.multi_reduction <add>, %640, %cst_303 [1] : vector<2x64xf32> to vector<2xf32>
    %642 = vector.shape_cast %641 : vector<2xf32> to vector<2x1xf32>
    %643 = tpu.reciprocal %642 {approx = true} : vector<2x1xf32> -> vector<2x1xf32>
    %644 = vector.broadcast %643 : vector<2x1xf32> to vector<2x64xf32>
    %645 = arith.mulf %640, %644 : vector<2x64xf32>
    %646 = arith.truncf %645 : vector<2x64xf32> to vector<2x64xbf16>
    %647 = tpu.concatenate %646, %646 in 1 : vector<2x64xbf16>, vector<2x64xbf16> -> vector<2x128xbf16>
    %c0_304 = arith.constant 0 : index
    %c0_305 = arith.constant 0 : index
    %648 = vector.load %arg2[%c0_304, %c0_305] : memref<2x128xbf16, #tpu.memory_space<vmem>>, vector<2x128xbf16>
    %649 = arith.mulf %647, %648 : vector<2x128xbf16>
    %c0_306 = arith.constant 0 : index
    %c0_307 = arith.constant 0 : index
    %650 = vector.load %arg1[%c0_306, %c0_307] : memref<128x32xbf16, #tpu.memory_space<vmem>>, vector<128x32xbf16>
    %cst_308 = arith.constant dense<0.000000e+00> : vector<2x32xf32>
    %651 = tpu.matmul %649, %650, %cst_308 {dimension_numbers = #tpu.dot_dimension_numbers<[1], [0], [0], [1], [0, 0, 1, 1], [], []>} : vector<2x128xbf16>, vector<128x32xbf16>, vector<2x32xf32> -> vector<2x32xf32>
    %652 = arith.truncf %651 : vector<2x32xf32> to vector<2x32xbf16>
    %c0_309 = arith.constant 0 : index
    %c0_310 = arith.constant 0 : index
    %653 = vector.load %arg9[%c0_309, %c0_310] : memref<32x128xbf16, #tpu.memory_space<vmem>>, vector<32x128xbf16>
    %cst_311 = arith.constant dense<0.000000e+00> : vector<2x128xf32>
    %654 = tpu.matmul %652, %653, %cst_311 {dimension_numbers = #tpu.dot_dimension_numbers<[1], [0], [0], [1], [0, 0, 1, 1], [], []>} : vector<2x32xbf16>, vector<32x128xbf16>, vector<2x128xf32> -> vector<2x128xf32>
    %c0_312 = arith.constant 0 : index
    %c0_313 = arith.constant 0 : index
    %655 = vector.load %arg10[%c0_312, %c0_313] : memref<1x128xf32, #tpu.memory_space<vmem>>, vector<1x128xf32>
    %656 = vector.broadcast %655 : vector<1x128xf32> to vector<2x128xf32>
    %657 = arith.addf %654, %656 : vector<2x128xf32>
    %cst_314 = arith.constant dense<0xFF800000> : vector<2xf32>
    %658 = vector.multi_reduction <maximumf>, %657, %cst_314 [1] : vector<2x128xf32> to vector<2xf32>
    %659 = vector.shape_cast %658 : vector<2xf32> to vector<2x1xf32>
    %660 = vector.broadcast %659 : vector<2x1xf32> to vector<2x128xf32>
    %661 = arith.cmpf oeq, %657, %660 : vector<2x128xf32>
    %662 = arith.extui %661 : vector<2x128xi1> to vector<2x128xi32>
    %663 = arith.sitofp %662 : vector<2x128xi32> to vector<2x128xf32>
    %664 = arith.truncf %663 : vector<2x128xf32> to vector<2x128xbf16>
    %c0_315 = arith.constant 0 : index
    %c0_316 = arith.constant 0 : index
    %665 = vector.load %arg12[%c0_315, %c0_316] : memref<2x160xbf16, #tpu.memory_space<vmem>>, vector<2x128xbf16>
    tpu.vector_store %arg12[%c0_315, %c0_316], %664 {strides = array<i32>} : memref<2x160xbf16, #tpu.memory_space<vmem>>, vector<2x128xbf16>,
    %666 = vector.broadcast %659 : vector<2x1xf32> to vector<2x128xf32>
    %667 = arith.subf %657, %666 : vector<2x128xf32>
    %668 = math.exp %667 : vector<2x128xf32>
    %cst_317 = arith.constant dense<0.000000e+00> : vector<2xf32>
    %669 = vector.multi_reduction <add>, %668, %cst_317 [1] : vector<2x128xf32> to vector<2xf32>
    %670 = vector.shape_cast %669 : vector<2xf32> to vector<2x1xf32>
    %671 = vector.broadcast %670 : vector<2x1xf32> to vector<2x128xf32>
    %672 = arith.divf %668, %671 : vector<2x128xf32>
    %c4 = arith.constant 4 : index
    %c0_318 = arith.constant 0 : index
    %c0_319 = arith.constant 0 : index
    %673 = vector.load %arg11[%c4, %c0_318, %c0_319] : memref<6x2x128xf32, #tpu.memory_space<vmem>>, vector<1x2x128xf32>
    %674 = vector.shape_cast %673 : vector<1x2x128xf32> to vector<2x128xf32>
    %675 = vector.shape_cast %672 : vector<2x128xf32> to vector<1x2x128xf32>
    tpu.vector_store %arg11[%c4, %c0_318, %c0_319], %675 {strides = array<i32>} : memref<6x2x128xf32, #tpu.memory_space<vmem>>, vector<1x2x128xf32>,
    %c0_320 = arith.constant 0 : index
    %c0_321 = arith.constant 0 : index
    %676 = vector.load %arg12[%c0_320, %c0_321] : memref<2x160xbf16, #tpu.memory_space<vmem>>, vector<2x160xbf16>
    %c0_322 = arith.constant 0 : index
    %c0_323 = arith.constant 0 : index
    %677 = vector.load %arg5[%c0_322, %c0_323] : memref<160x128xbf16, #tpu.memory_space<vmem>>, vector<160x128xbf16>
    %cst_324 = arith.constant dense<0.000000e+00> : vector<2x128xf32>
    %678 = tpu.matmul %676, %677, %cst_324 {dimension_numbers = #tpu.dot_dimension_numbers<[1], [0], [0], [1], [0, 0, 1, 1], [], []>} : vector<2x160xbf16>, vector<160x128xbf16>, vector<2x128xf32> -> vector<2x128xf32>
    %c0_325 = arith.constant 0 : index
    %c0_326 = arith.constant 0 : index
    %679 = vector.load %arg14[%c0_325, %c0_326] : memref<2x32xf32, #tpu.memory_space<vmem>>, vector<2x32xf32>
    %680 = vector.extract_strided_slice %678 {offsets = [0, 0], sizes = [2, 32], strides = [1, 1]} : vector<2x128xf32> to vector<2x32xf32>
    %681 = arith.negf %680 : vector<2x32xf32>
    %682 = math.exp %681 : vector<2x32xf32>
    %cst_327 = arith.constant 1.000000e+00 : f32
    %683 = vector.broadcast %cst_327 : f32 to vector<2x32xf32>
    %684 = arith.addf %683, %682 : vector<2x32xf32>
    %685 = arith.divf %683, %684 : vector<2x32xf32>
    %686 = vector.extract_strided_slice %678 {offsets = [0, 32], sizes = [2, 32], strides = [1, 1]} : vector<2x128xf32> to vector<2x32xf32>
    %687 = arith.negf %686 : vector<2x32xf32>
    %688 = math.exp %687 : vector<2x32xf32>
    %cst_328 = arith.constant 1.000000e+00 : f32
    %689 = vector.broadcast %cst_328 : f32 to vector<2x32xf32>
    %690 = arith.addf %689, %688 : vector<2x32xf32>
    %691 = arith.divf %689, %690 : vector<2x32xf32>
    %692 = vector.extract_strided_slice %678 {offsets = [0, 64], sizes = [2, 32], strides = [1, 1]} : vector<2x128xf32> to vector<2x32xf32>
    %693 = math.tanh %692 : vector<2x32xf32>
    %694 = vector.extract_strided_slice %678 {offsets = [0, 96], sizes = [2, 32], strides = [1, 1]} : vector<2x128xf32> to vector<2x32xf32>
    %695 = arith.negf %694 : vector<2x32xf32>
    %696 = math.exp %695 : vector<2x32xf32>
    %cst_329 = arith.constant 1.000000e+00 : f32
    %697 = vector.broadcast %cst_329 : f32 to vector<2x32xf32>
    %698 = arith.addf %697, %696 : vector<2x32xf32>
    %699 = arith.divf %697, %698 : vector<2x32xf32>
    %700 = arith.mulf %691, %679 : vector<2x32xf32>
    %701 = arith.mulf %685, %693 : vector<2x32xf32>
    %702 = arith.addf %700, %701 : vector<2x32xf32>
    %703 = math.tanh %702 : vector<2x32xf32>
    %704 = arith.mulf %699, %703 : vector<2x32xf32>
    %c0_330 = arith.constant 0 : index
    %c0_331 = arith.constant 0 : index
    %705 = vector.load %arg14[%c0_330, %c0_331] : memref<2x32xf32, #tpu.memory_space<vmem>>, vector<2x32xf32>
    tpu.vector_store %arg14[%c0_330, %c0_331], %702 {strides = array<i32>} : memref<2x32xf32, #tpu.memory_space<vmem>>, vector<2x32xf32>,
    %706 = arith.truncf %704 : vector<2x32xf32> to vector<2x32xbf16>
    %c0_332 = arith.constant 0 : index
    %c128_333 = arith.constant 128 : index
    %707 = vector.load %arg12[%c0_332, %c128_333] : memref<2x160xbf16, #tpu.memory_space<vmem>>, vector<2x32xbf16>
    tpu.vector_store %arg12[%c0_332, %c128_333], %706 {strides = array<i32>} : memref<2x160xbf16, #tpu.memory_space<vmem>>, vector<2x32xbf16>,
    %c0_334 = arith.constant 0 : index
    %c0_335 = arith.constant 0 : index
    %708 = vector.load %arg13[%c0_334, %c0_335] : memref<2x65xbf16, #tpu.memory_space<vmem>>, vector<2x32xbf16>
    tpu.vector_store %arg13[%c0_334, %c0_335], %706 {strides = array<i32>} : memref<2x65xbf16, #tpu.memory_space<vmem>>, vector<2x32xbf16>,
    %c0_336 = arith.constant 0 : index
    %c0_337 = arith.constant 0 : index
    %709 = vector.load %arg13[%c0_336, %c0_337] : memref<2x65xbf16, #tpu.memory_space<vmem>>, vector<2x65xbf16>
    %c0_338 = arith.constant 0 : index
    %c0_339 = arith.constant 0 : index
    %710 = vector.load %arg6[%c0_338, %c0_339] : memref<65x128xbf16, #tpu.memory_space<vmem>>, vector<65x128xbf16>
    %cst_340 = arith.constant dense<0.000000e+00> : vector<2x128xf32>
    %711 = tpu.matmul %709, %710, %cst_340 {dimension_numbers = #tpu.dot_dimension_numbers<[1], [0], [0], [1], [0, 0, 1, 1], [], []>} : vector<2x65xbf16>, vector<65x128xbf16>, vector<2x128xf32> -> vector<2x128xf32>
    %c0_341 = arith.constant 0 : index
    %c0_342 = arith.constant 0 : index
    %712 = vector.load %arg15[%c0_341, %c0_342] : memref<2x32xf32, #tpu.memory_space<vmem>>, vector<2x32xf32>
    %713 = vector.extract_strided_slice %711 {offsets = [0, 0], sizes = [2, 32], strides = [1, 1]} : vector<2x128xf32> to vector<2x32xf32>
    %714 = arith.negf %713 : vector<2x32xf32>
    %715 = math.exp %714 : vector<2x32xf32>
    %cst_343 = arith.constant 1.000000e+00 : f32
    %716 = vector.broadcast %cst_343 : f32 to vector<2x32xf32>
    %717 = arith.addf %716, %715 : vector<2x32xf32>
    %718 = arith.divf %716, %717 : vector<2x32xf32>
    %719 = vector.extract_strided_slice %711 {offsets = [0, 32], sizes = [2, 32], strides = [1, 1]} : vector<2x128xf32> to vector<2x32xf32>
    %720 = arith.negf %719 : vector<2x32xf32>
    %721 = math.exp %720 : vector<2x32xf32>
    %cst_344 = arith.constant 1.000000e+00 : f32
    %722 = vector.broadcast %cst_344 : f32 to vector<2x32xf32>
    %723 = arith.addf %722, %721 : vector<2x32xf32>
    %724 = arith.divf %722, %723 : vector<2x32xf32>
    %725 = vector.extract_strided_slice %711 {offsets = [0, 64], sizes = [2, 32], strides = [1, 1]} : vector<2x128xf32> to vector<2x32xf32>
    %726 = math.tanh %725 : vector<2x32xf32>
    %727 = vector.extract_strided_slice %711 {offsets = [0, 96], sizes = [2, 32], strides = [1, 1]} : vector<2x128xf32> to vector<2x32xf32>
    %728 = arith.negf %727 : vector<2x32xf32>
    %729 = math.exp %728 : vector<2x32xf32>
    %cst_345 = arith.constant 1.000000e+00 : f32
    %730 = vector.broadcast %cst_345 : f32 to vector<2x32xf32>
    %731 = arith.addf %730, %729 : vector<2x32xf32>
    %732 = arith.divf %730, %731 : vector<2x32xf32>
    %733 = arith.mulf %724, %712 : vector<2x32xf32>
    %734 = arith.mulf %718, %726 : vector<2x32xf32>
    %735 = arith.addf %733, %734 : vector<2x32xf32>
    %736 = math.tanh %735 : vector<2x32xf32>
    %737 = arith.mulf %732, %736 : vector<2x32xf32>
    %c0_346 = arith.constant 0 : index
    %c0_347 = arith.constant 0 : index
    %738 = vector.load %arg15[%c0_346, %c0_347] : memref<2x32xf32, #tpu.memory_space<vmem>>, vector<2x32xf32>
    tpu.vector_store %arg15[%c0_346, %c0_347], %735 {strides = array<i32>} : memref<2x32xf32, #tpu.memory_space<vmem>>, vector<2x32xf32>,
    %739 = arith.truncf %737 : vector<2x32xf32> to vector<2x32xbf16>
    %c0_348 = arith.constant 0 : index
    %c32_349 = arith.constant 32 : index
    %740 = vector.load %arg13[%c0_348, %c32_349] : memref<2x65xbf16, #tpu.memory_space<vmem>>, vector<2x32xbf16>
    tpu.vector_store %arg13[%c0_348, %c32_349], %739 {strides = array<i32>} : memref<2x65xbf16, #tpu.memory_space<vmem>>, vector<2x32xbf16>,
    %c0_350 = arith.constant 0 : index
    %c0_351 = arith.constant 0 : index
    %741 = vector.load %arg7[%c0_350, %c0_351] : memref<32x16xbf16, #tpu.memory_space<vmem>>, vector<32x16xbf16>
    %cst_352 = arith.constant dense<0.000000e+00> : vector<2x16xf32>
    %742 = tpu.matmul %739, %741, %cst_352 {dimension_numbers = #tpu.dot_dimension_numbers<[1], [0], [0], [1], [0, 0, 1, 1], [], []>} : vector<2x32xbf16>, vector<32x16xbf16>, vector<2x16xf32> -> vector<2x16xf32>
    %c0_353 = arith.constant 0 : index
    %c0_354 = arith.constant 0 : index
    %c0_355 = arith.constant 0 : index
    %743 = vector.load %arg0[%c0_353, %c0_354, %c0_355] : memref<2x64x16xbf16, #tpu.memory_space<vmem>>, vector<2x64x16xbf16>
    %744 = arith.extf %743 : vector<2x64x16xbf16> to vector<2x64x16xf32>
    %745 = vector.shape_cast %742 : vector<2x16xf32> to vector<2x1x16xf32>
    %746 = vector.broadcast %745 : vector<2x1x16xf32> to vector<2x64x16xf32>
    %747 = arith.addf %744, %746 : vector<2x64x16xf32>
    %748 = math.tanh %747 : vector<2x64x16xf32>
    %c0_356 = arith.constant 0 : index
    %c0_357 = arith.constant 0 : index
    %749 = vector.load %arg8[%c0_356, %c0_357] : memref<1x16xf32, #tpu.memory_space<vmem>>, vector<1x16xf32>
    %750 = vector.shape_cast %749 : vector<1x16xf32> to vector<1x1x16xf32>
    %751 = vector.broadcast %750 : vector<1x1x16xf32> to vector<2x64x16xf32>
    %752 = arith.mulf %748, %751 : vector<2x64x16xf32>
    %cst_358 = arith.constant dense<0.000000e+00> : vector<2x64xf32>
    %753 = vector.multi_reduction <add>, %752, %cst_358 [2] : vector<2x64x16xf32> to vector<2x64xf32>
    %c0_359 = arith.constant 0 : index
    %c0_360 = arith.constant 0 : index
    %754 = vector.load %arg3[%c0_359, %c0_360] : memref<2x64xf32, #tpu.memory_space<vmem>>, vector<2x64xf32>
    %755 = arith.addf %753, %754 : vector<2x64xf32>
    %cst_361 = arith.constant dense<0xFF800000> : vector<2xf32>
    %756 = vector.multi_reduction <maximumf>, %755, %cst_361 [1] : vector<2x64xf32> to vector<2xf32>
    %757 = vector.shape_cast %756 : vector<2xf32> to vector<2x1xf32>
    %758 = vector.broadcast %757 : vector<2x1xf32> to vector<2x64xf32>
    %759 = arith.subf %755, %758 : vector<2x64xf32>
    %760 = math.exp %759 : vector<2x64xf32>
    %cst_362 = arith.constant dense<0.000000e+00> : vector<2xf32>
    %761 = vector.multi_reduction <add>, %760, %cst_362 [1] : vector<2x64xf32> to vector<2xf32>
    %762 = vector.shape_cast %761 : vector<2xf32> to vector<2x1xf32>
    %763 = tpu.reciprocal %762 {approx = true} : vector<2x1xf32> -> vector<2x1xf32>
    %764 = vector.broadcast %763 : vector<2x1xf32> to vector<2x64xf32>
    %765 = arith.mulf %760, %764 : vector<2x64xf32>
    %766 = arith.truncf %765 : vector<2x64xf32> to vector<2x64xbf16>
    %767 = tpu.concatenate %766, %766 in 1 : vector<2x64xbf16>, vector<2x64xbf16> -> vector<2x128xbf16>
    %c0_363 = arith.constant 0 : index
    %c0_364 = arith.constant 0 : index
    %768 = vector.load %arg2[%c0_363, %c0_364] : memref<2x128xbf16, #tpu.memory_space<vmem>>, vector<2x128xbf16>
    %769 = arith.mulf %767, %768 : vector<2x128xbf16>
    %c0_365 = arith.constant 0 : index
    %c0_366 = arith.constant 0 : index
    %770 = vector.load %arg1[%c0_365, %c0_366] : memref<128x32xbf16, #tpu.memory_space<vmem>>, vector<128x32xbf16>
    %cst_367 = arith.constant dense<0.000000e+00> : vector<2x32xf32>
    %771 = tpu.matmul %769, %770, %cst_367 {dimension_numbers = #tpu.dot_dimension_numbers<[1], [0], [0], [1], [0, 0, 1, 1], [], []>} : vector<2x128xbf16>, vector<128x32xbf16>, vector<2x32xf32> -> vector<2x32xf32>
    %772 = arith.truncf %771 : vector<2x32xf32> to vector<2x32xbf16>
    %c0_368 = arith.constant 0 : index
    %c0_369 = arith.constant 0 : index
    %773 = vector.load %arg9[%c0_368, %c0_369] : memref<32x128xbf16, #tpu.memory_space<vmem>>, vector<32x128xbf16>
    %cst_370 = arith.constant dense<0.000000e+00> : vector<2x128xf32>
    %774 = tpu.matmul %772, %773, %cst_370 {dimension_numbers = #tpu.dot_dimension_numbers<[1], [0], [0], [1], [0, 0, 1, 1], [], []>} : vector<2x32xbf16>, vector<32x128xbf16>, vector<2x128xf32> -> vector<2x128xf32>
    %c0_371 = arith.constant 0 : index
    %c0_372 = arith.constant 0 : index
    %775 = vector.load %arg10[%c0_371, %c0_372] : memref<1x128xf32, #tpu.memory_space<vmem>>, vector<1x128xf32>
    %776 = vector.broadcast %775 : vector<1x128xf32> to vector<2x128xf32>
    %777 = arith.addf %774, %776 : vector<2x128xf32>
    %cst_373 = arith.constant dense<0xFF800000> : vector<2xf32>
    %778 = vector.multi_reduction <maximumf>, %777, %cst_373 [1] : vector<2x128xf32> to vector<2xf32>
    %779 = vector.shape_cast %778 : vector<2xf32> to vector<2x1xf32>
    %780 = vector.broadcast %779 : vector<2x1xf32> to vector<2x128xf32>
    %781 = arith.cmpf oeq, %777, %780 : vector<2x128xf32>
    %782 = arith.extui %781 : vector<2x128xi1> to vector<2x128xi32>
    %783 = arith.sitofp %782 : vector<2x128xi32> to vector<2x128xf32>
    %784 = arith.truncf %783 : vector<2x128xf32> to vector<2x128xbf16>
    %c0_374 = arith.constant 0 : index
    %c0_375 = arith.constant 0 : index
    %785 = vector.load %arg12[%c0_374, %c0_375] : memref<2x160xbf16, #tpu.memory_space<vmem>>, vector<2x128xbf16>
    tpu.vector_store %arg12[%c0_374, %c0_375], %784 {strides = array<i32>} : memref<2x160xbf16, #tpu.memory_space<vmem>>, vector<2x128xbf16>,
    %786 = vector.broadcast %779 : vector<2x1xf32> to vector<2x128xf32>
    %787 = arith.subf %777, %786 : vector<2x128xf32>
    %788 = math.exp %787 : vector<2x128xf32>
    %cst_376 = arith.constant dense<0.000000e+00> : vector<2xf32>
    %789 = vector.multi_reduction <add>, %788, %cst_376 [1] : vector<2x128xf32> to vector<2xf32>
    %790 = vector.shape_cast %789 : vector<2xf32> to vector<2x1xf32>
    %791 = vector.broadcast %790 : vector<2x1xf32> to vector<2x128xf32>
    %792 = arith.divf %788, %791 : vector<2x128xf32>
    %c5 = arith.constant 5 : index
    %c0_377 = arith.constant 0 : index
    %c0_378 = arith.constant 0 : index
    %793 = vector.load %arg11[%c5, %c0_377, %c0_378] : memref<6x2x128xf32, #tpu.memory_space<vmem>>, vector<1x2x128xf32>
    %794 = vector.shape_cast %793 : vector<1x2x128xf32> to vector<2x128xf32>
    %795 = vector.shape_cast %792 : vector<2x128xf32> to vector<1x2x128xf32>
    tpu.vector_store %arg11[%c5, %c0_377, %c0_378], %795 {strides = array<i32>} : memref<6x2x128xf32, #tpu.memory_space<vmem>>, vector<1x2x128xf32>,
    return
  }
}

</mosaic_0001>

<llo_original>
// kernel: tpu_custom_call.1
$region0: #{tpu_custom_call.1}
  #allocation0 [shape = 'u32[]', space=smem, size = 0x4, offset = 0x4, fixed_abs, tag = 'smem constant byte address 0x4 - core index']
  #allocation1 [shape = 'u32[144,128]{1,0:T(1,128)}', space=vmem, size = 0x12000, scoped, tag = 'internal scratch']
  #allocation2 [shape = 'bf16[2,160]{1,0:T(2,128)(2,1)}', space=vmem, size = 0x400, scoped, tag = 'scratch operand']
  #allocation3 [shape = 'bf16[2,65]{1,0:T(2,128)(2,1)}', space=vmem, size = 0x200, scoped, tag = 'scratch operand']
  #allocation4 [shape = 'f32[2,32]{1,0:T(2,128)}', space=vmem, size = 0x400, scoped, tag = 'scratch operand']
  #allocation5 [shape = 'f32[2,32]{1,0:T(2,128)}', space=vmem, size = 0x400, scoped, tag = 'scratch operand']
  %s0 = inlined_call_operand.vmem [shape: bf16[2,64,16], index: 0, kind: input, shape index: {}]
  %s1 = inlined_call_operand.vmem [shape: bf16[128,32], index: 1, kind: input, shape index: {}]
  %s2 = inlined_call_operand.vmem [shape: bf16[2,128], index: 2, kind: input, shape index: {}]
  %s3 = inlined_call_operand.vmem [shape: f32[2,64], index: 3, kind: input, shape index: {}]
  %s4 = inlined_call_operand.vmem [shape: f32[2,128], index: 4, kind: input, shape index: {}]
  %s5 = inlined_call_operand.vmem [shape: bf16[160,128], index: 5, kind: input, shape index: {}]
  %s6 = inlined_call_operand.vmem [shape: bf16[65,128], index: 6, kind: input, shape index: {}]
  %s7 = inlined_call_operand.vmem [shape: bf16[32,16], index: 7, kind: input, shape index: {}]
  %s8 = inlined_call_operand.vmem [shape: f32[1,16], index: 8, kind: input, shape index: {}]
  %s9 = inlined_call_operand.vmem [shape: bf16[32,128], index: 9, kind: input, shape index: {}]
  %s10 = inlined_call_operand.vmem [shape: f32[1,128], index: 10, kind: input, shape index: {}]
  %s11 = inlined_call_operand.hbm [shape: f32[6,2,128], index: 11, kind: output, shape index: {}]
  %s12 = sld [smem:[#allocation0]]
  $region54: #{tpu_custom_call.1} parent=0
    _
  %s14 = ssub.s32 1, %s12
  %s15 = scalar_select 0, %s14, %s12
  $region1: #{tpu_custom_call.1} parent=0
    #allocation6 [shape = 'u8[6144]{0}', space=vmem, size = 0x1800, scoped, tag = 'output window, operand 0, single buffered']
    #allocation7 [shape = 's32[1]{0}', space=sflag, size = 0x4, scoped, tag = 'scoped memory for tpu_custom_call.1']
    %16 = vsyncpa [#allocation7], 0
    // Predicated region
    $region2: #{tpu_custom_call.1} parent=1 // pred_check
      _
    $region3: #{tpu_custom_call.1} parent=1 // pred_check_branch
      %18 = sbr.rel (0) target = $region5
    $region4: #{tpu_custom_call.1} parent=1 // pred_region
      _
    $region5: #{tpu_custom_call.1} parent=1 // pred_fallthru
      _
    // Predicated region
    $region6: #{tpu_custom_call.1} parent=1 // pred_check
      _
    $region7: #{tpu_custom_call.1} parent=1 // pred_check_branch
      %20 = sbr.rel (0) target = $region9
    $region8: #{tpu_custom_call.1} parent=1 // pred_region
      _
    $region9: #{tpu_custom_call.1} parent=1 // pred_fallthru
      _
    // Predicated region
    $region10: #{tpu_custom_call.1} parent=1 // pred_check
      _
    $region11: #{tpu_custom_call.1} parent=1 // pred_check_branch
      %22 = sbr.rel (0) target = $region13
    $region12: #{tpu_custom_call.1} parent=1 // pred_region
      _
    $region13: #{tpu_custom_call.1} parent=1 // pred_fallthru
      _
    // Predicated region
    $region14: #{tpu_custom_call.1} parent=1 // pred_check
      _
    $region15: #{tpu_custom_call.1} parent=1 // pred_check_branch
      %24 = sbr.rel (0) target = $region17
    $region16: #{tpu_custom_call.1} parent=1 // pred_region
      _
    $region17: #{tpu_custom_call.1} parent=1 // pred_fallthru
      _
    // Predicated region
    $region18: #{tpu_custom_call.1} parent=1 // pred_check
      _
    $region19: #{tpu_custom_call.1} parent=1 // pred_check_branch
      %26 = sbr.rel (0) target = $region21
    $region20: #{tpu_custom_call.1} parent=1 // pred_region
      _
    $region21: #{tpu_custom_call.1} parent=1 // pred_fallthru
      _
    // Predicated region
    $region22: #{tpu_custom_call.1} parent=1 // pred_check
      _
    $region23: #{tpu_custom_call.1} parent=1 // pred_check_branch
      %28 = sbr.rel (0) target = $region25
    $region24: #{tpu_custom_call.1} parent=1 // pred_region
      _
    $region25: #{tpu_custom_call.1} parent=1 // pred_fallthru
      _
    // Predicated region
    $region26: #{tpu_custom_call.1} parent=1 // pred_check
      _
    $region27: #{tpu_custom_call.1} parent=1 // pred_check_branch
      %30 = sbr.rel (0) target = $region29
    $region28: #{tpu_custom_call.1} parent=1 // pred_region
      _
    $region29: #{tpu_custom_call.1} parent=1 // pred_fallthru
      _
    // Predicated region
    $region30: #{tpu_custom_call.1} parent=1 // pred_check
      _
    $region31: #{tpu_custom_call.1} parent=1 // pred_check_branch
      %32 = sbr.rel (0) target = $region33
    $region32: #{tpu_custom_call.1} parent=1 // pred_region
      _
    $region33: #{tpu_custom_call.1} parent=1 // pred_fallthru
      _
    // Predicated region
    $region34: #{tpu_custom_call.1} parent=1 // pred_check
      _
    $region35: #{tpu_custom_call.1} parent=1 // pred_check_branch
      %34 = sbr.rel (0) target = $region37
    $region36: #{tpu_custom_call.1} parent=1 // pred_region
      _
    $region37: #{tpu_custom_call.1} parent=1 // pred_fallthru
      _
    // Predicated region
    $region38: #{tpu_custom_call.1} parent=1 // pred_check
      _
    $region39: #{tpu_custom_call.1} parent=1 // pred_check_branch
      %36 = sbr.rel (0) target = $region41
    $region40: #{tpu_custom_call.1} parent=1 // pred_region
      _
    $region41: #{tpu_custom_call.1} parent=1 // pred_fallthru
      _
    // Predicated region
    $region42: #{tpu_custom_call.1} parent=1 // pred_check
      _
    $region43: #{tpu_custom_call.1} parent=1 // pred_check_branch
      %38 = sbr.rel (0) target = $region45
    $region44: #{tpu_custom_call.1} parent=1 // pred_region
      _
    $region45: #{tpu_custom_call.1} parent=1 // pred_fallthru
      _
    %v40 = vlaneseq
    %v41 = vand.u32 %v40, 127
    %vm42 = vcmp.eq.s32.totalorder %v41, 64
    %v43 = vsel %vm42, 1, 0
    %v44 = vcvt.s32.f32 %v43
    %v45 = vpack.c.bf16 %v44, %v44
    %vm46 = vcmask 524288
    %47 = vst.msk [vmem:[#allocation3] sm:$0x1] %vm46, %v45
    %v48 = vld [vmem:[%s4] sm:$0x3]
    %v49 = vxor.u32 %v48, 2147483648
    %v50 = vmul.f32 %v49, 1.442695
    %v51 = vpow.pop %v50
    %v52 = vadd.f32 %v51, 1.0
    %v53 = vrcp.pop %v52
    %v54 = vmul.f32 1.0, %v53
    %v55 = vtanh.pop %v48
    %v56 = vmul.f32 %v54, 0.0
    %58 = vrot.lane.b32.xlu0 %v55, 64
    %v59 = vpop.permute.xlu0 %58
    %v61 = vmul.f32 %v54, %v59
    %63 = vrot.lane.b32.xlu0 %v61, 32
    %v64 = vpop.permute.xlu0 %63
    %v66 = vadd.f32 %v56, %v64
    %v67 = vtanh.pop %v66
    %69 = vrot.lane.b32.xlu0 %v67, 64
    %v70 = vpop.permute.xlu0 %69
    %v72 = vmul.f32 %v54, %v70
    %v73 = vpack.c.bf16 %v72, %v72
    %v76 = vunpack.c.l.s4 1966171168
    %v77 = vunpack.c.0.s8 %v76
    %v78 = vlaneseq
    %v79 = vshrl.u32 %v78, 7
    %v80 = vsub.s32 %v77, %v79
    %v81 = vrot.slane %v73, %v80
    %v83 = vunpack.c.l.s4 1966171168
    %v84 = vunpack.c.0.s8 %v83
    %v85 = vlaneseq
    %v86 = vshrl.u32 %v85, 7
    %v87 = vsub.s32 %v84, %v86
    %v88 = vrot.slane %v81, %v87
    %89 = vrot.lane.b32.xlu0 %v88, 32
    %v90 = vpop.permute.xlu0 %89
    %vm92 = vcmask 253952
    %93 = vst.msk [vmem:[#allocation3] sm:$0x1] %vm92, %v90
    %v94 = vld [vmem:[#allocation3] sm:$0x1]
    %v95 = vld [vmem:[%s6] sm:$0xf]
    %v96 = vld [vmem:[%s6 + $0x4] sm:$0xf]
    %v97 = vld [vmem:[%s6 + $0x8] sm:$0xf]
    %v98 = vld [vmem:[%s6 + $0xc] sm:$0xf]
    %v99 = vld [vmem:[%s6 + $0x10] sm:$0xf]
    %v100 = vld [vmem:[%s6 + $0x14] sm:$0xf]
    %v101 = vld [vmem:[%s6 + $0x18] sm:$0xf]
    %v102 = vld [vmem:[%s6 + $0x1c] sm:$0xf]
    %v103 = vld [vmem:[%s6 + $0x20] sm:$0x1]
    %v113 = vunpack.c.l.b16 %v95
    %v114 = vunpack.c.l.b16 %v96
    %v115 = vunpack.c.l.b16 %v97
    %v116 = vunpack.c.l.b16 %v98
    %v117 = vunpack.c.l.b16 %v99
    %v118 = vunpack.c.l.b16 %v100
    %v119 = vunpack.c.l.b16 %v101
    %v120 = vunpack.c.l.b16 %v102
    %v121 = vunpack.c.l.b16 %v103
    %v122 = vpack.c.b16 %v114, %v113
    %v123 = vpack.c.b16 %v116, %v115
    %v124 = vpack.c.b16 %v118, %v117
    %v125 = vpack.c.b16 %v120, %v119
    %v126 = vpack.c.b16 %v121, %v121
    %vm131 = vcmask 531456
    %v133 = vsel %vm131, %v94, 0
    %vm135 = vcmask 1040384
    %v136 = vsel 0, 4294967295, 65535
    %v137 = vsel %vm135, %v136, 0
    %v139 = vand.u32 %v126, %v137
    %141 = vmatprep.subr.bf16.mxu0 0
    %142 = vmatpush1.bf16.msra.mxu0 %v122
    %143 = vmatprep.subr.bf16.mxu0 0
    %144 = vmatpush1.bf16.msra.mxu0 %v123
    %145 = vmatprep.subr.bf16.mxu0 0
    %146 = vmatpush1.bf16.msra.mxu0 %v124
    %147 = vmatprep.subr.bf16.mxu0 0
    %148 = vmatpush1.bf16.msra.mxu0 %v125
    %149 = vmatprep.subr.bf16.mxu0 0
    %150 = vmatpush1.bf16.msra.mxu0 %v139
    %151 = vmatprep.subr.bf16.mxu0 0
    %152 = vmatpush1.bf16.msra.mxu0 0
    %153 = vmatprep.subr.bf16.mxu0 0
    %154 = vmatpush1.bf16.msra.mxu0 0
    %155 = vmatprep.subr.bf16.mxu0 0
    %156 = vmatpush1.bf16.msra.mxu0 0
    %157 = vmatprep.subr.bf16.mxu0 0
    %158 = vmatpush1.bf16.msra.mxu0 0
    %159 = vmatprep.subr.bf16.mxu0 0
    %160 = vmatpush1.bf16.msra.mxu0 0
    %161 = vmatprep.subr.bf16.mxu0 0
    %162 = vmatpush1.bf16.msra.mxu0 0
    %163 = vmatprep.subr.bf16.mxu0 0
    %164 = vmatpush1.bf16.msra.mxu0 0
    %165 = vmatprep.subr.bf16.mxu0 0
    %166 = vmatpush1.bf16.msra.mxu0 0
    %167 = vmatprep.subr.bf16.mxu0 0
    %168 = vmatpush1.bf16.msra.mxu0 0
    %169 = vmatprep.subr.bf16.mxu0 0
    %170 = vmatpush1.bf16.msra.mxu0 0
    %171 = vmatprep.subr.bf16.mxu0 0
    %172 = vmatpush1.bf16.msra.mxu0 0
    %173 = vmatprep.mubr.bf16.mxu0 0
    %174 = vmatmul.mubr.bf16.gmra.mrb[0].mxu0 %v133
    %v175 = vpop.f32.mrb[0].mxu0
    %v176 = vadd.f32 0.0, %v175
    %v177 = vpop.f32.mrb[0].mxu0
    %v178 = vpop.f32.mrb[0].mxu0
    %v179 = vpop.f32.mrb[0].mxu0
    %180 = vdwg.mxu0
    %v181 = vxor.u32 %v176, 2147483648
    %v182 = vmul.f32 %v181, 1.442695
    %v183 = vpow.pop %v182
    %v184 = vadd.f32 %v183, 1.0
    %v185 = vrcp.pop %v184
    %v186 = vmul.f32 1.0, %v185
    %v187 = vtanh.pop %v176
    %v188 = vmul.f32 %v186, 0.0
    %190 = vrot.lane.b32.xlu0 %v187, 64
    %v191 = vpop.permute.xlu0 %190
    %v193 = vmul.f32 %v186, %v191
    %195 = vrot.lane.b32.xlu0 %v193, 32
    %v196 = vpop.permute.xlu0 %195
    %v198 = vadd.f32 %v188, %v196
    %v199 = vtanh.pop %v198
    %201 = vrot.lane.b32.xlu0 %v199, 64
    %v202 = vpop.permute.xlu0 %201
    %v204 = vmul.f32 %v186, %v202
    %v205 = vpack.c.bf16 %v204, %v204
    %v208 = vunpack.c.l.s4 1966171168
    %v209 = vunpack.c.0.s8 %v208
    %v210 = vlaneseq
    %v211 = vshrl.u32 %v210, 7
    %v212 = vsub.s32 %v209, %v211
    %v213 = vrot.slane %v205, %v212
    %v215 = vunpack.c.l.s4 1966171168
    %v216 = vunpack.c.0.s8 %v215
    %v217 = vlaneseq
    %v218 = vshrl.u32 %v217, 7
    %v219 = vsub.s32 %v216, %v218
    %v220 = vrot.slane %v213, %v219
    %221 = vrot.lane.b32.xlu0 %v220, 64
    %v222 = vpop.permute.xlu0 %221
    %vm224 = vcmask 516352
    %225 = vst.msk [vmem:[#allocation3] sm:$0x1] %vm224, %v222
    %227 = vrot.lane.b32.xlu0 %v66, 96
    %v228 = vpop.permute.xlu0 %227
    %vm230 = vcmask 254976
    %231 = vst.msk [vmem:[#allocation4] sm:$0x3] %vm230, %v228
    %233 = vrot.lane.b32.xlu0 %v198, 96
    %v234 = vpop.permute.xlu0 %233
    %236 = vst.msk [vmem:[#allocation5] sm:$0x3] %vm230, %v234
    %vm237 = vcmp.eq.s32.totalorder %v41, 0
    %v238 = vsel %vm237, 1, 0
    %v239 = vcvt.s32.f32 %v238
    %v240 = vpack.c.bf16 %v239, %v239
    %241 = vst [vmem:[#allocation2] sm:$0x1] %v240
    %242 = vst.msk [vmem:[#allocation2 + $0x1] sm:$0x1] %vm92, %v90
    %v243 = vld [vmem:[#allocation2] sm:$0x3]
    %v244 = vld [vmem:[%s5] sm:$0xf]
    %v245 = vld [vmem:[%s5 + $0x4] sm:$0xf]
    %v246 = vld [vmem:[%s5 + $0x8] sm:$0xf]
    %v247 = vld [vmem:[%s5 + $0xc] sm:$0xf]
    %v248 = vld [vmem:[%s5 + $0x10] sm:$0xf]
    %v249 = vld [vmem:[%s5 + $0x14] sm:$0xf]
    %v250 = vld [vmem:[%s5 + $0x18] sm:$0xf]
    %v251 = vld [vmem:[%s5 + $0x1c] sm:$0xf]
    %v252 = vld [vmem:[%s5 + $0x20] sm:$0xf]
    %v253 = vld [vmem:[%s5 + $0x24] sm:$0xf]
    %v254 = vld [vmem:[%s5 + $0x28] sm:$0xf]
    %v255 = vld [vmem:[%s5 + $0x2c] sm:$0xf]
    %v256 = vld [vmem:[%s5 + $0x30] sm:$0xf]
    %v257 = vld [vmem:[%s5 + $0x34] sm:$0xf]
    %v258 = vld [vmem:[%s5 + $0x38] sm:$0xf]
    %v259 = vld [vmem:[%s5 + $0x3c] sm:$0xf]
    %v260 = vld [vmem:[%s5 + $0x40] sm:$0xf]
    %v261 = vld [vmem:[%s5 + $0x44] sm:$0xf]
    %v262 = vld [vmem:[%s5 + $0x48] sm:$0xf]
    %v263 = vld [vmem:[%s5 + $0x4c] sm:$0xf]
    %v266 = vunpack.c.l.s4 1966171168
    %v267 = vunpack.c.0.s8 %v266
    %v268 = vlaneseq
    %v269 = vshrl.u32 %v268, 7
    %v270 = vsub.s32 %v267, %v269
    %v271 = vrot.slane %v243, %v270
    %v272 = vcombine.high %v271, %v271
    %v274 = vunpack.c.l.s4 1966171168
    %v275 = vunpack.c.0.s8 %v274
    %v276 = vlaneseq
    %v277 = vshrl.u32 %v276, 7
    %v278 = vsub.s32 %v275, %v277
    %v279 = vrot.slane %v271, %v278
    %v281 = vunpack.c.l.s4 1966171168
    %v282 = vunpack.c.0.s8 %v281
    %v283 = vlaneseq
    %v284 = vshrl.u32 %v283, 7
    %v285 = vsub.s32 %v282, %v284
    %v286 = vrot.slane %v272, %v285
    %v308 = vunpack.c.l.b16 %v244
    %v309 = vunpack.c.l.b16 %v245
    %v310 = vunpack.c.l.b16 %v246
    %v311 = vunpack.c.l.b16 %v247
    %v312 = vunpack.c.l.b16 %v248
    %v313 = vunpack.c.l.b16 %v249
    %v314 = vunpack.c.l.b16 %v250
    %v315 = vunpack.c.l.b16 %v251
    %v316 = vunpack.c.l.b16 %v252
    %v317 = vunpack.c.l.b16 %v253
    %v318 = vunpack.c.l.b16 %v254
    %v319 = vunpack.c.l.b16 %v255
    %v320 = vunpack.c.l.b16 %v256
    %v321 = vunpack.c.l.b16 %v257
    %v322 = vunpack.c.l.b16 %v258
    %v323 = vunpack.c.l.b16 %v259
    %v324 = vunpack.c.l.b16 %v260
    %v325 = vunpack.c.l.b16 %v261
    %v326 = vunpack.c.l.b16 %v262
    %v327 = vunpack.c.l.b16 %v263
    %v328 = vpack.c.b16 %v309, %v308
    %v329 = vpack.c.b16 %v311, %v310
    %v330 = vpack.c.b16 %v313, %v312
    %v331 = vpack.c.b16 %v315, %v314
    %v332 = vpack.c.b16 %v317, %v316
    %v333 = vpack.c.b16 %v319, %v318
    %v334 = vpack.c.b16 %v321, %v320
    %v335 = vpack.c.b16 %v323, %v322
    %v336 = vpack.c.b16 %v325, %v324
    %v337 = vpack.c.b16 %v327, %v326
    %vm348 = vcmask 261120
    %v350 = vsel %vm348, %v286, 0
    %352 = vmatprep.subr.bf16.mxu0 0
    %353 = vmatpush1.bf16.msra.mxu0 %v328
    %354 = vmatprep.subr.bf16.mxu0 0
    %355 = vmatpush1.bf16.msra.mxu0 %v329
    %356 = vmatprep.subr.bf16.mxu0 0
    %357 = vmatpush1.bf16.msra.mxu0 %v330
    %358 = vmatprep.subr.bf16.mxu0 0
    %359 = vmatpush1.bf16.msra.mxu0 %v331
    %360 = vmatprep.subr.bf16.mxu0 0
    %361 = vmatpush1.bf16.msra.mxu0 %v332
    %362 = vmatprep.subr.bf16.mxu0 0
    %363 = vmatpush1.bf16.msra.mxu0 %v333
    %364 = vmatprep.subr.bf16.mxu0 0
    %365 = vmatpush1.bf16.msra.mxu0 %v334
    %366 = vmatprep.subr.bf16.mxu0 0
    %367 = vmatpush1.bf16.msra.mxu0 %v335
    %368 = vmatprep.subr.bf16.mxu0 0
    %369 = vmatpush1.bf16.msra.mxu0 %v336
    %370 = vmatprep.subr.bf16.mxu0 0
    %371 = vmatpush1.bf16.msra.mxu0 %v337
    %372 = vmatprep.subr.bf16.mxu0 0
    %373 = vmatpush1.bf16.msra.mxu0 0
    %374 = vmatprep.subr.bf16.mxu0 0
    %375 = vmatpush1.bf16.msra.mxu0 0
    %376 = vmatprep.subr.bf16.mxu0 0
    %377 = vmatpush1.bf16.msra.mxu0 0
    %378 = vmatprep.subr.bf16.mxu0 0
    %379 = vmatpush1.bf16.msra.mxu0 0
    %380 = vmatprep.subr.bf16.mxu0 0
    %381 = vmatpush1.bf16.msra.mxu0 0
    %382 = vmatprep.subr.bf16.mxu0 0
    %383 = vmatpush1.bf16.msra.mxu0 0
    %384 = vmatprep.mubr.bf16.mxu0 %v350
    %385 = vmatmul.mubr.bf16.gmra.mrb[0].mxu0 %v279
    %v386 = vpop.f32.mrb[0].mxu0
    %v387 = vadd.f32 0.0, %v386
    %v388 = vpop.f32.mrb[0].mxu0
    %v389 = vpop.f32.mrb[0].mxu0
    %v390 = vpop.f32.mrb[0].mxu0
    %391 = vdwg.mxu0
    %v392 = vld [vmem:[#allocation4] sm:$0x3]
    %v393 = vxor.u32 %v387, 2147483648
    %v394 = vmul.f32 %v393, 1.442695
    %v395 = vpow.pop %v394
    %v396 = vadd.f32 %v395, 1.0
    %v397 = vrcp.pop %v396
    %v398 = vmul.f32 1.0, %v397
    %v399 = vtanh.pop %v387
    %401 = vrot.lane.b32.xlu0 %v392, 32
    %v402 = vpop.permute.xlu0 %401
    %v404 = vmul.f32 %v398, %v402
    %406 = vrot.lane.b32.xlu0 %v399, 64
    %v407 = vpop.permute.xlu0 %406
    %v409 = vmul.f32 %v398, %v407
    %411 = vrot.lane.b32.xlu0 %v409, 32
    %v412 = vpop.permute.xlu0 %411
    %v414 = vadd.f32 %v404, %v412
    %v415 = vtanh.pop %v414
    %417 = vrot.lane.b32.xlu0 %v415, 64
    %v418 = vpop.permute.xlu0 %417
    %v420 = vmul.f32 %v398, %v418
    %422 = vrot.lane.b32.xlu0 %v414, 96
    %v423 = vpop.permute.xlu0 %422
    %425 = vst.msk [vmem:[#allocation4] sm:$0x3] %vm230, %v423
    %v426 = vpack.c.bf16 %v420, %v420
    %v429 = vunpack.c.l.s4 1966171168
    %v430 = vunpack.c.0.s8 %v429
    %v431 = vlaneseq
    %v432 = vshrl.u32 %v431, 7
    %v433 = vsub.s32 %v430, %v432
    %v434 = vrot.slane %v426, %v433
    %v436 = vunpack.c.l.s4 1966171168
    %v437 = vunpack.c.0.s8 %v436
    %v438 = vlaneseq
    %v439 = vshrl.u32 %v438, 7
    %v440 = vsub.s32 %v437, %v439
    %v441 = vrot.slane %v434, %v440
    %442 = vrot.lane.b32.xlu0 %v441, 32
    %v443 = vpop.permute.xlu0 %442
    %445 = vst.msk [vmem:[#allocation2 + $0x1] sm:$0x1] %vm92, %v443
    %446 = vst.msk [vmem:[#allocation3] sm:$0x1] %vm92, %v443
    %v447 = vld [vmem:[#allocation3] sm:$0x1]
    %v448 = vld [vmem:[%s6] sm:$0xf]
    %v449 = vld [vmem:[%s6 + $0x4] sm:$0xf]
    %v450 = vld [vmem:[%s6 + $0x8] sm:$0xf]
    %v451 = vld [vmem:[%s6 + $0xc] sm:$0xf]
    %v452 = vld [vmem:[%s6 + $0x10] sm:$0xf]
    %v453 = vld [vmem:[%s6 + $0x14] sm:$0xf]
    %v454 = vld [vmem:[%s6 + $0x18] sm:$0xf]
    %v455 = vld [vmem:[%s6 + $0x1c] sm:$0xf]
    %v456 = vld [vmem:[%s6 + $0x20] sm:$0x1]
    %v466 = vunpack.c.l.b16 %v448
    %v467 = vunpack.c.l.b16 %v449
    %v468 = vunpack.c.l.b16 %v450
    %v469 = vunpack.c.l.b16 %v451
    %v470 = vunpack.c.l.b16 %v452
    %v471 = vunpack.c.l.b16 %v453
    %v472 = vunpack.c.l.b16 %v454
    %v473 = vunpack.c.l.b16 %v455
    %v474 = vunpack.c.l.b16 %v456
    %v475 = vpack.c.b16 %v467, %v466
    %v476 = vpack.c.b16 %v469, %v468
    %v477 = vpack.c.b16 %v471, %v470
    %v478 = vpack.c.b16 %v473, %v472
    %v479 = vpack.c.b16 %v474, %v474
    %v485 = vsel %vm131, %v447, 0
    %v488 = vand.u32 %v479, %v137
    %490 = vmatprep.subr.bf16.mxu0 0
    %491 = vmatpush1.bf16.msra.mxu0 %v475
    %492 = vmatprep.subr.bf16.mxu0 0
    %493 = vmatpush1.bf16.msra.mxu0 %v476
    %494 = vmatprep.subr.bf16.mxu0 0
    %495 = vmatpush1.bf16.msra.mxu0 %v477
    %496 = vmatprep.subr.bf16.mxu0 0
    %497 = vmatpush1.bf16.msra.mxu0 %v478
    %498 = vmatprep.subr.bf16.mxu0 0
    %499 = vmatpush1.bf16.msra.mxu0 %v488
    %500 = vmatprep.subr.bf16.mxu0 0
    %501 = vmatpush1.bf16.msra.mxu0 0
    %502 = vmatprep.subr.bf16.mxu0 0
    %503 = vmatpush1.bf16.msra.mxu0 0
    %504 = vmatprep.subr.bf16.mxu0 0
    %505 = vmatpush1.bf16.msra.mxu0 0
    %506 = vmatprep.subr.bf16.mxu0 0
    %507 = vmatpush1.bf16.msra.mxu0 0
    %508 = vmatprep.subr.bf16.mxu0 0
    %509 = vmatpush1.bf16.msra.mxu0 0
    %510 = vmatprep.subr.bf16.mxu0 0
    %511 = vmatpush1.bf16.msra.mxu0 0
    %512 = vmatprep.subr.bf16.mxu0 0
    %513 = vmatpush1.bf16.msra.mxu0 0
    %514 = vmatprep.subr.bf16.mxu0 0
    %515 = vmatpush1.bf16.msra.mxu0 0
    %516 = vmatprep.subr.bf16.mxu0 0
    %517 = vmatpush1.bf16.msra.mxu0 0
    %518 = vmatprep.subr.bf16.mxu0 0
    %519 = vmatpush1.bf16.msra.mxu0 0
    %520 = vmatprep.subr.bf16.mxu0 0
    %521 = vmatpush1.bf16.msra.mxu0 0
    %522 = vmatprep.mubr.bf16.mxu0 0
    %523 = vmatmul.mubr.bf16.gmra.mrb[0].mxu0 %v485
    %v524 = vpop.f32.mrb[0].mxu0
    %v525 = vadd.f32 0.0, %v524
    %v526 = vpop.f32.mrb[0].mxu0
    %v527 = vpop.f32.mrb[0].mxu0
    %v528 = vpop.f32.mrb[0].mxu0
    %529 = vdwg.mxu0
    %v530 = vld [vmem:[#allocation5] sm:$0x3]
    %v531 = vxor.u32 %v525, 2147483648
    %v532 = vmul.f32 %v531, 1.442695
    %v533 = vpow.pop %v532
    %v534 = vadd.f32 %v533, 1.0
    %v535 = vrcp.pop %v534
    %v536 = vmul.f32 1.0, %v535
    %v537 = vtanh.pop %v525
    %539 = vrot.lane.b32.xlu0 %v530, 32
    %v540 = vpop.permute.xlu0 %539
    %v542 = vmul.f32 %v536, %v540
    %544 = vrot.lane.b32.xlu0 %v537, 64
    %v545 = vpop.permute.xlu0 %544
    %v547 = vmul.f32 %v536, %v545
    %549 = vrot.lane.b32.xlu0 %v547, 32
    %v550 = vpop.permute.xlu0 %549
    %v552 = vadd.f32 %v542, %v550
    %v553 = vtanh.pop %v552
    %555 = vrot.lane.b32.xlu0 %v553, 64
    %v556 = vpop.permute.xlu0 %555
    %v558 = vmul.f32 %v536, %v556
    %560 = vrot.lane.b32.xlu0 %v552, 96
    %v561 = vpop.permute.xlu0 %560
    %563 = vst.msk [vmem:[#allocation5] sm:$0x3] %vm230, %v561
    %v564 = vpack.c.bf16 %v558, %v558
    %v567 = vunpack.c.l.s4 1966171168
    %v568 = vunpack.c.0.s8 %v567
    %v569 = vlaneseq
    %v570 = vshrl.u32 %v569, 7
    %v571 = vsub.s32 %v568, %v570
    %v572 = vrot.slane %v564, %v571
    %v574 = vunpack.c.l.s4 1966171168
    %v575 = vunpack.c.0.s8 %v574
    %v576 = vlaneseq
    %v577 = vshrl.u32 %v576, 7
    %v578 = vsub.s32 %v575, %v577
    %v579 = vrot.slane %v572, %v578
    %580 = vrot.lane.b32.xlu0 %v579, 64
    %v581 = vpop.permute.xlu0 %580
    %583 = vst.msk [vmem:[#allocation3] sm:$0x1] %vm224, %v581
    %v584 = vld [vmem:[%s7] sm:$0xf]
    %v585 = vld [vmem:[%s7 + $0x4] sm:$0xf]
    %v586 = vld [vmem:[%s7 + $0x8] sm:$0xf]
    %v587 = vld [vmem:[%s7 + $0xc] sm:$0xf]
    %588 = vrot.lane.b32.xlu0 %v564, 32
    %v589 = vpop.permute.xlu0 %588
    %v594 = vunpack.c.l.b16 %v584
    %v595 = vunpack.c.l.b16 %v585
    %v596 = vunpack.c.l.b16 %v586
    %v597 = vunpack.c.l.b16 %v587
    %v598 = vpack.c.b16 %v595, %v594
    %v599 = vpack.c.b16 %v597, %v596
    %v603 = vsel %vm348, %v589, 0
    %605 = vmatprep.subr.bf16.mxu0 0
    %606 = vmatpush1.bf16.msra.mxu0 %v598
    %607 = vmatprep.subr.bf16.mxu0 0
    %608 = vmatpush1.bf16.msra.mxu0 %v599
    %609 = vmatprep.subr.bf16.mxu0 0
    %610 = vmatpush1.bf16.msra.mxu0 0
    %611 = vmatprep.subr.bf16.mxu0 0
    %612 = vmatpush1.bf16.msra.mxu0 0
    %613 = vmatprep.subr.bf16.mxu0 0
    %614 = vmatpush1.bf16.msra.mxu0 0
    %615 = vmatprep.subr.bf16.mxu0 0
    %616 = vmatpush1.bf16.msra.mxu0 0
    %617 = vmatprep.subr.bf16.mxu0 0
    %618 = vmatpush1.bf16.msra.mxu0 0
    %619 = vmatprep.subr.bf16.mxu0 0
    %620 = vmatpush1.bf16.msra.mxu0 0
    %621 = vmatprep.subr.bf16.mxu0 0
    %622 = vmatpush1.bf16.msra.mxu0 0
    %623 = vmatprep.subr.bf16.mxu0 0
    %624 = vmatpush1.bf16.msra.mxu0 0
    %625 = vmatprep.subr.bf16.mxu0 0
    %626 = vmatpush1.bf16.msra.mxu0 0
    %627 = vmatprep.subr.bf16.mxu0 0
    %628 = vmatpush1.bf16.msra.mxu0 0
    %629 = vmatprep.subr.bf16.mxu0 0
    %630 = vmatpush1.bf16.msra.mxu0 0
    %631 = vmatprep.subr.bf16.mxu0 0
    %632 = vmatpush1.bf16.msra.mxu0 0
    %633 = vmatprep.subr.bf16.mxu0 0
    %634 = vmatpush1.bf16.msra.mxu0 0
    %635 = vmatprep.subr.bf16.mxu0 0
    %636 = vmatpush1.bf16.msra.mxu0 0
    %637 = vmatprep.mubr.bf16.mxu0 0
    %638 = vmatmul.mubr.bf16.gmra.mrb[0].mxu0 %v603
    %v639 = vpop.f32.mrb[0].mxu0
    %v640 = vadd.f32 0.0, %v639
    %v641 = vpop.f32.mrb[0].mxu0
    %v642 = vpop.f32.mrb[0].mxu0
    %v643 = vpop.f32.mrb[0].mxu0
    %644 = vdwg.mxu0
    %v645 = vld [vmem:[%s0] sm:$0xf]
    %v646 = vld [vmem:[%s0 + $0x4] sm:$0xf]
    %v647 = vld [vmem:[%s0 + $0x8] sm:$0xf]
    %v648 = vld [vmem:[%s0 + $0xc] sm:$0xf]
    %v649 = vld [vmem:[%s0 + $0x10] sm:$0xf]
    %v650 = vld [vmem:[%s0 + $0x14] sm:$0xf]
    %v651 = vld [vmem:[%s0 + $0x18] sm:$0xf]
    %v652 = vld [vmem:[%s0 + $0x1c] sm:$0xf]
    %v653 = vld [vmem:[%s0 + $0x20] sm:$0xf]
    %v654 = vld [vmem:[%s0 + $0x24] sm:$0xf]
    %v655 = vld [vmem:[%s0 + $0x28] sm:$0xf]
    %v656 = vld [vmem:[%s0 + $0x2c] sm:$0xf]
    %v657 = vld [vmem:[%s0 + $0x30] sm:$0xf]
    %v658 = vld [vmem:[%s0 + $0x34] sm:$0xf]
    %v659 = vld [vmem:[%s0 + $0x38] sm:$0xf]
    %v660 = vld [vmem:[%s0 + $0x3c] sm:$0xf]
    %v661 = vunpack.c.l.bf16 %v645
    %v662 = vunpack.c.l.bf16 %v646
    %v663 = vunpack.c.l.bf16 %v647
    %v664 = vunpack.c.l.bf16 %v648
    %v665 = vunpack.c.l.bf16 %v649
    %v666 = vunpack.c.l.bf16 %v650
    %v667 = vunpack.c.l.bf16 %v651
    %v668 = vunpack.c.l.bf16 %v652
    %v669 = vunpack.c.l.bf16 %v653
    %v670 = vunpack.c.l.bf16 %v654
    %v671 = vunpack.c.l.bf16 %v655
    %v672 = vunpack.c.l.bf16 %v656
    %v673 = vunpack.c.l.bf16 %v657
    %v674 = vunpack.c.l.bf16 %v658
    %v675 = vunpack.c.l.bf16 %v659
    %v676 = vunpack.c.l.bf16 %v660
    %v679 = vunpack.c.l.s4 1966171168
    %v680 = vunpack.c.0.s8 %v679
    %v681 = vlaneseq
    %v682 = vshrl.u32 %v681, 7
    %v683 = vsub.s32 %v680, %v682
    %v684 = vrot.slane %v640, %v683
    %v685 = vcombine.high %v684, %v684
    %v687 = vunpack.c.l.s4 1966171168
    %v688 = vunpack.c.0.s8 %v687
    %v689 = vlaneseq
    %v690 = vshrl.u32 %v689, 7
    %v691 = vsub.s32 %v688, %v690
    %v692 = vrot.slane %v684, %v691
    %v694 = vunpack.c.l.s4 1966171168
    %v695 = vunpack.c.0.s8 %v694
    %v696 = vlaneseq
    %v697 = vshrl.u32 %v696, 7
    %v698 = vsub.s32 %v695, %v697
    %v699 = vrot.slane %v685, %v698
    %v700 = vlaneseq
    %v701 = vshrl.u32 %v700, 7
    %v702 = vsub.s32 0, %v701
    %v703 = vrot.slane %v692, %v702
    %v704 = vlaneseq
    %v705 = vshrl.u32 %v704, 7
    %v706 = vsub.s32 0, %v705
    %v707 = vrot.slane %v699, %v706
    %v710 = vadd.f32 %v661, %v703
    %v711 = vadd.f32 %v662, %v703
    %v712 = vadd.f32 %v663, %v703
    %v713 = vadd.f32 %v664, %v703
    %v714 = vadd.f32 %v665, %v703
    %v715 = vadd.f32 %v666, %v703
    %v716 = vadd.f32 %v667, %v703
    %v717 = vadd.f32 %v668, %v703
    %v718 = vadd.f32 %v669, %v707
    %v719 = vadd.f32 %v670, %v707
    %v720 = vadd.f32 %v671, %v707
    %v721 = vadd.f32 %v672, %v707
    %v722 = vadd.f32 %v673, %v707
    %v723 = vadd.f32 %v674, %v707
    %v724 = vadd.f32 %v675, %v707
    %v725 = vadd.f32 %v676, %v707
    %v726 = vtanh.pop %v710
    %v727 = vtanh.pop %v711
    %v728 = vtanh.pop %v712
    %v729 = vtanh.pop %v713
    %v730 = vtanh.pop %v714
    %v731 = vtanh.pop %v715
    %v732 = vtanh.pop %v716
    %v733 = vtanh.pop %v717
    %v734 = vtanh.pop %v718
    %v735 = vtanh.pop %v719
    %v736 = vtanh.pop %v720
    %v737 = vtanh.pop %v721
    %v738 = vtanh.pop %v722
    %v739 = vtanh.pop %v723
    %v740 = vtanh.pop %v724
    %v741 = vtanh.pop %v725
    %v742 = vld [vmem:[%s8] sm:$0x1]
    %v744 = vlaneseq
    %v745 = vshrl.u32 %v744, 7
    %v746 = vsub.s32 0, %v745
    %v747 = vrot.slane %v742, %v746
    %v749 = vmul.f32 %v726, %v747
    %v750 = vmul.f32 %v727, %v747
    %v751 = vmul.f32 %v728, %v747
    %v752 = vmul.f32 %v729, %v747
    %v753 = vmul.f32 %v730, %v747
    %v754 = vmul.f32 %v731, %v747
    %v755 = vmul.f32 %v732, %v747
    %v756 = vmul.f32 %v733, %v747
    %v757 = vmul.f32 %v734, %v747
    %v758 = vmul.f32 %v735, %v747
    %v759 = vmul.f32 %v736, %v747
    %v760 = vmul.f32 %v737, %v747
    %v761 = vmul.f32 %v738, %v747
    %v762 = vmul.f32 %v739, %v747
    %v763 = vmul.f32 %v740, %v747
    %v764 = vmul.f32 %v741, %v747
    %vm765 = vcmask 130048
    %v766 = vsel %vm765, %v749, 0.0
    %767 = vadd.xlane.f32.xlu0 %v766
    %v768 = vpop.xlane.xlu0 %767
    %v769 = vsel %vm765, %v750, 0.0
    %770 = vadd.xlane.f32.xlu0 %v769
    %v771 = vpop.xlane.xlu0 %770
    %v772 = vsel %vm765, %v751, 0.0
    %773 = vadd.xlane.f32.xlu0 %v772
    %v774 = vpop.xlane.xlu0 %773
    %v775 = vsel %vm765, %v752, 0.0
    %776 = vadd.xlane.f32.xlu0 %v775
    %v777 = vpop.xlane.xlu0 %776
    %v778 = vsel %vm765, %v753, 0.0
    %779 = vadd.xlane.f32.xlu0 %v778
    %v780 = vpop.xlane.xlu0 %779
    %v781 = vsel %vm765, %v754, 0.0
    %782 = vadd.xlane.f32.xlu0 %v781
    %v783 = vpop.xlane.xlu0 %782
    %v784 = vsel %vm765, %v755, 0.0
    %785 = vadd.xlane.f32.xlu0 %v784
    %v786 = vpop.xlane.xlu0 %785
    %v787 = vsel %vm765, %v756, 0.0
    %788 = vadd.xlane.f32.xlu0 %v787
    %v789 = vpop.xlane.xlu0 %788
    %v790 = vsel %vm765, %v757, 0.0
    %791 = vadd.xlane.f32.xlu0 %v790
    %v792 = vpop.xlane.xlu0 %791
    %v793 = vsel %vm765, %v758, 0.0
    %794 = vadd.xlane.f32.xlu0 %v793
    %v795 = vpop.xlane.xlu0 %794
    %v796 = vsel %vm765, %v759, 0.0
    %797 = vadd.xlane.f32.xlu0 %v796
    %v798 = vpop.xlane.xlu0 %797
    %v799 = vsel %vm765, %v760, 0.0
    %800 = vadd.xlane.f32.xlu0 %v799
    %v801 = vpop.xlane.xlu0 %800
    %v802 = vsel %vm765, %v761, 0.0
    %803 = vadd.xlane.f32.xlu0 %v802
    %v804 = vpop.xlane.xlu0 %803
    %v805 = vsel %vm765, %v762, 0.0
    %806 = vadd.xlane.f32.xlu0 %v805
    %v807 = vpop.xlane.xlu0 %806
    %v808 = vsel %vm765, %v763, 0.0
    %809 = vadd.xlane.f32.xlu0 %v808
    %v810 = vpop.xlane.xlu0 %809
    %v811 = vsel %vm765, %v764, 0.0
    %812 = vadd.xlane.f32.xlu0 %v811
    %v813 = vpop.xlane.xlu0 %812
    %v814 = vld [vmem:[%s3] sm:$0x3]
    %v816 = vlaneseq
    %v817 = vshrl.u32 %v816, 7
    %v818 = vsub.s32 0, %v817
    %v819 = vrot.slane %v814, %v818
    %821 = vbcast.lane.b32.xlu0 %v819, 256
    %v822 = vpop.permute.xlu0 %821
    %s824 = sor.u32 256, 8
    %825 = vbcast.lane.b32.xlu0 %v819, %s824
    %v826 = vpop.permute.xlu0 %825
    %s828 = sor.u32 256, 16
    %829 = vbcast.lane.b32.xlu0 %v819, %s828
    %v830 = vpop.permute.xlu0 %829
    %s832 = sor.u32 256, 24
    %833 = vbcast.lane.b32.xlu0 %v819, %s832
    %v834 = vpop.permute.xlu0 %833
    %s836 = sor.u32 256, 32
    %837 = vbcast.lane.b32.xlu0 %v819, %s836
    %v838 = vpop.permute.xlu0 %837
    %s840 = sor.u32 256, 40
    %841 = vbcast.lane.b32.xlu0 %v819, %s840
    %v842 = vpop.permute.xlu0 %841
    %s844 = sor.u32 256, 48
    %845 = vbcast.lane.b32.xlu0 %v819, %s844
    %v846 = vpop.permute.xlu0 %845
    %s848 = sor.u32 256, 56
    %849 = vbcast.lane.b32.xlu0 %v819, %s848
    %v850 = vpop.permute.xlu0 %849
    %v851 = vlaneseq
    %v852 = vshrl.u32 %v851, 7
    %v853 = vsub.s32 1, %v852
    %v854 = vrot.slane %v814, %v853
    %856 = vbcast.lane.b32.xlu0 %v854, 256
    %v857 = vpop.permute.xlu0 %856
    %s859 = sor.u32 256, 8
    %860 = vbcast.lane.b32.xlu0 %v854, %s859
    %v861 = vpop.permute.xlu0 %860
    %s863 = sor.u32 256, 16
    %864 = vbcast.lane.b32.xlu0 %v854, %s863
    %v865 = vpop.permute.xlu0 %864
    %s867 = sor.u32 256, 24
    %868 = vbcast.lane.b32.xlu0 %v854, %s867
    %v869 = vpop.permute.xlu0 %868
    %s871 = sor.u32 256, 32
    %872 = vbcast.lane.b32.xlu0 %v854, %s871
    %v873 = vpop.permute.xlu0 %872
    %s875 = sor.u32 256, 40
    %876 = vbcast.lane.b32.xlu0 %v854, %s875
    %v877 = vpop.permute.xlu0 %876
    %s879 = sor.u32 256, 48
    %880 = vbcast.lane.b32.xlu0 %v854, %s879
    %v881 = vpop.permute.xlu0 %880
    %s883 = sor.u32 256, 56
    %884 = vbcast.lane.b32.xlu0 %v854, %s883
    %v885 = vpop.permute.xlu0 %884
    %v902 = vadd.f32 %v768, %v822
    %v903 = vadd.f32 %v771, %v826
    %v904 = vadd.f32 %v774, %v830
    %v905 = vadd.f32 %v777, %v834
    %v906 = vadd.f32 %v780, %v838
    %v907 = vadd.f32 %v783, %v842
    %v908 = vadd.f32 %v786, %v846
    %v909 = vadd.f32 %v789, %v850
    %v910 = vadd.f32 %v792, %v857
    %v911 = vadd.f32 %v795, %v861
    %v912 = vadd.f32 %v798, %v865
    %v913 = vadd.f32 %v801, %v869
    %v914 = vadd.f32 %v804, %v873
    %v915 = vadd.f32 %v807, %v877
    %v916 = vadd.f32 %v810, %v881
    %v917 = vadd.f32 %v813, %v885
    %934 = vset.pattern.permute.xlu0 0
    %935 = vperm.xlu0 %934, %v902
    %v936 = vpop.permute.xlu0 %935
    %937 = vset.pattern.permute.xlu0 0
    %938 = vperm.xlu0 %937, %v903
    %v939 = vpop.permute.xlu0 %938
    %940 = vset.pattern.permute.xlu0 0
    %941 = vperm.xlu0 %940, %v904
    %v942 = vpop.permute.xlu0 %941
    %943 = vset.pattern.permute.xlu0 0
    %944 = vperm.xlu0 %943, %v905
    %v945 = vpop.permute.xlu0 %944
    %946 = vset.pattern.permute.xlu0 0
    %947 = vperm.xlu0 %946, %v906
    %v948 = vpop.permute.xlu0 %947
    %949 = vset.pattern.permute.xlu0 0
    %950 = vperm.xlu0 %949, %v907
    %v951 = vpop.permute.xlu0 %950
    %952 = vset.pattern.permute.xlu0 0
    %953 = vperm.xlu0 %952, %v908
    %v954 = vpop.permute.xlu0 %953
    %955 = vset.pattern.permute.xlu0 0
    %956 = vperm.xlu0 %955, %v909
    %v957 = vpop.permute.xlu0 %956
    %958 = vset.pattern.permute.xlu0 0
    %959 = vperm.xlu0 %958, %v910
    %v960 = vpop.permute.xlu0 %959
    %961 = vset.pattern.permute.xlu0 0
    %962 = vperm.xlu0 %961, %v911
    %v963 = vpop.permute.xlu0 %962
    %964 = vset.pattern.permute.xlu0 0
    %965 = vperm.xlu0 %964, %v912
    %v966 = vpop.permute.xlu0 %965
    %967 = vset.pattern.permute.xlu0 0
    %968 = vperm.xlu0 %967, %v913
    %v969 = vpop.permute.xlu0 %968
    %970 = vset.pattern.permute.xlu0 0
    %971 = vperm.xlu0 %970, %v914
    %v972 = vpop.permute.xlu0 %971
    %973 = vset.pattern.permute.xlu0 0
    %974 = vperm.xlu0 %973, %v915
    %v975 = vpop.permute.xlu0 %974
    %976 = vset.pattern.permute.xlu0 0
    %977 = vperm.xlu0 %976, %v916
    %v978 = vpop.permute.xlu0 %977
    %979 = vset.pattern.permute.xlu0 0
    %980 = vperm.xlu0 %979, %v917
    %v981 = vpop.permute.xlu0 %980
    %v982 = vlaneseq
    %v983 = vshrl.u32 %v982, 7
    %v984 = vsub.s32 %v41, %v983
    %v985 = vrot.slane %v936, %v984
    %v986 = vadd.s32 %v41, 4294967288
    %v987 = vlaneseq
    %v988 = vshrl.u32 %v987, 7
    %v989 = vsub.s32 %v986, %v988
    %v990 = vrot.slane %v939, %v989
    %vm991 = vcmask 130112
    %v992 = vsel %vm991, %v990, %v985
    %v993 = vadd.s32 %v41, 4294967280
    %v994 = vlaneseq
    %v995 = vshrl.u32 %v994, 7
    %v996 = vsub.s32 %v993, %v995
    %v997 = vrot.slane %v942, %v996
    %vm998 = vcmask 195712
    %v999 = vsel %vm998, %v997, %v992
    %v1000 = vadd.s32 %v41, 4294967272
    %v1001 = vlaneseq
    %v1002 = vshrl.u32 %v1001, 7
    %v1003 = vsub.s32 %v1000, %v1002
    %v1004 = vrot.slane %v945, %v1003
    %vm1005 = vcmask 261312
    %v1006 = vsel %vm1005, %v1004, %v999
    %v1007 = vadd.s32 %v41, 4294967264
    %v1008 = vlaneseq
    %v1009 = vshrl.u32 %v1008, 7
    %v1010 = vsub.s32 %v1007, %v1009
    %v1011 = vrot.slane %v948, %v1010
    %vm1012 = vcmask 326912
    %v1013 = vsel %vm1012, %v1011, %v1006
    %v1014 = vadd.s32 %v41, 4294967256
    %v1015 = vlaneseq
    %v1016 = vshrl.u32 %v1015, 7
    %v1017 = vsub.s32 %v1014, %v1016
    %v1018 = vrot.slane %v951, %v1017
    %vm1019 = vcmask 392512
    %v1020 = vsel %vm1019, %v1018, %v1013
    %v1021 = vadd.s32 %v41, 4294967248
    %v1022 = vlaneseq
    %v1023 = vshrl.u32 %v1022, 7
    %v1024 = vsub.s32 %v1021, %v1023
    %v1025 = vrot.slane %v954, %v1024
    %vm1026 = vcmask 458112
    %v1027 = vsel %vm1026, %v1025, %v1020
    %v1028 = vadd.s32 %v41, 4294967240
    %v1029 = vlaneseq
    %v1030 = vshrl.u32 %v1029, 7
    %v1031 = vsub.s32 %v1028, %v1030
    %v1032 = vrot.slane %v957, %v1031
    %vm1033 = vcmask 523712
    %v1034 = vsel %vm1033, %v1032, %v1027
    %v1035 = vlaneseq
    %v1036 = vshrl.u32 %v1035, 7
    %v1037 = vsub.s32 %v41, %v1036
    %v1038 = vrot.slane %v960, %v1037
    %v1039 = vlaneseq
    %v1040 = vshrl.u32 %v1039, 7
    %v1041 = vsub.s32 %v986, %v1040
    %v1042 = vrot.slane %v963, %v1041
    %v1043 = vsel %vm991, %v1042, %v1038
    %v1044 = vlaneseq
    %v1045 = vshrl.u32 %v1044, 7
    %v1046 = vsub.s32 %v993, %v1045
    %v1047 = vrot.slane %v966, %v1046
    %v1048 = vsel %vm998, %v1047, %v1043
    %v1049 = vlaneseq
    %v1050 = vshrl.u32 %v1049, 7
    %v1051 = vsub.s32 %v1000, %v1050
    %v1052 = vrot.slane %v969, %v1051
    %v1053 = vsel %vm1005, %v1052, %v1048
    %v1054 = vlaneseq
    %v1055 = vshrl.u32 %v1054, 7
    %v1056 = vsub.s32 %v1007, %v1055
    %v1057 = vrot.slane %v972, %v1056
    %v1058 = vsel %vm1012, %v1057, %v1053
    %v1059 = vlaneseq
    %v1060 = vshrl.u32 %v1059, 7
    %v1061 = vsub.s32 %v1014, %v1060
    %v1062 = vrot.slane %v975, %v1061
    %v1063 = vsel %vm1019, %v1062, %v1058
    %v1064 = vlaneseq
    %v1065 = vshrl.u32 %v1064, 7
    %v1066 = vsub.s32 %v1021, %v1065
    %v1067 = vrot.slane %v978, %v1066
    %v1068 = vsel %vm1026, %v1067, %v1063
    %v1069 = vlaneseq
    %v1070 = vshrl.u32 %v1069, 7
    %v1071 = vsub.s32 %v1028, %v1070
    %v1072 = vrot.slane %v981, %v1071
    %v1073 = vsel %vm1033, %v1072, %v1068
    %vm1074 = vcmask 1041409
    %v1075 = vsel %vm1074, %v1073, %v1034
    %vm1077 = vcmask 517120
    %v1078 = vsel %vm1077, %v1075, -inf
    %1079 = vmax.xlane.f32.xlu0 %v1078
    %v1080 = vpop.xlane.xlu0 %1079
    %v1082 = vlaneseq
    %v1083 = vshrl.u32 %v1082, 7
    %v1084 = vsub.s32 0, %v1083
    %v1085 = vrot.slane %v1080, %v1084
    %v1086 = vlaneseq
    %v1087 = vshrl.u32 %v1086, 7
    %v1088 = vsub.s32 1, %v1087
    %v1089 = vrot.slane %v1080, %v1088
    %v1092 = vsub.f32 %v902, %v1085
    %v1093 = vsub.f32 %v903, %v1085
    %v1094 = vsub.f32 %v904, %v1085
    %v1095 = vsub.f32 %v905, %v1085
    %v1096 = vsub.f32 %v906, %v1085
    %v1097 = vsub.f32 %v907, %v1085
    %v1098 = vsub.f32 %v908, %v1085
    %v1099 = vsub.f32 %v909, %v1085
    %v1100 = vsub.f32 %v910, %v1089
    %v1101 = vsub.f32 %v911, %v1089
    %v1102 = vsub.f32 %v912, %v1089
    %v1103 = vsub.f32 %v913, %v1089
    %v1104 = vsub.f32 %v914, %v1089
    %v1105 = vsub.f32 %v915, %v1089
    %v1106 = vsub.f32 %v916, %v1089
    %v1107 = vsub.f32 %v917, %v1089
    %v1108 = vmul.f32 %v1092, 1.442695
    %v1109 = vpow.pop %v1108
    %v1110 = vmul.f32 %v1093, 1.442695
    %v1111 = vpow.pop %v1110
    %v1112 = vmul.f32 %v1094, 1.442695
    %v1113 = vpow.pop %v1112
    %v1114 = vmul.f32 %v1095, 1.442695
    %v1115 = vpow.pop %v1114
    %v1116 = vmul.f32 %v1096, 1.442695
    %v1117 = vpow.pop %v1116
    %v1118 = vmul.f32 %v1097, 1.442695
    %v1119 = vpow.pop %v1118
    %v1120 = vmul.f32 %v1098, 1.442695
    %v1121 = vpow.pop %v1120
    %v1122 = vmul.f32 %v1099, 1.442695
    %v1123 = vpow.pop %v1122
    %v1124 = vmul.f32 %v1100, 1.442695
    %v1125 = vpow.pop %v1124
    %v1126 = vmul.f32 %v1101, 1.442695
    %v1127 = vpow.pop %v1126
    %v1128 = vmul.f32 %v1102, 1.442695
    %v1129 = vpow.pop %v1128
    %v1130 = vmul.f32 %v1103, 1.442695
    %v1131 = vpow.pop %v1130
    %v1132 = vmul.f32 %v1104, 1.442695
    %v1133 = vpow.pop %v1132
    %v1134 = vmul.f32 %v1105, 1.442695
    %v1135 = vpow.pop %v1134
    %v1136 = vmul.f32 %v1106, 1.442695
    %v1137 = vpow.pop %v1136
    %v1138 = vmul.f32 %v1107, 1.442695
    %v1139 = vpow.pop %v1138
    %1156 = vset.pattern.permute.xlu0 0
    %1157 = vperm.xlu0 %1156, %v1109
    %v1158 = vpop.permute.xlu0 %1157
    %1159 = vset.pattern.permute.xlu0 0
    %1160 = vperm.xlu0 %1159, %v1111
    %v1161 = vpop.permute.xlu0 %1160
    %1162 = vset.pattern.permute.xlu0 0
    %1163 = vperm.xlu0 %1162, %v1113
    %v1164 = vpop.permute.xlu0 %1163
    %1165 = vset.pattern.permute.xlu0 0
    %1166 = vperm.xlu0 %1165, %v1115
    %v1167 = vpop.permute.xlu0 %1166
    %1168 = vset.pattern.permute.xlu0 0
    %1169 = vperm.xlu0 %1168, %v1117
    %v1170 = vpop.permute.xlu0 %1169
    %1171 = vset.pattern.permute.xlu0 0
    %1172 = vperm.xlu0 %1171, %v1119
    %v1173 = vpop.permute.xlu0 %1172
    %1174 = vset.pattern.permute.xlu0 0
    %1175 = vperm.xlu0 %1174, %v1121
    %v1176 = vpop.permute.xlu0 %1175
    %1177 = vset.pattern.permute.xlu0 0
    %1178 = vperm.xlu0 %1177, %v1123
    %v1179 = vpop.permute.xlu0 %1178
    %1180 = vset.pattern.permute.xlu0 0
    %1181 = vperm.xlu0 %1180, %v1125
    %v1182 = vpop.permute.xlu0 %1181
    %1183 = vset.pattern.permute.xlu0 0
    %1184 = vperm.xlu0 %1183, %v1127
    %v1185 = vpop.permute.xlu0 %1184
    %1186 = vset.pattern.permute.xlu0 0
    %1187 = vperm.xlu0 %1186, %v1129
    %v1188 = vpop.permute.xlu0 %1187
    %1189 = vset.pattern.permute.xlu0 0
    %1190 = vperm.xlu0 %1189, %v1131
    %v1191 = vpop.permute.xlu0 %1190
    %1192 = vset.pattern.permute.xlu0 0
    %1193 = vperm.xlu0 %1192, %v1133
    %v1194 = vpop.permute.xlu0 %1193
    %1195 = vset.pattern.permute.xlu0 0
    %1196 = vperm.xlu0 %1195, %v1135
    %v1197 = vpop.permute.xlu0 %1196
    %1198 = vset.pattern.permute.xlu0 0
    %1199 = vperm.xlu0 %1198, %v1137
    %v1200 = vpop.permute.xlu0 %1199
    %1201 = vset.pattern.permute.xlu0 0
    %1202 = vperm.xlu0 %1201, %v1139
    %v1203 = vpop.permute.xlu0 %1202
    %v1204 = vlaneseq
    %v1205 = vshrl.u32 %v1204, 7
    %v1206 = vsub.s32 %v41, %v1205
    %v1207 = vrot.slane %v1158, %v1206
    %v1208 = vlaneseq
    %v1209 = vshrl.u32 %v1208, 7
    %v1210 = vsub.s32 %v986, %v1209
    %v1211 = vrot.slane %v1161, %v1210
    %v1212 = vsel %vm991, %v1211, %v1207
    %v1213 = vlaneseq
    %v1214 = vshrl.u32 %v1213, 7
    %v1215 = vsub.s32 %v993, %v1214
    %v1216 = vrot.slane %v1164, %v1215
    %v1217 = vsel %vm998, %v1216, %v1212
    %v1218 = vlaneseq
    %v1219 = vshrl.u32 %v1218, 7
    %v1220 = vsub.s32 %v1000, %v1219
    %v1221 = vrot.slane %v1167, %v1220
    %v1222 = vsel %vm1005, %v1221, %v1217
    %v1223 = vlaneseq
    %v1224 = vshrl.u32 %v1223, 7
    %v1225 = vsub.s32 %v1007, %v1224
    %v1226 = vrot.slane %v1170, %v1225
    %v1227 = vsel %vm1012, %v1226, %v1222
    %v1228 = vlaneseq
    %v1229 = vshrl.u32 %v1228, 7
    %v1230 = vsub.s32 %v1014, %v1229
    %v1231 = vrot.slane %v1173, %v1230
    %v1232 = vsel %vm1019, %v1231, %v1227
    %v1233 = vlaneseq
    %v1234 = vshrl.u32 %v1233, 7
    %v1235 = vsub.s32 %v1021, %v1234
    %v1236 = vrot.slane %v1176, %v1235
    %v1237 = vsel %vm1026, %v1236, %v1232
    %v1238 = vlaneseq
    %v1239 = vshrl.u32 %v1238, 7
    %v1240 = vsub.s32 %v1028, %v1239
    %v1241 = vrot.slane %v1179, %v1240
    %v1242 = vsel %vm1033, %v1241, %v1237
    %v1243 = vlaneseq
    %v1244 = vshrl.u32 %v1243, 7
    %v1245 = vsub.s32 %v41, %v1244
    %v1246 = vrot.slane %v1182, %v1245
    %v1247 = vlaneseq
    %v1248 = vshrl.u32 %v1247, 7
    %v1249 = vsub.s32 %v986, %v1248
    %v1250 = vrot.slane %v1185, %v1249
    %v1251 = vsel %vm991, %v1250, %v1246
    %v1252 = vlaneseq
    %v1253 = vshrl.u32 %v1252, 7
    %v1254 = vsub.s32 %v993, %v1253
    %v1255 = vrot.slane %v1188, %v1254
    %v1256 = vsel %vm998, %v1255, %v1251
    %v1257 = vlaneseq
    %v1258 = vshrl.u32 %v1257, 7
    %v1259 = vsub.s32 %v1000, %v1258
    %v1260 = vrot.slane %v1191, %v1259
    %v1261 = vsel %vm1005, %v1260, %v1256
    %v1262 = vlaneseq
    %v1263 = vshrl.u32 %v1262, 7
    %v1264 = vsub.s32 %v1007, %v1263
    %v1265 = vrot.slane %v1194, %v1264
    %v1266 = vsel %vm1012, %v1265, %v1261
    %v1267 = vlaneseq
    %v1268 = vshrl.u32 %v1267, 7
    %v1269 = vsub.s32 %v1014, %v1268
    %v1270 = vrot.slane %v1197, %v1269
    %v1271 = vsel %vm1019, %v1270, %v1266
    %v1272 = vlaneseq
    %v1273 = vshrl.u32 %v1272, 7
    %v1274 = vsub.s32 %v1021, %v1273
    %v1275 = vrot.slane %v1200, %v1274
    %v1276 = vsel %vm1026, %v1275, %v1271
    %v1277 = vlaneseq
    %v1278 = vshrl.u32 %v1277, 7
    %v1279 = vsub.s32 %v1028, %v1278
    %v1280 = vrot.slane %v1203, %v1279
    %v1281 = vsel %vm1033, %v1280, %v1276
    %v1282 = vsel %vm1074, %v1281, %v1242
    %v1284 = vsel %vm1077, %v1282, 0.0
    %1285 = vadd.xlane.f32.xlu0 %v1284
    %v1286 = vpop.xlane.xlu0 %1285
    %v1287 = vrcp.pop %v1286
    %v1289 = vlaneseq
    %v1290 = vshrl.u32 %v1289, 7
    %v1291 = vsub.s32 0, %v1290
    %v1292 = vrot.slane %v1287, %v1291
    %v1293 = vlaneseq
    %v1294 = vshrl.u32 %v1293, 7
    %v1295 = vsub.s32 1, %v1294
    %v1296 = vrot.slane %v1287, %v1295
    %v1299 = vmul.f32 %v1109, %v1292
    %v1300 = vmul.f32 %v1111, %v1292
    %v1301 = vmul.f32 %v1113, %v1292
    %v1302 = vmul.f32 %v1115, %v1292
    %v1303 = vmul.f32 %v1117, %v1292
    %v1304 = vmul.f32 %v1119, %v1292
    %v1305 = vmul.f32 %v1121, %v1292
    %v1306 = vmul.f32 %v1123, %v1292
    %v1307 = vmul.f32 %v1125, %v1296
    %v1308 = vmul.f32 %v1127, %v1296
    %v1309 = vmul.f32 %v1129, %v1296
    %v1310 = vmul.f32 %v1131, %v1296
    %v1311 = vmul.f32 %v1133, %v1296
    %v1312 = vmul.f32 %v1135, %v1296
    %v1313 = vmul.f32 %v1137, %v1296
    %v1314 = vmul.f32 %v1139, %v1296
    %v1315 = vpack.c.bf16 %v1300, %v1299
    %v1316 = vpack.c.bf16 %v1302, %v1301
    %v1317 = vpack.c.bf16 %v1304, %v1303
    %v1318 = vpack.c.bf16 %v1306, %v1305
    %v1319 = vpack.c.bf16 %v1308, %v1307
    %v1320 = vpack.c.bf16 %v1310, %v1309
    %v1321 = vpack.c.bf16 %v1312, %v1311
    %v1322 = vpack.c.bf16 %v1314, %v1313
    %v1331 = vunpack.c.l.b16 %v1315
    %v1332 = vunpack.c.h.b16 %v1315
    %v1333 = vunpack.c.l.b16 %v1316
    %v1334 = vunpack.c.h.b16 %v1316
    %v1335 = vunpack.c.l.b16 %v1317
    %v1336 = vunpack.c.h.b16 %v1317
    %v1337 = vunpack.c.l.b16 %v1318
    %v1338 = vunpack.c.h.b16 %v1318
    %v1339 = vunpack.c.l.b16 %v1319
    %v1340 = vunpack.c.h.b16 %v1319
    %v1341 = vunpack.c.l.b16 %v1320
    %v1342 = vunpack.c.h.b16 %v1320
    %v1343 = vunpack.c.l.b16 %v1321
    %v1344 = vunpack.c.h.b16 %v1321
    %v1345 = vunpack.c.l.b16 %v1322
    %v1346 = vunpack.c.h.b16 %v1322
    %1347 = vset.pattern.permute.xlu0 0
    %1348 = vperm.xlu0 %1347, %v1331
    %v1349 = vpop.permute.xlu0 %1348
    %1350 = vset.pattern.permute.xlu0 0
    %1351 = vperm.xlu0 %1350, %v1332
    %v1352 = vpop.permute.xlu0 %1351
    %1353 = vset.pattern.permute.xlu0 0
    %1354 = vperm.xlu0 %1353, %v1333
    %v1355 = vpop.permute.xlu0 %1354
    %1356 = vset.pattern.permute.xlu0 0
    %1357 = vperm.xlu0 %1356, %v1334
    %v1358 = vpop.permute.xlu0 %1357
    %1359 = vset.pattern.permute.xlu0 0
    %1360 = vperm.xlu0 %1359, %v1335
    %v1361 = vpop.permute.xlu0 %1360
    %1362 = vset.pattern.permute.xlu0 0
    %1363 = vperm.xlu0 %1362, %v1336
    %v1364 = vpop.permute.xlu0 %1363
    %1365 = vset.pattern.permute.xlu0 0
    %1366 = vperm.xlu0 %1365, %v1337
    %v1367 = vpop.permute.xlu0 %1366
    %1368 = vset.pattern.permute.xlu0 0
    %1369 = vperm.xlu0 %1368, %v1338
    %v1370 = vpop.permute.xlu0 %1369
    %1371 = vset.pattern.permute.xlu0 0
    %1372 = vperm.xlu0 %1371, %v1339
    %v1373 = vpop.permute.xlu0 %1372
    %1374 = vset.pattern.permute.xlu0 0
    %1375 = vperm.xlu0 %1374, %v1340
    %v1376 = vpop.permute.xlu0 %1375
    %1377 = vset.pattern.permute.xlu0 0
    %1378 = vperm.xlu0 %1377, %v1341
    %v1379 = vpop.permute.xlu0 %1378
    %1380 = vset.pattern.permute.xlu0 0
    %1381 = vperm.xlu0 %1380, %v1342
    %v1382 = vpop.permute.xlu0 %1381
    %1383 = vset.pattern.permute.xlu0 0
    %1384 = vperm.xlu0 %1383, %v1343
    %v1385 = vpop.permute.xlu0 %1384
    %1386 = vset.pattern.permute.xlu0 0
    %1387 = vperm.xlu0 %1386, %v1344
    %v1388 = vpop.permute.xlu0 %1387
    %1389 = vset.pattern.permute.xlu0 0
    %1390 = vperm.xlu0 %1389, %v1345
    %v1391 = vpop.permute.xlu0 %1390
    %1392 = vset.pattern.permute.xlu0 0
    %1393 = vperm.xlu0 %1392, %v1346
    %v1394 = vpop.permute.xlu0 %1393
    %v1395 = vlaneseq
    %v1396 = vshrl.u32 %v1395, 7
    %v1397 = vsub.s32 %v41, %v1396
    %v1398 = vrot.slane %v1349, %v1397
    %v1399 = vlaneseq
    %v1400 = vshrl.u32 %v1399, 7
    %v1401 = vsub.s32 %v986, %v1400
    %v1402 = vrot.slane %v1352, %v1401
    %v1403 = vsel %vm991, %v1402, %v1398
    %v1404 = vlaneseq
    %v1405 = vshrl.u32 %v1404, 7
    %v1406 = vsub.s32 %v993, %v1405
    %v1407 = vrot.slane %v1355, %v1406
    %v1408 = vsel %vm998, %v1407, %v1403
    %v1409 = vlaneseq
    %v1410 = vshrl.u32 %v1409, 7
    %v1411 = vsub.s32 %v1000, %v1410
    %v1412 = vrot.slane %v1358, %v1411
    %v1413 = vsel %vm1005, %v1412, %v1408
    %v1414 = vlaneseq
    %v1415 = vshrl.u32 %v1414, 7
    %v1416 = vsub.s32 %v1007, %v1415
    %v1417 = vrot.slane %v1361, %v1416
    %v1418 = vsel %vm1012, %v1417, %v1413
    %v1419 = vlaneseq
    %v1420 = vshrl.u32 %v1419, 7
    %v1421 = vsub.s32 %v1014, %v1420
    %v1422 = vrot.slane %v1364, %v1421
    %v1423 = vsel %vm1019, %v1422, %v1418
    %v1424 = vlaneseq
    %v1425 = vshrl.u32 %v1424, 7
    %v1426 = vsub.s32 %v1021, %v1425
    %v1427 = vrot.slane %v1367, %v1426
    %v1428 = vsel %vm1026, %v1427, %v1423
    %v1429 = vlaneseq
    %v1430 = vshrl.u32 %v1429, 7
    %v1431 = vsub.s32 %v1028, %v1430
    %v1432 = vrot.slane %v1370, %v1431
    %v1433 = vsel %vm1033, %v1432, %v1428
    %v1434 = vlaneseq
    %v1435 = vshrl.u32 %v1434, 7
    %v1436 = vsub.s32 %v41, %v1435
    %v1437 = vrot.slane %v1373, %v1436
    %v1438 = vlaneseq
    %v1439 = vshrl.u32 %v1438, 7
    %v1440 = vsub.s32 %v986, %v1439
    %v1441 = vrot.slane %v1376, %v1440
    %v1442 = vsel %vm991, %v1441, %v1437
    %v1443 = vlaneseq
    %v1444 = vshrl.u32 %v1443, 7
    %v1445 = vsub.s32 %v993, %v1444
    %v1446 = vrot.slane %v1379, %v1445
    %v1447 = vsel %vm998, %v1446, %v1442
    %v1448 = vlaneseq
    %v1449 = vshrl.u32 %v1448, 7
    %v1450 = vsub.s32 %v1000, %v1449
    %v1451 = vrot.slane %v1382, %v1450
    %v1452 = vsel %vm1005, %v1451, %v1447
    %v1453 = vlaneseq
    %v1454 = vshrl.u32 %v1453, 7
    %v1455 = vsub.s32 %v1007, %v1454
    %v1456 = vrot.slane %v1385, %v1455
    %v1457 = vsel %vm1012, %v1456, %v1452
    %v1458 = vlaneseq
    %v1459 = vshrl.u32 %v1458, 7
    %v1460 = vsub.s32 %v1014, %v1459
    %v1461 = vrot.slane %v1388, %v1460
    %v1462 = vsel %vm1019, %v1461, %v1457
    %v1463 = vlaneseq
    %v1464 = vshrl.u32 %v1463, 7
    %v1465 = vsub.s32 %v1021, %v1464
    %v1466 = vrot.slane %v1391, %v1465
    %v1467 = vsel %vm1026, %v1466, %v1462
    %v1468 = vlaneseq
    %v1469 = vshrl.u32 %v1468, 7
    %v1470 = vsub.s32 %v1028, %v1469
    %v1471 = vrot.slane %v1394, %v1470
    %v1472 = vsel %vm1033, %v1471, %v1467
    %v1473 = vsel %vm1074, %v1472, %v1433
    %v1474 = vpack.c.b16 %v1473, %v1473
    %v1475 = vadd.s32 %v41, 4294967232
    %v1476 = vlaneseq
    %v1477 = vshrl.u32 %v1476, 7
    %v1478 = vsub.s32 %v1475, %v1477
    %v1479 = vrot.slane %v1349, %v1478
    %v1480 = vadd.s32 %v41, 4294967224
    %v1481 = vlaneseq
    %v1482 = vshrl.u32 %v1481, 7
    %v1483 = vsub.s32 %v1480, %v1482
    %v1484 = vrot.slane %v1352, %v1483
    %vm1485 = vcmask 654912
    %v1486 = vsel %vm1485, %v1484, %v1479
    %v1487 = vadd.s32 %v41, 4294967216
    %v1488 = vlaneseq
    %v1489 = vshrl.u32 %v1488, 7
    %v1490 = vsub.s32 %v1487, %v1489
    %v1491 = vrot.slane %v1355, %v1490
    %vm1492 = vcmask 720512
    %v1493 = vsel %vm1492, %v1491, %v1486
    %v1494 = vadd.s32 %v41, 4294967208
    %v1495 = vlaneseq
    %v1496 = vshrl.u32 %v1495, 7
    %v1497 = vsub.s32 %v1494, %v1496
    %v1498 = vrot.slane %v1358, %v1497
    %vm1499 = vcmask 786112
    %v1500 = vsel %vm1499, %v1498, %v1493
    %v1501 = vadd.s32 %v41, 4294967200
    %v1502 = vlaneseq
    %v1503 = vshrl.u32 %v1502, 7
    %v1504 = vsub.s32 %v1501, %v1503
    %v1505 = vrot.slane %v1361, %v1504
    %vm1506 = vcmask 851712
    %v1507 = vsel %vm1506, %v1505, %v1500
    %v1508 = vadd.s32 %v41, 4294967192
    %v1509 = vlaneseq
    %v1510 = vshrl.u32 %v1509, 7
    %v1511 = vsub.s32 %v1508, %v1510
    %v1512 = vrot.slane %v1364, %v1511
    %vm1513 = vcmask 917312
    %v1514 = vsel %vm1513, %v1512, %v1507
    %v1515 = vadd.s32 %v41, 4294967184
    %v1516 = vlaneseq
    %v1517 = vshrl.u32 %v1516, 7
    %v1518 = vsub.s32 %v1515, %v1517
    %v1519 = vrot.slane %v1367, %v1518
    %vm1520 = vcmask 982912
    %v1521 = vsel %vm1520, %v1519, %v1514
    %v1522 = vadd.s32 %v41, 4294967176
    %v1523 = vlaneseq
    %v1524 = vshrl.u32 %v1523, 7
    %v1525 = vsub.s32 %v1522, %v1524
    %v1526 = vrot.slane %v1370, %v1525
    %vm1527 = vcmask 1048512
    %v1528 = vsel %vm1527, %v1526, %v1521
    %v1529 = vlaneseq
    %v1530 = vshrl.u32 %v1529, 7
    %v1531 = vsub.s32 %v1475, %v1530
    %v1532 = vrot.slane %v1373, %v1531
    %v1533 = vlaneseq
    %v1534 = vshrl.u32 %v1533, 7
    %v1535 = vsub.s32 %v1480, %v1534
    %v1536 = vrot.slane %v1376, %v1535
    %v1537 = vsel %vm1485, %v1536, %v1532
    %v1538 = vlaneseq
    %v1539 = vshrl.u32 %v1538, 7
    %v1540 = vsub.s32 %v1487, %v1539
    %v1541 = vrot.slane %v1379, %v1540
    %v1542 = vsel %vm1492, %v1541, %v1537
    %v1543 = vlaneseq
    %v1544 = vshrl.u32 %v1543, 7
    %v1545 = vsub.s32 %v1494, %v1544
    %v1546 = vrot.slane %v1382, %v1545
    %v1547 = vsel %vm1499, %v1546, %v1542
    %v1548 = vlaneseq
    %v1549 = vshrl.u32 %v1548, 7
    %v1550 = vsub.s32 %v1501, %v1549
    %v1551 = vrot.slane %v1385, %v1550
    %v1552 = vsel %vm1506, %v1551, %v1547
    %v1553 = vlaneseq
    %v1554 = vshrl.u32 %v1553, 7
    %v1555 = vsub.s32 %v1508, %v1554
    %v1556 = vrot.slane %v1388, %v1555
    %v1557 = vsel %vm1513, %v1556, %v1552
    %v1558 = vlaneseq
    %v1559 = vshrl.u32 %v1558, 7
    %v1560 = vsub.s32 %v1515, %v1559
    %v1561 = vrot.slane %v1391, %v1560
    %v1562 = vsel %vm1520, %v1561, %v1557
    %v1563 = vlaneseq
    %v1564 = vshrl.u32 %v1563, 7
    %v1565 = vsub.s32 %v1522, %v1564
    %v1566 = vrot.slane %v1394, %v1565
    %v1567 = vsel %vm1527, %v1566, %v1562
    %v1568 = vsel %vm1074, %v1567, %v1528
    %v1569 = vpack.c.b16 %v1568, %v1568
    %vm1570 = vcmask 523264
    %v1573 = vsel %vm1570, %v1474, %v1569
    %v1575 = vld [vmem:[%s2] sm:$0x1]
    %v1576 = vmul.bf16 %v1573, %v1575
    %v1577 = vld [vmem:[%s1] sm:$0xf]
    %v1578 = vld [vmem:[%s1 + $0x4] sm:$0xf]
    %v1579 = vld [vmem:[%s1 + $0x8] sm:$0xf]
    %v1580 = vld [vmem:[%s1 + $0xc] sm:$0xf]
    %v1581 = vld [vmem:[%s1 + $0x10] sm:$0xf]
    %v1582 = vld [vmem:[%s1 + $0x14] sm:$0xf]
    %v1583 = vld [vmem:[%s1 + $0x18] sm:$0xf]
    %v1584 = vld [vmem:[%s1 + $0x1c] sm:$0xf]
    %v1585 = vld [vmem:[%s1 + $0x20] sm:$0xf]
    %v1586 = vld [vmem:[%s1 + $0x24] sm:$0xf]
    %v1587 = vld [vmem:[%s1 + $0x28] sm:$0xf]
    %v1588 = vld [vmem:[%s1 + $0x2c] sm:$0xf]
    %v1589 = vld [vmem:[%s1 + $0x30] sm:$0xf]
    %v1590 = vld [vmem:[%s1 + $0x34] sm:$0xf]
    %v1591 = vld [vmem:[%s1 + $0x38] sm:$0xf]
    %v1592 = vld [vmem:[%s1 + $0x3c] sm:$0xf]
    %v1609 = vunpack.c.l.b16 %v1577
    %v1610 = vunpack.c.l.b16 %v1578
    %v1611 = vunpack.c.l.b16 %v1579
    %v1612 = vunpack.c.l.b16 %v1580
    %v1613 = vunpack.c.l.b16 %v1581
    %v1614 = vunpack.c.l.b16 %v1582
    %v1615 = vunpack.c.l.b16 %v1583
    %v1616 = vunpack.c.l.b16 %v1584
    %v1617 = vunpack.c.l.b16 %v1585
    %v1618 = vunpack.c.l.b16 %v1586
    %v1619 = vunpack.c.l.b16 %v1587
    %v1620 = vunpack.c.l.b16 %v1588
    %v1621 = vunpack.c.l.b16 %v1589
    %v1622 = vunpack.c.l.b16 %v1590
    %v1623 = vunpack.c.l.b16 %v1591
    %v1624 = vunpack.c.l.b16 %v1592
    %v1625 = vpack.c.b16 %v1610, %v1609
    %v1626 = vpack.c.b16 %v1612, %v1611
    %v1627 = vpack.c.b16 %v1614, %v1613
    %v1628 = vpack.c.b16 %v1616, %v1615
    %v1629 = vpack.c.b16 %v1618, %v1617
    %v1630 = vpack.c.b16 %v1620, %v1619
    %v1631 = vpack.c.b16 %v1622, %v1621
    %v1632 = vpack.c.b16 %v1624, %v1623
    %1641 = vmatprep.subr.bf16.mxu0 0
    %1642 = vmatpush1.bf16.msra.mxu0 %v1625
    %1643 = vmatprep.subr.bf16.mxu0 0
    %1644 = vmatpush1.bf16.msra.mxu0 %v1626
    %1645 = vmatprep.subr.bf16.mxu0 0
    %1646 = vmatpush1.bf16.msra.mxu0 %v1627
    %1647 = vmatprep.subr.bf16.mxu0 0
    %1648 = vmatpush1.bf16.msra.mxu0 %v1628
    %1649 = vmatprep.subr.bf16.mxu0 0
    %1650 = vmatpush1.bf16.msra.mxu0 %v1629
    %1651 = vmatprep.subr.bf16.mxu0 0
    %1652 = vmatpush1.bf16.msra.mxu0 %v1630
    %1653 = vmatprep.subr.bf16.mxu0 0
    %1654 = vmatpush1.bf16.msra.mxu0 %v1631
    %1655 = vmatprep.subr.bf16.mxu0 0
    %1656 = vmatpush1.bf16.msra.mxu0 %v1632
    %1657 = vmatprep.subr.bf16.mxu0 0
    %1658 = vmatpush1.bf16.msra.mxu0 0
    %1659 = vmatprep.subr.bf16.mxu0 0
    %1660 = vmatpush1.bf16.msra.mxu0 0
    %1661 = vmatprep.subr.bf16.mxu0 0
    %1662 = vmatpush1.bf16.msra.mxu0 0
    %1663 = vmatprep.subr.bf16.mxu0 0
    %1664 = vmatpush1.bf16.msra.mxu0 0
    %1665 = vmatprep.subr.bf16.mxu0 0
    %1666 = vmatpush1.bf16.msra.mxu0 0
    %1667 = vmatprep.subr.bf16.mxu0 0
    %1668 = vmatpush1.bf16.msra.mxu0 0
    %1669 = vmatprep.subr.bf16.mxu0 0
    %1670 = vmatpush1.bf16.msra.mxu0 0
    %1671 = vmatprep.subr.bf16.mxu0 0
    %1672 = vmatpush1.bf16.msra.mxu0 0
    %1673 = vmatprep.mubr.bf16.mxu0 0
    %1674 = vmatmul.mubr.bf16.gmra.mrb[0].mxu0 %v1576
    %v1675 = vpop.f32.mrb[0].mxu0
    %v1676 = vadd.f32 0.0, %v1675
    %v1677 = vpop.f32.mrb[0].mxu0
    %v1678 = vpop.f32.mrb[0].mxu0
    %v1679 = vpop.f32.mrb[0].mxu0
    %1680 = vdwg.mxu0
    %v1681 = vpack.c.bf16 %v1676, %v1676
    %v1682 = vld [vmem:[%s9] sm:$0xf]
    %v1683 = vld [vmem:[%s9 + $0x4] sm:$0xf]
    %v1684 = vld [vmem:[%s9 + $0x8] sm:$0xf]
    %v1685 = vld [vmem:[%s9 + $0xc] sm:$0xf]
    %v1686 = vld [vmem:[%s10] sm:$0x1]
    %v1688 = vlaneseq
    %v1689 = vshrl.u32 %v1688, 7
    %v1690 = vsub.s32 0, %v1689
    %v1691 = vrot.slane %v1686, %v1690
    %v1697 = vunpack.c.l.b16 %v1682
    %v1698 = vunpack.c.l.b16 %v1683
    %v1699 = vunpack.c.l.b16 %v1684
    %v1700 = vunpack.c.l.b16 %v1685
    %v1701 = vpack.c.b16 %v1698, %v1697
    %v1702 = vpack.c.b16 %v1700, %v1699
    %v1706 = vsel %vm348, %v1681, 0
    %1708 = vmatprep.subr.bf16.mxu0 0
    %1709 = vmatpush1.bf16.msra.mxu0 %v1701
    %1710 = vmatprep.subr.bf16.mxu0 0
    %1711 = vmatpush1.bf16.msra.mxu0 %v1702
    %1712 = vmatprep.subr.bf16.mxu0 0
    %1713 = vmatpush1.bf16.msra.mxu0 0
    %1714 = vmatprep.subr.bf16.mxu0 0
    %1715 = vmatpush1.bf16.msra.mxu0 0
    %1716 = vmatprep.subr.bf16.mxu0 0
    %1717 = vmatpush1.bf16.msra.mxu0 0
    %1718 = vmatprep.subr.bf16.mxu0 0
    %1719 = vmatpush1.bf16.msra.mxu0 0
    %1720 = vmatprep.subr.bf16.mxu0 0
    %1721 = vmatpush1.bf16.msra.mxu0 0
    %1722 = vmatprep.subr.bf16.mxu0 0
    %1723 = vmatpush1.bf16.msra.mxu0 0
    %1724 = vmatprep.subr.bf16.mxu0 0
    %1725 = vmatpush1.bf16.msra.mxu0 0
    %1726 = vmatprep.subr.bf16.mxu0 0
    %1727 = vmatpush1.bf16.msra.mxu0 0
    %1728 = vmatprep.subr.bf16.mxu0 0
    %1729 = vmatpush1.bf16.msra.mxu0 0
    %1730 = vmatprep.subr.bf16.mxu0 0
    %1731 = vmatpush1.bf16.msra.mxu0 0
    %1732 = vmatprep.subr.bf16.mxu0 0
    %1733 = vmatpush1.bf16.msra.mxu0 0
    %1734 = vmatprep.subr.bf16.mxu0 0
    %1735 = vmatpush1.bf16.msra.mxu0 0
    %1736 = vmatprep.subr.bf16.mxu0 0
    %1737 = vmatpush1.bf16.msra.mxu0 0
    %1738 = vmatprep.subr.bf16.mxu0 0
    %1739 = vmatpush1.bf16.msra.mxu0 0
    %1740 = vmatprep.mubr.bf16.mxu0 0
    %1741 = vmatmul.mubr.bf16.gmra.mrb[0].mxu0 %v1706
    %v1742 = vpop.f32.mrb[0].mxu0
    %v1743 = vadd.f32 %v1691, %v1742
    %v1744 = vpop.f32.mrb[0].mxu0
    %v1745 = vpop.f32.mrb[0].mxu0
    %v1746 = vpop.f32.mrb[0].mxu0
    %1747 = vdwg.mxu0
    %vm1748 = vcmask 1041408
    %v1749 = vsel %vm1748, %v1743, -inf
    %1750 = vmax.xlane.f32.xlu0 %v1749
    %v1751 = vpop.xlane.xlu0 %1750
    %vm1752 = vcmp.eq.f32.partialorder %v1743, %v1751
    %v1753 = vsel %vm1752, 1, 0
    %v1754 = vcvt.s32.f32 %v1753
    %v1755 = vpack.c.bf16 %v1754, %v1754
    %1756 = vst [vmem:[#allocation2] sm:$0x1] %v1755
    %v1757 = vsub.f32 %v1743, %v1751
    %v1758 = vmul.f32 %v1757, 1.442695
    %v1759 = vpow.pop %v1758
    %v1760 = vsel %vm1748, %v1759, 0.0
    %1761 = vadd.xlane.f32.xlu0 %v1760
    %v1762 = vpop.xlane.xlu0 %1761
    %v1763 = vrcp.pop %v1762
    %v1764 = vmul.f32 %v1759, %v1763
    %1765 = vst [vmem:[#allocation6] sm:$0x3] %v1764
    %v1766 = vld [vmem:[#allocation2] sm:$0x3]
    %v1767 = vld [vmem:[%s5] sm:$0xf]
    %v1768 = vld [vmem:[%s5 + $0x4] sm:$0xf]
    %v1769 = vld [vmem:[%s5 + $0x8] sm:$0xf]
    %v1770 = vld [vmem:[%s5 + $0xc] sm:$0xf]
    %v1771 = vld [vmem:[%s5 + $0x10] sm:$0xf]
    %v1772 = vld [vmem:[%s5 + $0x14] sm:$0xf]
    %v1773 = vld [vmem:[%s5 + $0x18] sm:$0xf]
    %v1774 = vld [vmem:[%s5 + $0x1c] sm:$0xf]
    %v1775 = vld [vmem:[%s5 + $0x20] sm:$0xf]
    %v1776 = vld [vmem:[%s5 + $0x24] sm:$0xf]
    %v1777 = vld [vmem:[%s5 + $0x28] sm:$0xf]
    %v1778 = vld [vmem:[%s5 + $0x2c] sm:$0xf]
    %v1779 = vld [vmem:[%s5 + $0x30] sm:$0xf]
    %v1780 = vld [vmem:[%s5 + $0x34] sm:$0xf]
    %v1781 = vld [vmem:[%s5 + $0x38] sm:$0xf]
    %v1782 = vld [vmem:[%s5 + $0x3c] sm:$0xf]
    %v1783 = vld [vmem:[%s5 + $0x40] sm:$0xf]
    %v1784 = vld [vmem:[%s5 + $0x44] sm:$0xf]
    %v1785 = vld [vmem:[%s5 + $0x48] sm:$0xf]
    %v1786 = vld [vmem:[%s5 + $0x4c] sm:$0xf]
    %v1789 = vunpack.c.l.s4 1966171168
    %v1790 = vunpack.c.0.s8 %v1789
    %v1791 = vlaneseq
    %v1792 = vshrl.u32 %v1791, 7
    %v1793 = vsub.s32 %v1790, %v1792
    %v1794 = vrot.slane %v1766, %v1793
    %v1795 = vcombine.high %v1794, %v1794
    %v1797 = vunpack.c.l.s4 1966171168
    %v1798 = vunpack.c.0.s8 %v1797
    %v1799 = vlaneseq
    %v1800 = vshrl.u32 %v1799, 7
    %v1801 = vsub.s32 %v1798, %v1800
    %v1802 = vrot.slane %v1794, %v1801
    %v1804 = vunpack.c.l.s4 1966171168
    %v1805 = vunpack.c.0.s8 %v1804
    %v1806 = vlaneseq
    %v1807 = vshrl.u32 %v1806, 7
    %v1808 = vsub.s32 %v1805, %v1807
    %v1809 = vrot.slane %v1795, %v1808
    %v1831 = vunpack.c.l.b16 %v1767
    %v1832 = vunpack.c.l.b16 %v1768
    %v1833 = vunpack.c.l.b16 %v1769
    %v1834 = vunpack.c.l.b16 %v1770
    %v1835 = vunpack.c.l.b16 %v1771
    %v1836 = vunpack.c.l.b16 %v1772
    %v1837 = vunpack.c.l.b16 %v1773
    %v1838 = vunpack.c.l.b16 %v1774
    %v1839 = vunpack.c.l.b16 %v1775
    %v1840 = vunpack.c.l.b16 %v1776
    %v1841 = vunpack.c.l.b16 %v1777
    %v1842 = vunpack.c.l.b16 %v1778
    %v1843 = vunpack.c.l.b16 %v1779
    %v1844 = vunpack.c.l.b16 %v1780
    %v1845 = vunpack.c.l.b16 %v1781
    %v1846 = vunpack.c.l.b16 %v1782
    %v1847 = vunpack.c.l.b16 %v1783
    %v1848 = vunpack.c.l.b16 %v1784
    %v1849 = vunpack.c.l.b16 %v1785
    %v1850 = vunpack.c.l.b16 %v1786
    %v1851 = vpack.c.b16 %v1832, %v1831
    %v1852 = vpack.c.b16 %v1834, %v1833
    %v1853 = vpack.c.b16 %v1836, %v1835
    %v1854 = vpack.c.b16 %v1838, %v1837
    %v1855 = vpack.c.b16 %v1840, %v1839
    %v1856 = vpack.c.b16 %v1842, %v1841
    %v1857 = vpack.c.b16 %v1844, %v1843
    %v1858 = vpack.c.b16 %v1846, %v1845
    %v1859 = vpack.c.b16 %v1848, %v1847
    %v1860 = vpack.c.b16 %v1850, %v1849
    %v1872 = vsel %vm348, %v1809, 0
    %1874 = vmatprep.subr.bf16.mxu0 0
    %1875 = vmatpush1.bf16.msra.mxu0 %v1851
    %1876 = vmatprep.subr.bf16.mxu0 0
    %1877 = vmatpush1.bf16.msra.mxu0 %v1852
    %1878 = vmatprep.subr.bf16.mxu0 0
    %1879 = vmatpush1.bf16.msra.mxu0 %v1853
    %1880 = vmatprep.subr.bf16.mxu0 0
    %1881 = vmatpush1.bf16.msra.mxu0 %v1854
    %1882 = vmatprep.subr.bf16.mxu0 0
    %1883 = vmatpush1.bf16.msra.mxu0 %v1855
    %1884 = vmatprep.subr.bf16.mxu0 0
    %1885 = vmatpush1.bf16.msra.mxu0 %v1856
    %1886 = vmatprep.subr.bf16.mxu0 0
    %1887 = vmatpush1.bf16.msra.mxu0 %v1857
    %1888 = vmatprep.subr.bf16.mxu0 0
    %1889 = vmatpush1.bf16.msra.mxu0 %v1858
    %1890 = vmatprep.subr.bf16.mxu0 0
    %1891 = vmatpush1.bf16.msra.mxu0 %v1859
    %1892 = vmatprep.subr.bf16.mxu0 0
    %1893 = vmatpush1.bf16.msra.mxu0 %v1860
    %1894 = vmatprep.subr.bf16.mxu0 0
    %1895 = vmatpush1.bf16.msra.mxu0 0
    %1896 = vmatprep.subr.bf16.mxu0 0
    %1897 = vmatpush1.bf16.msra.mxu0 0
    %1898 = vmatprep.subr.bf16.mxu0 0
    %1899 = vmatpush1.bf16.msra.mxu0 0
    %1900 = vmatprep.subr.bf16.mxu0 0
    %1901 = vmatpush1.bf16.msra.mxu0 0
    %1902 = vmatprep.subr.bf16.mxu0 0
    %1903 = vmatpush1.bf16.msra.mxu0 0
    %1904 = vmatprep.subr.bf16.mxu0 0
    %1905 = vmatpush1.bf16.msra.mxu0 0
    %1906 = vmatprep.mubr.bf16.mxu0 %v1872
    %1907 = vmatmul.mubr.bf16.gmra.mrb[0].mxu0 %v1802
    %v1908 = vpop.f32.mrb[0].mxu0
    %v1909 = vadd.f32 0.0, %v1908
    %v1910 = vpop.f32.mrb[0].mxu0
    %v1911 = vpop.f32.mrb[0].mxu0
    %v1912 = vpop.f32.mrb[0].mxu0
    %1913 = vdwg.mxu0
    %v1914 = vld [vmem:[#allocation4] sm:$0x3]
    %v1915 = vxor.u32 %v1909, 2147483648
    %v1916 = vmul.f32 %v1915, 1.442695
    %v1917 = vpow.pop %v1916
    %v1918 = vadd.f32 %v1917, 1.0
    %v1919 = vrcp.pop %v1918
    %v1920 = vmul.f32 1.0, %v1919
    %v1921 = vtanh.pop %v1909
    %1923 = vrot.lane.b32.xlu0 %v1914, 32
    %v1924 = vpop.permute.xlu0 %1923
    %v1926 = vmul.f32 %v1920, %v1924
    %1928 = vrot.lane.b32.xlu0 %v1921, 64
    %v1929 = vpop.permute.xlu0 %1928
    %v1931 = vmul.f32 %v1920, %v1929
    %1933 = vrot.lane.b32.xlu0 %v1931, 32
    %v1934 = vpop.permute.xlu0 %1933
    %v1936 = vadd.f32 %v1926, %v1934
    %v1937 = vtanh.pop %v1936
    %1939 = vrot.lane.b32.xlu0 %v1937, 64
    %v1940 = vpop.permute.xlu0 %1939
    %v1942 = vmul.f32 %v1920, %v1940
    %1944 = vrot.lane.b32.xlu0 %v1936, 96
    %v1945 = vpop.permute.xlu0 %1944
    %1947 = vst.msk [vmem:[#allocation4] sm:$0x3] %vm230, %v1945
    %v1948 = vpack.c.bf16 %v1942, %v1942
    %v1951 = vunpack.c.l.s4 1966171168
    %v1952 = vunpack.c.0.s8 %v1951
    %v1953 = vlaneseq
    %v1954 = vshrl.u32 %v1953, 7
    %v1955 = vsub.s32 %v1952, %v1954
    %v1956 = vrot.slane %v1948, %v1955
    %v1958 = vunpack.c.l.s4 1966171168
    %v1959 = vunpack.c.0.s8 %v1958
    %v1960 = vlaneseq
    %v1961 = vshrl.u32 %v1960, 7
    %v1962 = vsub.s32 %v1959, %v1961
    %v1963 = vrot.slane %v1956, %v1962
    %1964 = vrot.lane.b32.xlu0 %v1963, 32
    %v1965 = vpop.permute.xlu0 %1964
    %1967 = vst.msk [vmem:[#allocation2 + $0x1] sm:$0x1] %vm92, %v1965
    %1968 = vst.msk [vmem:[#allocation3] sm:$0x1] %vm92, %v1965
    %v1969 = vld [vmem:[#allocation3] sm:$0x1]
    %v1970 = vld [vmem:[%s6] sm:$0xf]
    %v1971 = vld [vmem:[%s6 + $0x4] sm:$0xf]
    %v1972 = vld [vmem:[%s6 + $0x8] sm:$0xf]
    %v1973 = vld [vmem:[%s6 + $0xc] sm:$0xf]
    %v1974 = vld [vmem:[%s6 + $0x10] sm:$0xf]
    %v1975 = vld [vmem:[%s6 + $0x14] sm:$0xf]
    %v1976 = vld [vmem:[%s6 + $0x18] sm:$0xf]
    %v1977 = vld [vmem:[%s6 + $0x1c] sm:$0xf]
    %v1978 = vld [vmem:[%s6 + $0x20] sm:$0x1]
    %v1988 = vunpack.c.l.b16 %v1970
    %v1989 = vunpack.c.l.b16 %v1971
    %v1990 = vunpack.c.l.b16 %v1972
    %v1991 = vunpack.c.l.b16 %v1973
    %v1992 = vunpack.c.l.b16 %v1974
    %v1993 = vunpack.c.l.b16 %v1975
    %v1994 = vunpack.c.l.b16 %v1976
    %v1995 = vunpack.c.l.b16 %v1977
    %v1996 = vunpack.c.l.b16 %v1978
    %v1997 = vpack.c.b16 %v1989, %v1988
    %v1998 = vpack.c.b16 %v1991, %v1990
    %v1999 = vpack.c.b16 %v1993, %v1992
    %v2000 = vpack.c.b16 %v1995, %v1994
    %v2001 = vpack.c.b16 %v1996, %v1996
    %v2007 = vsel %vm131, %v1969, 0
    %v2010 = vand.u32 %v2001, %v137
    %2012 = vmatprep.subr.bf16.mxu0 0
    %2013 = vmatpush1.bf16.msra.mxu0 %v1997
    %2014 = vmatprep.subr.bf16.mxu0 0
    %2015 = vmatpush1.bf16.msra.mxu0 %v1998
    %2016 = vmatprep.subr.bf16.mxu0 0
    %2017 = vmatpush1.bf16.msra.mxu0 %v1999
    %2018 = vmatprep.subr.bf16.mxu0 0
    %2019 = vmatpush1.bf16.msra.mxu0 %v2000
    %2020 = vmatprep.subr.bf16.mxu0 0
    %2021 = vmatpush1.bf16.msra.mxu0 %v2010
    %2022 = vmatprep.subr.bf16.mxu0 0
    %2023 = vmatpush1.bf16.msra.mxu0 0
    %2024 = vmatprep.subr.bf16.mxu0 0
    %2025 = vmatpush1.bf16.msra.mxu0 0
    %2026 = vmatprep.subr.bf16.mxu0 0
    %2027 = vmatpush1.bf16.msra.mxu0 0
    %2028 = vmatprep.subr.bf16.mxu0 0
    %2029 = vmatpush1.bf16.msra.mxu0 0
    %2030 = vmatprep.subr.bf16.mxu0 0
    %2031 = vmatpush1.bf16.msra.mxu0 0
    %2032 = vmatprep.subr.bf16.mxu0 0
    %2033 = vmatpush1.bf16.msra.mxu0 0
    %2034 = vmatprep.subr.bf16.mxu0 0
    %2035 = vmatpush1.bf16.msra.mxu0 0
    %2036 = vmatprep.subr.bf16.mxu0 0
    %2037 = vmatpush1.bf16.msra.mxu0 0
    %2038 = vmatprep.subr.bf16.mxu0 0
    %2039 = vmatpush1.bf16.msra.mxu0 0
    %2040 = vmatprep.subr.bf16.mxu0 0
    %2041 = vmatpush1.bf16.msra.mxu0 0
    %2042 = vmatprep.subr.bf16.mxu0 0
    %2043 = vmatpush1.bf16.msra.mxu0 0
    %2044 = vmatprep.mubr.bf16.mxu0 0
    %2045 = vmatmul.mubr.bf16.gmra.mrb[0].mxu0 %v2007
    %v2046 = vpop.f32.mrb[0].mxu0
    %v2047 = vadd.f32 0.0, %v2046
    %v2048 = vpop.f32.mrb[0].mxu0
    %v2049 = vpop.f32.mrb[0].mxu0
    %v2050 = vpop.f32.mrb[0].mxu0
    %2051 = vdwg.mxu0
    %v2052 = vld [vmem:[#allocation5] sm:$0x3]
    %v2053 = vxor.u32 %v2047, 2147483648
    %v2054 = vmul.f32 %v2053, 1.442695
    %v2055 = vpow.pop %v2054
    %v2056 = vadd.f32 %v2055, 1.0
    %v2057 = vrcp.pop %v2056
    %v2058 = vmul.f32 1.0, %v2057
    %v2059 = vtanh.pop %v2047
    %2061 = vrot.lane.b32.xlu0 %v2052, 32
    %v2062 = vpop.permute.xlu0 %2061
    %v2064 = vmul.f32 %v2058, %v2062
    %2066 = vrot.lane.b32.xlu0 %v2059, 64
    %v2067 = vpop.permute.xlu0 %2066
    %v2069 = vmul.f32 %v2058, %v2067
    %2071 = vrot.lane.b32.xlu0 %v2069, 32
    %v2072 = vpop.permute.xlu0 %2071
    %v2074 = vadd.f32 %v2064, %v2072
    %v2075 = vtanh.pop %v2074
    %2077 = vrot.lane.b32.xlu0 %v2075, 64
    %v2078 = vpop.permute.xlu0 %2077
    %v2080 = vmul.f32 %v2058, %v2078
    %2082 = vrot.lane.b32.xlu0 %v2074, 96
    %v2083 = vpop.permute.xlu0 %2082
    %2085 = vst.msk [vmem:[#allocation5] sm:$0x3] %vm230, %v2083
    %v2086 = vpack.c.bf16 %v2080, %v2080
    %v2089 = vunpack.c.l.s4 1966171168
    %v2090 = vunpack.c.0.s8 %v2089
    %v2091 = vlaneseq
    %v2092 = vshrl.u32 %v2091, 7
    %v2093 = vsub.s32 %v2090, %v2092
    %v2094 = vrot.slane %v2086, %v2093
    %v2096 = vunpack.c.l.s4 1966171168
    %v2097 = vunpack.c.0.s8 %v2096
    %v2098 = vlaneseq
    %v2099 = vshrl.u32 %v2098, 7
    %v2100 = vsub.s32 %v2097, %v2099
    %v2101 = vrot.slane %v2094, %v2100
    %2102 = vrot.lane.b32.xlu0 %v2101, 64
    %v2103 = vpop.permute.xlu0 %2102
    %2105 = vst.msk [vmem:[#allocation3] sm:$0x1] %vm224, %v2103
    %v2106 = vld [vmem:[%s7] sm:$0xf]
    %v2107 = vld [vmem:[%s7 + $0x4] sm:$0xf]
    %v2108 = vld [vmem:[%s7 + $0x8] sm:$0xf]
    %v2109 = vld [vmem:[%s7 + $0xc] sm:$0xf]
    %2110 = vrot.lane.b32.xlu0 %v2086, 32
    %v2111 = vpop.permute.xlu0 %2110
    %v2116 = vunpack.c.l.b16 %v2106
    %v2117 = vunpack.c.l.b16 %v2107
    %v2118 = vunpack.c.l.b16 %v2108
    %v2119 = vunpack.c.l.b16 %v2109
    %v2120 = vpack.c.b16 %v2117, %v2116
    %v2121 = vpack.c.b16 %v2119, %v2118
    %v2125 = vsel %vm348, %v2111, 0
    %2127 = vmatprep.subr.bf16.mxu0 0
    %2128 = vmatpush1.bf16.msra.mxu0 %v2120
    %2129 = vmatprep.subr.bf16.mxu0 0
    %2130 = vmatpush1.bf16.msra.mxu0 %v2121
    %2131 = vmatprep.subr.bf16.mxu0 0
    %2132 = vmatpush1.bf16.msra.mxu0 0
    %2133 = vmatprep.subr.bf16.mxu0 0
    %2134 = vmatpush1.bf16.msra.mxu0 0
    %2135 = vmatprep.subr.bf16.mxu0 0
    %2136 = vmatpush1.bf16.msra.mxu0 0
    %2137 = vmatprep.subr.bf16.mxu0 0
    %2138 = vmatpush1.bf16.msra.mxu0 0
    %2139 = vmatprep.subr.bf16.mxu0 0
    %2140 = vmatpush1.bf16.msra.mxu0 0
    %2141 = vmatprep.subr.bf16.mxu0 0
    %2142 = vmatpush1.bf16.msra.mxu0 0
    %2143 = vmatprep.subr.bf16.mxu0 0
    %2144 = vmatpush1.bf16.msra.mxu0 0
    %2145 = vmatprep.subr.bf16.mxu0 0
    %2146 = vmatpush1.bf16.msra.mxu0 0
    %2147 = vmatprep.subr.bf16.mxu0 0
    %2148 = vmatpush1.bf16.msra.mxu0 0
    %2149 = vmatprep.subr.bf16.mxu0 0
    %2150 = vmatpush1.bf16.msra.mxu0 0
    %2151 = vmatprep.subr.bf16.mxu0 0
    %2152 = vmatpush1.bf16.msra.mxu0 0
    %2153 = vmatprep.subr.bf16.mxu0 0
    %2154 = vmatpush1.bf16.msra.mxu0 0
    %2155 = vmatprep.subr.bf16.mxu0 0
    %2156 = vmatpush1.bf16.msra.mxu0 0
    %2157 = vmatprep.subr.bf16.mxu0 0
    %2158 = vmatpush1.bf16.msra.mxu0 0
    %2159 = vmatprep.mubr.bf16.mxu0 0
    %2160 = vmatmul.mubr.bf16.gmra.mrb[0].mxu0 %v2125
    %v2161 = vpop.f32.mrb[0].mxu0
    %v2162 = vadd.f32 0.0, %v2161
    %v2163 = vpop.f32.mrb[0].mxu0
    %v2164 = vpop.f32.mrb[0].mxu0
    %v2165 = vpop.f32.mrb[0].mxu0
    %2166 = vdwg.mxu0
    %v2167 = vld [vmem:[%s0] sm:$0xf]
    %v2168 = vld [vmem:[%s0 + $0x4] sm:$0xf]
    %v2169 = vld [vmem:[%s0 + $0x8] sm:$0xf]
    %v2170 = vld [vmem:[%s0 + $0xc] sm:$0xf]
    %v2171 = vld [vmem:[%s0 + $0x10] sm:$0xf]
    %v2172 = vld [vmem:[%s0 + $0x14] sm:$0xf]
    %v2173 = vld [vmem:[%s0 + $0x18] sm:$0xf]
    %v2174 = vld [vmem:[%s0 + $0x1c] sm:$0xf]
    %v2175 = vld [vmem:[%s0 + $0x20] sm:$0xf]
    %v2176 = vld [vmem:[%s0 + $0x24] sm:$0xf]
    %v2177 = vld [vmem:[%s0 + $0x28] sm:$0xf]
    %v2178 = vld [vmem:[%s0 + $0x2c] sm:$0xf]
    %v2179 = vld [vmem:[%s0 + $0x30] sm:$0xf]
    %v2180 = vld [vmem:[%s0 + $0x34] sm:$0xf]
    %v2181 = vld [vmem:[%s0 + $0x38] sm:$0xf]
    %v2182 = vld [vmem:[%s0 + $0x3c] sm:$0xf]
    %v2183 = vunpack.c.l.bf16 %v2167
    %v2184 = vunpack.c.l.bf16 %v2168
    %v2185 = vunpack.c.l.bf16 %v2169
    %v2186 = vunpack.c.l.bf16 %v2170
    %v2187 = vunpack.c.l.bf16 %v2171
    %v2188 = vunpack.c.l.bf16 %v2172
    %v2189 = vunpack.c.l.bf16 %v2173
    %v2190 = vunpack.c.l.bf16 %v2174
    %v2191 = vunpack.c.l.bf16 %v2175
    %v2192 = vunpack.c.l.bf16 %v2176
    %v2193 = vunpack.c.l.bf16 %v2177
    %v2194 = vunpack.c.l.bf16 %v2178
    %v2195 = vunpack.c.l.bf16 %v2179
    %v2196 = vunpack.c.l.bf16 %v2180
    %v2197 = vunpack.c.l.bf16 %v2181
    %v2198 = vunpack.c.l.bf16 %v2182
    %v2201 = vunpack.c.l.s4 1966171168
    %v2202 = vunpack.c.0.s8 %v2201
    %v2203 = vlaneseq
    %v2204 = vshrl.u32 %v2203, 7
    %v2205 = vsub.s32 %v2202, %v2204
    %v2206 = vrot.slane %v2162, %v2205
    %v2207 = vcombine.high %v2206, %v2206
    %v2209 = vunpack.c.l.s4 1966171168
    %v2210 = vunpack.c.0.s8 %v2209
    %v2211 = vlaneseq
    %v2212 = vshrl.u32 %v2211, 7
    %v2213 = vsub.s32 %v2210, %v2212
    %v2214 = vrot.slane %v2206, %v2213
    %v2216 = vunpack.c.l.s4 1966171168
    %v2217 = vunpack.c.0.s8 %v2216
    %v2218 = vlaneseq
    %v2219 = vshrl.u32 %v2218, 7
    %v2220 = vsub.s32 %v2217, %v2219
    %v2221 = vrot.slane %v2207, %v2220
    %v2222 = vlaneseq
    %v2223 = vshrl.u32 %v2222, 7
    %v2224 = vsub.s32 0, %v2223
    %v2225 = vrot.slane %v2214, %v2224
    %v2226 = vlaneseq
    %v2227 = vshrl.u32 %v2226, 7
    %v2228 = vsub.s32 0, %v2227
    %v2229 = vrot.slane %v2221, %v2228
    %v2232 = vadd.f32 %v2183, %v2225
    %v2233 = vadd.f32 %v2184, %v2225
    %v2234 = vadd.f32 %v2185, %v2225
    %v2235 = vadd.f32 %v2186, %v2225
    %v2236 = vadd.f32 %v2187, %v2225
    %v2237 = vadd.f32 %v2188, %v2225
    %v2238 = vadd.f32 %v2189, %v2225
    %v2239 = vadd.f32 %v2190, %v2225
    %v2240 = vadd.f32 %v2191, %v2229
    %v2241 = vadd.f32 %v2192, %v2229
    %v2242 = vadd.f32 %v2193, %v2229
    %v2243 = vadd.f32 %v2194, %v2229
    %v2244 = vadd.f32 %v2195, %v2229
    %v2245 = vadd.f32 %v2196, %v2229
    %v2246 = vadd.f32 %v2197, %v2229
    %v2247 = vadd.f32 %v2198, %v2229
    %v2248 = vtanh.pop %v2232
    %v2249 = vtanh.pop %v2233
    %v2250 = vtanh.pop %v2234
    %v2251 = vtanh.pop %v2235
    %v2252 = vtanh.pop %v2236
    %v2253 = vtanh.pop %v2237
    %v2254 = vtanh.pop %v2238
    %v2255 = vtanh.pop %v2239
    %v2256 = vtanh.pop %v2240
    %v2257 = vtanh.pop %v2241
    %v2258 = vtanh.pop %v2242
    %v2259 = vtanh.pop %v2243
    %v2260 = vtanh.pop %v2244
    %v2261 = vtanh.pop %v2245
    %v2262 = vtanh.pop %v2246
    %v2263 = vtanh.pop %v2247
    %v2264 = vld [vmem:[%s8] sm:$0x1]
    %v2266 = vlaneseq
    %v2267 = vshrl.u32 %v2266, 7
    %v2268 = vsub.s32 0, %v2267
    %v2269 = vrot.slane %v2264, %v2268
    %v2271 = vmul.f32 %v2248, %v2269
    %v2272 = vmul.f32 %v2249, %v2269
    %v2273 = vmul.f32 %v2250, %v2269
    %v2274 = vmul.f32 %v2251, %v2269
    %v2275 = vmul.f32 %v2252, %v2269
    %v2276 = vmul.f32 %v2253, %v2269
    %v2277 = vmul.f32 %v2254, %v2269
    %v2278 = vmul.f32 %v2255, %v2269
    %v2279 = vmul.f32 %v2256, %v2269
    %v2280 = vmul.f32 %v2257, %v2269
    %v2281 = vmul.f32 %v2258, %v2269
    %v2282 = vmul.f32 %v2259, %v2269
    %v2283 = vmul.f32 %v2260, %v2269
    %v2284 = vmul.f32 %v2261, %v2269
    %v2285 = vmul.f32 %v2262, %v2269
    %v2286 = vmul.f32 %v2263, %v2269
    %v2287 = vsel %vm765, %v2271, 0.0
    %2288 = vadd.xlane.f32.xlu0 %v2287
    %v2289 = vpop.xlane.xlu0 %2288
    %v2290 = vsel %vm765, %v2272, 0.0
    %2291 = vadd.xlane.f32.xlu0 %v2290
    %v2292 = vpop.xlane.xlu0 %2291
    %v2293 = vsel %vm765, %v2273, 0.0
    %2294 = vadd.xlane.f32.xlu0 %v2293
    %v2295 = vpop.xlane.xlu0 %2294
    %v2296 = vsel %vm765, %v2274, 0.0
    %2297 = vadd.xlane.f32.xlu0 %v2296
    %v2298 = vpop.xlane.xlu0 %2297
    %v2299 = vsel %vm765, %v2275, 0.0
    %2300 = vadd.xlane.f32.xlu0 %v2299
    %v2301 = vpop.xlane.xlu0 %2300
    %v2302 = vsel %vm765, %v2276, 0.0
    %2303 = vadd.xlane.f32.xlu0 %v2302
    %v2304 = vpop.xlane.xlu0 %2303
    %v2305 = vsel %vm765, %v2277, 0.0
    %2306 = vadd.xlane.f32.xlu0 %v2305
    %v2307 = vpop.xlane.xlu0 %2306
    %v2308 = vsel %vm765, %v2278, 0.0
    %2309 = vadd.xlane.f32.xlu0 %v2308
    %v2310 = vpop.xlane.xlu0 %2309
    %v2311 = vsel %vm765, %v2279, 0.0
    %2312 = vadd.xlane.f32.xlu0 %v2311
    %v2313 = vpop.xlane.xlu0 %2312
    %v2314 = vsel %vm765, %v2280, 0.0
    %2315 = vadd.xlane.f32.xlu0 %v2314
    %v2316 = vpop.xlane.xlu0 %2315
    %v2317 = vsel %vm765, %v2281, 0.0
    %2318 = vadd.xlane.f32.xlu0 %v2317
    %v2319 = vpop.xlane.xlu0 %2318
    %v2320 = vsel %vm765, %v2282, 0.0
    %2321 = vadd.xlane.f32.xlu0 %v2320
    %v2322 = vpop.xlane.xlu0 %2321
    %v2323 = vsel %vm765, %v2283, 0.0
    %2324 = vadd.xlane.f32.xlu0 %v2323
    %v2325 = vpop.xlane.xlu0 %2324
    %v2326 = vsel %vm765, %v2284, 0.0
    %2327 = vadd.xlane.f32.xlu0 %v2326
    %v2328 = vpop.xlane.xlu0 %2327
    %v2329 = vsel %vm765, %v2285, 0.0
    %2330 = vadd.xlane.f32.xlu0 %v2329
    %v2331 = vpop.xlane.xlu0 %2330
    %v2332 = vsel %vm765, %v2286, 0.0
    %2333 = vadd.xlane.f32.xlu0 %v2332
    %v2334 = vpop.xlane.xlu0 %2333
    %v2335 = vld [vmem:[%s3] sm:$0x3]
    %v2337 = vlaneseq
    %v2338 = vshrl.u32 %v2337, 7
    %v2339 = vsub.s32 0, %v2338
    %v2340 = vrot.slane %v2335, %v2339
    %2342 = vbcast.lane.b32.xlu0 %v2340, 256
    %v2343 = vpop.permute.xlu0 %2342
    %s2345 = sor.u32 256, 8
    %2346 = vbcast.lane.b32.xlu0 %v2340, %s2345
    %v2347 = vpop.permute.xlu0 %2346
    %s2349 = sor.u32 256, 16
    %2350 = vbcast.lane.b32.xlu0 %v2340, %s2349
    %v2351 = vpop.permute.xlu0 %2350
    %s2353 = sor.u32 256, 24
    %2354 = vbcast.lane.b32.xlu0 %v2340, %s2353
    %v2355 = vpop.permute.xlu0 %2354
    %s2357 = sor.u32 256, 32
    %2358 = vbcast.lane.b32.xlu0 %v2340, %s2357
    %v2359 = vpop.permute.xlu0 %2358
    %s2361 = sor.u32 256, 40
    %2362 = vbcast.lane.b32.xlu0 %v2340, %s2361
    %v2363 = vpop.permute.xlu0 %2362
    %s2365 = sor.u32 256, 48
    %2366 = vbcast.lane.b32.xlu0 %v2340, %s2365
    %v2367 = vpop.permute.xlu0 %2366
    %s2369 = sor.u32 256, 56
    %2370 = vbcast.lane.b32.xlu0 %v2340, %s2369
    %v2371 = vpop.permute.xlu0 %2370
    %v2372 = vlaneseq
    %v2373 = vshrl.u32 %v2372, 7
    %v2374 = vsub.s32 1, %v2373
    %v2375 = vrot.slane %v2335, %v2374
    %2377 = vbcast.lane.b32.xlu0 %v2375, 256
    %v2378 = vpop.permute.xlu0 %2377
    %s2380 = sor.u32 256, 8
    %2381 = vbcast.lane.b32.xlu0 %v2375, %s2380
    %v2382 = vpop.permute.xlu0 %2381
    %s2384 = sor.u32 256, 16
    %2385 = vbcast.lane.b32.xlu0 %v2375, %s2384
    %v2386 = vpop.permute.xlu0 %2385
    %s2388 = sor.u32 256, 24
    %2389 = vbcast.lane.b32.xlu0 %v2375, %s2388
    %v2390 = vpop.permute.xlu0 %2389
    %s2392 = sor.u32 256, 32
    %2393 = vbcast.lane.b32.xlu0 %v2375, %s2392
    %v2394 = vpop.permute.xlu0 %2393
    %s2396 = sor.u32 256, 40
    %2397 = vbcast.lane.b32.xlu0 %v2375, %s2396
    %v2398 = vpop.permute.xlu0 %2397
    %s2400 = sor.u32 256, 48
    %2401 = vbcast.lane.b32.xlu0 %v2375, %s2400
    %v2402 = vpop.permute.xlu0 %2401
    %s2404 = sor.u32 256, 56
    %2405 = vbcast.lane.b32.xlu0 %v2375, %s2404
    %v2406 = vpop.permute.xlu0 %2405
    %v2423 = vadd.f32 %v2289, %v2343
    %v2424 = vadd.f32 %v2292, %v2347
    %v2425 = vadd.f32 %v2295, %v2351
    %v2426 = vadd.f32 %v2298, %v2355
    %v2427 = vadd.f32 %v2301, %v2359
    %v2428 = vadd.f32 %v2304, %v2363
    %v2429 = vadd.f32 %v2307, %v2367
    %v2430 = vadd.f32 %v2310, %v2371
    %v2431 = vadd.f32 %v2313, %v2378
    %v2432 = vadd.f32 %v2316, %v2382
    %v2433 = vadd.f32 %v2319, %v2386
    %v2434 = vadd.f32 %v2322, %v2390
    %v2435 = vadd.f32 %v2325, %v2394
    %v2436 = vadd.f32 %v2328, %v2398
    %v2437 = vadd.f32 %v2331, %v2402
    %v2438 = vadd.f32 %v2334, %v2406
    %2455 = vset.pattern.permute.xlu0 0
    %2456 = vperm.xlu0 %2455, %v2423
    %v2457 = vpop.permute.xlu0 %2456
    %2458 = vset.pattern.permute.xlu0 0
    %2459 = vperm.xlu0 %2458, %v2424
    %v2460 = vpop.permute.xlu0 %2459
    %2461 = vset.pattern.permute.xlu0 0
    %2462 = vperm.xlu0 %2461, %v2425
    %v2463 = vpop.permute.xlu0 %2462
    %2464 = vset.pattern.permute.xlu0 0
    %2465 = vperm.xlu0 %2464, %v2426
    %v2466 = vpop.permute.xlu0 %2465
    %2467 = vset.pattern.permute.xlu0 0
    %2468 = vperm.xlu0 %2467, %v2427
    %v2469 = vpop.permute.xlu0 %2468
    %2470 = vset.pattern.permute.xlu0 0
    %2471 = vperm.xlu0 %2470, %v2428
    %v2472 = vpop.permute.xlu0 %2471
    %2473 = vset.pattern.permute.xlu0 0
    %2474 = vperm.xlu0 %2473, %v2429
    %v2475 = vpop.permute.xlu0 %2474
    %2476 = vset.pattern.permute.xlu0 0
    %2477 = vperm.xlu0 %2476, %v2430
    %v2478 = vpop.permute.xlu0 %2477
    %2479 = vset.pattern.permute.xlu0 0
    %2480 = vperm.xlu0 %2479, %v2431
    %v2481 = vpop.permute.xlu0 %2480
    %2482 = vset.pattern.permute.xlu0 0
    %2483 = vperm.xlu0 %2482, %v2432
    %v2484 = vpop.permute.xlu0 %2483
    %2485 = vset.pattern.permute.xlu0 0
    %2486 = vperm.xlu0 %2485, %v2433
    %v2487 = vpop.permute.xlu0 %2486
    %2488 = vset.pattern.permute.xlu0 0
    %2489 = vperm.xlu0 %2488, %v2434
    %v2490 = vpop.permute.xlu0 %2489
    %2491 = vset.pattern.permute.xlu0 0
    %2492 = vperm.xlu0 %2491, %v2435
    %v2493 = vpop.permute.xlu0 %2492
    %2494 = vset.pattern.permute.xlu0 0
    %2495 = vperm.xlu0 %2494, %v2436
    %v2496 = vpop.permute.xlu0 %2495
    %2497 = vset.pattern.permute.xlu0 0
    %2498 = vperm.xlu0 %2497, %v2437
    %v2499 = vpop.permute.xlu0 %2498
    %2500 = vset.pattern.permute.xlu0 0
    %2501 = vperm.xlu0 %2500, %v2438
    %v2502 = vpop.permute.xlu0 %2501
    %v2503 = vlaneseq
    %v2504 = vshrl.u32 %v2503, 7
    %v2505 = vsub.s32 %v41, %v2504
    %v2506 = vrot.slane %v2457, %v2505
    %v2507 = vlaneseq
    %v2508 = vshrl.u32 %v2507, 7
    %v2509 = vsub.s32 %v986, %v2508
    %v2510 = vrot.slane %v2460, %v2509
    %v2511 = vsel %vm991, %v2510, %v2506
    %v2512 = vlaneseq
    %v2513 = vshrl.u32 %v2512, 7
    %v2514 = vsub.s32 %v993, %v2513
    %v2515 = vrot.slane %v2463, %v2514
    %v2516 = vsel %vm998, %v2515, %v2511
    %v2517 = vlaneseq
    %v2518 = vshrl.u32 %v2517, 7
    %v2519 = vsub.s32 %v1000, %v2518
    %v2520 = vrot.slane %v2466, %v2519
    %v2521 = vsel %vm1005, %v2520, %v2516
    %v2522 = vlaneseq
    %v2523 = vshrl.u32 %v2522, 7
    %v2524 = vsub.s32 %v1007, %v2523
    %v2525 = vrot.slane %v2469, %v2524
    %v2526 = vsel %vm1012, %v2525, %v2521
    %v2527 = vlaneseq
    %v2528 = vshrl.u32 %v2527, 7
    %v2529 = vsub.s32 %v1014, %v2528
    %v2530 = vrot.slane %v2472, %v2529
    %v2531 = vsel %vm1019, %v2530, %v2526
    %v2532 = vlaneseq
    %v2533 = vshrl.u32 %v2532, 7
    %v2534 = vsub.s32 %v1021, %v2533
    %v2535 = vrot.slane %v2475, %v2534
    %v2536 = vsel %vm1026, %v2535, %v2531
    %v2537 = vlaneseq
    %v2538 = vshrl.u32 %v2537, 7
    %v2539 = vsub.s32 %v1028, %v2538
    %v2540 = vrot.slane %v2478, %v2539
    %v2541 = vsel %vm1033, %v2540, %v2536
    %v2542 = vlaneseq
    %v2543 = vshrl.u32 %v2542, 7
    %v2544 = vsub.s32 %v41, %v2543
    %v2545 = vrot.slane %v2481, %v2544
    %v2546 = vlaneseq
    %v2547 = vshrl.u32 %v2546, 7
    %v2548 = vsub.s32 %v986, %v2547
    %v2549 = vrot.slane %v2484, %v2548
    %v2550 = vsel %vm991, %v2549, %v2545
    %v2551 = vlaneseq
    %v2552 = vshrl.u32 %v2551, 7
    %v2553 = vsub.s32 %v993, %v2552
    %v2554 = vrot.slane %v2487, %v2553
    %v2555 = vsel %vm998, %v2554, %v2550
    %v2556 = vlaneseq
    %v2557 = vshrl.u32 %v2556, 7
    %v2558 = vsub.s32 %v1000, %v2557
    %v2559 = vrot.slane %v2490, %v2558
    %v2560 = vsel %vm1005, %v2559, %v2555
    %v2561 = vlaneseq
    %v2562 = vshrl.u32 %v2561, 7
    %v2563 = vsub.s32 %v1007, %v2562
    %v2564 = vrot.slane %v2493, %v2563
    %v2565 = vsel %vm1012, %v2564, %v2560
    %v2566 = vlaneseq
    %v2567 = vshrl.u32 %v2566, 7
    %v2568 = vsub.s32 %v1014, %v2567
    %v2569 = vrot.slane %v2496, %v2568
    %v2570 = vsel %vm1019, %v2569, %v2565
    %v2571 = vlaneseq
    %v2572 = vshrl.u32 %v2571, 7
    %v2573 = vsub.s32 %v1021, %v2572
    %v2574 = vrot.slane %v2499, %v2573
    %v2575 = vsel %vm1026, %v2574, %v2570
    %v2576 = vlaneseq
    %v2577 = vshrl.u32 %v2576, 7
    %v2578 = vsub.s32 %v1028, %v2577
    %v2579 = vrot.slane %v2502, %v2578
    %v2580 = vsel %vm1033, %v2579, %v2575
    %v2581 = vsel %vm1074, %v2580, %v2541
    %v2583 = vsel %vm1077, %v2581, -inf
    %2584 = vmax.xlane.f32.xlu0 %v2583
    %v2585 = vpop.xlane.xlu0 %2584
    %v2587 = vlaneseq
    %v2588 = vshrl.u32 %v2587, 7
    %v2589 = vsub.s32 0, %v2588
    %v2590 = vrot.slane %v2585, %v2589
    %v2591 = vlaneseq
    %v2592 = vshrl.u32 %v2591, 7
    %v2593 = vsub.s32 1, %v2592
    %v2594 = vrot.slane %v2585, %v2593
    %v2597 = vsub.f32 %v2423, %v2590
    %v2598 = vsub.f32 %v2424, %v2590
    %v2599 = vsub.f32 %v2425, %v2590
    %v2600 = vsub.f32 %v2426, %v2590
    %v2601 = vsub.f32 %v2427, %v2590
    %v2602 = vsub.f32 %v2428, %v2590
    %v2603 = vsub.f32 %v2429, %v2590
    %v2604 = vsub.f32 %v2430, %v2590
    %v2605 = vsub.f32 %v2431, %v2594
    %v2606 = vsub.f32 %v2432, %v2594
    %v2607 = vsub.f32 %v2433, %v2594
    %v2608 = vsub.f32 %v2434, %v2594
    %v2609 = vsub.f32 %v2435, %v2594
    %v2610 = vsub.f32 %v2436, %v2594
    %v2611 = vsub.f32 %v2437, %v2594
    %v2612 = vsub.f32 %v2438, %v2594
    %v2613 = vmul.f32 %v2597, 1.442695
    %v2614 = vpow.pop %v2613
    %v2615 = vmul.f32 %v2598, 1.442695
    %v2616 = vpow.pop %v2615
    %v2617 = vmul.f32 %v2599, 1.442695
    %v2618 = vpow.pop %v2617
    %v2619 = vmul.f32 %v2600, 1.442695
    %v2620 = vpow.pop %v2619
    %v2621 = vmul.f32 %v2601, 1.442695
    %v2622 = vpow.pop %v2621
    %v2623 = vmul.f32 %v2602, 1.442695
    %v2624 = vpow.pop %v2623
    %v2625 = vmul.f32 %v2603, 1.442695
    %v2626 = vpow.pop %v2625
    %v2627 = vmul.f32 %v2604, 1.442695
    %v2628 = vpow.pop %v2627
    %v2629 = vmul.f32 %v2605, 1.442695
    %v2630 = vpow.pop %v2629
    %v2631 = vmul.f32 %v2606, 1.442695
    %v2632 = vpow.pop %v2631
    %v2633 = vmul.f32 %v2607, 1.442695
    %v2634 = vpow.pop %v2633
    %v2635 = vmul.f32 %v2608, 1.442695
    %v2636 = vpow.pop %v2635
    %v2637 = vmul.f32 %v2609, 1.442695
    %v2638 = vpow.pop %v2637
    %v2639 = vmul.f32 %v2610, 1.442695
    %v2640 = vpow.pop %v2639
    %v2641 = vmul.f32 %v2611, 1.442695
    %v2642 = vpow.pop %v2641
    %v2643 = vmul.f32 %v2612, 1.442695
    %v2644 = vpow.pop %v2643
    %2661 = vset.pattern.permute.xlu0 0
    %2662 = vperm.xlu0 %2661, %v2614
    %v2663 = vpop.permute.xlu0 %2662
    %2664 = vset.pattern.permute.xlu0 0
    %2665 = vperm.xlu0 %2664, %v2616
    %v2666 = vpop.permute.xlu0 %2665
    %2667 = vset.pattern.permute.xlu0 0
    %2668 = vperm.xlu0 %2667, %v2618
    %v2669 = vpop.permute.xlu0 %2668
    %2670 = vset.pattern.permute.xlu0 0
    %2671 = vperm.xlu0 %2670, %v2620
    %v2672 = vpop.permute.xlu0 %2671
    %2673 = vset.pattern.permute.xlu0 0
    %2674 = vperm.xlu0 %2673, %v2622
    %v2675 = vpop.permute.xlu0 %2674
    %2676 = vset.pattern.permute.xlu0 0
    %2677 = vperm.xlu0 %2676, %v2624
    %v2678 = vpop.permute.xlu0 %2677
    %2679 = vset.pattern.permute.xlu0 0
    %2680 = vperm.xlu0 %2679, %v2626
    %v2681 = vpop.permute.xlu0 %2680
    %2682 = vset.pattern.permute.xlu0 0
    %2683 = vperm.xlu0 %2682, %v2628
    %v2684 = vpop.permute.xlu0 %2683
    %2685 = vset.pattern.permute.xlu0 0
    %2686 = vperm.xlu0 %2685, %v2630
    %v2687 = vpop.permute.xlu0 %2686
    %2688 = vset.pattern.permute.xlu0 0
    %2689 = vperm.xlu0 %2688, %v2632
    %v2690 = vpop.permute.xlu0 %2689
    %2691 = vset.pattern.permute.xlu0 0
    %2692 = vperm.xlu0 %2691, %v2634
    %v2693 = vpop.permute.xlu0 %2692
    %2694 = vset.pattern.permute.xlu0 0
    %2695 = vperm.xlu0 %2694, %v2636
    %v2696 = vpop.permute.xlu0 %2695
    %2697 = vset.pattern.permute.xlu0 0
    %2698 = vperm.xlu0 %2697, %v2638
    %v2699 = vpop.permute.xlu0 %2698
    %2700 = vset.pattern.permute.xlu0 0
    %2701 = vperm.xlu0 %2700, %v2640
    %v2702 = vpop.permute.xlu0 %2701
    %2703 = vset.pattern.permute.xlu0 0
    %2704 = vperm.xlu0 %2703, %v2642
    %v2705 = vpop.permute.xlu0 %2704
    %2706 = vset.pattern.permute.xlu0 0
    %2707 = vperm.xlu0 %2706, %v2644
    %v2708 = vpop.permute.xlu0 %2707
    %v2709 = vlaneseq
    %v2710 = vshrl.u32 %v2709, 7
    %v2711 = vsub.s32 %v41, %v2710
    %v2712 = vrot.slane %v2663, %v2711
    %v2713 = vlaneseq
    %v2714 = vshrl.u32 %v2713, 7
    %v2715 = vsub.s32 %v986, %v2714
    %v2716 = vrot.slane %v2666, %v2715
    %v2717 = vsel %vm991, %v2716, %v2712
    %v2718 = vlaneseq
    %v2719 = vshrl.u32 %v2718, 7
    %v2720 = vsub.s32 %v993, %v2719
    %v2721 = vrot.slane %v2669, %v2720
    %v2722 = vsel %vm998, %v2721, %v2717
    %v2723 = vlaneseq
    %v2724 = vshrl.u32 %v2723, 7
    %v2725 = vsub.s32 %v1000, %v2724
    %v2726 = vrot.slane %v2672, %v2725
    %v2727 = vsel %vm1005, %v2726, %v2722
    %v2728 = vlaneseq
    %v2729 = vshrl.u32 %v2728, 7
    %v2730 = vsub.s32 %v1007, %v2729
    %v2731 = vrot.slane %v2675, %v2730
    %v2732 = vsel %vm1012, %v2731, %v2727
    %v2733 = vlaneseq
    %v2734 = vshrl.u32 %v2733, 7
    %v2735 = vsub.s32 %v1014, %v2734
    %v2736 = vrot.slane %v2678, %v2735
    %v2737 = vsel %vm1019, %v2736, %v2732
    %v2738 = vlaneseq
    %v2739 = vshrl.u32 %v2738, 7
    %v2740 = vsub.s32 %v1021, %v2739
    %v2741 = vrot.slane %v2681, %v2740
    %v2742 = vsel %vm1026, %v2741, %v2737
    %v2743 = vlaneseq
    %v2744 = vshrl.u32 %v2743, 7
    %v2745 = vsub.s32 %v1028, %v2744
    %v2746 = vrot.slane %v2684, %v2745
    %v2747 = vsel %vm1033, %v2746, %v2742
    %v2748 = vlaneseq
    %v2749 = vshrl.u32 %v2748, 7
    %v2750 = vsub.s32 %v41, %v2749
    %v2751 = vrot.slane %v2687, %v2750
    %v2752 = vlaneseq
    %v2753 = vshrl.u32 %v2752, 7
    %v2754 = vsub.s32 %v986, %v2753
    %v2755 = vrot.slane %v2690, %v2754
    %v2756 = vsel %vm991, %v2755, %v2751
    %v2757 = vlaneseq
    %v2758 = vshrl.u32 %v2757, 7
    %v2759 = vsub.s32 %v993, %v2758
    %v2760 = vrot.slane %v2693, %v2759
    %v2761 = vsel %vm998, %v2760, %v2756
    %v2762 = vlaneseq
    %v2763 = vshrl.u32 %v2762, 7
    %v2764 = vsub.s32 %v1000, %v2763
    %v2765 = vrot.slane %v2696, %v2764
    %v2766 = vsel %vm1005, %v2765, %v2761
    %v2767 = vlaneseq
    %v2768 = vshrl.u32 %v2767, 7
    %v2769 = vsub.s32 %v1007, %v2768
    %v2770 = vrot.slane %v2699, %v2769
    %v2771 = vsel %vm1012, %v2770, %v2766
    %v2772 = vlaneseq
    %v2773 = vshrl.u32 %v2772, 7
    %v2774 = vsub.s32 %v1014, %v2773
    %v2775 = vrot.slane %v2702, %v2774
    %v2776 = vsel %vm1019, %v2775, %v2771
    %v2777 = vlaneseq
    %v2778 = vshrl.u32 %v2777, 7
    %v2779 = vsub.s32 %v1021, %v2778
    %v2780 = vrot.slane %v2705, %v2779
    %v2781 = vsel %vm1026, %v2780, %v2776
    %v2782 = vlaneseq
    %v2783 = vshrl.u32 %v2782, 7
    %v2784 = vsub.s32 %v1028, %v2783
    %v2785 = vrot.slane %v2708, %v2784
    %v2786 = vsel %vm1033, %v2785, %v2781
    %v2787 = vsel %vm1074, %v2786, %v2747
    %v2789 = vsel %vm1077, %v2787, 0.0
    %2790 = vadd.xlane.f32.xlu0 %v2789
    %v2791 = vpop.xlane.xlu0 %2790
    %v2792 = vrcp.pop %v2791
    %v2794 = vlaneseq
    %v2795 = vshrl.u32 %v2794, 7
    %v2796 = vsub.s32 0, %v2795
    %v2797 = vrot.slane %v2792, %v2796
    %v2798 = vlaneseq
    %v2799 = vshrl.u32 %v2798, 7
    %v2800 = vsub.s32 1, %v2799
    %v2801 = vrot.slane %v2792, %v2800
    %v2804 = vmul.f32 %v2614, %v2797
    %v2805 = vmul.f32 %v2616, %v2797
    %v2806 = vmul.f32 %v2618, %v2797
    %v2807 = vmul.f32 %v2620, %v2797
    %v2808 = vmul.f32 %v2622, %v2797
    %v2809 = vmul.f32 %v2624, %v2797
    %v2810 = vmul.f32 %v2626, %v2797
    %v2811 = vmul.f32 %v2628, %v2797
    %v2812 = vmul.f32 %v2630, %v2801
    %v2813 = vmul.f32 %v2632, %v2801
    %v2814 = vmul.f32 %v2634, %v2801
    %v2815 = vmul.f32 %v2636, %v2801
    %v2816 = vmul.f32 %v2638, %v2801
    %v2817 = vmul.f32 %v2640, %v2801
    %v2818 = vmul.f32 %v2642, %v2801
    %v2819 = vmul.f32 %v2644, %v2801
    %v2820 = vpack.c.bf16 %v2805, %v2804
    %v2821 = vpack.c.bf16 %v2807, %v2806
    %v2822 = vpack.c.bf16 %v2809, %v2808
    %v2823 = vpack.c.bf16 %v2811, %v2810
    %v2824 = vpack.c.bf16 %v2813, %v2812
    %v2825 = vpack.c.bf16 %v2815, %v2814
    %v2826 = vpack.c.bf16 %v2817, %v2816
    %v2827 = vpack.c.bf16 %v2819, %v2818
    %v2836 = vunpack.c.l.b16 %v2820
    %v2837 = vunpack.c.h.b16 %v2820
    %v2838 = vunpack.c.l.b16 %v2821
    %v2839 = vunpack.c.h.b16 %v2821
    %v2840 = vunpack.c.l.b16 %v2822
    %v2841 = vunpack.c.h.b16 %v2822
    %v2842 = vunpack.c.l.b16 %v2823
    %v2843 = vunpack.c.h.b16 %v2823
    %v2844 = vunpack.c.l.b16 %v2824
    %v2845 = vunpack.c.h.b16 %v2824
    %v2846 = vunpack.c.l.b16 %v2825
    %v2847 = vunpack.c.h.b16 %v2825
    %v2848 = vunpack.c.l.b16 %v2826
    %v2849 = vunpack.c.h.b16 %v2826
    %v2850 = vunpack.c.l.b16 %v2827
    %v2851 = vunpack.c.h.b16 %v2827
    %2852 = vset.pattern.permute.xlu0 0
    %2853 = vperm.xlu0 %2852, %v2836
    %v2854 = vpop.permute.xlu0 %2853
    %2855 = vset.pattern.permute.xlu0 0
    %2856 = vperm.xlu0 %2855, %v2837
    %v2857 = vpop.permute.xlu0 %2856
    %2858 = vset.pattern.permute.xlu0 0
    %2859 = vperm.xlu0 %2858, %v2838
    %v2860 = vpop.permute.xlu0 %2859
    %2861 = vset.pattern.permute.xlu0 0
    %2862 = vperm.xlu0 %2861, %v2839
    %v2863 = vpop.permute.xlu0 %2862
    %2864 = vset.pattern.permute.xlu0 0
    %2865 = vperm.xlu0 %2864, %v2840
    %v2866 = vpop.permute.xlu0 %2865
    %2867 = vset.pattern.permute.xlu0 0
    %2868 = vperm.xlu0 %2867, %v2841
    %v2869 = vpop.permute.xlu0 %2868
    %2870 = vset.pattern.permute.xlu0 0
    %2871 = vperm.xlu0 %2870, %v2842
    %v2872 = vpop.permute.xlu0 %2871
    %2873 = vset.pattern.permute.xlu0 0
    %2874 = vperm.xlu0 %2873, %v2843
    %v2875 = vpop.permute.xlu0 %2874
    %2876 = vset.pattern.permute.xlu0 0
    %2877 = vperm.xlu0 %2876, %v2844
    %v2878 = vpop.permute.xlu0 %2877
    %2879 = vset.pattern.permute.xlu0 0
    %2880 = vperm.xlu0 %2879, %v2845
    %v2881 = vpop.permute.xlu0 %2880
    %2882 = vset.pattern.permute.xlu0 0
    %2883 = vperm.xlu0 %2882, %v2846
    %v2884 = vpop.permute.xlu0 %2883
    %2885 = vset.pattern.permute.xlu0 0
    %2886 = vperm.xlu0 %2885, %v2847
    %v2887 = vpop.permute.xlu0 %2886
    %2888 = vset.pattern.permute.xlu0 0
    %2889 = vperm.xlu0 %2888, %v2848
    %v2890 = vpop.permute.xlu0 %2889
    %2891 = vset.pattern.permute.xlu0 0
    %2892 = vperm.xlu0 %2891, %v2849
    %v2893 = vpop.permute.xlu0 %2892
    %2894 = vset.pattern.permute.xlu0 0
    %2895 = vperm.xlu0 %2894, %v2850
    %v2896 = vpop.permute.xlu0 %2895
    %2897 = vset.pattern.permute.xlu0 0
    %2898 = vperm.xlu0 %2897, %v2851
    %v2899 = vpop.permute.xlu0 %2898
    %v2900 = vlaneseq
    %v2901 = vshrl.u32 %v2900, 7
    %v2902 = vsub.s32 %v41, %v2901
    %v2903 = vrot.slane %v2854, %v2902
    %v2904 = vlaneseq
    %v2905 = vshrl.u32 %v2904, 7
    %v2906 = vsub.s32 %v986, %v2905
    %v2907 = vrot.slane %v2857, %v2906
    %v2908 = vsel %vm991, %v2907, %v2903
    %v2909 = vlaneseq
    %v2910 = vshrl.u32 %v2909, 7
    %v2911 = vsub.s32 %v993, %v2910
    %v2912 = vrot.slane %v2860, %v2911
    %v2913 = vsel %vm998, %v2912, %v2908
    %v2914 = vlaneseq
    %v2915 = vshrl.u32 %v2914, 7
    %v2916 = vsub.s32 %v1000, %v2915
    %v2917 = vrot.slane %v2863, %v2916
    %v2918 = vsel %vm1005, %v2917, %v2913
    %v2919 = vlaneseq
    %v2920 = vshrl.u32 %v2919, 7
    %v2921 = vsub.s32 %v1007, %v2920
    %v2922 = vrot.slane %v2866, %v2921
    %v2923 = vsel %vm1012, %v2922, %v2918
    %v2924 = vlaneseq
    %v2925 = vshrl.u32 %v2924, 7
    %v2926 = vsub.s32 %v1014, %v2925
    %v2927 = vrot.slane %v2869, %v2926
    %v2928 = vsel %vm1019, %v2927, %v2923
    %v2929 = vlaneseq
    %v2930 = vshrl.u32 %v2929, 7
    %v2931 = vsub.s32 %v1021, %v2930
    %v2932 = vrot.slane %v2872, %v2931
    %v2933 = vsel %vm1026, %v2932, %v2928
    %v2934 = vlaneseq
    %v2935 = vshrl.u32 %v2934, 7
    %v2936 = vsub.s32 %v1028, %v2935
    %v2937 = vrot.slane %v2875, %v2936
    %v2938 = vsel %vm1033, %v2937, %v2933
    %v2939 = vlaneseq
    %v2940 = vshrl.u32 %v2939, 7
    %v2941 = vsub.s32 %v41, %v2940
    %v2942 = vrot.slane %v2878, %v2941
    %v2943 = vlaneseq
    %v2944 = vshrl.u32 %v2943, 7
    %v2945 = vsub.s32 %v986, %v2944
    %v2946 = vrot.slane %v2881, %v2945
    %v2947 = vsel %vm991, %v2946, %v2942
    %v2948 = vlaneseq
    %v2949 = vshrl.u32 %v2948, 7
    %v2950 = vsub.s32 %v993, %v2949
    %v2951 = vrot.slane %v2884, %v2950
    %v2952 = vsel %vm998, %v2951, %v2947
    %v2953 = vlaneseq
    %v2954 = vshrl.u32 %v2953, 7
    %v2955 = vsub.s32 %v1000, %v2954
    %v2956 = vrot.slane %v2887, %v2955
    %v2957 = vsel %vm1005, %v2956, %v2952
    %v2958 = vlaneseq
    %v2959 = vshrl.u32 %v2958, 7
    %v2960 = vsub.s32 %v1007, %v2959
    %v2961 = vrot.slane %v2890, %v2960
    %v2962 = vsel %vm1012, %v2961, %v2957
    %v2963 = vlaneseq
    %v2964 = vshrl.u32 %v2963, 7
    %v2965 = vsub.s32 %v1014, %v2964
    %v2966 = vrot.slane %v2893, %v2965
    %v2967 = vsel %vm1019, %v2966, %v2962
    %v2968 = vlaneseq
    %v2969 = vshrl.u32 %v2968, 7
    %v2970 = vsub.s32 %v1021, %v2969
    %v2971 = vrot.slane %v2896, %v2970
    %v2972 = vsel %vm1026, %v2971, %v2967
    %v2973 = vlaneseq
    %v2974 = vshrl.u32 %v2973, 7
    %v2975 = vsub.s32 %v1028, %v2974
    %v2976 = vrot.slane %v2899, %v2975
    %v2977 = vsel %vm1033, %v2976, %v2972
    %v2978 = vsel %vm1074, %v2977, %v2938
    %v2979 = vpack.c.b16 %v2978, %v2978
    %v2980 = vlaneseq
    %v2981 = vshrl.u32 %v2980, 7
    %v2982 = vsub.s32 %v1475, %v2981
    %v2983 = vrot.slane %v2854, %v2982
    %v2984 = vlaneseq
    %v2985 = vshrl.u32 %v2984, 7
    %v2986 = vsub.s32 %v1480, %v2985
    %v2987 = vrot.slane %v2857, %v2986
    %v2988 = vsel %vm1485, %v2987, %v2983
    %v2989 = vlaneseq
    %v2990 = vshrl.u32 %v2989, 7
    %v2991 = vsub.s32 %v1487, %v2990
    %v2992 = vrot.slane %v2860, %v2991
    %v2993 = vsel %vm1492, %v2992, %v2988
    %v2994 = vlaneseq
    %v2995 = vshrl.u32 %v2994, 7
    %v2996 = vsub.s32 %v1494, %v2995
    %v2997 = vrot.slane %v2863, %v2996
    %v2998 = vsel %vm1499, %v2997, %v2993
    %v2999 = vlaneseq
    %v3000 = vshrl.u32 %v2999, 7
    %v3001 = vsub.s32 %v1501, %v3000
    %v3002 = vrot.slane %v2866, %v3001
    %v3003 = vsel %vm1506, %v3002, %v2998
    %v3004 = vlaneseq
    %v3005 = vshrl.u32 %v3004, 7
    %v3006 = vsub.s32 %v1508, %v3005
    %v3007 = vrot.slane %v2869, %v3006
    %v3008 = vsel %vm1513, %v3007, %v3003
    %v3009 = vlaneseq
    %v3010 = vshrl.u32 %v3009, 7
    %v3011 = vsub.s32 %v1515, %v3010
    %v3012 = vrot.slane %v2872, %v3011
    %v3013 = vsel %vm1520, %v3012, %v3008
    %v3014 = vlaneseq
    %v3015 = vshrl.u32 %v3014, 7
    %v3016 = vsub.s32 %v1522, %v3015
    %v3017 = vrot.slane %v2875, %v3016
    %v3018 = vsel %vm1527, %v3017, %v3013
    %v3019 = vlaneseq
    %v3020 = vshrl.u32 %v3019, 7
    %v3021 = vsub.s32 %v1475, %v3020
    %v3022 = vrot.slane %v2878, %v3021
    %v3023 = vlaneseq
    %v3024 = vshrl.u32 %v3023, 7
    %v3025 = vsub.s32 %v1480, %v3024
    %v3026 = vrot.slane %v2881, %v3025
    %v3027 = vsel %vm1485, %v3026, %v3022
    %v3028 = vlaneseq
    %v3029 = vshrl.u32 %v3028, 7
    %v3030 = vsub.s32 %v1487, %v3029
    %v3031 = vrot.slane %v2884, %v3030
    %v3032 = vsel %vm1492, %v3031, %v3027
    %v3033 = vlaneseq
    %v3034 = vshrl.u32 %v3033, 7
    %v3035 = vsub.s32 %v1494, %v3034
    %v3036 = vrot.slane %v2887, %v3035
    %v3037 = vsel %vm1499, %v3036, %v3032
    %v3038 = vlaneseq
    %v3039 = vshrl.u32 %v3038, 7
    %v3040 = vsub.s32 %v1501, %v3039
    %v3041 = vrot.slane %v2890, %v3040
    %v3042 = vsel %vm1506, %v3041, %v3037
    %v3043 = vlaneseq
    %v3044 = vshrl.u32 %v3043, 7
    %v3045 = vsub.s32 %v1508, %v3044
    %v3046 = vrot.slane %v2893, %v3045
    %v3047 = vsel %vm1513, %v3046, %v3042
    %v3048 = vlaneseq
    %v3049 = vshrl.u32 %v3048, 7
    %v3050 = vsub.s32 %v1515, %v3049
    %v3051 = vrot.slane %v2896, %v3050
    %v3052 = vsel %vm1520, %v3051, %v3047
    %v3053 = vlaneseq
    %v3054 = vshrl.u32 %v3053, 7
    %v3055 = vsub.s32 %v1522, %v3054
    %v3056 = vrot.slane %v2899, %v3055
    %v3057 = vsel %vm1527, %v3056, %v3052
    %v3058 = vsel %vm1074, %v3057, %v3018
    %v3059 = vpack.c.b16 %v3058, %v3058
    %v3062 = vsel %vm1570, %v2979, %v3059
    %v3064 = vld [vmem:[%s2] sm:$0x1]
    %v3065 = vmul.bf16 %v3062, %v3064
    %v3066 = vld [vmem:[%s1] sm:$0xf]
    %v3067 = vld [vmem:[%s1 + $0x4] sm:$0xf]
    %v3068 = vld [vmem:[%s1 + $0x8] sm:$0xf]
    %v3069 = vld [vmem:[%s1 + $0xc] sm:$0xf]
    %v3070 = vld [vmem:[%s1 + $0x10] sm:$0xf]
    %v3071 = vld [vmem:[%s1 + $0x14] sm:$0xf]
    %v3072 = vld [vmem:[%s1 + $0x18] sm:$0xf]
    %v3073 = vld [vmem:[%s1 + $0x1c] sm:$0xf]
    %v3074 = vld [vmem:[%s1 + $0x20] sm:$0xf]
    %v3075 = vld [vmem:[%s1 + $0x24] sm:$0xf]
    %v3076 = vld [vmem:[%s1 + $0x28] sm:$0xf]
    %v3077 = vld [vmem:[%s1 + $0x2c] sm:$0xf]
    %v3078 = vld [vmem:[%s1 + $0x30] sm:$0xf]
    %v3079 = vld [vmem:[%s1 + $0x34] sm:$0xf]
    %v3080 = vld [vmem:[%s1 + $0x38] sm:$0xf]
    %v3081 = vld [vmem:[%s1 + $0x3c] sm:$0xf]
    %v3098 = vunpack.c.l.b16 %v3066
    %v3099 = vunpack.c.l.b16 %v3067
    %v3100 = vunpack.c.l.b16 %v3068
    %v3101 = vunpack.c.l.b16 %v3069
    %v3102 = vunpack.c.l.b16 %v3070
    %v3103 = vunpack.c.l.b16 %v3071
    %v3104 = vunpack.c.l.b16 %v3072
    %v3105 = vunpack.c.l.b16 %v3073
    %v3106 = vunpack.c.l.b16 %v3074
    %v3107 = vunpack.c.l.b16 %v3075
    %v3108 = vunpack.c.l.b16 %v3076
    %v3109 = vunpack.c.l.b16 %v3077
    %v3110 = vunpack.c.l.b16 %v3078
    %v3111 = vunpack.c.l.b16 %v3079
    %v3112 = vunpack.c.l.b16 %v3080
    %v3113 = vunpack.c.l.b16 %v3081
    %v3114 = vpack.c.b16 %v3099, %v3098
    %v3115 = vpack.c.b16 %v3101, %v3100
    %v3116 = vpack.c.b16 %v3103, %v3102
    %v3117 = vpack.c.b16 %v3105, %v3104
    %v3118 = vpack.c.b16 %v3107, %v3106
    %v3119 = vpack.c.b16 %v3109, %v3108
    %v3120 = vpack.c.b16 %v3111, %v3110
    %v3121 = vpack.c.b16 %v3113, %v3112
    %3130 = vmatprep.subr.bf16.mxu0 0
    %3131 = vmatpush1.bf16.msra.mxu0 %v3114
    %3132 = vmatprep.subr.bf16.mxu0 0
    %3133 = vmatpush1.bf16.msra.mxu0 %v3115
    %3134 = vmatprep.subr.bf16.mxu0 0
    %3135 = vmatpush1.bf16.msra.mxu0 %v3116
    %3136 = vmatprep.subr.bf16.mxu0 0
    %3137 = vmatpush1.bf16.msra.mxu0 %v3117
    %3138 = vmatprep.subr.bf16.mxu0 0
    %3139 = vmatpush1.bf16.msra.mxu0 %v3118
    %3140 = vmatprep.subr.bf16.mxu0 0
    %3141 = vmatpush1.bf16.msra.mxu0 %v3119
    %3142 = vmatprep.subr.bf16.mxu0 0
    %3143 = vmatpush1.bf16.msra.mxu0 %v3120
    %3144 = vmatprep.subr.bf16.mxu0 0
    %3145 = vmatpush1.bf16.msra.mxu0 %v3121
    %3146 = vmatprep.subr.bf16.mxu0 0
    %3147 = vmatpush1.bf16.msra.mxu0 0
    %3148 = vmatprep.subr.bf16.mxu0 0
    %3149 = vmatpush1.bf16.msra.mxu0 0
    %3150 = vmatprep.subr.bf16.mxu0 0
    %3151 = vmatpush1.bf16.msra.mxu0 0
    %3152 = vmatprep.subr.bf16.mxu0 0
    %3153 = vmatpush1.bf16.msra.mxu0 0
    %3154 = vmatprep.subr.bf16.mxu0 0
    %3155 = vmatpush1.bf16.msra.mxu0 0
    %3156 = vmatprep.subr.bf16.mxu0 0
    %3157 = vmatpush1.bf16.msra.mxu0 0
    %3158 = vmatprep.subr.bf16.mxu0 0
    %3159 = vmatpush1.bf16.msra.mxu0 0
    %3160 = vmatprep.subr.bf16.mxu0 0
    %3161 = vmatpush1.bf16.msra.mxu0 0
    %3162 = vmatprep.mubr.bf16.mxu0 0
    %3163 = vmatmul.mubr.bf16.gmra.mrb[0].mxu0 %v3065
    %v3164 = vpop.f32.mrb[0].mxu0
    %v3165 = vadd.f32 0.0, %v3164
    %v3166 = vpop.f32.mrb[0].mxu0
    %v3167 = vpop.f32.mrb[0].mxu0
    %v3168 = vpop.f32.mrb[0].mxu0
    %3169 = vdwg.mxu0
    %v3170 = vpack.c.bf16 %v3165, %v3165
    %v3171 = vld [vmem:[%s9] sm:$0xf]
    %v3172 = vld [vmem:[%s9 + $0x4] sm:$0xf]
    %v3173 = vld [vmem:[%s9 + $0x8] sm:$0xf]
    %v3174 = vld [vmem:[%s9 + $0xc] sm:$0xf]
    %v3175 = vld [vmem:[%s10] sm:$0x1]
    %v3177 = vlaneseq
    %v3178 = vshrl.u32 %v3177, 7
    %v3179 = vsub.s32 0, %v3178
    %v3180 = vrot.slane %v3175, %v3179
    %v3186 = vunpack.c.l.b16 %v3171
    %v3187 = vunpack.c.l.b16 %v3172
    %v3188 = vunpack.c.l.b16 %v3173
    %v3189 = vunpack.c.l.b16 %v3174
    %v3190 = vpack.c.b16 %v3187, %v3186
    %v3191 = vpack.c.b16 %v3189, %v3188
    %v3195 = vsel %vm348, %v3170, 0
    %3197 = vmatprep.subr.bf16.mxu0 0
    %3198 = vmatpush1.bf16.msra.mxu0 %v3190
    %3199 = vmatprep.subr.bf16.mxu0 0
    %3200 = vmatpush1.bf16.msra.mxu0 %v3191
    %3201 = vmatprep.subr.bf16.mxu0 0
    %3202 = vmatpush1.bf16.msra.mxu0 0
    %3203 = vmatprep.subr.bf16.mxu0 0
    %3204 = vmatpush1.bf16.msra.mxu0 0
    %3205 = vmatprep.subr.bf16.mxu0 0
    %3206 = vmatpush1.bf16.msra.mxu0 0
    %3207 = vmatprep.subr.bf16.mxu0 0
    %3208 = vmatpush1.bf16.msra.mxu0 0
    %3209 = vmatprep.subr.bf16.mxu0 0
    %3210 = vmatpush1.bf16.msra.mxu0 0
    %3211 = vmatprep.subr.bf16.mxu0 0
    %3212 = vmatpush1.bf16.msra.mxu0 0
    %3213 = vmatprep.subr.bf16.mxu0 0
    %3214 = vmatpush1.bf16.msra.mxu0 0
    %3215 = vmatprep.subr.bf16.mxu0 0
    %3216 = vmatpush1.bf16.msra.mxu0 0
    %3217 = vmatprep.subr.bf16.mxu0 0
    %3218 = vmatpush1.bf16.msra.mxu0 0
    %3219 = vmatprep.subr.bf16.mxu0 0
    %3220 = vmatpush1.bf16.msra.mxu0 0
    %3221 = vmatprep.subr.bf16.mxu0 0
    %3222 = vmatpush1.bf16.msra.mxu0 0
    %3223 = vmatprep.subr.bf16.mxu0 0
    %3224 = vmatpush1.bf16.msra.mxu0 0
    %3225 = vmatprep.subr.bf16.mxu0 0
    %3226 = vmatpush1.bf16.msra.mxu0 0
    %3227 = vmatprep.subr.bf16.mxu0 0
    %3228 = vmatpush1.bf16.msra.mxu0 0
    %3229 = vmatprep.mubr.bf16.mxu0 0
    %3230 = vmatmul.mubr.bf16.gmra.mrb[0].mxu0 %v3195
    %v3231 = vpop.f32.mrb[0].mxu0
    %v3232 = vadd.f32 %v3180, %v3231
    %v3233 = vpop.f32.mrb[0].mxu0
    %v3234 = vpop.f32.mrb[0].mxu0
    %v3235 = vpop.f32.mrb[0].mxu0
    %3236 = vdwg.mxu0
    %v3237 = vsel %vm1748, %v3232, -inf
    %3238 = vmax.xlane.f32.xlu0 %v3237
    %v3239 = vpop.xlane.xlu0 %3238
    %vm3240 = vcmp.eq.f32.partialorder %v3232, %v3239
    %v3241 = vsel %vm3240, 1, 0
    %v3242 = vcvt.s32.f32 %v3241
    %v3243 = vpack.c.bf16 %v3242, %v3242
    %3244 = vst [vmem:[#allocation2] sm:$0x1] %v3243
    %v3245 = vsub.f32 %v3232, %v3239
    %v3246 = vmul.f32 %v3245, 1.442695
    %v3247 = vpow.pop %v3246
    %v3248 = vsel %vm1748, %v3247, 0.0
    %3249 = vadd.xlane.f32.xlu0 %v3248
    %v3250 = vpop.xlane.xlu0 %3249
    %v3251 = vrcp.pop %v3250
    %v3252 = vmul.f32 %v3247, %v3251
    %s3253 = scalar_lea.vmem [#allocation6], 2
    %3254 = vst [vmem:[%s3253] sm:$0x3] %v3252
    %v3255 = vld [vmem:[#allocation2] sm:$0x3]
    %v3256 = vld [vmem:[%s5] sm:$0xf]
    %v3257 = vld [vmem:[%s5 + $0x4] sm:$0xf]
    %v3258 = vld [vmem:[%s5 + $0x8] sm:$0xf]
    %v3259 = vld [vmem:[%s5 + $0xc] sm:$0xf]
    %v3260 = vld [vmem:[%s5 + $0x10] sm:$0xf]
    %v3261 = vld [vmem:[%s5 + $0x14] sm:$0xf]
    %v3262 = vld [vmem:[%s5 + $0x18] sm:$0xf]
    %v3263 = vld [vmem:[%s5 + $0x1c] sm:$0xf]
    %v3264 = vld [vmem:[%s5 + $0x20] sm:$0xf]
    %v3265 = vld [vmem:[%s5 + $0x24] sm:$0xf]
    %v3266 = vld [vmem:[%s5 + $0x28] sm:$0xf]
    %v3267 = vld [vmem:[%s5 + $0x2c] sm:$0xf]
    %v3268 = vld [vmem:[%s5 + $0x30] sm:$0xf]
    %v3269 = vld [vmem:[%s5 + $0x34] sm:$0xf]
    %v3270 = vld [vmem:[%s5 + $0x38] sm:$0xf]
    %v3271 = vld [vmem:[%s5 + $0x3c] sm:$0xf]
    %v3272 = vld [vmem:[%s5 + $0x40] sm:$0xf]
    %v3273 = vld [vmem:[%s5 + $0x44] sm:$0xf]
    %v3274 = vld [vmem:[%s5 + $0x48] sm:$0xf]
    %v3275 = vld [vmem:[%s5 + $0x4c] sm:$0xf]
    %v3278 = vunpack.c.l.s4 1966171168
    %v3279 = vunpack.c.0.s8 %v3278
    %v3280 = vlaneseq
    %v3281 = vshrl.u32 %v3280, 7
    %v3282 = vsub.s32 %v3279, %v3281
    %v3283 = vrot.slane %v3255, %v3282
    %v3284 = vcombine.high %v3283, %v3283
    %v3286 = vunpack.c.l.s4 1966171168
    %v3287 = vunpack.c.0.s8 %v3286
    %v3288 = vlaneseq
    %v3289 = vshrl.u32 %v3288, 7
    %v3290 = vsub.s32 %v3287, %v3289
    %v3291 = vrot.slane %v3283, %v3290
    %v3293 = vunpack.c.l.s4 1966171168
    %v3294 = vunpack.c.0.s8 %v3293
    %v3295 = vlaneseq
    %v3296 = vshrl.u32 %v3295, 7
    %v3297 = vsub.s32 %v3294, %v3296
    %v3298 = vrot.slane %v3284, %v3297
    %v3320 = vunpack.c.l.b16 %v3256
    %v3321 = vunpack.c.l.b16 %v3257
    %v3322 = vunpack.c.l.b16 %v3258
    %v3323 = vunpack.c.l.b16 %v3259
    %v3324 = vunpack.c.l.b16 %v3260
    %v3325 = vunpack.c.l.b16 %v3261
    %v3326 = vunpack.c.l.b16 %v3262
    %v3327 = vunpack.c.l.b16 %v3263
    %v3328 = vunpack.c.l.b16 %v3264
    %v3329 = vunpack.c.l.b16 %v3265
    %v3330 = vunpack.c.l.b16 %v3266
    %v3331 = vunpack.c.l.b16 %v3267
    %v3332 = vunpack.c.l.b16 %v3268
    %v3333 = vunpack.c.l.b16 %v3269
    %v3334 = vunpack.c.l.b16 %v3270
    %v3335 = vunpack.c.l.b16 %v3271
    %v3336 = vunpack.c.l.b16 %v3272
    %v3337 = vunpack.c.l.b16 %v3273
    %v3338 = vunpack.c.l.b16 %v3274
    %v3339 = vunpack.c.l.b16 %v3275
    %v3340 = vpack.c.b16 %v3321, %v3320
    %v3341 = vpack.c.b16 %v3323, %v3322
    %v3342 = vpack.c.b16 %v3325, %v3324
    %v3343 = vpack.c.b16 %v3327, %v3326
    %v3344 = vpack.c.b16 %v3329, %v3328
    %v3345 = vpack.c.b16 %v3331, %v3330
    %v3346 = vpack.c.b16 %v3333, %v3332
    %v3347 = vpack.c.b16 %v3335, %v3334
    %v3348 = vpack.c.b16 %v3337, %v3336
    %v3349 = vpack.c.b16 %v3339, %v3338
    %v3361 = vsel %vm348, %v3298, 0
    %3363 = vmatprep.subr.bf16.mxu0 0
    %3364 = vmatpush1.bf16.msra.mxu0 %v3340
    %3365 = vmatprep.subr.bf16.mxu0 0
    %3366 = vmatpush1.bf16.msra.mxu0 %v3341
    %3367 = vmatprep.subr.bf16.mxu0 0
    %3368 = vmatpush1.bf16.msra.mxu0 %v3342
    %3369 = vmatprep.subr.bf16.mxu0 0
    %3370 = vmatpush1.bf16.msra.mxu0 %v3343
    %3371 = vmatprep.subr.bf16.mxu0 0
    %3372 = vmatpush1.bf16.msra.mxu0 %v3344
    %3373 = vmatprep.subr.bf16.mxu0 0
    %3374 = vmatpush1.bf16.msra.mxu0 %v3345
    %3375 = vmatprep.subr.bf16.mxu0 0
    %3376 = vmatpush1.bf16.msra.mxu0 %v3346
    %3377 = vmatprep.subr.bf16.mxu0 0
    %3378 = vmatpush1.bf16.msra.mxu0 %v3347
    %3379 = vmatprep.subr.bf16.mxu0 0
    %3380 = vmatpush1.bf16.msra.mxu0 %v3348
    %3381 = vmatprep.subr.bf16.mxu0 0
    %3382 = vmatpush1.bf16.msra.mxu0 %v3349
    %3383 = vmatprep.subr.bf16.mxu0 0
    %3384 = vmatpush1.bf16.msra.mxu0 0
    %3385 = vmatprep.subr.bf16.mxu0 0
    %3386 = vmatpush1.bf16.msra.mxu0 0
    %3387 = vmatprep.subr.bf16.mxu0 0
    %3388 = vmatpush1.bf16.msra.mxu0 0
    %3389 = vmatprep.subr.bf16.mxu0 0
    %3390 = vmatpush1.bf16.msra.mxu0 0
    %3391 = vmatprep.subr.bf16.mxu0 0
    %3392 = vmatpush1.bf16.msra.mxu0 0
    %3393 = vmatprep.subr.bf16.mxu0 0
    %3394 = vmatpush1.bf16.msra.mxu0 0
    %3395 = vmatprep.mubr.bf16.mxu0 %v3361
    %3396 = vmatmul.mubr.bf16.gmra.mrb[0].mxu0 %v3291
    %v3397 = vpop.f32.mrb[0].mxu0
    %v3398 = vadd.f32 0.0, %v3397
    %v3399 = vpop.f32.mrb[0].mxu0
    %v3400 = vpop.f32.mrb[0].mxu0
    %v3401 = vpop.f32.mrb[0].mxu0
    %3402 = vdwg.mxu0
    %v3403 = vld [vmem:[#allocation4] sm:$0x3]
    %v3404 = vxor.u32 %v3398, 2147483648
    %v3405 = vmul.f32 %v3404, 1.442695
    %v3406 = vpow.pop %v3405
    %v3407 = vadd.f32 %v3406, 1.0
    %v3408 = vrcp.pop %v3407
    %v3409 = vmul.f32 1.0, %v3408
    %v3410 = vtanh.pop %v3398
    %3412 = vrot.lane.b32.xlu0 %v3403, 32
    %v3413 = vpop.permute.xlu0 %3412
    %v3415 = vmul.f32 %v3409, %v3413
    %3417 = vrot.lane.b32.xlu0 %v3410, 64
    %v3418 = vpop.permute.xlu0 %3417
    %v3420 = vmul.f32 %v3409, %v3418
    %3422 = vrot.lane.b32.xlu0 %v3420, 32
    %v3423 = vpop.permute.xlu0 %3422
    %v3425 = vadd.f32 %v3415, %v3423
    %v3426 = vtanh.pop %v3425
    %3428 = vrot.lane.b32.xlu0 %v3426, 64
    %v3429 = vpop.permute.xlu0 %3428
    %v3431 = vmul.f32 %v3409, %v3429
    %3433 = vrot.lane.b32.xlu0 %v3425, 96
    %v3434 = vpop.permute.xlu0 %3433
    %3436 = vst.msk [vmem:[#allocation4] sm:$0x3] %vm230, %v3434
    %v3437 = vpack.c.bf16 %v3431, %v3431
    %v3440 = vunpack.c.l.s4 1966171168
    %v3441 = vunpack.c.0.s8 %v3440
    %v3442 = vlaneseq
    %v3443 = vshrl.u32 %v3442, 7
    %v3444 = vsub.s32 %v3441, %v3443
    %v3445 = vrot.slane %v3437, %v3444
    %v3447 = vunpack.c.l.s4 1966171168
    %v3448 = vunpack.c.0.s8 %v3447
    %v3449 = vlaneseq
    %v3450 = vshrl.u32 %v3449, 7
    %v3451 = vsub.s32 %v3448, %v3450
    %v3452 = vrot.slane %v3445, %v3451
    %3453 = vrot.lane.b32.xlu0 %v3452, 32
    %v3454 = vpop.permute.xlu0 %3453
    %3456 = vst.msk [vmem:[#allocation2 + $0x1] sm:$0x1] %vm92, %v3454
    %3457 = vst.msk [vmem:[#allocation3] sm:$0x1] %vm92, %v3454
    %v3458 = vld [vmem:[#allocation3] sm:$0x1]
    %v3459 = vld [vmem:[%s6] sm:$0xf]
    %v3460 = vld [vmem:[%s6 + $0x4] sm:$0xf]
    %v3461 = vld [vmem:[%s6 + $0x8] sm:$0xf]
    %v3462 = vld [vmem:[%s6 + $0xc] sm:$0xf]
    %v3463 = vld [vmem:[%s6 + $0x10] sm:$0xf]
    %v3464 = vld [vmem:[%s6 + $0x14] sm:$0xf]
    %v3465 = vld [vmem:[%s6 + $0x18] sm:$0xf]
    %v3466 = vld [vmem:[%s6 + $0x1c] sm:$0xf]
    %v3467 = vld [vmem:[%s6 + $0x20] sm:$0x1]
    %v3477 = vunpack.c.l.b16 %v3459
    %v3478 = vunpack.c.l.b16 %v3460
    %v3479 = vunpack.c.l.b16 %v3461
    %v3480 = vunpack.c.l.b16 %v3462
    %v3481 = vunpack.c.l.b16 %v3463
    %v3482 = vunpack.c.l.b16 %v3464
    %v3483 = vunpack.c.l.b16 %v3465
    %v3484 = vunpack.c.l.b16 %v3466
    %v3485 = vunpack.c.l.b16 %v3467
    %v3486 = vpack.c.b16 %v3478, %v3477
    %v3487 = vpack.c.b16 %v3480, %v3479
    %v3488 = vpack.c.b16 %v3482, %v3481
    %v3489 = vpack.c.b16 %v3484, %v3483
    %v3490 = vpack.c.b16 %v3485, %v3485
    %v3496 = vsel %vm131, %v3458, 0
    %v3499 = vand.u32 %v3490, %v137
    %3501 = vmatprep.subr.bf16.mxu0 0
    %3502 = vmatpush1.bf16.msra.mxu0 %v3486
    %3503 = vmatprep.subr.bf16.mxu0 0
    %3504 = vmatpush1.bf16.msra.mxu0 %v3487
    %3505 = vmatprep.subr.bf16.mxu0 0
    %3506 = vmatpush1.bf16.msra.mxu0 %v3488
    %3507 = vmatprep.subr.bf16.mxu0 0
    %3508 = vmatpush1.bf16.msra.mxu0 %v3489
    %3509 = vmatprep.subr.bf16.mxu0 0
    %3510 = vmatpush1.bf16.msra.mxu0 %v3499
    %3511 = vmatprep.subr.bf16.mxu0 0
    %3512 = vmatpush1.bf16.msra.mxu0 0
    %3513 = vmatprep.subr.bf16.mxu0 0
    %3514 = vmatpush1.bf16.msra.mxu0 0
    %3515 = vmatprep.subr.bf16.mxu0 0
    %3516 = vmatpush1.bf16.msra.mxu0 0
    %3517 = vmatprep.subr.bf16.mxu0 0
    %3518 = vmatpush1.bf16.msra.mxu0 0
    %3519 = vmatprep.subr.bf16.mxu0 0
    %3520 = vmatpush1.bf16.msra.mxu0 0
    %3521 = vmatprep.subr.bf16.mxu0 0
    %3522 = vmatpush1.bf16.msra.mxu0 0
    %3523 = vmatprep.subr.bf16.mxu0 0
    %3524 = vmatpush1.bf16.msra.mxu0 0
    %3525 = vmatprep.subr.bf16.mxu0 0
    %3526 = vmatpush1.bf16.msra.mxu0 0
    %3527 = vmatprep.subr.bf16.mxu0 0
    %3528 = vmatpush1.bf16.msra.mxu0 0
    %3529 = vmatprep.subr.bf16.mxu0 0
    %3530 = vmatpush1.bf16.msra.mxu0 0
    %3531 = vmatprep.subr.bf16.mxu0 0
    %3532 = vmatpush1.bf16.msra.mxu0 0
    %3533 = vmatprep.mubr.bf16.mxu0 0
    %3534 = vmatmul.mubr.bf16.gmra.mrb[0].mxu0 %v3496
    %v3535 = vpop.f32.mrb[0].mxu0
    %v3536 = vadd.f32 0.0, %v3535
    %v3537 = vpop.f32.mrb[0].mxu0
    %v3538 = vpop.f32.mrb[0].mxu0
    %v3539 = vpop.f32.mrb[0].mxu0
    %3540 = vdwg.mxu0
    %v3541 = vld [vmem:[#allocation5] sm:$0x3]
    %v3542 = vxor.u32 %v3536, 2147483648
    %v3543 = vmul.f32 %v3542, 1.442695
    %v3544 = vpow.pop %v3543
    %v3545 = vadd.f32 %v3544, 1.0
    %v3546 = vrcp.pop %v3545
    %v3547 = vmul.f32 1.0, %v3546
    %v3548 = vtanh.pop %v3536
    %3550 = vrot.lane.b32.xlu0 %v3541, 32
    %v3551 = vpop.permute.xlu0 %3550
    %v3553 = vmul.f32 %v3547, %v3551
    %3555 = vrot.lane.b32.xlu0 %v3548, 64
    %v3556 = vpop.permute.xlu0 %3555
    %v3558 = vmul.f32 %v3547, %v3556
    %3560 = vrot.lane.b32.xlu0 %v3558, 32
    %v3561 = vpop.permute.xlu0 %3560
    %v3563 = vadd.f32 %v3553, %v3561
    %v3564 = vtanh.pop %v3563
    %3566 = vrot.lane.b32.xlu0 %v3564, 64
    %v3567 = vpop.permute.xlu0 %3566
    %v3569 = vmul.f32 %v3547, %v3567
    %3571 = vrot.lane.b32.xlu0 %v3563, 96
    %v3572 = vpop.permute.xlu0 %3571
    %3574 = vst.msk [vmem:[#allocation5] sm:$0x3] %vm230, %v3572
    %v3575 = vpack.c.bf16 %v3569, %v3569
    %v3578 = vunpack.c.l.s4 1966171168
    %v3579 = vunpack.c.0.s8 %v3578
    %v3580 = vlaneseq
    %v3581 = vshrl.u32 %v3580, 7
    %v3582 = vsub.s32 %v3579, %v3581
    %v3583 = vrot.slane %v3575, %v3582
    %v3585 = vunpack.c.l.s4 1966171168
    %v3586 = vunpack.c.0.s8 %v3585
    %v3587 = vlaneseq
    %v3588 = vshrl.u32 %v3587, 7
    %v3589 = vsub.s32 %v3586, %v3588
    %v3590 = vrot.slane %v3583, %v3589
    %3591 = vrot.lane.b32.xlu0 %v3590, 64
    %v3592 = vpop.permute.xlu0 %3591
    %3594 = vst.msk [vmem:[#allocation3] sm:$0x1] %vm224, %v3592
    %v3595 = vld [vmem:[%s7] sm:$0xf]
    %v3596 = vld [vmem:[%s7 + $0x4] sm:$0xf]
    %v3597 = vld [vmem:[%s7 + $0x8] sm:$0xf]
    %v3598 = vld [vmem:[%s7 + $0xc] sm:$0xf]
    %3599 = vrot.lane.b32.xlu0 %v3575, 32
    %v3600 = vpop.permute.xlu0 %3599
    %v3605 = vunpack.c.l.b16 %v3595
    %v3606 = vunpack.c.l.b16 %v3596
    %v3607 = vunpack.c.l.b16 %v3597
    %v3608 = vunpack.c.l.b16 %v3598
    %v3609 = vpack.c.b16 %v3606, %v3605
    %v3610 = vpack.c.b16 %v3608, %v3607
    %v3614 = vsel %vm348, %v3600, 0
    %3616 = vmatprep.subr.bf16.mxu0 0
    %3617 = vmatpush1.bf16.msra.mxu0 %v3609
    %3618 = vmatprep.subr.bf16.mxu0 0
    %3619 = vmatpush1.bf16.msra.mxu0 %v3610
    %3620 = vmatprep.subr.bf16.mxu0 0
    %3621 = vmatpush1.bf16.msra.mxu0 0
    %3622 = vmatprep.subr.bf16.mxu0 0
    %3623 = vmatpush1.bf16.msra.mxu0 0
    %3624 = vmatprep.subr.bf16.mxu0 0
    %3625 = vmatpush1.bf16.msra.mxu0 0
    %3626 = vmatprep.subr.bf16.mxu0 0
    %3627 = vmatpush1.bf16.msra.mxu0 0
    %3628 = vmatprep.subr.bf16.mxu0 0
    %3629 = vmatpush1.bf16.msra.mxu0 0
    %3630 = vmatprep.subr.bf16.mxu0 0
    %3631 = vmatpush1.bf16.msra.mxu0 0
    %3632 = vmatprep.subr.bf16.mxu0 0
    %3633 = vmatpush1.bf16.msra.mxu0 0
    %3634 = vmatprep.subr.bf16.mxu0 0
    %3635 = vmatpush1.bf16.msra.mxu0 0
    %3636 = vmatprep.subr.bf16.mxu0 0
    %3637 = vmatpush1.bf16.msra.mxu0 0
    %3638 = vmatprep.subr.bf16.mxu0 0
    %3639 = vmatpush1.bf16.msra.mxu0 0
    %3640 = vmatprep.subr.bf16.mxu0 0
    %3641 = vmatpush1.bf16.msra.mxu0 0
    %3642 = vmatprep.subr.bf16.mxu0 0
    %3643 = vmatpush1.bf16.msra.mxu0 0
    %3644 = vmatprep.subr.bf16.mxu0 0
    %3645 = vmatpush1.bf16.msra.mxu0 0
    %3646 = vmatprep.subr.bf16.mxu0 0
    %3647 = vmatpush1.bf16.msra.mxu0 0
    %3648 = vmatprep.mubr.bf16.mxu0 0
    %3649 = vmatmul.mubr.bf16.gmra.mrb[0].mxu0 %v3614
    %v3650 = vpop.f32.mrb[0].mxu0
    %v3651 = vadd.f32 0.0, %v3650
    %v3652 = vpop.f32.mrb[0].mxu0
    %v3653 = vpop.f32.mrb[0].mxu0
    %v3654 = vpop.f32.mrb[0].mxu0
    %3655 = vdwg.mxu0
    %v3656 = vld [vmem:[%s0] sm:$0xf]
    %v3657 = vld [vmem:[%s0 + $0x4] sm:$0xf]
    %v3658 = vld [vmem:[%s0 + $0x8] sm:$0xf]
    %v3659 = vld [vmem:[%s0 + $0xc] sm:$0xf]
    %v3660 = vld [vmem:[%s0 + $0x10] sm:$0xf]
    %v3661 = vld [vmem:[%s0 + $0x14] sm:$0xf]
    %v3662 = vld [vmem:[%s0 + $0x18] sm:$0xf]
    %v3663 = vld [vmem:[%s0 + $0x1c] sm:$0xf]
    %v3664 = vld [vmem:[%s0 + $0x20] sm:$0xf]
    %v3665 = vld [vmem:[%s0 + $0x24] sm:$0xf]
    %v3666 = vld [vmem:[%s0 + $0x28] sm:$0xf]
    %v3667 = vld [vmem:[%s0 + $0x2c] sm:$0xf]
    %v3668 = vld [vmem:[%s0 + $0x30] sm:$0xf]
    %v3669 = vld [vmem:[%s0 + $0x34] sm:$0xf]
    %v3670 = vld [vmem:[%s0 + $0x38] sm:$0xf]
    %v3671 = vld [vmem:[%s0 + $0x3c] sm:$0xf]
    %v3672 = vunpack.c.l.bf16 %v3656
    %v3673 = vunpack.c.l.bf16 %v3657
    %v3674 = vunpack.c.l.bf16 %v3658
    %v3675 = vunpack.c.l.bf16 %v3659
    %v3676 = vunpack.c.l.bf16 %v3660
    %v3677 = vunpack.c.l.bf16 %v3661
    %v3678 = vunpack.c.l.bf16 %v3662
    %v3679 = vunpack.c.l.bf16 %v3663
    %v3680 = vunpack.c.l.bf16 %v3664
    %v3681 = vunpack.c.l.bf16 %v3665
    %v3682 = vunpack.c.l.bf16 %v3666
    %v3683 = vunpack.c.l.bf16 %v3667
    %v3684 = vunpack.c.l.bf16 %v3668
    %v3685 = vunpack.c.l.bf16 %v3669
    %v3686 = vunpack.c.l.bf16 %v3670
    %v3687 = vunpack.c.l.bf16 %v3671
    %v3690 = vunpack.c.l.s4 1966171168
    %v3691 = vunpack.c.0.s8 %v3690
    %v3692 = vlaneseq
    %v3693 = vshrl.u32 %v3692, 7
    %v3694 = vsub.s32 %v3691, %v3693
    %v3695 = vrot.slane %v3651, %v3694
    %v3696 = vcombine.high %v3695, %v3695
    %v3698 = vunpack.c.l.s4 1966171168
    %v3699 = vunpack.c.0.s8 %v3698
    %v3700 = vlaneseq
    %v3701 = vshrl.u32 %v3700, 7
    %v3702 = vsub.s32 %v3699, %v3701
    %v3703 = vrot.slane %v3695, %v3702
    %v3705 = vunpack.c.l.s4 1966171168
    %v3706 = vunpack.c.0.s8 %v3705
    %v3707 = vlaneseq
    %v3708 = vshrl.u32 %v3707, 7
    %v3709 = vsub.s32 %v3706, %v3708
    %v3710 = vrot.slane %v3696, %v3709
    %v3711 = vlaneseq
    %v3712 = vshrl.u32 %v3711, 7
    %v3713 = vsub.s32 0, %v3712
    %v3714 = vrot.slane %v3703, %v3713
    %v3715 = vlaneseq
    %v3716 = vshrl.u32 %v3715, 7
    %v3717 = vsub.s32 0, %v3716
    %v3718 = vrot.slane %v3710, %v3717
    %v3721 = vadd.f32 %v3672, %v3714
    %v3722 = vadd.f32 %v3673, %v3714
    %v3723 = vadd.f32 %v3674, %v3714
    %v3724 = vadd.f32 %v3675, %v3714
    %v3725 = vadd.f32 %v3676, %v3714
    %v3726 = vadd.f32 %v3677, %v3714
    %v3727 = vadd.f32 %v3678, %v3714
    %v3728 = vadd.f32 %v3679, %v3714
    %v3729 = vadd.f32 %v3680, %v3718
    %v3730 = vadd.f32 %v3681, %v3718
    %v3731 = vadd.f32 %v3682, %v3718
    %v3732 = vadd.f32 %v3683, %v3718
    %v3733 = vadd.f32 %v3684, %v3718
    %v3734 = vadd.f32 %v3685, %v3718
    %v3735 = vadd.f32 %v3686, %v3718
    %v3736 = vadd.f32 %v3687, %v3718
    %v3737 = vtanh.pop %v3721
    %v3738 = vtanh.pop %v3722
    %v3739 = vtanh.pop %v3723
    %v3740 = vtanh.pop %v3724
    %v3741 = vtanh.pop %v3725
    %v3742 = vtanh.pop %v3726
    %v3743 = vtanh.pop %v3727
    %v3744 = vtanh.pop %v3728
    %v3745 = vtanh.pop %v3729
    %v3746 = vtanh.pop %v3730
    %v3747 = vtanh.pop %v3731
    %v3748 = vtanh.pop %v3732
    %v3749 = vtanh.pop %v3733
    %v3750 = vtanh.pop %v3734
    %v3751 = vtanh.pop %v3735
    %v3752 = vtanh.pop %v3736
    %v3753 = vld [vmem:[%s8] sm:$0x1]
    %v3755 = vlaneseq
    %v3756 = vshrl.u32 %v3755, 7
    %v3757 = vsub.s32 0, %v3756
    %v3758 = vrot.slane %v3753, %v3757
    %v3760 = vmul.f32 %v3737, %v3758
    %v3761 = vmul.f32 %v3738, %v3758
    %v3762 = vmul.f32 %v3739, %v3758
    %v3763 = vmul.f32 %v3740, %v3758
    %v3764 = vmul.f32 %v3741, %v3758
    %v3765 = vmul.f32 %v3742, %v3758
    %v3766 = vmul.f32 %v3743, %v3758
    %v3767 = vmul.f32 %v3744, %v3758
    %v3768 = vmul.f32 %v3745, %v3758
    %v3769 = vmul.f32 %v3746, %v3758
    %v3770 = vmul.f32 %v3747, %v3758
    %v3771 = vmul.f32 %v3748, %v3758
    %v3772 = vmul.f32 %v3749, %v3758
    %v3773 = vmul.f32 %v3750, %v3758
    %v3774 = vmul.f32 %v3751, %v3758
    %v3775 = vmul.f32 %v3752, %v3758
    %v3776 = vsel %vm765, %v3760, 0.0
    %3777 = vadd.xlane.f32.xlu0 %v3776
    %v3778 = vpop.xlane.xlu0 %3777
    %v3779 = vsel %vm765, %v3761, 0.0
    %3780 = vadd.xlane.f32.xlu0 %v3779
    %v3781 = vpop.xlane.xlu0 %3780
    %v3782 = vsel %vm765, %v3762, 0.0
    %3783 = vadd.xlane.f32.xlu0 %v3782
    %v3784 = vpop.xlane.xlu0 %3783
    %v3785 = vsel %vm765, %v3763, 0.0
    %3786 = vadd.xlane.f32.xlu0 %v3785
    %v3787 = vpop.xlane.xlu0 %3786
    %v3788 = vsel %vm765, %v3764, 0.0
    %3789 = vadd.xlane.f32.xlu0 %v3788
    %v3790 = vpop.xlane.xlu0 %3789
    %v3791 = vsel %vm765, %v3765, 0.0
    %3792 = vadd.xlane.f32.xlu0 %v3791
    %v3793 = vpop.xlane.xlu0 %3792
    %v3794 = vsel %vm765, %v3766, 0.0
    %3795 = vadd.xlane.f32.xlu0 %v3794
    %v3796 = vpop.xlane.xlu0 %3795
    %v3797 = vsel %vm765, %v3767, 0.0
    %3798 = vadd.xlane.f32.xlu0 %v3797
    %v3799 = vpop.xlane.xlu0 %3798
    %v3800 = vsel %vm765, %v3768, 0.0
    %3801 = vadd.xlane.f32.xlu0 %v3800
    %v3802 = vpop.xlane.xlu0 %3801
    %v3803 = vsel %vm765, %v3769, 0.0
    %3804 = vadd.xlane.f32.xlu0 %v3803
    %v3805 = vpop.xlane.xlu0 %3804
    %v3806 = vsel %vm765, %v3770, 0.0
    %3807 = vadd.xlane.f32.xlu0 %v3806
    %v3808 = vpop.xlane.xlu0 %3807
    %v3809 = vsel %vm765, %v3771, 0.0
    %3810 = vadd.xlane.f32.xlu0 %v3809
    %v3811 = vpop.xlane.xlu0 %3810
    %v3812 = vsel %vm765, %v3772, 0.0
    %3813 = vadd.xlane.f32.xlu0 %v3812
    %v3814 = vpop.xlane.xlu0 %3813
    %v3815 = vsel %vm765, %v3773, 0.0
    %3816 = vadd.xlane.f32.xlu0 %v3815
    %v3817 = vpop.xlane.xlu0 %3816
    %v3818 = vsel %vm765, %v3774, 0.0
    %3819 = vadd.xlane.f32.xlu0 %v3818
    %v3820 = vpop.xlane.xlu0 %3819
    %v3821 = vsel %vm765, %v3775, 0.0
    %3822 = vadd.xlane.f32.xlu0 %v3821
    %v3823 = vpop.xlane.xlu0 %3822
    %v3824 = vld [vmem:[%s3] sm:$0x3]
    %v3826 = vlaneseq
    %v3827 = vshrl.u32 %v3826, 7
    %v3828 = vsub.s32 0, %v3827
    %v3829 = vrot.slane %v3824, %v3828
    %3831 = vbcast.lane.b32.xlu0 %v3829, 256
    %v3832 = vpop.permute.xlu0 %3831
    %s3834 = sor.u32 256, 8
    %3835 = vbcast.lane.b32.xlu0 %v3829, %s3834
    %v3836 = vpop.permute.xlu0 %3835
    %s3838 = sor.u32 256, 16
    %3839 = vbcast.lane.b32.xlu0 %v3829, %s3838
    %v3840 = vpop.permute.xlu0 %3839
    %s3842 = sor.u32 256, 24
    %3843 = vbcast.lane.b32.xlu0 %v3829, %s3842
    %v3844 = vpop.permute.xlu0 %3843
    %s3846 = sor.u32 256, 32
    %3847 = vbcast.lane.b32.xlu0 %v3829, %s3846
    %v3848 = vpop.permute.xlu0 %3847
    %s3850 = sor.u32 256, 40
    %3851 = vbcast.lane.b32.xlu0 %v3829, %s3850
    %v3852 = vpop.permute.xlu0 %3851
    %s3854 = sor.u32 256, 48
    %3855 = vbcast.lane.b32.xlu0 %v3829, %s3854
    %v3856 = vpop.permute.xlu0 %3855
    %s3858 = sor.u32 256, 56
    %3859 = vbcast.lane.b32.xlu0 %v3829, %s3858
    %v3860 = vpop.permute.xlu0 %3859
    %v3861 = vlaneseq
    %v3862 = vshrl.u32 %v3861, 7
    %v3863 = vsub.s32 1, %v3862
    %v3864 = vrot.slane %v3824, %v3863
    %3866 = vbcast.lane.b32.xlu0 %v3864, 256
    %v3867 = vpop.permute.xlu0 %3866
    %s3869 = sor.u32 256, 8
    %3870 = vbcast.lane.b32.xlu0 %v3864, %s3869
    %v3871 = vpop.permute.xlu0 %3870
    %s3873 = sor.u32 256, 16
    %3874 = vbcast.lane.b32.xlu0 %v3864, %s3873
    %v3875 = vpop.permute.xlu0 %3874
    %s3877 = sor.u32 256, 24
    %3878 = vbcast.lane.b32.xlu0 %v3864, %s3877
    %v3879 = vpop.permute.xlu0 %3878
    %s3881 = sor.u32 256, 32
    %3882 = vbcast.lane.b32.xlu0 %v3864, %s3881
    %v3883 = vpop.permute.xlu0 %3882
    %s3885 = sor.u32 256, 40
    %3886 = vbcast.lane.b32.xlu0 %v3864, %s3885
    %v3887 = vpop.permute.xlu0 %3886
    %s3889 = sor.u32 256, 48
    %3890 = vbcast.lane.b32.xlu0 %v3864, %s3889
    %v3891 = vpop.permute.xlu0 %3890
    %s3893 = sor.u32 256, 56
    %3894 = vbcast.lane.b32.xlu0 %v3864, %s3893
    %v3895 = vpop.permute.xlu0 %3894
    %v3912 = vadd.f32 %v3778, %v3832
    %v3913 = vadd.f32 %v3781, %v3836
    %v3914 = vadd.f32 %v3784, %v3840
    %v3915 = vadd.f32 %v3787, %v3844
    %v3916 = vadd.f32 %v3790, %v3848
    %v3917 = vadd.f32 %v3793, %v3852
    %v3918 = vadd.f32 %v3796, %v3856
    %v3919 = vadd.f32 %v3799, %v3860
    %v3920 = vadd.f32 %v3802, %v3867
    %v3921 = vadd.f32 %v3805, %v3871
    %v3922 = vadd.f32 %v3808, %v3875
    %v3923 = vadd.f32 %v3811, %v3879
    %v3924 = vadd.f32 %v3814, %v3883
    %v3925 = vadd.f32 %v3817, %v3887
    %v3926 = vadd.f32 %v3820, %v3891
    %v3927 = vadd.f32 %v3823, %v3895
    %3944 = vset.pattern.permute.xlu0 0
    %3945 = vperm.xlu0 %3944, %v3912
    %v3946 = vpop.permute.xlu0 %3945
    %3947 = vset.pattern.permute.xlu0 0
    %3948 = vperm.xlu0 %3947, %v3913
    %v3949 = vpop.permute.xlu0 %3948
    %3950 = vset.pattern.permute.xlu0 0
    %3951 = vperm.xlu0 %3950, %v3914
    %v3952 = vpop.permute.xlu0 %3951
    %3953 = vset.pattern.permute.xlu0 0
    %3954 = vperm.xlu0 %3953, %v3915
    %v3955 = vpop.permute.xlu0 %3954
    %3956 = vset.pattern.permute.xlu0 0
    %3957 = vperm.xlu0 %3956, %v3916
    %v3958 = vpop.permute.xlu0 %3957
    %3959 = vset.pattern.permute.xlu0 0
    %3960 = vperm.xlu0 %3959, %v3917
    %v3961 = vpop.permute.xlu0 %3960
    %3962 = vset.pattern.permute.xlu0 0
    %3963 = vperm.xlu0 %3962, %v3918
    %v3964 = vpop.permute.xlu0 %3963
    %3965 = vset.pattern.permute.xlu0 0
    %3966 = vperm.xlu0 %3965, %v3919
    %v3967 = vpop.permute.xlu0 %3966
    %3968 = vset.pattern.permute.xlu0 0
    %3969 = vperm.xlu0 %3968, %v3920
    %v3970 = vpop.permute.xlu0 %3969
    %3971 = vset.pattern.permute.xlu0 0
    %3972 = vperm.xlu0 %3971, %v3921
    %v3973 = vpop.permute.xlu0 %3972
    %3974 = vset.pattern.permute.xlu0 0
    %3975 = vperm.xlu0 %3974, %v3922
    %v3976 = vpop.permute.xlu0 %3975
    %3977 = vset.pattern.permute.xlu0 0
    %3978 = vperm.xlu0 %3977, %v3923
    %v3979 = vpop.permute.xlu0 %3978
    %3980 = vset.pattern.permute.xlu0 0
    %3981 = vperm.xlu0 %3980, %v3924
    %v3982 = vpop.permute.xlu0 %3981
    %3983 = vset.pattern.permute.xlu0 0
    %3984 = vperm.xlu0 %3983, %v3925
    %v3985 = vpop.permute.xlu0 %3984
    %3986 = vset.pattern.permute.xlu0 0
    %3987 = vperm.xlu0 %3986, %v3926
    %v3988 = vpop.permute.xlu0 %3987
    %3989 = vset.pattern.permute.xlu0 0
    %3990 = vperm.xlu0 %3989, %v3927
    %v3991 = vpop.permute.xlu0 %3990
    %v3992 = vlaneseq
    %v3993 = vshrl.u32 %v3992, 7
    %v3994 = vsub.s32 %v41, %v3993
    %v3995 = vrot.slane %v3946, %v3994
    %v3996 = vlaneseq
    %v3997 = vshrl.u32 %v3996, 7
    %v3998 = vsub.s32 %v986, %v3997
    %v3999 = vrot.slane %v3949, %v3998
    %v4000 = vsel %vm991, %v3999, %v3995
    %v4001 = vlaneseq
    %v4002 = vshrl.u32 %v4001, 7
    %v4003 = vsub.s32 %v993, %v4002
    %v4004 = vrot.slane %v3952, %v4003
    %v4005 = vsel %vm998, %v4004, %v4000
    %v4006 = vlaneseq
    %v4007 = vshrl.u32 %v4006, 7
    %v4008 = vsub.s32 %v1000, %v4007
    %v4009 = vrot.slane %v3955, %v4008
    %v4010 = vsel %vm1005, %v4009, %v4005
    %v4011 = vlaneseq
    %v4012 = vshrl.u32 %v4011, 7
    %v4013 = vsub.s32 %v1007, %v4012
    %v4014 = vrot.slane %v3958, %v4013
    %v4015 = vsel %vm1012, %v4014, %v4010
    %v4016 = vlaneseq
    %v4017 = vshrl.u32 %v4016, 7
    %v4018 = vsub.s32 %v1014, %v4017
    %v4019 = vrot.slane %v3961, %v4018
    %v4020 = vsel %vm1019, %v4019, %v4015
    %v4021 = vlaneseq
    %v4022 = vshrl.u32 %v4021, 7
    %v4023 = vsub.s32 %v1021, %v4022
    %v4024 = vrot.slane %v3964, %v4023
    %v4025 = vsel %vm1026, %v4024, %v4020
    %v4026 = vlaneseq
    %v4027 = vshrl.u32 %v4026, 7
    %v4028 = vsub.s32 %v1028, %v4027
    %v4029 = vrot.slane %v3967, %v4028
    %v4030 = vsel %vm1033, %v4029, %v4025
    %v4031 = vlaneseq
    %v4032 = vshrl.u32 %v4031, 7
    %v4033 = vsub.s32 %v41, %v4032
    %v4034 = vrot.slane %v3970, %v4033
    %v4035 = vlaneseq
    %v4036 = vshrl.u32 %v4035, 7
    %v4037 = vsub.s32 %v986, %v4036
    %v4038 = vrot.slane %v3973, %v4037
    %v4039 = vsel %vm991, %v4038, %v4034
    %v4040 = vlaneseq
    %v4041 = vshrl.u32 %v4040, 7
    %v4042 = vsub.s32 %v993, %v4041
    %v4043 = vrot.slane %v3976, %v4042
    %v4044 = vsel %vm998, %v4043, %v4039
    %v4045 = vlaneseq
    %v4046 = vshrl.u32 %v4045, 7
    %v4047 = vsub.s32 %v1000, %v4046
    %v4048 = vrot.slane %v3979, %v4047
    %v4049 = vsel %vm1005, %v4048, %v4044
    %v4050 = vlaneseq
    %v4051 = vshrl.u32 %v4050, 7
    %v4052 = vsub.s32 %v1007, %v4051
    %v4053 = vrot.slane %v3982, %v4052
    %v4054 = vsel %vm1012, %v4053, %v4049
    %v4055 = vlaneseq
    %v4056 = vshrl.u32 %v4055, 7
    %v4057 = vsub.s32 %v1014, %v4056
    %v4058 = vrot.slane %v3985, %v4057
    %v4059 = vsel %vm1019, %v4058, %v4054
    %v4060 = vlaneseq
    %v4061 = vshrl.u32 %v4060, 7
    %v4062 = vsub.s32 %v1021, %v4061
    %v4063 = vrot.slane %v3988, %v4062
    %v4064 = vsel %vm1026, %v4063, %v4059
    %v4065 = vlaneseq
    %v4066 = vshrl.u32 %v4065, 7
    %v4067 = vsub.s32 %v1028, %v4066
    %v4068 = vrot.slane %v3991, %v4067
    %v4069 = vsel %vm1033, %v4068, %v4064
    %v4070 = vsel %vm1074, %v4069, %v4030
    %v4072 = vsel %vm1077, %v4070, -inf
    %4073 = vmax.xlane.f32.xlu0 %v4072
    %v4074 = vpop.xlane.xlu0 %4073
    %v4076 = vlaneseq
    %v4077 = vshrl.u32 %v4076, 7
    %v4078 = vsub.s32 0, %v4077
    %v4079 = vrot.slane %v4074, %v4078
    %v4080 = vlaneseq
    %v4081 = vshrl.u32 %v4080, 7
    %v4082 = vsub.s32 1, %v4081
    %v4083 = vrot.slane %v4074, %v4082
    %v4086 = vsub.f32 %v3912, %v4079
    %v4087 = vsub.f32 %v3913, %v4079
    %v4088 = vsub.f32 %v3914, %v4079
    %v4089 = vsub.f32 %v3915, %v4079
    %v4090 = vsub.f32 %v3916, %v4079
    %v4091 = vsub.f32 %v3917, %v4079
    %v4092 = vsub.f32 %v3918, %v4079
    %v4093 = vsub.f32 %v3919, %v4079
    %v4094 = vsub.f32 %v3920, %v4083
    %v4095 = vsub.f32 %v3921, %v4083
    %v4096 = vsub.f32 %v3922, %v4083
    %v4097 = vsub.f32 %v3923, %v4083
    %v4098 = vsub.f32 %v3924, %v4083
    %v4099 = vsub.f32 %v3925, %v4083
    %v4100 = vsub.f32 %v3926, %v4083
    %v4101 = vsub.f32 %v3927, %v4083
    %v4102 = vmul.f32 %v4086, 1.442695
    %v4103 = vpow.pop %v4102
    %v4104 = vmul.f32 %v4087, 1.442695
    %v4105 = vpow.pop %v4104
    %v4106 = vmul.f32 %v4088, 1.442695
    %v4107 = vpow.pop %v4106
    %v4108 = vmul.f32 %v4089, 1.442695
    %v4109 = vpow.pop %v4108
    %v4110 = vmul.f32 %v4090, 1.442695
    %v4111 = vpow.pop %v4110
    %v4112 = vmul.f32 %v4091, 1.442695
    %v4113 = vpow.pop %v4112
    %v4114 = vmul.f32 %v4092, 1.442695
    %v4115 = vpow.pop %v4114
    %v4116 = vmul.f32 %v4093, 1.442695
    %v4117 = vpow.pop %v4116
    %v4118 = vmul.f32 %v4094, 1.442695
    %v4119 = vpow.pop %v4118
    %v4120 = vmul.f32 %v4095, 1.442695
    %v4121 = vpow.pop %v4120
    %v4122 = vmul.f32 %v4096, 1.442695
    %v4123 = vpow.pop %v4122
    %v4124 = vmul.f32 %v4097, 1.442695
    %v4125 = vpow.pop %v4124
    %v4126 = vmul.f32 %v4098, 1.442695
    %v4127 = vpow.pop %v4126
    %v4128 = vmul.f32 %v4099, 1.442695
    %v4129 = vpow.pop %v4128
    %v4130 = vmul.f32 %v4100, 1.442695
    %v4131 = vpow.pop %v4130
    %v4132 = vmul.f32 %v4101, 1.442695
    %v4133 = vpow.pop %v4132
    %4150 = vset.pattern.permute.xlu0 0
    %4151 = vperm.xlu0 %4150, %v4103
    %v4152 = vpop.permute.xlu0 %4151
    %4153 = vset.pattern.permute.xlu0 0
    %4154 = vperm.xlu0 %4153, %v4105
    %v4155 = vpop.permute.xlu0 %4154
    %4156 = vset.pattern.permute.xlu0 0
    %4157 = vperm.xlu0 %4156, %v4107
    %v4158 = vpop.permute.xlu0 %4157
    %4159 = vset.pattern.permute.xlu0 0
    %4160 = vperm.xlu0 %4159, %v4109
    %v4161 = vpop.permute.xlu0 %4160
    %4162 = vset.pattern.permute.xlu0 0
    %4163 = vperm.xlu0 %4162, %v4111
    %v4164 = vpop.permute.xlu0 %4163
    %4165 = vset.pattern.permute.xlu0 0
    %4166 = vperm.xlu0 %4165, %v4113
    %v4167 = vpop.permute.xlu0 %4166
    %4168 = vset.pattern.permute.xlu0 0
    %4169 = vperm.xlu0 %4168, %v4115
    %v4170 = vpop.permute.xlu0 %4169
    %4171 = vset.pattern.permute.xlu0 0
    %4172 = vperm.xlu0 %4171, %v4117
    %v4173 = vpop.permute.xlu0 %4172
    %4174 = vset.pattern.permute.xlu0 0
    %4175 = vperm.xlu0 %4174, %v4119
    %v4176 = vpop.permute.xlu0 %4175
    %4177 = vset.pattern.permute.xlu0 0
    %4178 = vperm.xlu0 %4177, %v4121
    %v4179 = vpop.permute.xlu0 %4178
    %4180 = vset.pattern.permute.xlu0 0
    %4181 = vperm.xlu0 %4180, %v4123
    %v4182 = vpop.permute.xlu0 %4181
    %4183 = vset.pattern.permute.xlu0 0
    %4184 = vperm.xlu0 %4183, %v4125
    %v4185 = vpop.permute.xlu0 %4184
    %4186 = vset.pattern.permute.xlu0 0
    %4187 = vperm.xlu0 %4186, %v4127
    %v4188 = vpop.permute.xlu0 %4187
    %4189 = vset.pattern.permute.xlu0 0
    %4190 = vperm.xlu0 %4189, %v4129
    %v4191 = vpop.permute.xlu0 %4190
    %4192 = vset.pattern.permute.xlu0 0
    %4193 = vperm.xlu0 %4192, %v4131
    %v4194 = vpop.permute.xlu0 %4193
    %4195 = vset.pattern.permute.xlu0 0
    %4196 = vperm.xlu0 %4195, %v4133
    %v4197 = vpop.permute.xlu0 %4196
    %v4198 = vlaneseq
    %v4199 = vshrl.u32 %v4198, 7
    %v4200 = vsub.s32 %v41, %v4199
    %v4201 = vrot.slane %v4152, %v4200
    %v4202 = vlaneseq
    %v4203 = vshrl.u32 %v4202, 7
    %v4204 = vsub.s32 %v986, %v4203
    %v4205 = vrot.slane %v4155, %v4204
    %v4206 = vsel %vm991, %v4205, %v4201
    %v4207 = vlaneseq
    %v4208 = vshrl.u32 %v4207, 7
    %v4209 = vsub.s32 %v993, %v4208
    %v4210 = vrot.slane %v4158, %v4209
    %v4211 = vsel %vm998, %v4210, %v4206
    %v4212 = vlaneseq
    %v4213 = vshrl.u32 %v4212, 7
    %v4214 = vsub.s32 %v1000, %v4213
    %v4215 = vrot.slane %v4161, %v4214
    %v4216 = vsel %vm1005, %v4215, %v4211
    %v4217 = vlaneseq
    %v4218 = vshrl.u32 %v4217, 7
    %v4219 = vsub.s32 %v1007, %v4218
    %v4220 = vrot.slane %v4164, %v4219
    %v4221 = vsel %vm1012, %v4220, %v4216
    %v4222 = vlaneseq
    %v4223 = vshrl.u32 %v4222, 7
    %v4224 = vsub.s32 %v1014, %v4223
    %v4225 = vrot.slane %v4167, %v4224
    %v4226 = vsel %vm1019, %v4225, %v4221
    %v4227 = vlaneseq
    %v4228 = vshrl.u32 %v4227, 7
    %v4229 = vsub.s32 %v1021, %v4228
    %v4230 = vrot.slane %v4170, %v4229
    %v4231 = vsel %vm1026, %v4230, %v4226
    %v4232 = vlaneseq
    %v4233 = vshrl.u32 %v4232, 7
    %v4234 = vsub.s32 %v1028, %v4233
    %v4235 = vrot.slane %v4173, %v4234
    %v4236 = vsel %vm1033, %v4235, %v4231
    %v4237 = vlaneseq
    %v4238 = vshrl.u32 %v4237, 7
    %v4239 = vsub.s32 %v41, %v4238
    %v4240 = vrot.slane %v4176, %v4239
    %v4241 = vlaneseq
    %v4242 = vshrl.u32 %v4241, 7
    %v4243 = vsub.s32 %v986, %v4242
    %v4244 = vrot.slane %v4179, %v4243
    %v4245 = vsel %vm991, %v4244, %v4240
    %v4246 = vlaneseq
    %v4247 = vshrl.u32 %v4246, 7
    %v4248 = vsub.s32 %v993, %v4247
    %v4249 = vrot.slane %v4182, %v4248
    %v4250 = vsel %vm998, %v4249, %v4245
    %v4251 = vlaneseq
    %v4252 = vshrl.u32 %v4251, 7
    %v4253 = vsub.s32 %v1000, %v4252
    %v4254 = vrot.slane %v4185, %v4253
    %v4255 = vsel %vm1005, %v4254, %v4250
    %v4256 = vlaneseq
    %v4257 = vshrl.u32 %v4256, 7
    %v4258 = vsub.s32 %v1007, %v4257
    %v4259 = vrot.slane %v4188, %v4258
    %v4260 = vsel %vm1012, %v4259, %v4255
    %v4261 = vlaneseq
    %v4262 = vshrl.u32 %v4261, 7
    %v4263 = vsub.s32 %v1014, %v4262
    %v4264 = vrot.slane %v4191, %v4263
    %v4265 = vsel %vm1019, %v4264, %v4260
    %v4266 = vlaneseq
    %v4267 = vshrl.u32 %v4266, 7
    %v4268 = vsub.s32 %v1021, %v4267
    %v4269 = vrot.slane %v4194, %v4268
    %v4270 = vsel %vm1026, %v4269, %v4265
    %v4271 = vlaneseq
    %v4272 = vshrl.u32 %v4271, 7
    %v4273 = vsub.s32 %v1028, %v4272
    %v4274 = vrot.slane %v4197, %v4273
    %v4275 = vsel %vm1033, %v4274, %v4270
    %v4276 = vsel %vm1074, %v4275, %v4236
    %v4278 = vsel %vm1077, %v4276, 0.0
    %4279 = vadd.xlane.f32.xlu0 %v4278
    %v4280 = vpop.xlane.xlu0 %4279
    %v4281 = vrcp.pop %v4280
    %v4283 = vlaneseq
    %v4284 = vshrl.u32 %v4283, 7
    %v4285 = vsub.s32 0, %v4284
    %v4286 = vrot.slane %v4281, %v4285
    %v4287 = vlaneseq
    %v4288 = vshrl.u32 %v4287, 7
    %v4289 = vsub.s32 1, %v4288
    %v4290 = vrot.slane %v4281, %v4289
    %v4293 = vmul.f32 %v4103, %v4286
    %v4294 = vmul.f32 %v4105, %v4286
    %v4295 = vmul.f32 %v4107, %v4286
    %v4296 = vmul.f32 %v4109, %v4286
    %v4297 = vmul.f32 %v4111, %v4286
    %v4298 = vmul.f32 %v4113, %v4286
    %v4299 = vmul.f32 %v4115, %v4286
    %v4300 = vmul.f32 %v4117, %v4286
    %v4301 = vmul.f32 %v4119, %v4290
    %v4302 = vmul.f32 %v4121, %v4290
    %v4303 = vmul.f32 %v4123, %v4290
    %v4304 = vmul.f32 %v4125, %v4290
    %v4305 = vmul.f32 %v4127, %v4290
    %v4306 = vmul.f32 %v4129, %v4290
    %v4307 = vmul.f32 %v4131, %v4290
    %v4308 = vmul.f32 %v4133, %v4290
    %v4309 = vpack.c.bf16 %v4294, %v4293
    %v4310 = vpack.c.bf16 %v4296, %v4295
    %v4311 = vpack.c.bf16 %v4298, %v4297
    %v4312 = vpack.c.bf16 %v4300, %v4299
    %v4313 = vpack.c.bf16 %v4302, %v4301
    %v4314 = vpack.c.bf16 %v4304, %v4303
    %v4315 = vpack.c.bf16 %v4306, %v4305
    %v4316 = vpack.c.bf16 %v4308, %v4307
    %v4325 = vunpack.c.l.b16 %v4309
    %v4326 = vunpack.c.h.b16 %v4309
    %v4327 = vunpack.c.l.b16 %v4310
    %v4328 = vunpack.c.h.b16 %v4310
    %v4329 = vunpack.c.l.b16 %v4311
    %v4330 = vunpack.c.h.b16 %v4311
    %v4331 = vunpack.c.l.b16 %v4312
    %v4332 = vunpack.c.h.b16 %v4312
    %v4333 = vunpack.c.l.b16 %v4313
    %v4334 = vunpack.c.h.b16 %v4313
    %v4335 = vunpack.c.l.b16 %v4314
    %v4336 = vunpack.c.h.b16 %v4314
    %v4337 = vunpack.c.l.b16 %v4315
    %v4338 = vunpack.c.h.b16 %v4315
    %v4339 = vunpack.c.l.b16 %v4316
    %v4340 = vunpack.c.h.b16 %v4316
    %4341 = vset.pattern.permute.xlu0 0
    %4342 = vperm.xlu0 %4341, %v4325
    %v4343 = vpop.permute.xlu0 %4342
    %4344 = vset.pattern.permute.xlu0 0
    %4345 = vperm.xlu0 %4344, %v4326
    %v4346 = vpop.permute.xlu0 %4345
    %4347 = vset.pattern.permute.xlu0 0
    %4348 = vperm.xlu0 %4347, %v4327
    %v4349 = vpop.permute.xlu0 %4348
    %4350 = vset.pattern.permute.xlu0 0
    %4351 = vperm.xlu0 %4350, %v4328
    %v4352 = vpop.permute.xlu0 %4351
    %4353 = vset.pattern.permute.xlu0 0
    %4354 = vperm.xlu0 %4353, %v4329
    %v4355 = vpop.permute.xlu0 %4354
    %4356 = vset.pattern.permute.xlu0 0
    %4357 = vperm.xlu0 %4356, %v4330
    %v4358 = vpop.permute.xlu0 %4357
    %4359 = vset.pattern.permute.xlu0 0
    %4360 = vperm.xlu0 %4359, %v4331
    %v4361 = vpop.permute.xlu0 %4360
    %4362 = vset.pattern.permute.xlu0 0
    %4363 = vperm.xlu0 %4362, %v4332
    %v4364 = vpop.permute.xlu0 %4363
    %4365 = vset.pattern.permute.xlu0 0
    %4366 = vperm.xlu0 %4365, %v4333
    %v4367 = vpop.permute.xlu0 %4366
    %4368 = vset.pattern.permute.xlu0 0
    %4369 = vperm.xlu0 %4368, %v4334
    %v4370 = vpop.permute.xlu0 %4369
    %4371 = vset.pattern.permute.xlu0 0
    %4372 = vperm.xlu0 %4371, %v4335
    %v4373 = vpop.permute.xlu0 %4372
    %4374 = vset.pattern.permute.xlu0 0
    %4375 = vperm.xlu0 %4374, %v4336
    %v4376 = vpop.permute.xlu0 %4375
    %4377 = vset.pattern.permute.xlu0 0
    %4378 = vperm.xlu0 %4377, %v4337
    %v4379 = vpop.permute.xlu0 %4378
    %4380 = vset.pattern.permute.xlu0 0
    %4381 = vperm.xlu0 %4380, %v4338
    %v4382 = vpop.permute.xlu0 %4381
    %4383 = vset.pattern.permute.xlu0 0
    %4384 = vperm.xlu0 %4383, %v4339
    %v4385 = vpop.permute.xlu0 %4384
    %4386 = vset.pattern.permute.xlu0 0
    %4387 = vperm.xlu0 %4386, %v4340
    %v4388 = vpop.permute.xlu0 %4387
    %v4389 = vlaneseq
    %v4390 = vshrl.u32 %v4389, 7
    %v4391 = vsub.s32 %v41, %v4390
    %v4392 = vrot.slane %v4343, %v4391
    %v4393 = vlaneseq
    %v4394 = vshrl.u32 %v4393, 7
    %v4395 = vsub.s32 %v986, %v4394
    %v4396 = vrot.slane %v4346, %v4395
    %v4397 = vsel %vm991, %v4396, %v4392
    %v4398 = vlaneseq
    %v4399 = vshrl.u32 %v4398, 7
    %v4400 = vsub.s32 %v993, %v4399
    %v4401 = vrot.slane %v4349, %v4400
    %v4402 = vsel %vm998, %v4401, %v4397
    %v4403 = vlaneseq
    %v4404 = vshrl.u32 %v4403, 7
    %v4405 = vsub.s32 %v1000, %v4404
    %v4406 = vrot.slane %v4352, %v4405
    %v4407 = vsel %vm1005, %v4406, %v4402
    %v4408 = vlaneseq
    %v4409 = vshrl.u32 %v4408, 7
    %v4410 = vsub.s32 %v1007, %v4409
    %v4411 = vrot.slane %v4355, %v4410
    %v4412 = vsel %vm1012, %v4411, %v4407
    %v4413 = vlaneseq
    %v4414 = vshrl.u32 %v4413, 7
    %v4415 = vsub.s32 %v1014, %v4414
    %v4416 = vrot.slane %v4358, %v4415
    %v4417 = vsel %vm1019, %v4416, %v4412
    %v4418 = vlaneseq
    %v4419 = vshrl.u32 %v4418, 7
    %v4420 = vsub.s32 %v1021, %v4419
    %v4421 = vrot.slane %v4361, %v4420
    %v4422 = vsel %vm1026, %v4421, %v4417
    %v4423 = vlaneseq
    %v4424 = vshrl.u32 %v4423, 7
    %v4425 = vsub.s32 %v1028, %v4424
    %v4426 = vrot.slane %v4364, %v4425
    %v4427 = vsel %vm1033, %v4426, %v4422
    %v4428 = vlaneseq
    %v4429 = vshrl.u32 %v4428, 7
    %v4430 = vsub.s32 %v41, %v4429
    %v4431 = vrot.slane %v4367, %v4430
    %v4432 = vlaneseq
    %v4433 = vshrl.u32 %v4432, 7
    %v4434 = vsub.s32 %v986, %v4433
    %v4435 = vrot.slane %v4370, %v4434
    %v4436 = vsel %vm991, %v4435, %v4431
    %v4437 = vlaneseq
    %v4438 = vshrl.u32 %v4437, 7
    %v4439 = vsub.s32 %v993, %v4438
    %v4440 = vrot.slane %v4373, %v4439
    %v4441 = vsel %vm998, %v4440, %v4436
    %v4442 = vlaneseq
    %v4443 = vshrl.u32 %v4442, 7
    %v4444 = vsub.s32 %v1000, %v4443
    %v4445 = vrot.slane %v4376, %v4444
    %v4446 = vsel %vm1005, %v4445, %v4441
    %v4447 = vlaneseq
    %v4448 = vshrl.u32 %v4447, 7
    %v4449 = vsub.s32 %v1007, %v4448
    %v4450 = vrot.slane %v4379, %v4449
    %v4451 = vsel %vm1012, %v4450, %v4446
    %v4452 = vlaneseq
    %v4453 = vshrl.u32 %v4452, 7
    %v4454 = vsub.s32 %v1014, %v4453
    %v4455 = vrot.slane %v4382, %v4454
    %v4456 = vsel %vm1019, %v4455, %v4451
    %v4457 = vlaneseq
    %v4458 = vshrl.u32 %v4457, 7
    %v4459 = vsub.s32 %v1021, %v4458
    %v4460 = vrot.slane %v4385, %v4459
    %v4461 = vsel %vm1026, %v4460, %v4456
    %v4462 = vlaneseq
    %v4463 = vshrl.u32 %v4462, 7
    %v4464 = vsub.s32 %v1028, %v4463
    %v4465 = vrot.slane %v4388, %v4464
    %v4466 = vsel %vm1033, %v4465, %v4461
    %v4467 = vsel %vm1074, %v4466, %v4427
    %v4468 = vpack.c.b16 %v4467, %v4467
    %v4469 = vlaneseq
    %v4470 = vshrl.u32 %v4469, 7
    %v4471 = vsub.s32 %v1475, %v4470
    %v4472 = vrot.slane %v4343, %v4471
    %v4473 = vlaneseq
    %v4474 = vshrl.u32 %v4473, 7
    %v4475 = vsub.s32 %v1480, %v4474
    %v4476 = vrot.slane %v4346, %v4475
    %v4477 = vsel %vm1485, %v4476, %v4472
    %v4478 = vlaneseq
    %v4479 = vshrl.u32 %v4478, 7
    %v4480 = vsub.s32 %v1487, %v4479
    %v4481 = vrot.slane %v4349, %v4480
    %v4482 = vsel %vm1492, %v4481, %v4477
    %v4483 = vlaneseq
    %v4484 = vshrl.u32 %v4483, 7
    %v4485 = vsub.s32 %v1494, %v4484
    %v4486 = vrot.slane %v4352, %v4485
    %v4487 = vsel %vm1499, %v4486, %v4482
    %v4488 = vlaneseq
    %v4489 = vshrl.u32 %v4488, 7
    %v4490 = vsub.s32 %v1501, %v4489
    %v4491 = vrot.slane %v4355, %v4490
    %v4492 = vsel %vm1506, %v4491, %v4487
    %v4493 = vlaneseq
    %v4494 = vshrl.u32 %v4493, 7
    %v4495 = vsub.s32 %v1508, %v4494
    %v4496 = vrot.slane %v4358, %v4495
    %v4497 = vsel %vm1513, %v4496, %v4492
    %v4498 = vlaneseq
    %v4499 = vshrl.u32 %v4498, 7
    %v4500 = vsub.s32 %v1515, %v4499
    %v4501 = vrot.slane %v4361, %v4500
    %v4502 = vsel %vm1520, %v4501, %v4497
    %v4503 = vlaneseq
    %v4504 = vshrl.u32 %v4503, 7
    %v4505 = vsub.s32 %v1522, %v4504
    %v4506 = vrot.slane %v4364, %v4505
    %v4507 = vsel %vm1527, %v4506, %v4502
    %v4508 = vlaneseq
    %v4509 = vshrl.u32 %v4508, 7
    %v4510 = vsub.s32 %v1475, %v4509
    %v4511 = vrot.slane %v4367, %v4510
    %v4512 = vlaneseq
    %v4513 = vshrl.u32 %v4512, 7
    %v4514 = vsub.s32 %v1480, %v4513
    %v4515 = vrot.slane %v4370, %v4514
    %v4516 = vsel %vm1485, %v4515, %v4511
    %v4517 = vlaneseq
    %v4518 = vshrl.u32 %v4517, 7
    %v4519 = vsub.s32 %v1487, %v4518
    %v4520 = vrot.slane %v4373, %v4519
    %v4521 = vsel %vm1492, %v4520, %v4516
    %v4522 = vlaneseq
    %v4523 = vshrl.u32 %v4522, 7
    %v4524 = vsub.s32 %v1494, %v4523
    %v4525 = vrot.slane %v4376, %v4524
    %v4526 = vsel %vm1499, %v4525, %v4521
    %v4527 = vlaneseq
    %v4528 = vshrl.u32 %v4527, 7
    %v4529 = vsub.s32 %v1501, %v4528
    %v4530 = vrot.slane %v4379, %v4529
    %v4531 = vsel %vm1506, %v4530, %v4526
    %v4532 = vlaneseq
    %v4533 = vshrl.u32 %v4532, 7
    %v4534 = vsub.s32 %v1508, %v4533
    %v4535 = vrot.slane %v4382, %v4534
    %v4536 = vsel %vm1513, %v4535, %v4531
    %v4537 = vlaneseq
    %v4538 = vshrl.u32 %v4537, 7
    %v4539 = vsub.s32 %v1515, %v4538
    %v4540 = vrot.slane %v4385, %v4539
    %v4541 = vsel %vm1520, %v4540, %v4536
    %v4542 = vlaneseq
    %v4543 = vshrl.u32 %v4542, 7
    %v4544 = vsub.s32 %v1522, %v4543
    %v4545 = vrot.slane %v4388, %v4544
    %v4546 = vsel %vm1527, %v4545, %v4541
    %v4547 = vsel %vm1074, %v4546, %v4507
    %v4548 = vpack.c.b16 %v4547, %v4547
    %v4551 = vsel %vm1570, %v4468, %v4548
    %v4553 = vld [vmem:[%s2] sm:$0x1]
    %v4554 = vmul.bf16 %v4551, %v4553
    %v4555 = vld [vmem:[%s1] sm:$0xf]
    %v4556 = vld [vmem:[%s1 + $0x4] sm:$0xf]
    %v4557 = vld [vmem:[%s1 + $0x8] sm:$0xf]
    %v4558 = vld [vmem:[%s1 + $0xc] sm:$0xf]
    %v4559 = vld [vmem:[%s1 + $0x10] sm:$0xf]
    %v4560 = vld [vmem:[%s1 + $0x14] sm:$0xf]
    %v4561 = vld [vmem:[%s1 + $0x18] sm:$0xf]
    %v4562 = vld [vmem:[%s1 + $0x1c] sm:$0xf]
    %v4563 = vld [vmem:[%s1 + $0x20] sm:$0xf]
    %v4564 = vld [vmem:[%s1 + $0x24] sm:$0xf]
    %v4565 = vld [vmem:[%s1 + $0x28] sm:$0xf]
    %v4566 = vld [vmem:[%s1 + $0x2c] sm:$0xf]
    %v4567 = vld [vmem:[%s1 + $0x30] sm:$0xf]
    %v4568 = vld [vmem:[%s1 + $0x34] sm:$0xf]
    %v4569 = vld [vmem:[%s1 + $0x38] sm:$0xf]
    %v4570 = vld [vmem:[%s1 + $0x3c] sm:$0xf]
    %v4587 = vunpack.c.l.b16 %v4555
    %v4588 = vunpack.c.l.b16 %v4556
    %v4589 = vunpack.c.l.b16 %v4557
    %v4590 = vunpack.c.l.b16 %v4558
    %v4591 = vunpack.c.l.b16 %v4559
    %v4592 = vunpack.c.l.b16 %v4560
    %v4593 = vunpack.c.l.b16 %v4561
    %v4594 = vunpack.c.l.b16 %v4562
    %v4595 = vunpack.c.l.b16 %v4563
    %v4596 = vunpack.c.l.b16 %v4564
    %v4597 = vunpack.c.l.b16 %v4565
    %v4598 = vunpack.c.l.b16 %v4566
    %v4599 = vunpack.c.l.b16 %v4567
    %v4600 = vunpack.c.l.b16 %v4568
    %v4601 = vunpack.c.l.b16 %v4569
    %v4602 = vunpack.c.l.b16 %v4570
    %v4603 = vpack.c.b16 %v4588, %v4587
    %v4604 = vpack.c.b16 %v4590, %v4589
    %v4605 = vpack.c.b16 %v4592, %v4591
    %v4606 = vpack.c.b16 %v4594, %v4593
    %v4607 = vpack.c.b16 %v4596, %v4595
    %v4608 = vpack.c.b16 %v4598, %v4597
    %v4609 = vpack.c.b16 %v4600, %v4599
    %v4610 = vpack.c.b16 %v4602, %v4601
    %4619 = vmatprep.subr.bf16.mxu0 0
    %4620 = vmatpush1.bf16.msra.mxu0 %v4603
    %4621 = vmatprep.subr.bf16.mxu0 0
    %4622 = vmatpush1.bf16.msra.mxu0 %v4604
    %4623 = vmatprep.subr.bf16.mxu0 0
    %4624 = vmatpush1.bf16.msra.mxu0 %v4605
    %4625 = vmatprep.subr.bf16.mxu0 0
    %4626 = vmatpush1.bf16.msra.mxu0 %v4606
    %4627 = vmatprep.subr.bf16.mxu0 0
    %4628 = vmatpush1.bf16.msra.mxu0 %v4607
    %4629 = vmatprep.subr.bf16.mxu0 0
    %4630 = vmatpush1.bf16.msra.mxu0 %v4608
    %4631 = vmatprep.subr.bf16.mxu0 0
    %4632 = vmatpush1.bf16.msra.mxu0 %v4609
    %4633 = vmatprep.subr.bf16.mxu0 0
    %4634 = vmatpush1.bf16.msra.mxu0 %v4610
    %4635 = vmatprep.subr.bf16.mxu0 0
    %4636 = vmatpush1.bf16.msra.mxu0 0
    %4637 = vmatprep.subr.bf16.mxu0 0
    %4638 = vmatpush1.bf16.msra.mxu0 0
    %4639 = vmatprep.subr.bf16.mxu0 0
    %4640 = vmatpush1.bf16.msra.mxu0 0
    %4641 = vmatprep.subr.bf16.mxu0 0
    %4642 = vmatpush1.bf16.msra.mxu0 0
    %4643 = vmatprep.subr.bf16.mxu0 0
    %4644 = vmatpush1.bf16.msra.mxu0 0
    %4645 = vmatprep.subr.bf16.mxu0 0
    %4646 = vmatpush1.bf16.msra.mxu0 0
    %4647 = vmatprep.subr.bf16.mxu0 0
    %4648 = vmatpush1.bf16.msra.mxu0 0
    %4649 = vmatprep.subr.bf16.mxu0 0
    %4650 = vmatpush1.bf16.msra.mxu0 0
    %4651 = vmatprep.mubr.bf16.mxu0 0
    %4652 = vmatmul.mubr.bf16.gmra.mrb[0].mxu0 %v4554
    %v4653 = vpop.f32.mrb[0].mxu0
    %v4654 = vadd.f32 0.0, %v4653
    %v4655 = vpop.f32.mrb[0].mxu0
    %v4656 = vpop.f32.mrb[0].mxu0
    %v4657 = vpop.f32.mrb[0].mxu0
    %4658 = vdwg.mxu0
    %v4659 = vpack.c.bf16 %v4654, %v4654
    %v4660 = vld [vmem:[%s9] sm:$0xf]
    %v4661 = vld [vmem:[%s9 + $0x4] sm:$0xf]
    %v4662 = vld [vmem:[%s9 + $0x8] sm:$0xf]
    %v4663 = vld [vmem:[%s9 + $0xc] sm:$0xf]
    %v4664 = vld [vmem:[%s10] sm:$0x1]
    %v4666 = vlaneseq
    %v4667 = vshrl.u32 %v4666, 7
    %v4668 = vsub.s32 0, %v4667
    %v4669 = vrot.slane %v4664, %v4668
    %v4675 = vunpack.c.l.b16 %v4660
    %v4676 = vunpack.c.l.b16 %v4661
    %v4677 = vunpack.c.l.b16 %v4662
    %v4678 = vunpack.c.l.b16 %v4663
    %v4679 = vpack.c.b16 %v4676, %v4675
    %v4680 = vpack.c.b16 %v4678, %v4677
    %v4684 = vsel %vm348, %v4659, 0
    %4686 = vmatprep.subr.bf16.mxu0 0
    %4687 = vmatpush1.bf16.msra.mxu0 %v4679
    %4688 = vmatprep.subr.bf16.mxu0 0
    %4689 = vmatpush1.bf16.msra.mxu0 %v4680
    %4690 = vmatprep.subr.bf16.mxu0 0
    %4691 = vmatpush1.bf16.msra.mxu0 0
    %4692 = vmatprep.subr.bf16.mxu0 0
    %4693 = vmatpush1.bf16.msra.mxu0 0
    %4694 = vmatprep.subr.bf16.mxu0 0
    %4695 = vmatpush1.bf16.msra.mxu0 0
    %4696 = vmatprep.subr.bf16.mxu0 0
    %4697 = vmatpush1.bf16.msra.mxu0 0
    %4698 = vmatprep.subr.bf16.mxu0 0
    %4699 = vmatpush1.bf16.msra.mxu0 0
    %4700 = vmatprep.subr.bf16.mxu0 0
    %4701 = vmatpush1.bf16.msra.mxu0 0
    %4702 = vmatprep.subr.bf16.mxu0 0
    %4703 = vmatpush1.bf16.msra.mxu0 0
    %4704 = vmatprep.subr.bf16.mxu0 0
    %4705 = vmatpush1.bf16.msra.mxu0 0
    %4706 = vmatprep.subr.bf16.mxu0 0
    %4707 = vmatpush1.bf16.msra.mxu0 0
    %4708 = vmatprep.subr.bf16.mxu0 0
    %4709 = vmatpush1.bf16.msra.mxu0 0
    %4710 = vmatprep.subr.bf16.mxu0 0
    %4711 = vmatpush1.bf16.msra.mxu0 0
    %4712 = vmatprep.subr.bf16.mxu0 0
    %4713 = vmatpush1.bf16.msra.mxu0 0
    %4714 = vmatprep.subr.bf16.mxu0 0
    %4715 = vmatpush1.bf16.msra.mxu0 0
    %4716 = vmatprep.subr.bf16.mxu0 0
    %4717 = vmatpush1.bf16.msra.mxu0 0
    %4718 = vmatprep.mubr.bf16.mxu0 0
    %4719 = vmatmul.mubr.bf16.gmra.mrb[0].mxu0 %v4684
    %v4720 = vpop.f32.mrb[0].mxu0
    %v4721 = vadd.f32 %v4669, %v4720
    %v4722 = vpop.f32.mrb[0].mxu0
    %v4723 = vpop.f32.mrb[0].mxu0
    %v4724 = vpop.f32.mrb[0].mxu0
    %4725 = vdwg.mxu0
    %v4726 = vsel %vm1748, %v4721, -inf
    %4727 = vmax.xlane.f32.xlu0 %v4726
    %v4728 = vpop.xlane.xlu0 %4727
    %vm4729 = vcmp.eq.f32.partialorder %v4721, %v4728
    %v4730 = vsel %vm4729, 1, 0
    %v4731 = vcvt.s32.f32 %v4730
    %v4732 = vpack.c.bf16 %v4731, %v4731
    %4733 = vst [vmem:[#allocation2] sm:$0x1] %v4732
    %v4734 = vsub.f32 %v4721, %v4728
    %v4735 = vmul.f32 %v4734, 1.442695
    %v4736 = vpow.pop %v4735
    %v4737 = vsel %vm1748, %v4736, 0.0
    %4738 = vadd.xlane.f32.xlu0 %v4737
    %v4739 = vpop.xlane.xlu0 %4738
    %v4740 = vrcp.pop %v4739
    %v4741 = vmul.f32 %v4736, %v4740
    %s4742 = scalar_lea.vmem [#allocation6], 4
    %4743 = vst [vmem:[%s4742] sm:$0x3] %v4741
    %v4744 = vld [vmem:[#allocation2] sm:$0x3]
    %v4745 = vld [vmem:[%s5] sm:$0xf]
    %v4746 = vld [vmem:[%s5 + $0x4] sm:$0xf]
    %v4747 = vld [vmem:[%s5 + $0x8] sm:$0xf]
    %v4748 = vld [vmem:[%s5 + $0xc] sm:$0xf]
    %v4749 = vld [vmem:[%s5 + $0x10] sm:$0xf]
    %v4750 = vld [vmem:[%s5 + $0x14] sm:$0xf]
    %v4751 = vld [vmem:[%s5 + $0x18] sm:$0xf]
    %v4752 = vld [vmem:[%s5 + $0x1c] sm:$0xf]
    %v4753 = vld [vmem:[%s5 + $0x20] sm:$0xf]
    %v4754 = vld [vmem:[%s5 + $0x24] sm:$0xf]
    %v4755 = vld [vmem:[%s5 + $0x28] sm:$0xf]
    %v4756 = vld [vmem:[%s5 + $0x2c] sm:$0xf]
    %v4757 = vld [vmem:[%s5 + $0x30] sm:$0xf]
    %v4758 = vld [vmem:[%s5 + $0x34] sm:$0xf]
    %v4759 = vld [vmem:[%s5 + $0x38] sm:$0xf]
    %v4760 = vld [vmem:[%s5 + $0x3c] sm:$0xf]
    %v4761 = vld [vmem:[%s5 + $0x40] sm:$0xf]
    %v4762 = vld [vmem:[%s5 + $0x44] sm:$0xf]
    %v4763 = vld [vmem:[%s5 + $0x48] sm:$0xf]
    %v4764 = vld [vmem:[%s5 + $0x4c] sm:$0xf]
    %v4767 = vunpack.c.l.s4 1966171168
    %v4768 = vunpack.c.0.s8 %v4767
    %v4769 = vlaneseq
    %v4770 = vshrl.u32 %v4769, 7
    %v4771 = vsub.s32 %v4768, %v4770
    %v4772 = vrot.slane %v4744, %v4771
    %v4773 = vcombine.high %v4772, %v4772
    %v4775 = vunpack.c.l.s4 1966171168
    %v4776 = vunpack.c.0.s8 %v4775
    %v4777 = vlaneseq
    %v4778 = vshrl.u32 %v4777, 7
    %v4779 = vsub.s32 %v4776, %v4778
    %v4780 = vrot.slane %v4772, %v4779
    %v4782 = vunpack.c.l.s4 1966171168
    %v4783 = vunpack.c.0.s8 %v4782
    %v4784 = vlaneseq
    %v4785 = vshrl.u32 %v4784, 7
    %v4786 = vsub.s32 %v4783, %v4785
    %v4787 = vrot.slane %v4773, %v4786
    %v4809 = vunpack.c.l.b16 %v4745
    %v4810 = vunpack.c.l.b16 %v4746
    %v4811 = vunpack.c.l.b16 %v4747
    %v4812 = vunpack.c.l.b16 %v4748
    %v4813 = vunpack.c.l.b16 %v4749
    %v4814 = vunpack.c.l.b16 %v4750
    %v4815 = vunpack.c.l.b16 %v4751
    %v4816 = vunpack.c.l.b16 %v4752
    %v4817 = vunpack.c.l.b16 %v4753
    %v4818 = vunpack.c.l.b16 %v4754
    %v4819 = vunpack.c.l.b16 %v4755
    %v4820 = vunpack.c.l.b16 %v4756
    %v4821 = vunpack.c.l.b16 %v4757
    %v4822 = vunpack.c.l.b16 %v4758
    %v4823 = vunpack.c.l.b16 %v4759
    %v4824 = vunpack.c.l.b16 %v4760
    %v4825 = vunpack.c.l.b16 %v4761
    %v4826 = vunpack.c.l.b16 %v4762
    %v4827 = vunpack.c.l.b16 %v4763
    %v4828 = vunpack.c.l.b16 %v4764
    %v4829 = vpack.c.b16 %v4810, %v4809
    %v4830 = vpack.c.b16 %v4812, %v4811
    %v4831 = vpack.c.b16 %v4814, %v4813
    %v4832 = vpack.c.b16 %v4816, %v4815
    %v4833 = vpack.c.b16 %v4818, %v4817
    %v4834 = vpack.c.b16 %v4820, %v4819
    %v4835 = vpack.c.b16 %v4822, %v4821
    %v4836 = vpack.c.b16 %v4824, %v4823
    %v4837 = vpack.c.b16 %v4826, %v4825
    %v4838 = vpack.c.b16 %v4828, %v4827
    %v4850 = vsel %vm348, %v4787, 0
    %4852 = vmatprep.subr.bf16.mxu0 0
    %4853 = vmatpush1.bf16.msra.mxu0 %v4829
    %4854 = vmatprep.subr.bf16.mxu0 0
    %4855 = vmatpush1.bf16.msra.mxu0 %v4830
    %4856 = vmatprep.subr.bf16.mxu0 0
    %4857 = vmatpush1.bf16.msra.mxu0 %v4831
    %4858 = vmatprep.subr.bf16.mxu0 0
    %4859 = vmatpush1.bf16.msra.mxu0 %v4832
    %4860 = vmatprep.subr.bf16.mxu0 0
    %4861 = vmatpush1.bf16.msra.mxu0 %v4833
    %4862 = vmatprep.subr.bf16.mxu0 0
    %4863 = vmatpush1.bf16.msra.mxu0 %v4834
    %4864 = vmatprep.subr.bf16.mxu0 0
    %4865 = vmatpush1.bf16.msra.mxu0 %v4835
    %4866 = vmatprep.subr.bf16.mxu0 0
    %4867 = vmatpush1.bf16.msra.mxu0 %v4836
    %4868 = vmatprep.subr.bf16.mxu0 0
    %4869 = vmatpush1.bf16.msra.mxu0 %v4837
    %4870 = vmatprep.subr.bf16.mxu0 0
    %4871 = vmatpush1.bf16.msra.mxu0 %v4838
    %4872 = vmatprep.subr.bf16.mxu0 0
    %4873 = vmatpush1.bf16.msra.mxu0 0
    %4874 = vmatprep.subr.bf16.mxu0 0
    %4875 = vmatpush1.bf16.msra.mxu0 0
    %4876 = vmatprep.subr.bf16.mxu0 0
    %4877 = vmatpush1.bf16.msra.mxu0 0
    %4878 = vmatprep.subr.bf16.mxu0 0
    %4879 = vmatpush1.bf16.msra.mxu0 0
    %4880 = vmatprep.subr.bf16.mxu0 0
    %4881 = vmatpush1.bf16.msra.mxu0 0
    %4882 = vmatprep.subr.bf16.mxu0 0
    %4883 = vmatpush1.bf16.msra.mxu0 0
    %4884 = vmatprep.mubr.bf16.mxu0 %v4850
    %4885 = vmatmul.mubr.bf16.gmra.mrb[0].mxu0 %v4780
    %v4886 = vpop.f32.mrb[0].mxu0
    %v4887 = vadd.f32 0.0, %v4886
    %v4888 = vpop.f32.mrb[0].mxu0
    %v4889 = vpop.f32.mrb[0].mxu0
    %v4890 = vpop.f32.mrb[0].mxu0
    %4891 = vdwg.mxu0
    %v4892 = vld [vmem:[#allocation4] sm:$0x3]
    %v4893 = vxor.u32 %v4887, 2147483648
    %v4894 = vmul.f32 %v4893, 1.442695
    %v4895 = vpow.pop %v4894
    %v4896 = vadd.f32 %v4895, 1.0
    %v4897 = vrcp.pop %v4896
    %v4898 = vmul.f32 1.0, %v4897
    %v4899 = vtanh.pop %v4887
    %4901 = vrot.lane.b32.xlu0 %v4892, 32
    %v4902 = vpop.permute.xlu0 %4901
    %v4904 = vmul.f32 %v4898, %v4902
    %4906 = vrot.lane.b32.xlu0 %v4899, 64
    %v4907 = vpop.permute.xlu0 %4906
    %v4909 = vmul.f32 %v4898, %v4907
    %4911 = vrot.lane.b32.xlu0 %v4909, 32
    %v4912 = vpop.permute.xlu0 %4911
    %v4914 = vadd.f32 %v4904, %v4912
    %v4915 = vtanh.pop %v4914
    %4917 = vrot.lane.b32.xlu0 %v4915, 64
    %v4918 = vpop.permute.xlu0 %4917
    %v4920 = vmul.f32 %v4898, %v4918
    %4922 = vrot.lane.b32.xlu0 %v4914, 96
    %v4923 = vpop.permute.xlu0 %4922
    %4925 = vst.msk [vmem:[#allocation4] sm:$0x3] %vm230, %v4923
    %v4926 = vpack.c.bf16 %v4920, %v4920
    %v4929 = vunpack.c.l.s4 1966171168
    %v4930 = vunpack.c.0.s8 %v4929
    %v4931 = vlaneseq
    %v4932 = vshrl.u32 %v4931, 7
    %v4933 = vsub.s32 %v4930, %v4932
    %v4934 = vrot.slane %v4926, %v4933
    %v4936 = vunpack.c.l.s4 1966171168
    %v4937 = vunpack.c.0.s8 %v4936
    %v4938 = vlaneseq
    %v4939 = vshrl.u32 %v4938, 7
    %v4940 = vsub.s32 %v4937, %v4939
    %v4941 = vrot.slane %v4934, %v4940
    %4942 = vrot.lane.b32.xlu0 %v4941, 32
    %v4943 = vpop.permute.xlu0 %4942
    %4945 = vst.msk [vmem:[#allocation2 + $0x1] sm:$0x1] %vm92, %v4943
    %4946 = vst.msk [vmem:[#allocation3] sm:$0x1] %vm92, %v4943
    %v4947 = vld [vmem:[#allocation3] sm:$0x1]
    %v4948 = vld [vmem:[%s6] sm:$0xf]
    %v4949 = vld [vmem:[%s6 + $0x4] sm:$0xf]
    %v4950 = vld [vmem:[%s6 + $0x8] sm:$0xf]
    %v4951 = vld [vmem:[%s6 + $0xc] sm:$0xf]
    %v4952 = vld [vmem:[%s6 + $0x10] sm:$0xf]
    %v4953 = vld [vmem:[%s6 + $0x14] sm:$0xf]
    %v4954 = vld [vmem:[%s6 + $0x18] sm:$0xf]
    %v4955 = vld [vmem:[%s6 + $0x1c] sm:$0xf]
    %v4956 = vld [vmem:[%s6 + $0x20] sm:$0x1]
    %v4966 = vunpack.c.l.b16 %v4948
    %v4967 = vunpack.c.l.b16 %v4949
    %v4968 = vunpack.c.l.b16 %v4950
    %v4969 = vunpack.c.l.b16 %v4951
    %v4970 = vunpack.c.l.b16 %v4952
    %v4971 = vunpack.c.l.b16 %v4953
    %v4972 = vunpack.c.l.b16 %v4954
    %v4973 = vunpack.c.l.b16 %v4955
    %v4974 = vunpack.c.l.b16 %v4956
    %v4975 = vpack.c.b16 %v4967, %v4966
    %v4976 = vpack.c.b16 %v4969, %v4968
    %v4977 = vpack.c.b16 %v4971, %v4970
    %v4978 = vpack.c.b16 %v4973, %v4972
    %v4979 = vpack.c.b16 %v4974, %v4974
    %v4985 = vsel %vm131, %v4947, 0
    %v4988 = vand.u32 %v4979, %v137
    %4990 = vmatprep.subr.bf16.mxu0 0
    %4991 = vmatpush1.bf16.msra.mxu0 %v4975
    %4992 = vmatprep.subr.bf16.mxu0 0
    %4993 = vmatpush1.bf16.msra.mxu0 %v4976
    %4994 = vmatprep.subr.bf16.mxu0 0
    %4995 = vmatpush1.bf16.msra.mxu0 %v4977
    %4996 = vmatprep.subr.bf16.mxu0 0
    %4997 = vmatpush1.bf16.msra.mxu0 %v4978
    %4998 = vmatprep.subr.bf16.mxu0 0
    %4999 = vmatpush1.bf16.msra.mxu0 %v4988
    %5000 = vmatprep.subr.bf16.mxu0 0
    %5001 = vmatpush1.bf16.msra.mxu0 0
    %5002 = vmatprep.subr.bf16.mxu0 0
    %5003 = vmatpush1.bf16.msra.mxu0 0
    %5004 = vmatprep.subr.bf16.mxu0 0
    %5005 = vmatpush1.bf16.msra.mxu0 0
    %5006 = vmatprep.subr.bf16.mxu0 0
    %5007 = vmatpush1.bf16.msra.mxu0 0
    %5008 = vmatprep.subr.bf16.mxu0 0
    %5009 = vmatpush1.bf16.msra.mxu0 0
    %5010 = vmatprep.subr.bf16.mxu0 0
    %5011 = vmatpush1.bf16.msra.mxu0 0
    %5012 = vmatprep.subr.bf16.mxu0 0
    %5013 = vmatpush1.bf16.msra.mxu0 0
    %5014 = vmatprep.subr.bf16.mxu0 0
    %5015 = vmatpush1.bf16.msra.mxu0 0
    %5016 = vmatprep.subr.bf16.mxu0 0
    %5017 = vmatpush1.bf16.msra.mxu0 0
    %5018 = vmatprep.subr.bf16.mxu0 0
    %5019 = vmatpush1.bf16.msra.mxu0 0
    %5020 = vmatprep.subr.bf16.mxu0 0
    %5021 = vmatpush1.bf16.msra.mxu0 0
    %5022 = vmatprep.mubr.bf16.mxu0 0
    %5023 = vmatmul.mubr.bf16.gmra.mrb[0].mxu0 %v4985
    %v5024 = vpop.f32.mrb[0].mxu0
    %v5025 = vadd.f32 0.0, %v5024
    %v5026 = vpop.f32.mrb[0].mxu0
    %v5027 = vpop.f32.mrb[0].mxu0
    %v5028 = vpop.f32.mrb[0].mxu0
    %5029 = vdwg.mxu0
    %v5030 = vld [vmem:[#allocation5] sm:$0x3]
    %v5031 = vxor.u32 %v5025, 2147483648
    %v5032 = vmul.f32 %v5031, 1.442695
    %v5033 = vpow.pop %v5032
    %v5034 = vadd.f32 %v5033, 1.0
    %v5035 = vrcp.pop %v5034
    %v5036 = vmul.f32 1.0, %v5035
    %v5037 = vtanh.pop %v5025
    %5039 = vrot.lane.b32.xlu0 %v5030, 32
    %v5040 = vpop.permute.xlu0 %5039
    %v5042 = vmul.f32 %v5036, %v5040
    %5044 = vrot.lane.b32.xlu0 %v5037, 64
    %v5045 = vpop.permute.xlu0 %5044
    %v5047 = vmul.f32 %v5036, %v5045
    %5049 = vrot.lane.b32.xlu0 %v5047, 32
    %v5050 = vpop.permute.xlu0 %5049
    %v5052 = vadd.f32 %v5042, %v5050
    %v5053 = vtanh.pop %v5052
    %5055 = vrot.lane.b32.xlu0 %v5053, 64
    %v5056 = vpop.permute.xlu0 %5055
    %v5058 = vmul.f32 %v5036, %v5056
    %5060 = vrot.lane.b32.xlu0 %v5052, 96
    %v5061 = vpop.permute.xlu0 %5060
    %5063 = vst.msk [vmem:[#allocation5] sm:$0x3] %vm230, %v5061
    %v5064 = vpack.c.bf16 %v5058, %v5058
    %v5067 = vunpack.c.l.s4 1966171168
    %v5068 = vunpack.c.0.s8 %v5067
    %v5069 = vlaneseq
    %v5070 = vshrl.u32 %v5069, 7
    %v5071 = vsub.s32 %v5068, %v5070
    %v5072 = vrot.slane %v5064, %v5071
    %v5074 = vunpack.c.l.s4 1966171168
    %v5075 = vunpack.c.0.s8 %v5074
    %v5076 = vlaneseq
    %v5077 = vshrl.u32 %v5076, 7
    %v5078 = vsub.s32 %v5075, %v5077
    %v5079 = vrot.slane %v5072, %v5078
    %5080 = vrot.lane.b32.xlu0 %v5079, 64
    %v5081 = vpop.permute.xlu0 %5080
    %5083 = vst.msk [vmem:[#allocation3] sm:$0x1] %vm224, %v5081
    %v5084 = vld [vmem:[%s7] sm:$0xf]
    %v5085 = vld [vmem:[%s7 + $0x4] sm:$0xf]
    %v5086 = vld [vmem:[%s7 + $0x8] sm:$0xf]
    %v5087 = vld [vmem:[%s7 + $0xc] sm:$0xf]
    %5088 = vrot.lane.b32.xlu0 %v5064, 32
    %v5089 = vpop.permute.xlu0 %5088
    %v5094 = vunpack.c.l.b16 %v5084
    %v5095 = vunpack.c.l.b16 %v5085
    %v5096 = vunpack.c.l.b16 %v5086
    %v5097 = vunpack.c.l.b16 %v5087
    %v5098 = vpack.c.b16 %v5095, %v5094
    %v5099 = vpack.c.b16 %v5097, %v5096
    %v5103 = vsel %vm348, %v5089, 0
    %5105 = vmatprep.subr.bf16.mxu0 0
    %5106 = vmatpush1.bf16.msra.mxu0 %v5098
    %5107 = vmatprep.subr.bf16.mxu0 0
    %5108 = vmatpush1.bf16.msra.mxu0 %v5099
    %5109 = vmatprep.subr.bf16.mxu0 0
    %5110 = vmatpush1.bf16.msra.mxu0 0
    %5111 = vmatprep.subr.bf16.mxu0 0
    %5112 = vmatpush1.bf16.msra.mxu0 0
    %5113 = vmatprep.subr.bf16.mxu0 0
    %5114 = vmatpush1.bf16.msra.mxu0 0
    %5115 = vmatprep.subr.bf16.mxu0 0
    %5116 = vmatpush1.bf16.msra.mxu0 0
    %5117 = vmatprep.subr.bf16.mxu0 0
    %5118 = vmatpush1.bf16.msra.mxu0 0
    %5119 = vmatprep.subr.bf16.mxu0 0
    %5120 = vmatpush1.bf16.msra.mxu0 0
    %5121 = vmatprep.subr.bf16.mxu0 0
    %5122 = vmatpush1.bf16.msra.mxu0 0
    %5123 = vmatprep.subr.bf16.mxu0 0
    %5124 = vmatpush1.bf16.msra.mxu0 0
    %5125 = vmatprep.subr.bf16.mxu0 0
    %5126 = vmatpush1.bf16.msra.mxu0 0
    %5127 = vmatprep.subr.bf16.mxu0 0
    %5128 = vmatpush1.bf16.msra.mxu0 0
    %5129 = vmatprep.subr.bf16.mxu0 0
    %5130 = vmatpush1.bf16.msra.mxu0 0
    %5131 = vmatprep.subr.bf16.mxu0 0
    %5132 = vmatpush1.bf16.msra.mxu0 0
    %5133 = vmatprep.subr.bf16.mxu0 0
    %5134 = vmatpush1.bf16.msra.mxu0 0
    %5135 = vmatprep.subr.bf16.mxu0 0
    %5136 = vmatpush1.bf16.msra.mxu0 0
    %5137 = vmatprep.mubr.bf16.mxu0 0
    %5138 = vmatmul.mubr.bf16.gmra.mrb[0].mxu0 %v5103
    %v5139 = vpop.f32.mrb[0].mxu0
    %v5140 = vadd.f32 0.0, %v5139
    %v5141 = vpop.f32.mrb[0].mxu0
    %v5142 = vpop.f32.mrb[0].mxu0
    %v5143 = vpop.f32.mrb[0].mxu0
    %5144 = vdwg.mxu0
    %v5145 = vld [vmem:[%s0] sm:$0xf]
    %v5146 = vld [vmem:[%s0 + $0x4] sm:$0xf]
    %v5147 = vld [vmem:[%s0 + $0x8] sm:$0xf]
    %v5148 = vld [vmem:[%s0 + $0xc] sm:$0xf]
    %v5149 = vld [vmem:[%s0 + $0x10] sm:$0xf]
    %v5150 = vld [vmem:[%s0 + $0x14] sm:$0xf]
    %v5151 = vld [vmem:[%s0 + $0x18] sm:$0xf]
    %v5152 = vld [vmem:[%s0 + $0x1c] sm:$0xf]
    %v5153 = vld [vmem:[%s0 + $0x20] sm:$0xf]
    %v5154 = vld [vmem:[%s0 + $0x24] sm:$0xf]
    %v5155 = vld [vmem:[%s0 + $0x28] sm:$0xf]
    %v5156 = vld [vmem:[%s0 + $0x2c] sm:$0xf]
    %v5157 = vld [vmem:[%s0 + $0x30] sm:$0xf]
    %v5158 = vld [vmem:[%s0 + $0x34] sm:$0xf]
    %v5159 = vld [vmem:[%s0 + $0x38] sm:$0xf]
    %v5160 = vld [vmem:[%s0 + $0x3c] sm:$0xf]
    %v5161 = vunpack.c.l.bf16 %v5145
    %v5162 = vunpack.c.l.bf16 %v5146
    %v5163 = vunpack.c.l.bf16 %v5147
    %v5164 = vunpack.c.l.bf16 %v5148
    %v5165 = vunpack.c.l.bf16 %v5149
    %v5166 = vunpack.c.l.bf16 %v5150
    %v5167 = vunpack.c.l.bf16 %v5151
    %v5168 = vunpack.c.l.bf16 %v5152
    %v5169 = vunpack.c.l.bf16 %v5153
    %v5170 = vunpack.c.l.bf16 %v5154
    %v5171 = vunpack.c.l.bf16 %v5155
    %v5172 = vunpack.c.l.bf16 %v5156
    %v5173 = vunpack.c.l.bf16 %v5157
    %v5174 = vunpack.c.l.bf16 %v5158
    %v5175 = vunpack.c.l.bf16 %v5159
    %v5176 = vunpack.c.l.bf16 %v5160
    %v5179 = vunpack.c.l.s4 1966171168
    %v5180 = vunpack.c.0.s8 %v5179
    %v5181 = vlaneseq
    %v5182 = vshrl.u32 %v5181, 7
    %v5183 = vsub.s32 %v5180, %v5182
    %v5184 = vrot.slane %v5140, %v5183
    %v5185 = vcombine.high %v5184, %v5184
    %v5187 = vunpack.c.l.s4 1966171168
    %v5188 = vunpack.c.0.s8 %v5187
    %v5189 = vlaneseq
    %v5190 = vshrl.u32 %v5189, 7
    %v5191 = vsub.s32 %v5188, %v5190
    %v5192 = vrot.slane %v5184, %v5191
    %v5194 = vunpack.c.l.s4 1966171168
    %v5195 = vunpack.c.0.s8 %v5194
    %v5196 = vlaneseq
    %v5197 = vshrl.u32 %v5196, 7
    %v5198 = vsub.s32 %v5195, %v5197
    %v5199 = vrot.slane %v5185, %v5198
    %v5200 = vlaneseq
    %v5201 = vshrl.u32 %v5200, 7
    %v5202 = vsub.s32 0, %v5201
    %v5203 = vrot.slane %v5192, %v5202
    %v5204 = vlaneseq
    %v5205 = vshrl.u32 %v5204, 7
    %v5206 = vsub.s32 0, %v5205
    %v5207 = vrot.slane %v5199, %v5206
    %v5210 = vadd.f32 %v5161, %v5203
    %v5211 = vadd.f32 %v5162, %v5203
    %v5212 = vadd.f32 %v5163, %v5203
    %v5213 = vadd.f32 %v5164, %v5203
    %v5214 = vadd.f32 %v5165, %v5203
    %v5215 = vadd.f32 %v5166, %v5203
    %v5216 = vadd.f32 %v5167, %v5203
    %v5217 = vadd.f32 %v5168, %v5203
    %v5218 = vadd.f32 %v5169, %v5207
    %v5219 = vadd.f32 %v5170, %v5207
    %v5220 = vadd.f32 %v5171, %v5207
    %v5221 = vadd.f32 %v5172, %v5207
    %v5222 = vadd.f32 %v5173, %v5207
    %v5223 = vadd.f32 %v5174, %v5207
    %v5224 = vadd.f32 %v5175, %v5207
    %v5225 = vadd.f32 %v5176, %v5207
    %v5226 = vtanh.pop %v5210
    %v5227 = vtanh.pop %v5211
    %v5228 = vtanh.pop %v5212
    %v5229 = vtanh.pop %v5213
    %v5230 = vtanh.pop %v5214
    %v5231 = vtanh.pop %v5215
    %v5232 = vtanh.pop %v5216
    %v5233 = vtanh.pop %v5217
    %v5234 = vtanh.pop %v5218
    %v5235 = vtanh.pop %v5219
    %v5236 = vtanh.pop %v5220
    %v5237 = vtanh.pop %v5221
    %v5238 = vtanh.pop %v5222
    %v5239 = vtanh.pop %v5223
    %v5240 = vtanh.pop %v5224
    %v5241 = vtanh.pop %v5225
    %v5242 = vld [vmem:[%s8] sm:$0x1]
    %v5244 = vlaneseq
    %v5245 = vshrl.u32 %v5244, 7
    %v5246 = vsub.s32 0, %v5245
    %v5247 = vrot.slane %v5242, %v5246
    %v5249 = vmul.f32 %v5226, %v5247
    %v5250 = vmul.f32 %v5227, %v5247
    %v5251 = vmul.f32 %v5228, %v5247
    %v5252 = vmul.f32 %v5229, %v5247
    %v5253 = vmul.f32 %v5230, %v5247
    %v5254 = vmul.f32 %v5231, %v5247
    %v5255 = vmul.f32 %v5232, %v5247
    %v5256 = vmul.f32 %v5233, %v5247
    %v5257 = vmul.f32 %v5234, %v5247
    %v5258 = vmul.f32 %v5235, %v5247
    %v5259 = vmul.f32 %v5236, %v5247
    %v5260 = vmul.f32 %v5237, %v5247
    %v5261 = vmul.f32 %v5238, %v5247
    %v5262 = vmul.f32 %v5239, %v5247
    %v5263 = vmul.f32 %v5240, %v5247
    %v5264 = vmul.f32 %v5241, %v5247
    %v5265 = vsel %vm765, %v5249, 0.0
    %5266 = vadd.xlane.f32.xlu0 %v5265
    %v5267 = vpop.xlane.xlu0 %5266
    %v5268 = vsel %vm765, %v5250, 0.0
    %5269 = vadd.xlane.f32.xlu0 %v5268
    %v5270 = vpop.xlane.xlu0 %5269
    %v5271 = vsel %vm765, %v5251, 0.0
    %5272 = vadd.xlane.f32.xlu0 %v5271
    %v5273 = vpop.xlane.xlu0 %5272
    %v5274 = vsel %vm765, %v5252, 0.0
    %5275 = vadd.xlane.f32.xlu0 %v5274
    %v5276 = vpop.xlane.xlu0 %5275
    %v5277 = vsel %vm765, %v5253, 0.0
    %5278 = vadd.xlane.f32.xlu0 %v5277
    %v5279 = vpop.xlane.xlu0 %5278
    %v5280 = vsel %vm765, %v5254, 0.0
    %5281 = vadd.xlane.f32.xlu0 %v5280
    %v5282 = vpop.xlane.xlu0 %5281
    %v5283 = vsel %vm765, %v5255, 0.0
    %5284 = vadd.xlane.f32.xlu0 %v5283
    %v5285 = vpop.xlane.xlu0 %5284
    %v5286 = vsel %vm765, %v5256, 0.0
    %5287 = vadd.xlane.f32.xlu0 %v5286
    %v5288 = vpop.xlane.xlu0 %5287
    %v5289 = vsel %vm765, %v5257, 0.0
    %5290 = vadd.xlane.f32.xlu0 %v5289
    %v5291 = vpop.xlane.xlu0 %5290
    %v5292 = vsel %vm765, %v5258, 0.0
    %5293 = vadd.xlane.f32.xlu0 %v5292
    %v5294 = vpop.xlane.xlu0 %5293
    %v5295 = vsel %vm765, %v5259, 0.0
    %5296 = vadd.xlane.f32.xlu0 %v5295
    %v5297 = vpop.xlane.xlu0 %5296
    %v5298 = vsel %vm765, %v5260, 0.0
    %5299 = vadd.xlane.f32.xlu0 %v5298
    %v5300 = vpop.xlane.xlu0 %5299
    %v5301 = vsel %vm765, %v5261, 0.0
    %5302 = vadd.xlane.f32.xlu0 %v5301
    %v5303 = vpop.xlane.xlu0 %5302
    %v5304 = vsel %vm765, %v5262, 0.0
    %5305 = vadd.xlane.f32.xlu0 %v5304
    %v5306 = vpop.xlane.xlu0 %5305
    %v5307 = vsel %vm765, %v5263, 0.0
    %5308 = vadd.xlane.f32.xlu0 %v5307
    %v5309 = vpop.xlane.xlu0 %5308
    %v5310 = vsel %vm765, %v5264, 0.0
    %5311 = vadd.xlane.f32.xlu0 %v5310
    %v5312 = vpop.xlane.xlu0 %5311
    %v5313 = vld [vmem:[%s3] sm:$0x3]
    %v5315 = vlaneseq
    %v5316 = vshrl.u32 %v5315, 7
    %v5317 = vsub.s32 0, %v5316
    %v5318 = vrot.slane %v5313, %v5317
    %5320 = vbcast.lane.b32.xlu0 %v5318, 256
    %v5321 = vpop.permute.xlu0 %5320
    %s5323 = sor.u32 256, 8
    %5324 = vbcast.lane.b32.xlu0 %v5318, %s5323
    %v5325 = vpop.permute.xlu0 %5324
    %s5327 = sor.u32 256, 16
    %5328 = vbcast.lane.b32.xlu0 %v5318, %s5327
    %v5329 = vpop.permute.xlu0 %5328
    %s5331 = sor.u32 256, 24
    %5332 = vbcast.lane.b32.xlu0 %v5318, %s5331
    %v5333 = vpop.permute.xlu0 %5332
    %s5335 = sor.u32 256, 32
    %5336 = vbcast.lane.b32.xlu0 %v5318, %s5335
    %v5337 = vpop.permute.xlu0 %5336
    %s5339 = sor.u32 256, 40
    %5340 = vbcast.lane.b32.xlu0 %v5318, %s5339
    %v5341 = vpop.permute.xlu0 %5340
    %s5343 = sor.u32 256, 48
    %5344 = vbcast.lane.b32.xlu0 %v5318, %s5343
    %v5345 = vpop.permute.xlu0 %5344
    %s5347 = sor.u32 256, 56
    %5348 = vbcast.lane.b32.xlu0 %v5318, %s5347
    %v5349 = vpop.permute.xlu0 %5348
    %v5350 = vlaneseq
    %v5351 = vshrl.u32 %v5350, 7
    %v5352 = vsub.s32 1, %v5351
    %v5353 = vrot.slane %v5313, %v5352
    %5355 = vbcast.lane.b32.xlu0 %v5353, 256
    %v5356 = vpop.permute.xlu0 %5355
    %s5358 = sor.u32 256, 8
    %5359 = vbcast.lane.b32.xlu0 %v5353, %s5358
    %v5360 = vpop.permute.xlu0 %5359
    %s5362 = sor.u32 256, 16
    %5363 = vbcast.lane.b32.xlu0 %v5353, %s5362
    %v5364 = vpop.permute.xlu0 %5363
    %s5366 = sor.u32 256, 24
    %5367 = vbcast.lane.b32.xlu0 %v5353, %s5366
    %v5368 = vpop.permute.xlu0 %5367
    %s5370 = sor.u32 256, 32
    %5371 = vbcast.lane.b32.xlu0 %v5353, %s5370
    %v5372 = vpop.permute.xlu0 %5371
    %s5374 = sor.u32 256, 40
    %5375 = vbcast.lane.b32.xlu0 %v5353, %s5374
    %v5376 = vpop.permute.xlu0 %5375
    %s5378 = sor.u32 256, 48
    %5379 = vbcast.lane.b32.xlu0 %v5353, %s5378
    %v5380 = vpop.permute.xlu0 %5379
    %s5382 = sor.u32 256, 56
    %5383 = vbcast.lane.b32.xlu0 %v5353, %s5382
    %v5384 = vpop.permute.xlu0 %5383
    %v5401 = vadd.f32 %v5267, %v5321
    %v5402 = vadd.f32 %v5270, %v5325
    %v5403 = vadd.f32 %v5273, %v5329
    %v5404 = vadd.f32 %v5276, %v5333
    %v5405 = vadd.f32 %v5279, %v5337
    %v5406 = vadd.f32 %v5282, %v5341
    %v5407 = vadd.f32 %v5285, %v5345
    %v5408 = vadd.f32 %v5288, %v5349
    %v5409 = vadd.f32 %v5291, %v5356
    %v5410 = vadd.f32 %v5294, %v5360
    %v5411 = vadd.f32 %v5297, %v5364
    %v5412 = vadd.f32 %v5300, %v5368
    %v5413 = vadd.f32 %v5303, %v5372
    %v5414 = vadd.f32 %v5306, %v5376
    %v5415 = vadd.f32 %v5309, %v5380
    %v5416 = vadd.f32 %v5312, %v5384
    %5433 = vset.pattern.permute.xlu0 0
    %5434 = vperm.xlu0 %5433, %v5401
    %v5435 = vpop.permute.xlu0 %5434
    %5436 = vset.pattern.permute.xlu0 0
    %5437 = vperm.xlu0 %5436, %v5402
    %v5438 = vpop.permute.xlu0 %5437
    %5439 = vset.pattern.permute.xlu0 0
    %5440 = vperm.xlu0 %5439, %v5403
    %v5441 = vpop.permute.xlu0 %5440
    %5442 = vset.pattern.permute.xlu0 0
    %5443 = vperm.xlu0 %5442, %v5404
    %v5444 = vpop.permute.xlu0 %5443
    %5445 = vset.pattern.permute.xlu0 0
    %5446 = vperm.xlu0 %5445, %v5405
    %v5447 = vpop.permute.xlu0 %5446
    %5448 = vset.pattern.permute.xlu0 0
    %5449 = vperm.xlu0 %5448, %v5406
    %v5450 = vpop.permute.xlu0 %5449
    %5451 = vset.pattern.permute.xlu0 0
    %5452 = vperm.xlu0 %5451, %v5407
    %v5453 = vpop.permute.xlu0 %5452
    %5454 = vset.pattern.permute.xlu0 0
    %5455 = vperm.xlu0 %5454, %v5408
    %v5456 = vpop.permute.xlu0 %5455
    %5457 = vset.pattern.permute.xlu0 0
    %5458 = vperm.xlu0 %5457, %v5409
    %v5459 = vpop.permute.xlu0 %5458
    %5460 = vset.pattern.permute.xlu0 0
    %5461 = vperm.xlu0 %5460, %v5410
    %v5462 = vpop.permute.xlu0 %5461
    %5463 = vset.pattern.permute.xlu0 0
    %5464 = vperm.xlu0 %5463, %v5411
    %v5465 = vpop.permute.xlu0 %5464
    %5466 = vset.pattern.permute.xlu0 0
    %5467 = vperm.xlu0 %5466, %v5412
    %v5468 = vpop.permute.xlu0 %5467
    %5469 = vset.pattern.permute.xlu0 0
    %5470 = vperm.xlu0 %5469, %v5413
    %v5471 = vpop.permute.xlu0 %5470
    %5472 = vset.pattern.permute.xlu0 0
    %5473 = vperm.xlu0 %5472, %v5414
    %v5474 = vpop.permute.xlu0 %5473
    %5475 = vset.pattern.permute.xlu0 0
    %5476 = vperm.xlu0 %5475, %v5415
    %v5477 = vpop.permute.xlu0 %5476
    %5478 = vset.pattern.permute.xlu0 0
    %5479 = vperm.xlu0 %5478, %v5416
    %v5480 = vpop.permute.xlu0 %5479
    %v5481 = vlaneseq
    %v5482 = vshrl.u32 %v5481, 7
    %v5483 = vsub.s32 %v41, %v5482
    %v5484 = vrot.slane %v5435, %v5483
    %v5485 = vlaneseq
    %v5486 = vshrl.u32 %v5485, 7
    %v5487 = vsub.s32 %v986, %v5486
    %v5488 = vrot.slane %v5438, %v5487
    %v5489 = vsel %vm991, %v5488, %v5484
    %v5490 = vlaneseq
    %v5491 = vshrl.u32 %v5490, 7
    %v5492 = vsub.s32 %v993, %v5491
    %v5493 = vrot.slane %v5441, %v5492
    %v5494 = vsel %vm998, %v5493, %v5489
    %v5495 = vlaneseq
    %v5496 = vshrl.u32 %v5495, 7
    %v5497 = vsub.s32 %v1000, %v5496
    %v5498 = vrot.slane %v5444, %v5497
    %v5499 = vsel %vm1005, %v5498, %v5494
    %v5500 = vlaneseq
    %v5501 = vshrl.u32 %v5500, 7
    %v5502 = vsub.s32 %v1007, %v5501
    %v5503 = vrot.slane %v5447, %v5502
    %v5504 = vsel %vm1012, %v5503, %v5499
    %v5505 = vlaneseq
    %v5506 = vshrl.u32 %v5505, 7
    %v5507 = vsub.s32 %v1014, %v5506
    %v5508 = vrot.slane %v5450, %v5507
    %v5509 = vsel %vm1019, %v5508, %v5504
    %v5510 = vlaneseq
    %v5511 = vshrl.u32 %v5510, 7
    %v5512 = vsub.s32 %v1021, %v5511
    %v5513 = vrot.slane %v5453, %v5512
    %v5514 = vsel %vm1026, %v5513, %v5509
    %v5515 = vlaneseq
    %v5516 = vshrl.u32 %v5515, 7
    %v5517 = vsub.s32 %v1028, %v5516
    %v5518 = vrot.slane %v5456, %v5517
    %v5519 = vsel %vm1033, %v5518, %v5514
    %v5520 = vlaneseq
    %v5521 = vshrl.u32 %v5520, 7
    %v5522 = vsub.s32 %v41, %v5521
    %v5523 = vrot.slane %v5459, %v5522
    %v5524 = vlaneseq
    %v5525 = vshrl.u32 %v5524, 7
    %v5526 = vsub.s32 %v986, %v5525
    %v5527 = vrot.slane %v5462, %v5526
    %v5528 = vsel %vm991, %v5527, %v5523
    %v5529 = vlaneseq
    %v5530 = vshrl.u32 %v5529, 7
    %v5531 = vsub.s32 %v993, %v5530
    %v5532 = vrot.slane %v5465, %v5531
    %v5533 = vsel %vm998, %v5532, %v5528
    %v5534 = vlaneseq
    %v5535 = vshrl.u32 %v5534, 7
    %v5536 = vsub.s32 %v1000, %v5535
    %v5537 = vrot.slane %v5468, %v5536
    %v5538 = vsel %vm1005, %v5537, %v5533
    %v5539 = vlaneseq
    %v5540 = vshrl.u32 %v5539, 7
    %v5541 = vsub.s32 %v1007, %v5540
    %v5542 = vrot.slane %v5471, %v5541
    %v5543 = vsel %vm1012, %v5542, %v5538
    %v5544 = vlaneseq
    %v5545 = vshrl.u32 %v5544, 7
    %v5546 = vsub.s32 %v1014, %v5545
    %v5547 = vrot.slane %v5474, %v5546
    %v5548 = vsel %vm1019, %v5547, %v5543
    %v5549 = vlaneseq
    %v5550 = vshrl.u32 %v5549, 7
    %v5551 = vsub.s32 %v1021, %v5550
    %v5552 = vrot.slane %v5477, %v5551
    %v5553 = vsel %vm1026, %v5552, %v5548
    %v5554 = vlaneseq
    %v5555 = vshrl.u32 %v5554, 7
    %v5556 = vsub.s32 %v1028, %v5555
    %v5557 = vrot.slane %v5480, %v5556
    %v5558 = vsel %vm1033, %v5557, %v5553
    %v5559 = vsel %vm1074, %v5558, %v5519
    %v5561 = vsel %vm1077, %v5559, -inf
    %5562 = vmax.xlane.f32.xlu0 %v5561
    %v5563 = vpop.xlane.xlu0 %5562
    %v5565 = vlaneseq
    %v5566 = vshrl.u32 %v5565, 7
    %v5567 = vsub.s32 0, %v5566
    %v5568 = vrot.slane %v5563, %v5567
    %v5569 = vlaneseq
    %v5570 = vshrl.u32 %v5569, 7
    %v5571 = vsub.s32 1, %v5570
    %v5572 = vrot.slane %v5563, %v5571
    %v5575 = vsub.f32 %v5401, %v5568
    %v5576 = vsub.f32 %v5402, %v5568
    %v5577 = vsub.f32 %v5403, %v5568
    %v5578 = vsub.f32 %v5404, %v5568
    %v5579 = vsub.f32 %v5405, %v5568
    %v5580 = vsub.f32 %v5406, %v5568
    %v5581 = vsub.f32 %v5407, %v5568
    %v5582 = vsub.f32 %v5408, %v5568
    %v5583 = vsub.f32 %v5409, %v5572
    %v5584 = vsub.f32 %v5410, %v5572
    %v5585 = vsub.f32 %v5411, %v5572
    %v5586 = vsub.f32 %v5412, %v5572
    %v5587 = vsub.f32 %v5413, %v5572
    %v5588 = vsub.f32 %v5414, %v5572
    %v5589 = vsub.f32 %v5415, %v5572
    %v5590 = vsub.f32 %v5416, %v5572
    %v5591 = vmul.f32 %v5575, 1.442695
    %v5592 = vpow.pop %v5591
    %v5593 = vmul.f32 %v5576, 1.442695
    %v5594 = vpow.pop %v5593
    %v5595 = vmul.f32 %v5577, 1.442695
    %v5596 = vpow.pop %v5595
    %v5597 = vmul.f32 %v5578, 1.442695
    %v5598 = vpow.pop %v5597
    %v5599 = vmul.f32 %v5579, 1.442695
    %v5600 = vpow.pop %v5599
    %v5601 = vmul.f32 %v5580, 1.442695
    %v5602 = vpow.pop %v5601
    %v5603 = vmul.f32 %v5581, 1.442695
    %v5604 = vpow.pop %v5603
    %v5605 = vmul.f32 %v5582, 1.442695
    %v5606 = vpow.pop %v5605
    %v5607 = vmul.f32 %v5583, 1.442695
    %v5608 = vpow.pop %v5607
    %v5609 = vmul.f32 %v5584, 1.442695
    %v5610 = vpow.pop %v5609
    %v5611 = vmul.f32 %v5585, 1.442695
    %v5612 = vpow.pop %v5611
    %v5613 = vmul.f32 %v5586, 1.442695
    %v5614 = vpow.pop %v5613
    %v5615 = vmul.f32 %v5587, 1.442695
    %v5616 = vpow.pop %v5615
    %v5617 = vmul.f32 %v5588, 1.442695
    %v5618 = vpow.pop %v5617
    %v5619 = vmul.f32 %v5589, 1.442695
    %v5620 = vpow.pop %v5619
    %v5621 = vmul.f32 %v5590, 1.442695
    %v5622 = vpow.pop %v5621
    %5639 = vset.pattern.permute.xlu0 0
    %5640 = vperm.xlu0 %5639, %v5592
    %v5641 = vpop.permute.xlu0 %5640
    %5642 = vset.pattern.permute.xlu0 0
    %5643 = vperm.xlu0 %5642, %v5594
    %v5644 = vpop.permute.xlu0 %5643
    %5645 = vset.pattern.permute.xlu0 0
    %5646 = vperm.xlu0 %5645, %v5596
    %v5647 = vpop.permute.xlu0 %5646
    %5648 = vset.pattern.permute.xlu0 0
    %5649 = vperm.xlu0 %5648, %v5598
    %v5650 = vpop.permute.xlu0 %5649
    %5651 = vset.pattern.permute.xlu0 0
    %5652 = vperm.xlu0 %5651, %v5600
    %v5653 = vpop.permute.xlu0 %5652
    %5654 = vset.pattern.permute.xlu0 0
    %5655 = vperm.xlu0 %5654, %v5602
    %v5656 = vpop.permute.xlu0 %5655
    %5657 = vset.pattern.permute.xlu0 0
    %5658 = vperm.xlu0 %5657, %v5604
    %v5659 = vpop.permute.xlu0 %5658
    %5660 = vset.pattern.permute.xlu0 0
    %5661 = vperm.xlu0 %5660, %v5606
    %v5662 = vpop.permute.xlu0 %5661
    %5663 = vset.pattern.permute.xlu0 0
    %5664 = vperm.xlu0 %5663, %v5608
    %v5665 = vpop.permute.xlu0 %5664
    %5666 = vset.pattern.permute.xlu0 0
    %5667 = vperm.xlu0 %5666, %v5610
    %v5668 = vpop.permute.xlu0 %5667
    %5669 = vset.pattern.permute.xlu0 0
    %5670 = vperm.xlu0 %5669, %v5612
    %v5671 = vpop.permute.xlu0 %5670
    %5672 = vset.pattern.permute.xlu0 0
    %5673 = vperm.xlu0 %5672, %v5614
    %v5674 = vpop.permute.xlu0 %5673
    %5675 = vset.pattern.permute.xlu0 0
    %5676 = vperm.xlu0 %5675, %v5616
    %v5677 = vpop.permute.xlu0 %5676
    %5678 = vset.pattern.permute.xlu0 0
    %5679 = vperm.xlu0 %5678, %v5618
    %v5680 = vpop.permute.xlu0 %5679
    %5681 = vset.pattern.permute.xlu0 0
    %5682 = vperm.xlu0 %5681, %v5620
    %v5683 = vpop.permute.xlu0 %5682
    %5684 = vset.pattern.permute.xlu0 0
    %5685 = vperm.xlu0 %5684, %v5622
    %v5686 = vpop.permute.xlu0 %5685
    %v5687 = vlaneseq
    %v5688 = vshrl.u32 %v5687, 7
    %v5689 = vsub.s32 %v41, %v5688
    %v5690 = vrot.slane %v5641, %v5689
    %v5691 = vlaneseq
    %v5692 = vshrl.u32 %v5691, 7
    %v5693 = vsub.s32 %v986, %v5692
    %v5694 = vrot.slane %v5644, %v5693
    %v5695 = vsel %vm991, %v5694, %v5690
    %v5696 = vlaneseq
    %v5697 = vshrl.u32 %v5696, 7
    %v5698 = vsub.s32 %v993, %v5697
    %v5699 = vrot.slane %v5647, %v5698
    %v5700 = vsel %vm998, %v5699, %v5695
    %v5701 = vlaneseq
    %v5702 = vshrl.u32 %v5701, 7
    %v5703 = vsub.s32 %v1000, %v5702
    %v5704 = vrot.slane %v5650, %v5703
    %v5705 = vsel %vm1005, %v5704, %v5700
    %v5706 = vlaneseq
    %v5707 = vshrl.u32 %v5706, 7
    %v5708 = vsub.s32 %v1007, %v5707
    %v5709 = vrot.slane %v5653, %v5708
    %v5710 = vsel %vm1012, %v5709, %v5705
    %v5711 = vlaneseq
    %v5712 = vshrl.u32 %v5711, 7
    %v5713 = vsub.s32 %v1014, %v5712
    %v5714 = vrot.slane %v5656, %v5713
    %v5715 = vsel %vm1019, %v5714, %v5710
    %v5716 = vlaneseq
    %v5717 = vshrl.u32 %v5716, 7
    %v5718 = vsub.s32 %v1021, %v5717
    %v5719 = vrot.slane %v5659, %v5718
    %v5720 = vsel %vm1026, %v5719, %v5715
    %v5721 = vlaneseq
    %v5722 = vshrl.u32 %v5721, 7
    %v5723 = vsub.s32 %v1028, %v5722
    %v5724 = vrot.slane %v5662, %v5723
    %v5725 = vsel %vm1033, %v5724, %v5720
    %v5726 = vlaneseq
    %v5727 = vshrl.u32 %v5726, 7
    %v5728 = vsub.s32 %v41, %v5727
    %v5729 = vrot.slane %v5665, %v5728
    %v5730 = vlaneseq
    %v5731 = vshrl.u32 %v5730, 7
    %v5732 = vsub.s32 %v986, %v5731
    %v5733 = vrot.slane %v5668, %v5732
    %v5734 = vsel %vm991, %v5733, %v5729
    %v5735 = vlaneseq
    %v5736 = vshrl.u32 %v5735, 7
    %v5737 = vsub.s32 %v993, %v5736
    %v5738 = vrot.slane %v5671, %v5737
    %v5739 = vsel %vm998, %v5738, %v5734
    %v5740 = vlaneseq
    %v5741 = vshrl.u32 %v5740, 7
    %v5742 = vsub.s32 %v1000, %v5741
    %v5743 = vrot.slane %v5674, %v5742
    %v5744 = vsel %vm1005, %v5743, %v5739
    %v5745 = vlaneseq
    %v5746 = vshrl.u32 %v5745, 7
    %v5747 = vsub.s32 %v1007, %v5746
    %v5748 = vrot.slane %v5677, %v5747
    %v5749 = vsel %vm1012, %v5748, %v5744
    %v5750 = vlaneseq
    %v5751 = vshrl.u32 %v5750, 7
    %v5752 = vsub.s32 %v1014, %v5751
    %v5753 = vrot.slane %v5680, %v5752
    %v5754 = vsel %vm1019, %v5753, %v5749
    %v5755 = vlaneseq
    %v5756 = vshrl.u32 %v5755, 7
    %v5757 = vsub.s32 %v1021, %v5756
    %v5758 = vrot.slane %v5683, %v5757
    %v5759 = vsel %vm1026, %v5758, %v5754
    %v5760 = vlaneseq
    %v5761 = vshrl.u32 %v5760, 7
    %v5762 = vsub.s32 %v1028, %v5761
    %v5763 = vrot.slane %v5686, %v5762
    %v5764 = vsel %vm1033, %v5763, %v5759
    %v5765 = vsel %vm1074, %v5764, %v5725
    %v5767 = vsel %vm1077, %v5765, 0.0
    %5768 = vadd.xlane.f32.xlu0 %v5767
    %v5769 = vpop.xlane.xlu0 %5768
    %v5770 = vrcp.pop %v5769
    %v5772 = vlaneseq
    %v5773 = vshrl.u32 %v5772, 7
    %v5774 = vsub.s32 0, %v5773
    %v5775 = vrot.slane %v5770, %v5774
    %v5776 = vlaneseq
    %v5777 = vshrl.u32 %v5776, 7
    %v5778 = vsub.s32 1, %v5777
    %v5779 = vrot.slane %v5770, %v5778
    %v5782 = vmul.f32 %v5592, %v5775
    %v5783 = vmul.f32 %v5594, %v5775
    %v5784 = vmul.f32 %v5596, %v5775
    %v5785 = vmul.f32 %v5598, %v5775
    %v5786 = vmul.f32 %v5600, %v5775
    %v5787 = vmul.f32 %v5602, %v5775
    %v5788 = vmul.f32 %v5604, %v5775
    %v5789 = vmul.f32 %v5606, %v5775
    %v5790 = vmul.f32 %v5608, %v5779
    %v5791 = vmul.f32 %v5610, %v5779
    %v5792 = vmul.f32 %v5612, %v5779
    %v5793 = vmul.f32 %v5614, %v5779
    %v5794 = vmul.f32 %v5616, %v5779
    %v5795 = vmul.f32 %v5618, %v5779
    %v5796 = vmul.f32 %v5620, %v5779
    %v5797 = vmul.f32 %v5622, %v5779
    %v5798 = vpack.c.bf16 %v5783, %v5782
    %v5799 = vpack.c.bf16 %v5785, %v5784
    %v5800 = vpack.c.bf16 %v5787, %v5786
    %v5801 = vpack.c.bf16 %v5789, %v5788
    %v5802 = vpack.c.bf16 %v5791, %v5790
    %v5803 = vpack.c.bf16 %v5793, %v5792
    %v5804 = vpack.c.bf16 %v5795, %v5794
    %v5805 = vpack.c.bf16 %v5797, %v5796
    %v5814 = vunpack.c.l.b16 %v5798
    %v5815 = vunpack.c.h.b16 %v5798
    %v5816 = vunpack.c.l.b16 %v5799
    %v5817 = vunpack.c.h.b16 %v5799
    %v5818 = vunpack.c.l.b16 %v5800
    %v5819 = vunpack.c.h.b16 %v5800
    %v5820 = vunpack.c.l.b16 %v5801
    %v5821 = vunpack.c.h.b16 %v5801
    %v5822 = vunpack.c.l.b16 %v5802
    %v5823 = vunpack.c.h.b16 %v5802
    %v5824 = vunpack.c.l.b16 %v5803
    %v5825 = vunpack.c.h.b16 %v5803
    %v5826 = vunpack.c.l.b16 %v5804
    %v5827 = vunpack.c.h.b16 %v5804
    %v5828 = vunpack.c.l.b16 %v5805
    %v5829 = vunpack.c.h.b16 %v5805
    %5830 = vset.pattern.permute.xlu0 0
    %5831 = vperm.xlu0 %5830, %v5814
    %v5832 = vpop.permute.xlu0 %5831
    %5833 = vset.pattern.permute.xlu0 0
    %5834 = vperm.xlu0 %5833, %v5815
    %v5835 = vpop.permute.xlu0 %5834
    %5836 = vset.pattern.permute.xlu0 0
    %5837 = vperm.xlu0 %5836, %v5816
    %v5838 = vpop.permute.xlu0 %5837
    %5839 = vset.pattern.permute.xlu0 0
    %5840 = vperm.xlu0 %5839, %v5817
    %v5841 = vpop.permute.xlu0 %5840
    %5842 = vset.pattern.permute.xlu0 0
    %5843 = vperm.xlu0 %5842, %v5818
    %v5844 = vpop.permute.xlu0 %5843
    %5845 = vset.pattern.permute.xlu0 0
    %5846 = vperm.xlu0 %5845, %v5819
    %v5847 = vpop.permute.xlu0 %5846
    %5848 = vset.pattern.permute.xlu0 0
    %5849 = vperm.xlu0 %5848, %v5820
    %v5850 = vpop.permute.xlu0 %5849
    %5851 = vset.pattern.permute.xlu0 0
    %5852 = vperm.xlu0 %5851, %v5821
    %v5853 = vpop.permute.xlu0 %5852
    %5854 = vset.pattern.permute.xlu0 0
    %5855 = vperm.xlu0 %5854, %v5822
    %v5856 = vpop.permute.xlu0 %5855
    %5857 = vset.pattern.permute.xlu0 0
    %5858 = vperm.xlu0 %5857, %v5823
    %v5859 = vpop.permute.xlu0 %5858
    %5860 = vset.pattern.permute.xlu0 0
    %5861 = vperm.xlu0 %5860, %v5824
    %v5862 = vpop.permute.xlu0 %5861
    %5863 = vset.pattern.permute.xlu0 0
    %5864 = vperm.xlu0 %5863, %v5825
    %v5865 = vpop.permute.xlu0 %5864
    %5866 = vset.pattern.permute.xlu0 0
    %5867 = vperm.xlu0 %5866, %v5826
    %v5868 = vpop.permute.xlu0 %5867
    %5869 = vset.pattern.permute.xlu0 0
    %5870 = vperm.xlu0 %5869, %v5827
    %v5871 = vpop.permute.xlu0 %5870
    %5872 = vset.pattern.permute.xlu0 0
    %5873 = vperm.xlu0 %5872, %v5828
    %v5874 = vpop.permute.xlu0 %5873
    %5875 = vset.pattern.permute.xlu0 0
    %5876 = vperm.xlu0 %5875, %v5829
    %v5877 = vpop.permute.xlu0 %5876
    %v5878 = vlaneseq
    %v5879 = vshrl.u32 %v5878, 7
    %v5880 = vsub.s32 %v41, %v5879
    %v5881 = vrot.slane %v5832, %v5880
    %v5882 = vlaneseq
    %v5883 = vshrl.u32 %v5882, 7
    %v5884 = vsub.s32 %v986, %v5883
    %v5885 = vrot.slane %v5835, %v5884
    %v5886 = vsel %vm991, %v5885, %v5881
    %v5887 = vlaneseq
    %v5888 = vshrl.u32 %v5887, 7
    %v5889 = vsub.s32 %v993, %v5888
    %v5890 = vrot.slane %v5838, %v5889
    %v5891 = vsel %vm998, %v5890, %v5886
    %v5892 = vlaneseq
    %v5893 = vshrl.u32 %v5892, 7
    %v5894 = vsub.s32 %v1000, %v5893
    %v5895 = vrot.slane %v5841, %v5894
    %v5896 = vsel %vm1005, %v5895, %v5891
    %v5897 = vlaneseq
    %v5898 = vshrl.u32 %v5897, 7
    %v5899 = vsub.s32 %v1007, %v5898
    %v5900 = vrot.slane %v5844, %v5899
    %v5901 = vsel %vm1012, %v5900, %v5896
    %v5902 = vlaneseq
    %v5903 = vshrl.u32 %v5902, 7
    %v5904 = vsub.s32 %v1014, %v5903
    %v5905 = vrot.slane %v5847, %v5904
    %v5906 = vsel %vm1019, %v5905, %v5901
    %v5907 = vlaneseq
    %v5908 = vshrl.u32 %v5907, 7
    %v5909 = vsub.s32 %v1021, %v5908
    %v5910 = vrot.slane %v5850, %v5909
    %v5911 = vsel %vm1026, %v5910, %v5906
    %v5912 = vlaneseq
    %v5913 = vshrl.u32 %v5912, 7
    %v5914 = vsub.s32 %v1028, %v5913
    %v5915 = vrot.slane %v5853, %v5914
    %v5916 = vsel %vm1033, %v5915, %v5911
    %v5917 = vlaneseq
    %v5918 = vshrl.u32 %v5917, 7
    %v5919 = vsub.s32 %v41, %v5918
    %v5920 = vrot.slane %v5856, %v5919
    %v5921 = vlaneseq
    %v5922 = vshrl.u32 %v5921, 7
    %v5923 = vsub.s32 %v986, %v5922
    %v5924 = vrot.slane %v5859, %v5923
    %v5925 = vsel %vm991, %v5924, %v5920
    %v5926 = vlaneseq
    %v5927 = vshrl.u32 %v5926, 7
    %v5928 = vsub.s32 %v993, %v5927
    %v5929 = vrot.slane %v5862, %v5928
    %v5930 = vsel %vm998, %v5929, %v5925
    %v5931 = vlaneseq
    %v5932 = vshrl.u32 %v5931, 7
    %v5933 = vsub.s32 %v1000, %v5932
    %v5934 = vrot.slane %v5865, %v5933
    %v5935 = vsel %vm1005, %v5934, %v5930
    %v5936 = vlaneseq
    %v5937 = vshrl.u32 %v5936, 7
    %v5938 = vsub.s32 %v1007, %v5937
    %v5939 = vrot.slane %v5868, %v5938
    %v5940 = vsel %vm1012, %v5939, %v5935
    %v5941 = vlaneseq
    %v5942 = vshrl.u32 %v5941, 7
    %v5943 = vsub.s32 %v1014, %v5942
    %v5944 = vrot.slane %v5871, %v5943
    %v5945 = vsel %vm1019, %v5944, %v5940
    %v5946 = vlaneseq
    %v5947 = vshrl.u32 %v5946, 7
    %v5948 = vsub.s32 %v1021, %v5947
    %v5949 = vrot.slane %v5874, %v5948
    %v5950 = vsel %vm1026, %v5949, %v5945
    %v5951 = vlaneseq
    %v5952 = vshrl.u32 %v5951, 7
    %v5953 = vsub.s32 %v1028, %v5952
    %v5954 = vrot.slane %v5877, %v5953
    %v5955 = vsel %vm1033, %v5954, %v5950
    %v5956 = vsel %vm1074, %v5955, %v5916
    %v5957 = vpack.c.b16 %v5956, %v5956
    %v5958 = vlaneseq
    %v5959 = vshrl.u32 %v5958, 7
    %v5960 = vsub.s32 %v1475, %v5959
    %v5961 = vrot.slane %v5832, %v5960
    %v5962 = vlaneseq
    %v5963 = vshrl.u32 %v5962, 7
    %v5964 = vsub.s32 %v1480, %v5963
    %v5965 = vrot.slane %v5835, %v5964
    %v5966 = vsel %vm1485, %v5965, %v5961
    %v5967 = vlaneseq
    %v5968 = vshrl.u32 %v5967, 7
    %v5969 = vsub.s32 %v1487, %v5968
    %v5970 = vrot.slane %v5838, %v5969
    %v5971 = vsel %vm1492, %v5970, %v5966
    %v5972 = vlaneseq
    %v5973 = vshrl.u32 %v5972, 7
    %v5974 = vsub.s32 %v1494, %v5973
    %v5975 = vrot.slane %v5841, %v5974
    %v5976 = vsel %vm1499, %v5975, %v5971
    %v5977 = vlaneseq
    %v5978 = vshrl.u32 %v5977, 7
    %v5979 = vsub.s32 %v1501, %v5978
    %v5980 = vrot.slane %v5844, %v5979
    %v5981 = vsel %vm1506, %v5980, %v5976
    %v5982 = vlaneseq
    %v5983 = vshrl.u32 %v5982, 7
    %v5984 = vsub.s32 %v1508, %v5983
    %v5985 = vrot.slane %v5847, %v5984
    %v5986 = vsel %vm1513, %v5985, %v5981
    %v5987 = vlaneseq
    %v5988 = vshrl.u32 %v5987, 7
    %v5989 = vsub.s32 %v1515, %v5988
    %v5990 = vrot.slane %v5850, %v5989
    %v5991 = vsel %vm1520, %v5990, %v5986
    %v5992 = vlaneseq
    %v5993 = vshrl.u32 %v5992, 7
    %v5994 = vsub.s32 %v1522, %v5993
    %v5995 = vrot.slane %v5853, %v5994
    %v5996 = vsel %vm1527, %v5995, %v5991
    %v5997 = vlaneseq
    %v5998 = vshrl.u32 %v5997, 7
    %v5999 = vsub.s32 %v1475, %v5998
    %v6000 = vrot.slane %v5856, %v5999
    %v6001 = vlaneseq
    %v6002 = vshrl.u32 %v6001, 7
    %v6003 = vsub.s32 %v1480, %v6002
    %v6004 = vrot.slane %v5859, %v6003
    %v6005 = vsel %vm1485, %v6004, %v6000
    %v6006 = vlaneseq
    %v6007 = vshrl.u32 %v6006, 7
    %v6008 = vsub.s32 %v1487, %v6007
    %v6009 = vrot.slane %v5862, %v6008
    %v6010 = vsel %vm1492, %v6009, %v6005
    %v6011 = vlaneseq
    %v6012 = vshrl.u32 %v6011, 7
    %v6013 = vsub.s32 %v1494, %v6012
    %v6014 = vrot.slane %v5865, %v6013
    %v6015 = vsel %vm1499, %v6014, %v6010
    %v6016 = vlaneseq
    %v6017 = vshrl.u32 %v6016, 7
    %v6018 = vsub.s32 %v1501, %v6017
    %v6019 = vrot.slane %v5868, %v6018
    %v6020 = vsel %vm1506, %v6019, %v6015
    %v6021 = vlaneseq
    %v6022 = vshrl.u32 %v6021, 7
    %v6023 = vsub.s32 %v1508, %v6022
    %v6024 = vrot.slane %v5871, %v6023
    %v6025 = vsel %vm1513, %v6024, %v6020
    %v6026 = vlaneseq
    %v6027 = vshrl.u32 %v6026, 7
    %v6028 = vsub.s32 %v1515, %v6027
    %v6029 = vrot.slane %v5874, %v6028
    %v6030 = vsel %vm1520, %v6029, %v6025
    %v6031 = vlaneseq
    %v6032 = vshrl.u32 %v6031, 7
    %v6033 = vsub.s32 %v1522, %v6032
    %v6034 = vrot.slane %v5877, %v6033
    %v6035 = vsel %vm1527, %v6034, %v6030
    %v6036 = vsel %vm1074, %v6035, %v5996
    %v6037 = vpack.c.b16 %v6036, %v6036
    %v6040 = vsel %vm1570, %v5957, %v6037
    %v6042 = vld [vmem:[%s2] sm:$0x1]
    %v6043 = vmul.bf16 %v6040, %v6042
    %v6044 = vld [vmem:[%s1] sm:$0xf]
    %v6045 = vld [vmem:[%s1 + $0x4] sm:$0xf]
    %v6046 = vld [vmem:[%s1 + $0x8] sm:$0xf]
    %v6047 = vld [vmem:[%s1 + $0xc] sm:$0xf]
    %v6048 = vld [vmem:[%s1 + $0x10] sm:$0xf]
    %v6049 = vld [vmem:[%s1 + $0x14] sm:$0xf]
    %v6050 = vld [vmem:[%s1 + $0x18] sm:$0xf]
    %v6051 = vld [vmem:[%s1 + $0x1c] sm:$0xf]
    %v6052 = vld [vmem:[%s1 + $0x20] sm:$0xf]
    %v6053 = vld [vmem:[%s1 + $0x24] sm:$0xf]
    %v6054 = vld [vmem:[%s1 + $0x28] sm:$0xf]
    %v6055 = vld [vmem:[%s1 + $0x2c] sm:$0xf]
    %v6056 = vld [vmem:[%s1 + $0x30] sm:$0xf]
    %v6057 = vld [vmem:[%s1 + $0x34] sm:$0xf]
    %v6058 = vld [vmem:[%s1 + $0x38] sm:$0xf]
    %v6059 = vld [vmem:[%s1 + $0x3c] sm:$0xf]
    %v6076 = vunpack.c.l.b16 %v6044
    %v6077 = vunpack.c.l.b16 %v6045
    %v6078 = vunpack.c.l.b16 %v6046
    %v6079 = vunpack.c.l.b16 %v6047
    %v6080 = vunpack.c.l.b16 %v6048
    %v6081 = vunpack.c.l.b16 %v6049
    %v6082 = vunpack.c.l.b16 %v6050
    %v6083 = vunpack.c.l.b16 %v6051
    %v6084 = vunpack.c.l.b16 %v6052
    %v6085 = vunpack.c.l.b16 %v6053
    %v6086 = vunpack.c.l.b16 %v6054
    %v6087 = vunpack.c.l.b16 %v6055
    %v6088 = vunpack.c.l.b16 %v6056
    %v6089 = vunpack.c.l.b16 %v6057
    %v6090 = vunpack.c.l.b16 %v6058
    %v6091 = vunpack.c.l.b16 %v6059
    %v6092 = vpack.c.b16 %v6077, %v6076
    %v6093 = vpack.c.b16 %v6079, %v6078
    %v6094 = vpack.c.b16 %v6081, %v6080
    %v6095 = vpack.c.b16 %v6083, %v6082
    %v6096 = vpack.c.b16 %v6085, %v6084
    %v6097 = vpack.c.b16 %v6087, %v6086
    %v6098 = vpack.c.b16 %v6089, %v6088
    %v6099 = vpack.c.b16 %v6091, %v6090
    %6108 = vmatprep.subr.bf16.mxu0 0
    %6109 = vmatpush1.bf16.msra.mxu0 %v6092
    %6110 = vmatprep.subr.bf16.mxu0 0
    %6111 = vmatpush1.bf16.msra.mxu0 %v6093
    %6112 = vmatprep.subr.bf16.mxu0 0
    %6113 = vmatpush1.bf16.msra.mxu0 %v6094
    %6114 = vmatprep.subr.bf16.mxu0 0
    %6115 = vmatpush1.bf16.msra.mxu0 %v6095
    %6116 = vmatprep.subr.bf16.mxu0 0
    %6117 = vmatpush1.bf16.msra.mxu0 %v6096
    %6118 = vmatprep.subr.bf16.mxu0 0
    %6119 = vmatpush1.bf16.msra.mxu0 %v6097
    %6120 = vmatprep.subr.bf16.mxu0 0
    %6121 = vmatpush1.bf16.msra.mxu0 %v6098
    %6122 = vmatprep.subr.bf16.mxu0 0
    %6123 = vmatpush1.bf16.msra.mxu0 %v6099
    %6124 = vmatprep.subr.bf16.mxu0 0
    %6125 = vmatpush1.bf16.msra.mxu0 0
    %6126 = vmatprep.subr.bf16.mxu0 0
    %6127 = vmatpush1.bf16.msra.mxu0 0
    %6128 = vmatprep.subr.bf16.mxu0 0
    %6129 = vmatpush1.bf16.msra.mxu0 0
    %6130 = vmatprep.subr.bf16.mxu0 0
    %6131 = vmatpush1.bf16.msra.mxu0 0
    %6132 = vmatprep.subr.bf16.mxu0 0
    %6133 = vmatpush1.bf16.msra.mxu0 0
    %6134 = vmatprep.subr.bf16.mxu0 0
    %6135 = vmatpush1.bf16.msra.mxu0 0
    %6136 = vmatprep.subr.bf16.mxu0 0
    %6137 = vmatpush1.bf16.msra.mxu0 0
    %6138 = vmatprep.subr.bf16.mxu0 0
    %6139 = vmatpush1.bf16.msra.mxu0 0
    %6140 = vmatprep.mubr.bf16.mxu0 0
    %6141 = vmatmul.mubr.bf16.gmra.mrb[0].mxu0 %v6043
    %v6142 = vpop.f32.mrb[0].mxu0
    %v6143 = vadd.f32 0.0, %v6142
    %v6144 = vpop.f32.mrb[0].mxu0
    %v6145 = vpop.f32.mrb[0].mxu0
    %v6146 = vpop.f32.mrb[0].mxu0
    %6147 = vdwg.mxu0
    %v6148 = vpack.c.bf16 %v6143, %v6143
    %v6149 = vld [vmem:[%s9] sm:$0xf]
    %v6150 = vld [vmem:[%s9 + $0x4] sm:$0xf]
    %v6151 = vld [vmem:[%s9 + $0x8] sm:$0xf]
    %v6152 = vld [vmem:[%s9 + $0xc] sm:$0xf]
    %v6153 = vld [vmem:[%s10] sm:$0x1]
    %v6155 = vlaneseq
    %v6156 = vshrl.u32 %v6155, 7
    %v6157 = vsub.s32 0, %v6156
    %v6158 = vrot.slane %v6153, %v6157
    %v6164 = vunpack.c.l.b16 %v6149
    %v6165 = vunpack.c.l.b16 %v6150
    %v6166 = vunpack.c.l.b16 %v6151
    %v6167 = vunpack.c.l.b16 %v6152
    %v6168 = vpack.c.b16 %v6165, %v6164
    %v6169 = vpack.c.b16 %v6167, %v6166
    %v6173 = vsel %vm348, %v6148, 0
    %6175 = vmatprep.subr.bf16.mxu0 0
    %6176 = vmatpush1.bf16.msra.mxu0 %v6168
    %6177 = vmatprep.subr.bf16.mxu0 0
    %6178 = vmatpush1.bf16.msra.mxu0 %v6169
    %6179 = vmatprep.subr.bf16.mxu0 0
    %6180 = vmatpush1.bf16.msra.mxu0 0
    %6181 = vmatprep.subr.bf16.mxu0 0
    %6182 = vmatpush1.bf16.msra.mxu0 0
    %6183 = vmatprep.subr.bf16.mxu0 0
    %6184 = vmatpush1.bf16.msra.mxu0 0
    %6185 = vmatprep.subr.bf16.mxu0 0
    %6186 = vmatpush1.bf16.msra.mxu0 0
    %6187 = vmatprep.subr.bf16.mxu0 0
    %6188 = vmatpush1.bf16.msra.mxu0 0
    %6189 = vmatprep.subr.bf16.mxu0 0
    %6190 = vmatpush1.bf16.msra.mxu0 0
    %6191 = vmatprep.subr.bf16.mxu0 0
    %6192 = vmatpush1.bf16.msra.mxu0 0
    %6193 = vmatprep.subr.bf16.mxu0 0
    %6194 = vmatpush1.bf16.msra.mxu0 0
    %6195 = vmatprep.subr.bf16.mxu0 0
    %6196 = vmatpush1.bf16.msra.mxu0 0
    %6197 = vmatprep.subr.bf16.mxu0 0
    %6198 = vmatpush1.bf16.msra.mxu0 0
    %6199 = vmatprep.subr.bf16.mxu0 0
    %6200 = vmatpush1.bf16.msra.mxu0 0
    %6201 = vmatprep.subr.bf16.mxu0 0
    %6202 = vmatpush1.bf16.msra.mxu0 0
    %6203 = vmatprep.subr.bf16.mxu0 0
    %6204 = vmatpush1.bf16.msra.mxu0 0
    %6205 = vmatprep.subr.bf16.mxu0 0
    %6206 = vmatpush1.bf16.msra.mxu0 0
    %6207 = vmatprep.mubr.bf16.mxu0 0
    %6208 = vmatmul.mubr.bf16.gmra.mrb[0].mxu0 %v6173
    %v6209 = vpop.f32.mrb[0].mxu0
    %v6210 = vadd.f32 %v6158, %v6209
    %v6211 = vpop.f32.mrb[0].mxu0
    %v6212 = vpop.f32.mrb[0].mxu0
    %v6213 = vpop.f32.mrb[0].mxu0
    %6214 = vdwg.mxu0
    %v6215 = vsel %vm1748, %v6210, -inf
    %6216 = vmax.xlane.f32.xlu0 %v6215
    %v6217 = vpop.xlane.xlu0 %6216
    %vm6218 = vcmp.eq.f32.partialorder %v6210, %v6217
    %v6219 = vsel %vm6218, 1, 0
    %v6220 = vcvt.s32.f32 %v6219
    %v6221 = vpack.c.bf16 %v6220, %v6220
    %6222 = vst [vmem:[#allocation2] sm:$0x1] %v6221
    %v6223 = vsub.f32 %v6210, %v6217
    %v6224 = vmul.f32 %v6223, 1.442695
    %v6225 = vpow.pop %v6224
    %v6226 = vsel %vm1748, %v6225, 0.0
    %6227 = vadd.xlane.f32.xlu0 %v6226
    %v6228 = vpop.xlane.xlu0 %6227
    %v6229 = vrcp.pop %v6228
    %v6230 = vmul.f32 %v6225, %v6229
    %s6231 = scalar_lea.vmem [#allocation6], 6
    %6232 = vst [vmem:[%s6231] sm:$0x3] %v6230
    %v6233 = vld [vmem:[#allocation2] sm:$0x3]
    %v6234 = vld [vmem:[%s5] sm:$0xf]
    %v6235 = vld [vmem:[%s5 + $0x4] sm:$0xf]
    %v6236 = vld [vmem:[%s5 + $0x8] sm:$0xf]
    %v6237 = vld [vmem:[%s5 + $0xc] sm:$0xf]
    %v6238 = vld [vmem:[%s5 + $0x10] sm:$0xf]
    %v6239 = vld [vmem:[%s5 + $0x14] sm:$0xf]
    %v6240 = vld [vmem:[%s5 + $0x18] sm:$0xf]
    %v6241 = vld [vmem:[%s5 + $0x1c] sm:$0xf]
    %v6242 = vld [vmem:[%s5 + $0x20] sm:$0xf]
    %v6243 = vld [vmem:[%s5 + $0x24] sm:$0xf]
    %v6244 = vld [vmem:[%s5 + $0x28] sm:$0xf]
    %v6245 = vld [vmem:[%s5 + $0x2c] sm:$0xf]
    %v6246 = vld [vmem:[%s5 + $0x30] sm:$0xf]
    %v6247 = vld [vmem:[%s5 + $0x34] sm:$0xf]
    %v6248 = vld [vmem:[%s5 + $0x38] sm:$0xf]
    %v6249 = vld [vmem:[%s5 + $0x3c] sm:$0xf]
    %v6250 = vld [vmem:[%s5 + $0x40] sm:$0xf]
    %v6251 = vld [vmem:[%s5 + $0x44] sm:$0xf]
    %v6252 = vld [vmem:[%s5 + $0x48] sm:$0xf]
    %v6253 = vld [vmem:[%s5 + $0x4c] sm:$0xf]
    %v6256 = vunpack.c.l.s4 1966171168
    %v6257 = vunpack.c.0.s8 %v6256
    %v6258 = vlaneseq
    %v6259 = vshrl.u32 %v6258, 7
    %v6260 = vsub.s32 %v6257, %v6259
    %v6261 = vrot.slane %v6233, %v6260
    %v6262 = vcombine.high %v6261, %v6261
    %v6264 = vunpack.c.l.s4 1966171168
    %v6265 = vunpack.c.0.s8 %v6264
    %v6266 = vlaneseq
    %v6267 = vshrl.u32 %v6266, 7
    %v6268 = vsub.s32 %v6265, %v6267
    %v6269 = vrot.slane %v6261, %v6268
    %v6271 = vunpack.c.l.s4 1966171168
    %v6272 = vunpack.c.0.s8 %v6271
    %v6273 = vlaneseq
    %v6274 = vshrl.u32 %v6273, 7
    %v6275 = vsub.s32 %v6272, %v6274
    %v6276 = vrot.slane %v6262, %v6275
    %v6298 = vunpack.c.l.b16 %v6234
    %v6299 = vunpack.c.l.b16 %v6235
    %v6300 = vunpack.c.l.b16 %v6236
    %v6301 = vunpack.c.l.b16 %v6237
    %v6302 = vunpack.c.l.b16 %v6238
    %v6303 = vunpack.c.l.b16 %v6239
    %v6304 = vunpack.c.l.b16 %v6240
    %v6305 = vunpack.c.l.b16 %v6241
    %v6306 = vunpack.c.l.b16 %v6242
    %v6307 = vunpack.c.l.b16 %v6243
    %v6308 = vunpack.c.l.b16 %v6244
    %v6309 = vunpack.c.l.b16 %v6245
    %v6310 = vunpack.c.l.b16 %v6246
    %v6311 = vunpack.c.l.b16 %v6247
    %v6312 = vunpack.c.l.b16 %v6248
    %v6313 = vunpack.c.l.b16 %v6249
    %v6314 = vunpack.c.l.b16 %v6250
    %v6315 = vunpack.c.l.b16 %v6251
    %v6316 = vunpack.c.l.b16 %v6252
    %v6317 = vunpack.c.l.b16 %v6253
    %v6318 = vpack.c.b16 %v6299, %v6298
    %v6319 = vpack.c.b16 %v6301, %v6300
    %v6320 = vpack.c.b16 %v6303, %v6302
    %v6321 = vpack.c.b16 %v6305, %v6304
    %v6322 = vpack.c.b16 %v6307, %v6306
    %v6323 = vpack.c.b16 %v6309, %v6308
    %v6324 = vpack.c.b16 %v6311, %v6310
    %v6325 = vpack.c.b16 %v6313, %v6312
    %v6326 = vpack.c.b16 %v6315, %v6314
    %v6327 = vpack.c.b16 %v6317, %v6316
    %v6339 = vsel %vm348, %v6276, 0
    %6341 = vmatprep.subr.bf16.mxu0 0
    %6342 = vmatpush1.bf16.msra.mxu0 %v6318
    %6343 = vmatprep.subr.bf16.mxu0 0
    %6344 = vmatpush1.bf16.msra.mxu0 %v6319
    %6345 = vmatprep.subr.bf16.mxu0 0
    %6346 = vmatpush1.bf16.msra.mxu0 %v6320
    %6347 = vmatprep.subr.bf16.mxu0 0
    %6348 = vmatpush1.bf16.msra.mxu0 %v6321
    %6349 = vmatprep.subr.bf16.mxu0 0
    %6350 = vmatpush1.bf16.msra.mxu0 %v6322
    %6351 = vmatprep.subr.bf16.mxu0 0
    %6352 = vmatpush1.bf16.msra.mxu0 %v6323
    %6353 = vmatprep.subr.bf16.mxu0 0
    %6354 = vmatpush1.bf16.msra.mxu0 %v6324
    %6355 = vmatprep.subr.bf16.mxu0 0
    %6356 = vmatpush1.bf16.msra.mxu0 %v6325
    %6357 = vmatprep.subr.bf16.mxu0 0
    %6358 = vmatpush1.bf16.msra.mxu0 %v6326
    %6359 = vmatprep.subr.bf16.mxu0 0
    %6360 = vmatpush1.bf16.msra.mxu0 %v6327
    %6361 = vmatprep.subr.bf16.mxu0 0
    %6362 = vmatpush1.bf16.msra.mxu0 0
    %6363 = vmatprep.subr.bf16.mxu0 0
    %6364 = vmatpush1.bf16.msra.mxu0 0
    %6365 = vmatprep.subr.bf16.mxu0 0
    %6366 = vmatpush1.bf16.msra.mxu0 0
    %6367 = vmatprep.subr.bf16.mxu0 0
    %6368 = vmatpush1.bf16.msra.mxu0 0
    %6369 = vmatprep.subr.bf16.mxu0 0
    %6370 = vmatpush1.bf16.msra.mxu0 0
    %6371 = vmatprep.subr.bf16.mxu0 0
    %6372 = vmatpush1.bf16.msra.mxu0 0
    %6373 = vmatprep.mubr.bf16.mxu0 %v6339
    %6374 = vmatmul.mubr.bf16.gmra.mrb[0].mxu0 %v6269
    %v6375 = vpop.f32.mrb[0].mxu0
    %v6376 = vadd.f32 0.0, %v6375
    %v6377 = vpop.f32.mrb[0].mxu0
    %v6378 = vpop.f32.mrb[0].mxu0
    %v6379 = vpop.f32.mrb[0].mxu0
    %6380 = vdwg.mxu0
    %v6381 = vld [vmem:[#allocation4] sm:$0x3]
    %v6382 = vxor.u32 %v6376, 2147483648
    %v6383 = vmul.f32 %v6382, 1.442695
    %v6384 = vpow.pop %v6383
    %v6385 = vadd.f32 %v6384, 1.0
    %v6386 = vrcp.pop %v6385
    %v6387 = vmul.f32 1.0, %v6386
    %v6388 = vtanh.pop %v6376
    %6390 = vrot.lane.b32.xlu0 %v6381, 32
    %v6391 = vpop.permute.xlu0 %6390
    %v6393 = vmul.f32 %v6387, %v6391
    %6395 = vrot.lane.b32.xlu0 %v6388, 64
    %v6396 = vpop.permute.xlu0 %6395
    %v6398 = vmul.f32 %v6387, %v6396
    %6400 = vrot.lane.b32.xlu0 %v6398, 32
    %v6401 = vpop.permute.xlu0 %6400
    %v6403 = vadd.f32 %v6393, %v6401
    %v6404 = vtanh.pop %v6403
    %6406 = vrot.lane.b32.xlu0 %v6404, 64
    %v6407 = vpop.permute.xlu0 %6406
    %v6409 = vmul.f32 %v6387, %v6407
    %6411 = vrot.lane.b32.xlu0 %v6403, 96
    %v6412 = vpop.permute.xlu0 %6411
    %6414 = vst.msk [vmem:[#allocation4] sm:$0x3] %vm230, %v6412
    %v6415 = vpack.c.bf16 %v6409, %v6409
    %v6418 = vunpack.c.l.s4 1966171168
    %v6419 = vunpack.c.0.s8 %v6418
    %v6420 = vlaneseq
    %v6421 = vshrl.u32 %v6420, 7
    %v6422 = vsub.s32 %v6419, %v6421
    %v6423 = vrot.slane %v6415, %v6422
    %v6425 = vunpack.c.l.s4 1966171168
    %v6426 = vunpack.c.0.s8 %v6425
    %v6427 = vlaneseq
    %v6428 = vshrl.u32 %v6427, 7
    %v6429 = vsub.s32 %v6426, %v6428
    %v6430 = vrot.slane %v6423, %v6429
    %6431 = vrot.lane.b32.xlu0 %v6430, 32
    %v6432 = vpop.permute.xlu0 %6431
    %6434 = vst.msk [vmem:[#allocation2 + $0x1] sm:$0x1] %vm92, %v6432
    %6435 = vst.msk [vmem:[#allocation3] sm:$0x1] %vm92, %v6432
    %v6436 = vld [vmem:[#allocation3] sm:$0x1]
    %v6437 = vld [vmem:[%s6] sm:$0xf]
    %v6438 = vld [vmem:[%s6 + $0x4] sm:$0xf]
    %v6439 = vld [vmem:[%s6 + $0x8] sm:$0xf]
    %v6440 = vld [vmem:[%s6 + $0xc] sm:$0xf]
    %v6441 = vld [vmem:[%s6 + $0x10] sm:$0xf]
    %v6442 = vld [vmem:[%s6 + $0x14] sm:$0xf]
    %v6443 = vld [vmem:[%s6 + $0x18] sm:$0xf]
    %v6444 = vld [vmem:[%s6 + $0x1c] sm:$0xf]
    %v6445 = vld [vmem:[%s6 + $0x20] sm:$0x1]
    %v6455 = vunpack.c.l.b16 %v6437
    %v6456 = vunpack.c.l.b16 %v6438
    %v6457 = vunpack.c.l.b16 %v6439
    %v6458 = vunpack.c.l.b16 %v6440
    %v6459 = vunpack.c.l.b16 %v6441
    %v6460 = vunpack.c.l.b16 %v6442
    %v6461 = vunpack.c.l.b16 %v6443
    %v6462 = vunpack.c.l.b16 %v6444
    %v6463 = vunpack.c.l.b16 %v6445
    %v6464 = vpack.c.b16 %v6456, %v6455
    %v6465 = vpack.c.b16 %v6458, %v6457
    %v6466 = vpack.c.b16 %v6460, %v6459
    %v6467 = vpack.c.b16 %v6462, %v6461
    %v6468 = vpack.c.b16 %v6463, %v6463
    %v6474 = vsel %vm131, %v6436, 0
    %v6477 = vand.u32 %v6468, %v137
    %6479 = vmatprep.subr.bf16.mxu0 0
    %6480 = vmatpush1.bf16.msra.mxu0 %v6464
    %6481 = vmatprep.subr.bf16.mxu0 0
    %6482 = vmatpush1.bf16.msra.mxu0 %v6465
    %6483 = vmatprep.subr.bf16.mxu0 0
    %6484 = vmatpush1.bf16.msra.mxu0 %v6466
    %6485 = vmatprep.subr.bf16.mxu0 0
    %6486 = vmatpush1.bf16.msra.mxu0 %v6467
    %6487 = vmatprep.subr.bf16.mxu0 0
    %6488 = vmatpush1.bf16.msra.mxu0 %v6477
    %6489 = vmatprep.subr.bf16.mxu0 0
    %6490 = vmatpush1.bf16.msra.mxu0 0
    %6491 = vmatprep.subr.bf16.mxu0 0
    %6492 = vmatpush1.bf16.msra.mxu0 0
    %6493 = vmatprep.subr.bf16.mxu0 0
    %6494 = vmatpush1.bf16.msra.mxu0 0
    %6495 = vmatprep.subr.bf16.mxu0 0
    %6496 = vmatpush1.bf16.msra.mxu0 0
    %6497 = vmatprep.subr.bf16.mxu0 0
    %6498 = vmatpush1.bf16.msra.mxu0 0
    %6499 = vmatprep.subr.bf16.mxu0 0
    %6500 = vmatpush1.bf16.msra.mxu0 0
    %6501 = vmatprep.subr.bf16.mxu0 0
    %6502 = vmatpush1.bf16.msra.mxu0 0
    %6503 = vmatprep.subr.bf16.mxu0 0
    %6504 = vmatpush1.bf16.msra.mxu0 0
    %6505 = vmatprep.subr.bf16.mxu0 0
    %6506 = vmatpush1.bf16.msra.mxu0 0
    %6507 = vmatprep.subr.bf16.mxu0 0
    %6508 = vmatpush1.bf16.msra.mxu0 0
    %6509 = vmatprep.subr.bf16.mxu0 0
    %6510 = vmatpush1.bf16.msra.mxu0 0
    %6511 = vmatprep.mubr.bf16.mxu0 0
    %6512 = vmatmul.mubr.bf16.gmra.mrb[0].mxu0 %v6474
    %v6513 = vpop.f32.mrb[0].mxu0
    %v6514 = vadd.f32 0.0, %v6513
    %v6515 = vpop.f32.mrb[0].mxu0
    %v6516 = vpop.f32.mrb[0].mxu0
    %v6517 = vpop.f32.mrb[0].mxu0
    %6518 = vdwg.mxu0
    %v6519 = vld [vmem:[#allocation5] sm:$0x3]
    %v6520 = vxor.u32 %v6514, 2147483648
    %v6521 = vmul.f32 %v6520, 1.442695
    %v6522 = vpow.pop %v6521
    %v6523 = vadd.f32 %v6522, 1.0
    %v6524 = vrcp.pop %v6523
    %v6525 = vmul.f32 1.0, %v6524
    %v6526 = vtanh.pop %v6514
    %6528 = vrot.lane.b32.xlu0 %v6519, 32
    %v6529 = vpop.permute.xlu0 %6528
    %v6531 = vmul.f32 %v6525, %v6529
    %6533 = vrot.lane.b32.xlu0 %v6526, 64
    %v6534 = vpop.permute.xlu0 %6533
    %v6536 = vmul.f32 %v6525, %v6534
    %6538 = vrot.lane.b32.xlu0 %v6536, 32
    %v6539 = vpop.permute.xlu0 %6538
    %v6541 = vadd.f32 %v6531, %v6539
    %v6542 = vtanh.pop %v6541
    %6544 = vrot.lane.b32.xlu0 %v6542, 64
    %v6545 = vpop.permute.xlu0 %6544
    %v6547 = vmul.f32 %v6525, %v6545
    %6549 = vrot.lane.b32.xlu0 %v6541, 96
    %v6550 = vpop.permute.xlu0 %6549
    %6552 = vst.msk [vmem:[#allocation5] sm:$0x3] %vm230, %v6550
    %v6553 = vpack.c.bf16 %v6547, %v6547
    %v6556 = vunpack.c.l.s4 1966171168
    %v6557 = vunpack.c.0.s8 %v6556
    %v6558 = vlaneseq
    %v6559 = vshrl.u32 %v6558, 7
    %v6560 = vsub.s32 %v6557, %v6559
    %v6561 = vrot.slane %v6553, %v6560
    %v6563 = vunpack.c.l.s4 1966171168
    %v6564 = vunpack.c.0.s8 %v6563
    %v6565 = vlaneseq
    %v6566 = vshrl.u32 %v6565, 7
    %v6567 = vsub.s32 %v6564, %v6566
    %v6568 = vrot.slane %v6561, %v6567
    %6569 = vrot.lane.b32.xlu0 %v6568, 64
    %v6570 = vpop.permute.xlu0 %6569
    %6572 = vst.msk [vmem:[#allocation3] sm:$0x1] %vm224, %v6570
    %v6573 = vld [vmem:[%s7] sm:$0xf]
    %v6574 = vld [vmem:[%s7 + $0x4] sm:$0xf]
    %v6575 = vld [vmem:[%s7 + $0x8] sm:$0xf]
    %v6576 = vld [vmem:[%s7 + $0xc] sm:$0xf]
    %6577 = vrot.lane.b32.xlu0 %v6553, 32
    %v6578 = vpop.permute.xlu0 %6577
    %v6583 = vunpack.c.l.b16 %v6573
    %v6584 = vunpack.c.l.b16 %v6574
    %v6585 = vunpack.c.l.b16 %v6575
    %v6586 = vunpack.c.l.b16 %v6576
    %v6587 = vpack.c.b16 %v6584, %v6583
    %v6588 = vpack.c.b16 %v6586, %v6585
    %v6592 = vsel %vm348, %v6578, 0
    %6594 = vmatprep.subr.bf16.mxu0 0
    %6595 = vmatpush1.bf16.msra.mxu0 %v6587
    %6596 = vmatprep.subr.bf16.mxu0 0
    %6597 = vmatpush1.bf16.msra.mxu0 %v6588
    %6598 = vmatprep.subr.bf16.mxu0 0
    %6599 = vmatpush1.bf16.msra.mxu0 0
    %6600 = vmatprep.subr.bf16.mxu0 0
    %6601 = vmatpush1.bf16.msra.mxu0 0
    %6602 = vmatprep.subr.bf16.mxu0 0
    %6603 = vmatpush1.bf16.msra.mxu0 0
    %6604 = vmatprep.subr.bf16.mxu0 0
    %6605 = vmatpush1.bf16.msra.mxu0 0
    %6606 = vmatprep.subr.bf16.mxu0 0
    %6607 = vmatpush1.bf16.msra.mxu0 0
    %6608 = vmatprep.subr.bf16.mxu0 0
    %6609 = vmatpush1.bf16.msra.mxu0 0
    %6610 = vmatprep.subr.bf16.mxu0 0
    %6611 = vmatpush1.bf16.msra.mxu0 0
    %6612 = vmatprep.subr.bf16.mxu0 0
    %6613 = vmatpush1.bf16.msra.mxu0 0
    %6614 = vmatprep.subr.bf16.mxu0 0
    %6615 = vmatpush1.bf16.msra.mxu0 0
    %6616 = vmatprep.subr.bf16.mxu0 0
    %6617 = vmatpush1.bf16.msra.mxu0 0
    %6618 = vmatprep.subr.bf16.mxu0 0
    %6619 = vmatpush1.bf16.msra.mxu0 0
    %6620 = vmatprep.subr.bf16.mxu0 0
    %6621 = vmatpush1.bf16.msra.mxu0 0
    %6622 = vmatprep.subr.bf16.mxu0 0
    %6623 = vmatpush1.bf16.msra.mxu0 0
    %6624 = vmatprep.subr.bf16.mxu0 0
    %6625 = vmatpush1.bf16.msra.mxu0 0
    %6626 = vmatprep.mubr.bf16.mxu0 0
    %6627 = vmatmul.mubr.bf16.gmra.mrb[0].mxu0 %v6592
    %v6628 = vpop.f32.mrb[0].mxu0
    %v6629 = vadd.f32 0.0, %v6628
    %v6630 = vpop.f32.mrb[0].mxu0
    %v6631 = vpop.f32.mrb[0].mxu0
    %v6632 = vpop.f32.mrb[0].mxu0
    %6633 = vdwg.mxu0
    %v6634 = vld [vmem:[%s0] sm:$0xf]
    %v6635 = vld [vmem:[%s0 + $0x4] sm:$0xf]
    %v6636 = vld [vmem:[%s0 + $0x8] sm:$0xf]
    %v6637 = vld [vmem:[%s0 + $0xc] sm:$0xf]
    %v6638 = vld [vmem:[%s0 + $0x10] sm:$0xf]
    %v6639 = vld [vmem:[%s0 + $0x14] sm:$0xf]
    %v6640 = vld [vmem:[%s0 + $0x18] sm:$0xf]
    %v6641 = vld [vmem:[%s0 + $0x1c] sm:$0xf]
    %v6642 = vld [vmem:[%s0 + $0x20] sm:$0xf]
    %v6643 = vld [vmem:[%s0 + $0x24] sm:$0xf]
    %v6644 = vld [vmem:[%s0 + $0x28] sm:$0xf]
    %v6645 = vld [vmem:[%s0 + $0x2c] sm:$0xf]
    %v6646 = vld [vmem:[%s0 + $0x30] sm:$0xf]
    %v6647 = vld [vmem:[%s0 + $0x34] sm:$0xf]
    %v6648 = vld [vmem:[%s0 + $0x38] sm:$0xf]
    %v6649 = vld [vmem:[%s0 + $0x3c] sm:$0xf]
    %v6650 = vunpack.c.l.bf16 %v6634
    %v6651 = vunpack.c.l.bf16 %v6635
    %v6652 = vunpack.c.l.bf16 %v6636
    %v6653 = vunpack.c.l.bf16 %v6637
    %v6654 = vunpack.c.l.bf16 %v6638
    %v6655 = vunpack.c.l.bf16 %v6639
    %v6656 = vunpack.c.l.bf16 %v6640
    %v6657 = vunpack.c.l.bf16 %v6641
    %v6658 = vunpack.c.l.bf16 %v6642
    %v6659 = vunpack.c.l.bf16 %v6643
    %v6660 = vunpack.c.l.bf16 %v6644
    %v6661 = vunpack.c.l.bf16 %v6645
    %v6662 = vunpack.c.l.bf16 %v6646
    %v6663 = vunpack.c.l.bf16 %v6647
    %v6664 = vunpack.c.l.bf16 %v6648
    %v6665 = vunpack.c.l.bf16 %v6649
    %v6668 = vunpack.c.l.s4 1966171168
    %v6669 = vunpack.c.0.s8 %v6668
    %v6670 = vlaneseq
    %v6671 = vshrl.u32 %v6670, 7
    %v6672 = vsub.s32 %v6669, %v6671
    %v6673 = vrot.slane %v6629, %v6672
    %v6674 = vcombine.high %v6673, %v6673
    %v6676 = vunpack.c.l.s4 1966171168
    %v6677 = vunpack.c.0.s8 %v6676
    %v6678 = vlaneseq
    %v6679 = vshrl.u32 %v6678, 7
    %v6680 = vsub.s32 %v6677, %v6679
    %v6681 = vrot.slane %v6673, %v6680
    %v6683 = vunpack.c.l.s4 1966171168
    %v6684 = vunpack.c.0.s8 %v6683
    %v6685 = vlaneseq
    %v6686 = vshrl.u32 %v6685, 7
    %v6687 = vsub.s32 %v6684, %v6686
    %v6688 = vrot.slane %v6674, %v6687
    %v6689 = vlaneseq
    %v6690 = vshrl.u32 %v6689, 7
    %v6691 = vsub.s32 0, %v6690
    %v6692 = vrot.slane %v6681, %v6691
    %v6693 = vlaneseq
    %v6694 = vshrl.u32 %v6693, 7
    %v6695 = vsub.s32 0, %v6694
    %v6696 = vrot.slane %v6688, %v6695
    %v6699 = vadd.f32 %v6650, %v6692
    %v6700 = vadd.f32 %v6651, %v6692
    %v6701 = vadd.f32 %v6652, %v6692
    %v6702 = vadd.f32 %v6653, %v6692
    %v6703 = vadd.f32 %v6654, %v6692
    %v6704 = vadd.f32 %v6655, %v6692
    %v6705 = vadd.f32 %v6656, %v6692
    %v6706 = vadd.f32 %v6657, %v6692
    %v6707 = vadd.f32 %v6658, %v6696
    %v6708 = vadd.f32 %v6659, %v6696
    %v6709 = vadd.f32 %v6660, %v6696
    %v6710 = vadd.f32 %v6661, %v6696
    %v6711 = vadd.f32 %v6662, %v6696
    %v6712 = vadd.f32 %v6663, %v6696
    %v6713 = vadd.f32 %v6664, %v6696
    %v6714 = vadd.f32 %v6665, %v6696
    %v6715 = vtanh.pop %v6699
    %v6716 = vtanh.pop %v6700
    %v6717 = vtanh.pop %v6701
    %v6718 = vtanh.pop %v6702
    %v6719 = vtanh.pop %v6703
    %v6720 = vtanh.pop %v6704
    %v6721 = vtanh.pop %v6705
    %v6722 = vtanh.pop %v6706
    %v6723 = vtanh.pop %v6707
    %v6724 = vtanh.pop %v6708
    %v6725 = vtanh.pop %v6709
    %v6726 = vtanh.pop %v6710
    %v6727 = vtanh.pop %v6711
    %v6728 = vtanh.pop %v6712
    %v6729 = vtanh.pop %v6713
    %v6730 = vtanh.pop %v6714
    %v6731 = vld [vmem:[%s8] sm:$0x1]
    %v6733 = vlaneseq
    %v6734 = vshrl.u32 %v6733, 7
    %v6735 = vsub.s32 0, %v6734
    %v6736 = vrot.slane %v6731, %v6735
    %v6738 = vmul.f32 %v6715, %v6736
    %v6739 = vmul.f32 %v6716, %v6736
    %v6740 = vmul.f32 %v6717, %v6736
    %v6741 = vmul.f32 %v6718, %v6736
    %v6742 = vmul.f32 %v6719, %v6736
    %v6743 = vmul.f32 %v6720, %v6736
    %v6744 = vmul.f32 %v6721, %v6736
    %v6745 = vmul.f32 %v6722, %v6736
    %v6746 = vmul.f32 %v6723, %v6736
    %v6747 = vmul.f32 %v6724, %v6736
    %v6748 = vmul.f32 %v6725, %v6736
    %v6749 = vmul.f32 %v6726, %v6736
    %v6750 = vmul.f32 %v6727, %v6736
    %v6751 = vmul.f32 %v6728, %v6736
    %v6752 = vmul.f32 %v6729, %v6736
    %v6753 = vmul.f32 %v6730, %v6736
    %v6754 = vsel %vm765, %v6738, 0.0
    %6755 = vadd.xlane.f32.xlu0 %v6754
    %v6756 = vpop.xlane.xlu0 %6755
    %v6757 = vsel %vm765, %v6739, 0.0
    %6758 = vadd.xlane.f32.xlu0 %v6757
    %v6759 = vpop.xlane.xlu0 %6758
    %v6760 = vsel %vm765, %v6740, 0.0
    %6761 = vadd.xlane.f32.xlu0 %v6760
    %v6762 = vpop.xlane.xlu0 %6761
    %v6763 = vsel %vm765, %v6741, 0.0
    %6764 = vadd.xlane.f32.xlu0 %v6763
    %v6765 = vpop.xlane.xlu0 %6764
    %v6766 = vsel %vm765, %v6742, 0.0
    %6767 = vadd.xlane.f32.xlu0 %v6766
    %v6768 = vpop.xlane.xlu0 %6767
    %v6769 = vsel %vm765, %v6743, 0.0
    %6770 = vadd.xlane.f32.xlu0 %v6769
    %v6771 = vpop.xlane.xlu0 %6770
    %v6772 = vsel %vm765, %v6744, 0.0
    %6773 = vadd.xlane.f32.xlu0 %v6772
    %v6774 = vpop.xlane.xlu0 %6773
    %v6775 = vsel %vm765, %v6745, 0.0
    %6776 = vadd.xlane.f32.xlu0 %v6775
    %v6777 = vpop.xlane.xlu0 %6776
    %v6778 = vsel %vm765, %v6746, 0.0
    %6779 = vadd.xlane.f32.xlu0 %v6778
    %v6780 = vpop.xlane.xlu0 %6779
    %v6781 = vsel %vm765, %v6747, 0.0
    %6782 = vadd.xlane.f32.xlu0 %v6781
    %v6783 = vpop.xlane.xlu0 %6782
    %v6784 = vsel %vm765, %v6748, 0.0
    %6785 = vadd.xlane.f32.xlu0 %v6784
    %v6786 = vpop.xlane.xlu0 %6785
    %v6787 = vsel %vm765, %v6749, 0.0
    %6788 = vadd.xlane.f32.xlu0 %v6787
    %v6789 = vpop.xlane.xlu0 %6788
    %v6790 = vsel %vm765, %v6750, 0.0
    %6791 = vadd.xlane.f32.xlu0 %v6790
    %v6792 = vpop.xlane.xlu0 %6791
    %v6793 = vsel %vm765, %v6751, 0.0
    %6794 = vadd.xlane.f32.xlu0 %v6793
    %v6795 = vpop.xlane.xlu0 %6794
    %v6796 = vsel %vm765, %v6752, 0.0
    %6797 = vadd.xlane.f32.xlu0 %v6796
    %v6798 = vpop.xlane.xlu0 %6797
    %v6799 = vsel %vm765, %v6753, 0.0
    %6800 = vadd.xlane.f32.xlu0 %v6799
    %v6801 = vpop.xlane.xlu0 %6800
    %v6802 = vld [vmem:[%s3] sm:$0x3]
    %v6804 = vlaneseq
    %v6805 = vshrl.u32 %v6804, 7
    %v6806 = vsub.s32 0, %v6805
    %v6807 = vrot.slane %v6802, %v6806
    %6809 = vbcast.lane.b32.xlu0 %v6807, 256
    %v6810 = vpop.permute.xlu0 %6809
    %s6812 = sor.u32 256, 8
    %6813 = vbcast.lane.b32.xlu0 %v6807, %s6812
    %v6814 = vpop.permute.xlu0 %6813
    %s6816 = sor.u32 256, 16
    %6817 = vbcast.lane.b32.xlu0 %v6807, %s6816
    %v6818 = vpop.permute.xlu0 %6817
    %s6820 = sor.u32 256, 24
    %6821 = vbcast.lane.b32.xlu0 %v6807, %s6820
    %v6822 = vpop.permute.xlu0 %6821
    %s6824 = sor.u32 256, 32
    %6825 = vbcast.lane.b32.xlu0 %v6807, %s6824
    %v6826 = vpop.permute.xlu0 %6825
    %s6828 = sor.u32 256, 40
    %6829 = vbcast.lane.b32.xlu0 %v6807, %s6828
    %v6830 = vpop.permute.xlu0 %6829
    %s6832 = sor.u32 256, 48
    %6833 = vbcast.lane.b32.xlu0 %v6807, %s6832
    %v6834 = vpop.permute.xlu0 %6833
    %s6836 = sor.u32 256, 56
    %6837 = vbcast.lane.b32.xlu0 %v6807, %s6836
    %v6838 = vpop.permute.xlu0 %6837
    %v6839 = vlaneseq
    %v6840 = vshrl.u32 %v6839, 7
    %v6841 = vsub.s32 1, %v6840
    %v6842 = vrot.slane %v6802, %v6841
    %6844 = vbcast.lane.b32.xlu0 %v6842, 256
    %v6845 = vpop.permute.xlu0 %6844
    %s6847 = sor.u32 256, 8
    %6848 = vbcast.lane.b32.xlu0 %v6842, %s6847
    %v6849 = vpop.permute.xlu0 %6848
    %s6851 = sor.u32 256, 16
    %6852 = vbcast.lane.b32.xlu0 %v6842, %s6851
    %v6853 = vpop.permute.xlu0 %6852
    %s6855 = sor.u32 256, 24
    %6856 = vbcast.lane.b32.xlu0 %v6842, %s6855
    %v6857 = vpop.permute.xlu0 %6856
    %s6859 = sor.u32 256, 32
    %6860 = vbcast.lane.b32.xlu0 %v6842, %s6859
    %v6861 = vpop.permute.xlu0 %6860
    %s6863 = sor.u32 256, 40
    %6864 = vbcast.lane.b32.xlu0 %v6842, %s6863
    %v6865 = vpop.permute.xlu0 %6864
    %s6867 = sor.u32 256, 48
    %6868 = vbcast.lane.b32.xlu0 %v6842, %s6867
    %v6869 = vpop.permute.xlu0 %6868
    %s6871 = sor.u32 256, 56
    %6872 = vbcast.lane.b32.xlu0 %v6842, %s6871
    %v6873 = vpop.permute.xlu0 %6872
    %v6890 = vadd.f32 %v6756, %v6810
    %v6891 = vadd.f32 %v6759, %v6814
    %v6892 = vadd.f32 %v6762, %v6818
    %v6893 = vadd.f32 %v6765, %v6822
    %v6894 = vadd.f32 %v6768, %v6826
    %v6895 = vadd.f32 %v6771, %v6830
    %v6896 = vadd.f32 %v6774, %v6834
    %v6897 = vadd.f32 %v6777, %v6838
    %v6898 = vadd.f32 %v6780, %v6845
    %v6899 = vadd.f32 %v6783, %v6849
    %v6900 = vadd.f32 %v6786, %v6853
    %v6901 = vadd.f32 %v6789, %v6857
    %v6902 = vadd.f32 %v6792, %v6861
    %v6903 = vadd.f32 %v6795, %v6865
    %v6904 = vadd.f32 %v6798, %v6869
    %v6905 = vadd.f32 %v6801, %v6873
    %6922 = vset.pattern.permute.xlu0 0
    %6923 = vperm.xlu0 %6922, %v6890
    %v6924 = vpop.permute.xlu0 %6923
    %6925 = vset.pattern.permute.xlu0 0
    %6926 = vperm.xlu0 %6925, %v6891
    %v6927 = vpop.permute.xlu0 %6926
    %6928 = vset.pattern.permute.xlu0 0
    %6929 = vperm.xlu0 %6928, %v6892
    %v6930 = vpop.permute.xlu0 %6929
    %6931 = vset.pattern.permute.xlu0 0
    %6932 = vperm.xlu0 %6931, %v6893
    %v6933 = vpop.permute.xlu0 %6932
    %6934 = vset.pattern.permute.xlu0 0
    %6935 = vperm.xlu0 %6934, %v6894
    %v6936 = vpop.permute.xlu0 %6935
    %6937 = vset.pattern.permute.xlu0 0
    %6938 = vperm.xlu0 %6937, %v6895
    %v6939 = vpop.permute.xlu0 %6938
    %6940 = vset.pattern.permute.xlu0 0
    %6941 = vperm.xlu0 %6940, %v6896
    %v6942 = vpop.permute.xlu0 %6941
    %6943 = vset.pattern.permute.xlu0 0
    %6944 = vperm.xlu0 %6943, %v6897
    %v6945 = vpop.permute.xlu0 %6944
    %6946 = vset.pattern.permute.xlu0 0
    %6947 = vperm.xlu0 %6946, %v6898
    %v6948 = vpop.permute.xlu0 %6947
    %6949 = vset.pattern.permute.xlu0 0
    %6950 = vperm.xlu0 %6949, %v6899
    %v6951 = vpop.permute.xlu0 %6950
    %6952 = vset.pattern.permute.xlu0 0
    %6953 = vperm.xlu0 %6952, %v6900
    %v6954 = vpop.permute.xlu0 %6953
    %6955 = vset.pattern.permute.xlu0 0
    %6956 = vperm.xlu0 %6955, %v6901
    %v6957 = vpop.permute.xlu0 %6956
    %6958 = vset.pattern.permute.xlu0 0
    %6959 = vperm.xlu0 %6958, %v6902
    %v6960 = vpop.permute.xlu0 %6959
    %6961 = vset.pattern.permute.xlu0 0
    %6962 = vperm.xlu0 %6961, %v6903
    %v6963 = vpop.permute.xlu0 %6962
    %6964 = vset.pattern.permute.xlu0 0
    %6965 = vperm.xlu0 %6964, %v6904
    %v6966 = vpop.permute.xlu0 %6965
    %6967 = vset.pattern.permute.xlu0 0
    %6968 = vperm.xlu0 %6967, %v6905
    %v6969 = vpop.permute.xlu0 %6968
    %v6970 = vlaneseq
    %v6971 = vshrl.u32 %v6970, 7
    %v6972 = vsub.s32 %v41, %v6971
    %v6973 = vrot.slane %v6924, %v6972
    %v6974 = vlaneseq
    %v6975 = vshrl.u32 %v6974, 7
    %v6976 = vsub.s32 %v986, %v6975
    %v6977 = vrot.slane %v6927, %v6976
    %v6978 = vsel %vm991, %v6977, %v6973
    %v6979 = vlaneseq
    %v6980 = vshrl.u32 %v6979, 7
    %v6981 = vsub.s32 %v993, %v6980
    %v6982 = vrot.slane %v6930, %v6981
    %v6983 = vsel %vm998, %v6982, %v6978
    %v6984 = vlaneseq
    %v6985 = vshrl.u32 %v6984, 7
    %v6986 = vsub.s32 %v1000, %v6985
    %v6987 = vrot.slane %v6933, %v6986
    %v6988 = vsel %vm1005, %v6987, %v6983
    %v6989 = vlaneseq
    %v6990 = vshrl.u32 %v6989, 7
    %v6991 = vsub.s32 %v1007, %v6990
    %v6992 = vrot.slane %v6936, %v6991
    %v6993 = vsel %vm1012, %v6992, %v6988
    %v6994 = vlaneseq
    %v6995 = vshrl.u32 %v6994, 7
    %v6996 = vsub.s32 %v1014, %v6995
    %v6997 = vrot.slane %v6939, %v6996
    %v6998 = vsel %vm1019, %v6997, %v6993
    %v6999 = vlaneseq
    %v7000 = vshrl.u32 %v6999, 7
    %v7001 = vsub.s32 %v1021, %v7000
    %v7002 = vrot.slane %v6942, %v7001
    %v7003 = vsel %vm1026, %v7002, %v6998
    %v7004 = vlaneseq
    %v7005 = vshrl.u32 %v7004, 7
    %v7006 = vsub.s32 %v1028, %v7005
    %v7007 = vrot.slane %v6945, %v7006
    %v7008 = vsel %vm1033, %v7007, %v7003
    %v7009 = vlaneseq
    %v7010 = vshrl.u32 %v7009, 7
    %v7011 = vsub.s32 %v41, %v7010
    %v7012 = vrot.slane %v6948, %v7011
    %v7013 = vlaneseq
    %v7014 = vshrl.u32 %v7013, 7
    %v7015 = vsub.s32 %v986, %v7014
    %v7016 = vrot.slane %v6951, %v7015
    %v7017 = vsel %vm991, %v7016, %v7012
    %v7018 = vlaneseq
    %v7019 = vshrl.u32 %v7018, 7
    %v7020 = vsub.s32 %v993, %v7019
    %v7021 = vrot.slane %v6954, %v7020
    %v7022 = vsel %vm998, %v7021, %v7017
    %v7023 = vlaneseq
    %v7024 = vshrl.u32 %v7023, 7
    %v7025 = vsub.s32 %v1000, %v7024
    %v7026 = vrot.slane %v6957, %v7025
    %v7027 = vsel %vm1005, %v7026, %v7022
    %v7028 = vlaneseq
    %v7029 = vshrl.u32 %v7028, 7
    %v7030 = vsub.s32 %v1007, %v7029
    %v7031 = vrot.slane %v6960, %v7030
    %v7032 = vsel %vm1012, %v7031, %v7027
    %v7033 = vlaneseq
    %v7034 = vshrl.u32 %v7033, 7
    %v7035 = vsub.s32 %v1014, %v7034
    %v7036 = vrot.slane %v6963, %v7035
    %v7037 = vsel %vm1019, %v7036, %v7032
    %v7038 = vlaneseq
    %v7039 = vshrl.u32 %v7038, 7
    %v7040 = vsub.s32 %v1021, %v7039
    %v7041 = vrot.slane %v6966, %v7040
    %v7042 = vsel %vm1026, %v7041, %v7037
    %v7043 = vlaneseq
    %v7044 = vshrl.u32 %v7043, 7
    %v7045 = vsub.s32 %v1028, %v7044
    %v7046 = vrot.slane %v6969, %v7045
    %v7047 = vsel %vm1033, %v7046, %v7042
    %v7048 = vsel %vm1074, %v7047, %v7008
    %v7050 = vsel %vm1077, %v7048, -inf
    %7051 = vmax.xlane.f32.xlu0 %v7050
    %v7052 = vpop.xlane.xlu0 %7051
    %v7054 = vlaneseq
    %v7055 = vshrl.u32 %v7054, 7
    %v7056 = vsub.s32 0, %v7055
    %v7057 = vrot.slane %v7052, %v7056
    %v7058 = vlaneseq
    %v7059 = vshrl.u32 %v7058, 7
    %v7060 = vsub.s32 1, %v7059
    %v7061 = vrot.slane %v7052, %v7060
    %v7064 = vsub.f32 %v6890, %v7057
    %v7065 = vsub.f32 %v6891, %v7057
    %v7066 = vsub.f32 %v6892, %v7057
    %v7067 = vsub.f32 %v6893, %v7057
    %v7068 = vsub.f32 %v6894, %v7057
    %v7069 = vsub.f32 %v6895, %v7057
    %v7070 = vsub.f32 %v6896, %v7057
    %v7071 = vsub.f32 %v6897, %v7057
    %v7072 = vsub.f32 %v6898, %v7061
    %v7073 = vsub.f32 %v6899, %v7061
    %v7074 = vsub.f32 %v6900, %v7061
    %v7075 = vsub.f32 %v6901, %v7061
    %v7076 = vsub.f32 %v6902, %v7061
    %v7077 = vsub.f32 %v6903, %v7061
    %v7078 = vsub.f32 %v6904, %v7061
    %v7079 = vsub.f32 %v6905, %v7061
    %v7080 = vmul.f32 %v7064, 1.442695
    %v7081 = vpow.pop %v7080
    %v7082 = vmul.f32 %v7065, 1.442695
    %v7083 = vpow.pop %v7082
    %v7084 = vmul.f32 %v7066, 1.442695
    %v7085 = vpow.pop %v7084
    %v7086 = vmul.f32 %v7067, 1.442695
    %v7087 = vpow.pop %v7086
    %v7088 = vmul.f32 %v7068, 1.442695
    %v7089 = vpow.pop %v7088
    %v7090 = vmul.f32 %v7069, 1.442695
    %v7091 = vpow.pop %v7090
    %v7092 = vmul.f32 %v7070, 1.442695
    %v7093 = vpow.pop %v7092
    %v7094 = vmul.f32 %v7071, 1.442695
    %v7095 = vpow.pop %v7094
    %v7096 = vmul.f32 %v7072, 1.442695
    %v7097 = vpow.pop %v7096
    %v7098 = vmul.f32 %v7073, 1.442695
    %v7099 = vpow.pop %v7098
    %v7100 = vmul.f32 %v7074, 1.442695
    %v7101 = vpow.pop %v7100
    %v7102 = vmul.f32 %v7075, 1.442695
    %v7103 = vpow.pop %v7102
    %v7104 = vmul.f32 %v7076, 1.442695
    %v7105 = vpow.pop %v7104
    %v7106 = vmul.f32 %v7077, 1.442695
    %v7107 = vpow.pop %v7106
    %v7108 = vmul.f32 %v7078, 1.442695
    %v7109 = vpow.pop %v7108
    %v7110 = vmul.f32 %v7079, 1.442695
    %v7111 = vpow.pop %v7110
    %7128 = vset.pattern.permute.xlu0 0
    %7129 = vperm.xlu0 %7128, %v7081
    %v7130 = vpop.permute.xlu0 %7129
    %7131 = vset.pattern.permute.xlu0 0
    %7132 = vperm.xlu0 %7131, %v7083
    %v7133 = vpop.permute.xlu0 %7132
    %7134 = vset.pattern.permute.xlu0 0
    %7135 = vperm.xlu0 %7134, %v7085
    %v7136 = vpop.permute.xlu0 %7135
    %7137 = vset.pattern.permute.xlu0 0
    %7138 = vperm.xlu0 %7137, %v7087
    %v7139 = vpop.permute.xlu0 %7138
    %7140 = vset.pattern.permute.xlu0 0
    %7141 = vperm.xlu0 %7140, %v7089
    %v7142 = vpop.permute.xlu0 %7141
    %7143 = vset.pattern.permute.xlu0 0
    %7144 = vperm.xlu0 %7143, %v7091
    %v7145 = vpop.permute.xlu0 %7144
    %7146 = vset.pattern.permute.xlu0 0
    %7147 = vperm.xlu0 %7146, %v7093
    %v7148 = vpop.permute.xlu0 %7147
    %7149 = vset.pattern.permute.xlu0 0
    %7150 = vperm.xlu0 %7149, %v7095
    %v7151 = vpop.permute.xlu0 %7150
    %7152 = vset.pattern.permute.xlu0 0
    %7153 = vperm.xlu0 %7152, %v7097
    %v7154 = vpop.permute.xlu0 %7153
    %7155 = vset.pattern.permute.xlu0 0
    %7156 = vperm.xlu0 %7155, %v7099
    %v7157 = vpop.permute.xlu0 %7156
    %7158 = vset.pattern.permute.xlu0 0
    %7159 = vperm.xlu0 %7158, %v7101
    %v7160 = vpop.permute.xlu0 %7159
    %7161 = vset.pattern.permute.xlu0 0
    %7162 = vperm.xlu0 %7161, %v7103
    %v7163 = vpop.permute.xlu0 %7162
    %7164 = vset.pattern.permute.xlu0 0
    %7165 = vperm.xlu0 %7164, %v7105
    %v7166 = vpop.permute.xlu0 %7165
    %7167 = vset.pattern.permute.xlu0 0
    %7168 = vperm.xlu0 %7167, %v7107
    %v7169 = vpop.permute.xlu0 %7168
    %7170 = vset.pattern.permute.xlu0 0
    %7171 = vperm.xlu0 %7170, %v7109
    %v7172 = vpop.permute.xlu0 %7171
    %7173 = vset.pattern.permute.xlu0 0
    %7174 = vperm.xlu0 %7173, %v7111
    %v7175 = vpop.permute.xlu0 %7174
    %v7176 = vlaneseq
    %v7177 = vshrl.u32 %v7176, 7
    %v7178 = vsub.s32 %v41, %v7177
    %v7179 = vrot.slane %v7130, %v7178
    %v7180 = vlaneseq
    %v7181 = vshrl.u32 %v7180, 7
    %v7182 = vsub.s32 %v986, %v7181
    %v7183 = vrot.slane %v7133, %v7182
    %v7184 = vsel %vm991, %v7183, %v7179
    %v7185 = vlaneseq
    %v7186 = vshrl.u32 %v7185, 7
    %v7187 = vsub.s32 %v993, %v7186
    %v7188 = vrot.slane %v7136, %v7187
    %v7189 = vsel %vm998, %v7188, %v7184
    %v7190 = vlaneseq
    %v7191 = vshrl.u32 %v7190, 7
    %v7192 = vsub.s32 %v1000, %v7191
    %v7193 = vrot.slane %v7139, %v7192
    %v7194 = vsel %vm1005, %v7193, %v7189
    %v7195 = vlaneseq
    %v7196 = vshrl.u32 %v7195, 7
    %v7197 = vsub.s32 %v1007, %v7196
    %v7198 = vrot.slane %v7142, %v7197
    %v7199 = vsel %vm1012, %v7198, %v7194
    %v7200 = vlaneseq
    %v7201 = vshrl.u32 %v7200, 7
    %v7202 = vsub.s32 %v1014, %v7201
    %v7203 = vrot.slane %v7145, %v7202
    %v7204 = vsel %vm1019, %v7203, %v7199
    %v7205 = vlaneseq
    %v7206 = vshrl.u32 %v7205, 7
    %v7207 = vsub.s32 %v1021, %v7206
    %v7208 = vrot.slane %v7148, %v7207
    %v7209 = vsel %vm1026, %v7208, %v7204
    %v7210 = vlaneseq
    %v7211 = vshrl.u32 %v7210, 7
    %v7212 = vsub.s32 %v1028, %v7211
    %v7213 = vrot.slane %v7151, %v7212
    %v7214 = vsel %vm1033, %v7213, %v7209
    %v7215 = vlaneseq
    %v7216 = vshrl.u32 %v7215, 7
    %v7217 = vsub.s32 %v41, %v7216
    %v7218 = vrot.slane %v7154, %v7217
    %v7219 = vlaneseq
    %v7220 = vshrl.u32 %v7219, 7
    %v7221 = vsub.s32 %v986, %v7220
    %v7222 = vrot.slane %v7157, %v7221
    %v7223 = vsel %vm991, %v7222, %v7218
    %v7224 = vlaneseq
    %v7225 = vshrl.u32 %v7224, 7
    %v7226 = vsub.s32 %v993, %v7225
    %v7227 = vrot.slane %v7160, %v7226
    %v7228 = vsel %vm998, %v7227, %v7223
    %v7229 = vlaneseq
    %v7230 = vshrl.u32 %v7229, 7
    %v7231 = vsub.s32 %v1000, %v7230
    %v7232 = vrot.slane %v7163, %v7231
    %v7233 = vsel %vm1005, %v7232, %v7228
    %v7234 = vlaneseq
    %v7235 = vshrl.u32 %v7234, 7
    %v7236 = vsub.s32 %v1007, %v7235
    %v7237 = vrot.slane %v7166, %v7236
    %v7238 = vsel %vm1012, %v7237, %v7233
    %v7239 = vlaneseq
    %v7240 = vshrl.u32 %v7239, 7
    %v7241 = vsub.s32 %v1014, %v7240
    %v7242 = vrot.slane %v7169, %v7241
    %v7243 = vsel %vm1019, %v7242, %v7238
    %v7244 = vlaneseq
    %v7245 = vshrl.u32 %v7244, 7
    %v7246 = vsub.s32 %v1021, %v7245
    %v7247 = vrot.slane %v7172, %v7246
    %v7248 = vsel %vm1026, %v7247, %v7243
    %v7249 = vlaneseq
    %v7250 = vshrl.u32 %v7249, 7
    %v7251 = vsub.s32 %v1028, %v7250
    %v7252 = vrot.slane %v7175, %v7251
    %v7253 = vsel %vm1033, %v7252, %v7248
    %v7254 = vsel %vm1074, %v7253, %v7214
    %v7256 = vsel %vm1077, %v7254, 0.0
    %7257 = vadd.xlane.f32.xlu0 %v7256
    %v7258 = vpop.xlane.xlu0 %7257
    %v7259 = vrcp.pop %v7258
    %v7261 = vlaneseq
    %v7262 = vshrl.u32 %v7261, 7
    %v7263 = vsub.s32 0, %v7262
    %v7264 = vrot.slane %v7259, %v7263
    %v7265 = vlaneseq
    %v7266 = vshrl.u32 %v7265, 7
    %v7267 = vsub.s32 1, %v7266
    %v7268 = vrot.slane %v7259, %v7267
    %v7271 = vmul.f32 %v7081, %v7264
    %v7272 = vmul.f32 %v7083, %v7264
    %v7273 = vmul.f32 %v7085, %v7264
    %v7274 = vmul.f32 %v7087, %v7264
    %v7275 = vmul.f32 %v7089, %v7264
    %v7276 = vmul.f32 %v7091, %v7264
    %v7277 = vmul.f32 %v7093, %v7264
    %v7278 = vmul.f32 %v7095, %v7264
    %v7279 = vmul.f32 %v7097, %v7268
    %v7280 = vmul.f32 %v7099, %v7268
    %v7281 = vmul.f32 %v7101, %v7268
    %v7282 = vmul.f32 %v7103, %v7268
    %v7283 = vmul.f32 %v7105, %v7268
    %v7284 = vmul.f32 %v7107, %v7268
    %v7285 = vmul.f32 %v7109, %v7268
    %v7286 = vmul.f32 %v7111, %v7268
    %v7287 = vpack.c.bf16 %v7272, %v7271
    %v7288 = vpack.c.bf16 %v7274, %v7273
    %v7289 = vpack.c.bf16 %v7276, %v7275
    %v7290 = vpack.c.bf16 %v7278, %v7277
    %v7291 = vpack.c.bf16 %v7280, %v7279
    %v7292 = vpack.c.bf16 %v7282, %v7281
    %v7293 = vpack.c.bf16 %v7284, %v7283
    %v7294 = vpack.c.bf16 %v7286, %v7285
    %v7303 = vunpack.c.l.b16 %v7287
    %v7304 = vunpack.c.h.b16 %v7287
    %v7305 = vunpack.c.l.b16 %v7288
    %v7306 = vunpack.c.h.b16 %v7288
    %v7307 = vunpack.c.l.b16 %v7289
    %v7308 = vunpack.c.h.b16 %v7289
    %v7309 = vunpack.c.l.b16 %v7290
    %v7310 = vunpack.c.h.b16 %v7290
    %v7311 = vunpack.c.l.b16 %v7291
    %v7312 = vunpack.c.h.b16 %v7291
    %v7313 = vunpack.c.l.b16 %v7292
    %v7314 = vunpack.c.h.b16 %v7292
    %v7315 = vunpack.c.l.b16 %v7293
    %v7316 = vunpack.c.h.b16 %v7293
    %v7317 = vunpack.c.l.b16 %v7294
    %v7318 = vunpack.c.h.b16 %v7294
    %7319 = vset.pattern.permute.xlu0 0
    %7320 = vperm.xlu0 %7319, %v7303
    %v7321 = vpop.permute.xlu0 %7320
    %7322 = vset.pattern.permute.xlu0 0
    %7323 = vperm.xlu0 %7322, %v7304
    %v7324 = vpop.permute.xlu0 %7323
    %7325 = vset.pattern.permute.xlu0 0
    %7326 = vperm.xlu0 %7325, %v7305
    %v7327 = vpop.permute.xlu0 %7326
    %7328 = vset.pattern.permute.xlu0 0
    %7329 = vperm.xlu0 %7328, %v7306
    %v7330 = vpop.permute.xlu0 %7329
    %7331 = vset.pattern.permute.xlu0 0
    %7332 = vperm.xlu0 %7331, %v7307
    %v7333 = vpop.permute.xlu0 %7332
    %7334 = vset.pattern.permute.xlu0 0
    %7335 = vperm.xlu0 %7334, %v7308
    %v7336 = vpop.permute.xlu0 %7335
    %7337 = vset.pattern.permute.xlu0 0
    %7338 = vperm.xlu0 %7337, %v7309
    %v7339 = vpop.permute.xlu0 %7338
    %7340 = vset.pattern.permute.xlu0 0
    %7341 = vperm.xlu0 %7340, %v7310
    %v7342 = vpop.permute.xlu0 %7341
    %7343 = vset.pattern.permute.xlu0 0
    %7344 = vperm.xlu0 %7343, %v7311
    %v7345 = vpop.permute.xlu0 %7344
    %7346 = vset.pattern.permute.xlu0 0
    %7347 = vperm.xlu0 %7346, %v7312
    %v7348 = vpop.permute.xlu0 %7347
    %7349 = vset.pattern.permute.xlu0 0
    %7350 = vperm.xlu0 %7349, %v7313
    %v7351 = vpop.permute.xlu0 %7350
    %7352 = vset.pattern.permute.xlu0 0
    %7353 = vperm.xlu0 %7352, %v7314
    %v7354 = vpop.permute.xlu0 %7353
    %7355 = vset.pattern.permute.xlu0 0
    %7356 = vperm.xlu0 %7355, %v7315
    %v7357 = vpop.permute.xlu0 %7356
    %7358 = vset.pattern.permute.xlu0 0
    %7359 = vperm.xlu0 %7358, %v7316
    %v7360 = vpop.permute.xlu0 %7359
    %7361 = vset.pattern.permute.xlu0 0
    %7362 = vperm.xlu0 %7361, %v7317
    %v7363 = vpop.permute.xlu0 %7362
    %7364 = vset.pattern.permute.xlu0 0
    %7365 = vperm.xlu0 %7364, %v7318
    %v7366 = vpop.permute.xlu0 %7365
    %v7367 = vlaneseq
    %v7368 = vshrl.u32 %v7367, 7
    %v7369 = vsub.s32 %v41, %v7368
    %v7370 = vrot.slane %v7321, %v7369
    %v7371 = vlaneseq
    %v7372 = vshrl.u32 %v7371, 7
    %v7373 = vsub.s32 %v986, %v7372
    %v7374 = vrot.slane %v7324, %v7373
    %v7375 = vsel %vm991, %v7374, %v7370
    %v7376 = vlaneseq
    %v7377 = vshrl.u32 %v7376, 7
    %v7378 = vsub.s32 %v993, %v7377
    %v7379 = vrot.slane %v7327, %v7378
    %v7380 = vsel %vm998, %v7379, %v7375
    %v7381 = vlaneseq
    %v7382 = vshrl.u32 %v7381, 7
    %v7383 = vsub.s32 %v1000, %v7382
    %v7384 = vrot.slane %v7330, %v7383
    %v7385 = vsel %vm1005, %v7384, %v7380
    %v7386 = vlaneseq
    %v7387 = vshrl.u32 %v7386, 7
    %v7388 = vsub.s32 %v1007, %v7387
    %v7389 = vrot.slane %v7333, %v7388
    %v7390 = vsel %vm1012, %v7389, %v7385
    %v7391 = vlaneseq
    %v7392 = vshrl.u32 %v7391, 7
    %v7393 = vsub.s32 %v1014, %v7392
    %v7394 = vrot.slane %v7336, %v7393
    %v7395 = vsel %vm1019, %v7394, %v7390
    %v7396 = vlaneseq
    %v7397 = vshrl.u32 %v7396, 7
    %v7398 = vsub.s32 %v1021, %v7397
    %v7399 = vrot.slane %v7339, %v7398
    %v7400 = vsel %vm1026, %v7399, %v7395
    %v7401 = vlaneseq
    %v7402 = vshrl.u32 %v7401, 7
    %v7403 = vsub.s32 %v1028, %v7402
    %v7404 = vrot.slane %v7342, %v7403
    %v7405 = vsel %vm1033, %v7404, %v7400
    %v7406 = vlaneseq
    %v7407 = vshrl.u32 %v7406, 7
    %v7408 = vsub.s32 %v41, %v7407
    %v7409 = vrot.slane %v7345, %v7408
    %v7410 = vlaneseq
    %v7411 = vshrl.u32 %v7410, 7
    %v7412 = vsub.s32 %v986, %v7411
    %v7413 = vrot.slane %v7348, %v7412
    %v7414 = vsel %vm991, %v7413, %v7409
    %v7415 = vlaneseq
    %v7416 = vshrl.u32 %v7415, 7
    %v7417 = vsub.s32 %v993, %v7416
    %v7418 = vrot.slane %v7351, %v7417
    %v7419 = vsel %vm998, %v7418, %v7414
    %v7420 = vlaneseq
    %v7421 = vshrl.u32 %v7420, 7
    %v7422 = vsub.s32 %v1000, %v7421
    %v7423 = vrot.slane %v7354, %v7422
    %v7424 = vsel %vm1005, %v7423, %v7419
    %v7425 = vlaneseq
    %v7426 = vshrl.u32 %v7425, 7
    %v7427 = vsub.s32 %v1007, %v7426
    %v7428 = vrot.slane %v7357, %v7427
    %v7429 = vsel %vm1012, %v7428, %v7424
    %v7430 = vlaneseq
    %v7431 = vshrl.u32 %v7430, 7
    %v7432 = vsub.s32 %v1014, %v7431
    %v7433 = vrot.slane %v7360, %v7432
    %v7434 = vsel %vm1019, %v7433, %v7429
    %v7435 = vlaneseq
    %v7436 = vshrl.u32 %v7435, 7
    %v7437 = vsub.s32 %v1021, %v7436
    %v7438 = vrot.slane %v7363, %v7437
    %v7439 = vsel %vm1026, %v7438, %v7434
    %v7440 = vlaneseq
    %v7441 = vshrl.u32 %v7440, 7
    %v7442 = vsub.s32 %v1028, %v7441
    %v7443 = vrot.slane %v7366, %v7442
    %v7444 = vsel %vm1033, %v7443, %v7439
    %v7445 = vsel %vm1074, %v7444, %v7405
    %v7446 = vpack.c.b16 %v7445, %v7445
    %v7447 = vlaneseq
    %v7448 = vshrl.u32 %v7447, 7
    %v7449 = vsub.s32 %v1475, %v7448
    %v7450 = vrot.slane %v7321, %v7449
    %v7451 = vlaneseq
    %v7452 = vshrl.u32 %v7451, 7
    %v7453 = vsub.s32 %v1480, %v7452
    %v7454 = vrot.slane %v7324, %v7453
    %v7455 = vsel %vm1485, %v7454, %v7450
    %v7456 = vlaneseq
    %v7457 = vshrl.u32 %v7456, 7
    %v7458 = vsub.s32 %v1487, %v7457
    %v7459 = vrot.slane %v7327, %v7458
    %v7460 = vsel %vm1492, %v7459, %v7455
    %v7461 = vlaneseq
    %v7462 = vshrl.u32 %v7461, 7
    %v7463 = vsub.s32 %v1494, %v7462
    %v7464 = vrot.slane %v7330, %v7463
    %v7465 = vsel %vm1499, %v7464, %v7460
    %v7466 = vlaneseq
    %v7467 = vshrl.u32 %v7466, 7
    %v7468 = vsub.s32 %v1501, %v7467
    %v7469 = vrot.slane %v7333, %v7468
    %v7470 = vsel %vm1506, %v7469, %v7465
    %v7471 = vlaneseq
    %v7472 = vshrl.u32 %v7471, 7
    %v7473 = vsub.s32 %v1508, %v7472
    %v7474 = vrot.slane %v7336, %v7473
    %v7475 = vsel %vm1513, %v7474, %v7470
    %v7476 = vlaneseq
    %v7477 = vshrl.u32 %v7476, 7
    %v7478 = vsub.s32 %v1515, %v7477
    %v7479 = vrot.slane %v7339, %v7478
    %v7480 = vsel %vm1520, %v7479, %v7475
    %v7481 = vlaneseq
    %v7482 = vshrl.u32 %v7481, 7
    %v7483 = vsub.s32 %v1522, %v7482
    %v7484 = vrot.slane %v7342, %v7483
    %v7485 = vsel %vm1527, %v7484, %v7480
    %v7486 = vlaneseq
    %v7487 = vshrl.u32 %v7486, 7
    %v7488 = vsub.s32 %v1475, %v7487
    %v7489 = vrot.slane %v7345, %v7488
    %v7490 = vlaneseq
    %v7491 = vshrl.u32 %v7490, 7
    %v7492 = vsub.s32 %v1480, %v7491
    %v7493 = vrot.slane %v7348, %v7492
    %v7494 = vsel %vm1485, %v7493, %v7489
    %v7495 = vlaneseq
    %v7496 = vshrl.u32 %v7495, 7
    %v7497 = vsub.s32 %v1487, %v7496
    %v7498 = vrot.slane %v7351, %v7497
    %v7499 = vsel %vm1492, %v7498, %v7494
    %v7500 = vlaneseq
    %v7501 = vshrl.u32 %v7500, 7
    %v7502 = vsub.s32 %v1494, %v7501
    %v7503 = vrot.slane %v7354, %v7502
    %v7504 = vsel %vm1499, %v7503, %v7499
    %v7505 = vlaneseq
    %v7506 = vshrl.u32 %v7505, 7
    %v7507 = vsub.s32 %v1501, %v7506
    %v7508 = vrot.slane %v7357, %v7507
    %v7509 = vsel %vm1506, %v7508, %v7504
    %v7510 = vlaneseq
    %v7511 = vshrl.u32 %v7510, 7
    %v7512 = vsub.s32 %v1508, %v7511
    %v7513 = vrot.slane %v7360, %v7512
    %v7514 = vsel %vm1513, %v7513, %v7509
    %v7515 = vlaneseq
    %v7516 = vshrl.u32 %v7515, 7
    %v7517 = vsub.s32 %v1515, %v7516
    %v7518 = vrot.slane %v7363, %v7517
    %v7519 = vsel %vm1520, %v7518, %v7514
    %v7520 = vlaneseq
    %v7521 = vshrl.u32 %v7520, 7
    %v7522 = vsub.s32 %v1522, %v7521
    %v7523 = vrot.slane %v7366, %v7522
    %v7524 = vsel %vm1527, %v7523, %v7519
    %v7525 = vsel %vm1074, %v7524, %v7485
    %v7526 = vpack.c.b16 %v7525, %v7525
    %v7529 = vsel %vm1570, %v7446, %v7526
    %v7531 = vld [vmem:[%s2] sm:$0x1]
    %v7532 = vmul.bf16 %v7529, %v7531
    %v7533 = vld [vmem:[%s1] sm:$0xf]
    %v7534 = vld [vmem:[%s1 + $0x4] sm:$0xf]
    %v7535 = vld [vmem:[%s1 + $0x8] sm:$0xf]
    %v7536 = vld [vmem:[%s1 + $0xc] sm:$0xf]
    %v7537 = vld [vmem:[%s1 + $0x10] sm:$0xf]
    %v7538 = vld [vmem:[%s1 + $0x14] sm:$0xf]
    %v7539 = vld [vmem:[%s1 + $0x18] sm:$0xf]
    %v7540 = vld [vmem:[%s1 + $0x1c] sm:$0xf]
    %v7541 = vld [vmem:[%s1 + $0x20] sm:$0xf]
    %v7542 = vld [vmem:[%s1 + $0x24] sm:$0xf]
    %v7543 = vld [vmem:[%s1 + $0x28] sm:$0xf]
    %v7544 = vld [vmem:[%s1 + $0x2c] sm:$0xf]
    %v7545 = vld [vmem:[%s1 + $0x30] sm:$0xf]
    %v7546 = vld [vmem:[%s1 + $0x34] sm:$0xf]
    %v7547 = vld [vmem:[%s1 + $0x38] sm:$0xf]
    %v7548 = vld [vmem:[%s1 + $0x3c] sm:$0xf]
    %v7565 = vunpack.c.l.b16 %v7533
    %v7566 = vunpack.c.l.b16 %v7534
    %v7567 = vunpack.c.l.b16 %v7535
    %v7568 = vunpack.c.l.b16 %v7536
    %v7569 = vunpack.c.l.b16 %v7537
    %v7570 = vunpack.c.l.b16 %v7538
    %v7571 = vunpack.c.l.b16 %v7539
    %v7572 = vunpack.c.l.b16 %v7540
    %v7573 = vunpack.c.l.b16 %v7541
    %v7574 = vunpack.c.l.b16 %v7542
    %v7575 = vunpack.c.l.b16 %v7543
    %v7576 = vunpack.c.l.b16 %v7544
    %v7577 = vunpack.c.l.b16 %v7545
    %v7578 = vunpack.c.l.b16 %v7546
    %v7579 = vunpack.c.l.b16 %v7547
    %v7580 = vunpack.c.l.b16 %v7548
    %v7581 = vpack.c.b16 %v7566, %v7565
    %v7582 = vpack.c.b16 %v7568, %v7567
    %v7583 = vpack.c.b16 %v7570, %v7569
    %v7584 = vpack.c.b16 %v7572, %v7571
    %v7585 = vpack.c.b16 %v7574, %v7573
    %v7586 = vpack.c.b16 %v7576, %v7575
    %v7587 = vpack.c.b16 %v7578, %v7577
    %v7588 = vpack.c.b16 %v7580, %v7579
    %7597 = vmatprep.subr.bf16.mxu0 0
    %7598 = vmatpush1.bf16.msra.mxu0 %v7581
    %7599 = vmatprep.subr.bf16.mxu0 0
    %7600 = vmatpush1.bf16.msra.mxu0 %v7582
    %7601 = vmatprep.subr.bf16.mxu0 0
    %7602 = vmatpush1.bf16.msra.mxu0 %v7583
    %7603 = vmatprep.subr.bf16.mxu0 0
    %7604 = vmatpush1.bf16.msra.mxu0 %v7584
    %7605 = vmatprep.subr.bf16.mxu0 0
    %7606 = vmatpush1.bf16.msra.mxu0 %v7585
    %7607 = vmatprep.subr.bf16.mxu0 0
    %7608 = vmatpush1.bf16.msra.mxu0 %v7586
    %7609 = vmatprep.subr.bf16.mxu0 0
    %7610 = vmatpush1.bf16.msra.mxu0 %v7587
    %7611 = vmatprep.subr.bf16.mxu0 0
    %7612 = vmatpush1.bf16.msra.mxu0 %v7588
    %7613 = vmatprep.subr.bf16.mxu0 0
    %7614 = vmatpush1.bf16.msra.mxu0 0
    %7615 = vmatprep.subr.bf16.mxu0 0
    %7616 = vmatpush1.bf16.msra.mxu0 0
    %7617 = vmatprep.subr.bf16.mxu0 0
    %7618 = vmatpush1.bf16.msra.mxu0 0
    %7619 = vmatprep.subr.bf16.mxu0 0
    %7620 = vmatpush1.bf16.msra.mxu0 0
    %7621 = vmatprep.subr.bf16.mxu0 0
    %7622 = vmatpush1.bf16.msra.mxu0 0
    %7623 = vmatprep.subr.bf16.mxu0 0
    %7624 = vmatpush1.bf16.msra.mxu0 0
    %7625 = vmatprep.subr.bf16.mxu0 0
    %7626 = vmatpush1.bf16.msra.mxu0 0
    %7627 = vmatprep.subr.bf16.mxu0 0
    %7628 = vmatpush1.bf16.msra.mxu0 0
    %7629 = vmatprep.mubr.bf16.mxu0 0
    %7630 = vmatmul.mubr.bf16.gmra.mrb[0].mxu0 %v7532
    %v7631 = vpop.f32.mrb[0].mxu0
    %v7632 = vadd.f32 0.0, %v7631
    %v7633 = vpop.f32.mrb[0].mxu0
    %v7634 = vpop.f32.mrb[0].mxu0
    %v7635 = vpop.f32.mrb[0].mxu0
    %7636 = vdwg.mxu0
    %v7637 = vpack.c.bf16 %v7632, %v7632
    %v7638 = vld [vmem:[%s9] sm:$0xf]
    %v7639 = vld [vmem:[%s9 + $0x4] sm:$0xf]
    %v7640 = vld [vmem:[%s9 + $0x8] sm:$0xf]
    %v7641 = vld [vmem:[%s9 + $0xc] sm:$0xf]
    %v7642 = vld [vmem:[%s10] sm:$0x1]
    %v7644 = vlaneseq
    %v7645 = vshrl.u32 %v7644, 7
    %v7646 = vsub.s32 0, %v7645
    %v7647 = vrot.slane %v7642, %v7646
    %v7653 = vunpack.c.l.b16 %v7638
    %v7654 = vunpack.c.l.b16 %v7639
    %v7655 = vunpack.c.l.b16 %v7640
    %v7656 = vunpack.c.l.b16 %v7641
    %v7657 = vpack.c.b16 %v7654, %v7653
    %v7658 = vpack.c.b16 %v7656, %v7655
    %v7662 = vsel %vm348, %v7637, 0
    %7664 = vmatprep.subr.bf16.mxu0 0
    %7665 = vmatpush1.bf16.msra.mxu0 %v7657
    %7666 = vmatprep.subr.bf16.mxu0 0
    %7667 = vmatpush1.bf16.msra.mxu0 %v7658
    %7668 = vmatprep.subr.bf16.mxu0 0
    %7669 = vmatpush1.bf16.msra.mxu0 0
    %7670 = vmatprep.subr.bf16.mxu0 0
    %7671 = vmatpush1.bf16.msra.mxu0 0
    %7672 = vmatprep.subr.bf16.mxu0 0
    %7673 = vmatpush1.bf16.msra.mxu0 0
    %7674 = vmatprep.subr.bf16.mxu0 0
    %7675 = vmatpush1.bf16.msra.mxu0 0
    %7676 = vmatprep.subr.bf16.mxu0 0
    %7677 = vmatpush1.bf16.msra.mxu0 0
    %7678 = vmatprep.subr.bf16.mxu0 0
    %7679 = vmatpush1.bf16.msra.mxu0 0
    %7680 = vmatprep.subr.bf16.mxu0 0
    %7681 = vmatpush1.bf16.msra.mxu0 0
    %7682 = vmatprep.subr.bf16.mxu0 0
    %7683 = vmatpush1.bf16.msra.mxu0 0
    %7684 = vmatprep.subr.bf16.mxu0 0
    %7685 = vmatpush1.bf16.msra.mxu0 0
    %7686 = vmatprep.subr.bf16.mxu0 0
    %7687 = vmatpush1.bf16.msra.mxu0 0
    %7688 = vmatprep.subr.bf16.mxu0 0
    %7689 = vmatpush1.bf16.msra.mxu0 0
    %7690 = vmatprep.subr.bf16.mxu0 0
    %7691 = vmatpush1.bf16.msra.mxu0 0
    %7692 = vmatprep.subr.bf16.mxu0 0
    %7693 = vmatpush1.bf16.msra.mxu0 0
    %7694 = vmatprep.subr.bf16.mxu0 0
    %7695 = vmatpush1.bf16.msra.mxu0 0
    %7696 = vmatprep.mubr.bf16.mxu0 0
    %7697 = vmatmul.mubr.bf16.gmra.mrb[0].mxu0 %v7662
    %v7698 = vpop.f32.mrb[0].mxu0
    %v7699 = vadd.f32 %v7647, %v7698
    %v7700 = vpop.f32.mrb[0].mxu0
    %v7701 = vpop.f32.mrb[0].mxu0
    %v7702 = vpop.f32.mrb[0].mxu0
    %7703 = vdwg.mxu0
    %v7704 = vsel %vm1748, %v7699, -inf
    %7705 = vmax.xlane.f32.xlu0 %v7704
    %v7706 = vpop.xlane.xlu0 %7705
    %vm7707 = vcmp.eq.f32.partialorder %v7699, %v7706
    %v7708 = vsel %vm7707, 1, 0
    %v7709 = vcvt.s32.f32 %v7708
    %v7710 = vpack.c.bf16 %v7709, %v7709
    %7711 = vst [vmem:[#allocation2] sm:$0x1] %v7710
    %v7712 = vsub.f32 %v7699, %v7706
    %v7713 = vmul.f32 %v7712, 1.442695
    %v7714 = vpow.pop %v7713
    %v7715 = vsel %vm1748, %v7714, 0.0
    %7716 = vadd.xlane.f32.xlu0 %v7715
    %v7717 = vpop.xlane.xlu0 %7716
    %v7718 = vrcp.pop %v7717
    %v7719 = vmul.f32 %v7714, %v7718
    %s7720 = scalar_lea.vmem [#allocation6], 8
    %7721 = vst [vmem:[%s7720] sm:$0x3] %v7719
    %v7722 = vld [vmem:[#allocation2] sm:$0x3]
    %v7723 = vld [vmem:[%s5] sm:$0xf]
    %v7724 = vld [vmem:[%s5 + $0x4] sm:$0xf]
    %v7725 = vld [vmem:[%s5 + $0x8] sm:$0xf]
    %v7726 = vld [vmem:[%s5 + $0xc] sm:$0xf]
    %v7727 = vld [vmem:[%s5 + $0x10] sm:$0xf]
    %v7728 = vld [vmem:[%s5 + $0x14] sm:$0xf]
    %v7729 = vld [vmem:[%s5 + $0x18] sm:$0xf]
    %v7730 = vld [vmem:[%s5 + $0x1c] sm:$0xf]
    %v7731 = vld [vmem:[%s5 + $0x20] sm:$0xf]
    %v7732 = vld [vmem:[%s5 + $0x24] sm:$0xf]
    %v7733 = vld [vmem:[%s5 + $0x28] sm:$0xf]
    %v7734 = vld [vmem:[%s5 + $0x2c] sm:$0xf]
    %v7735 = vld [vmem:[%s5 + $0x30] sm:$0xf]
    %v7736 = vld [vmem:[%s5 + $0x34] sm:$0xf]
    %v7737 = vld [vmem:[%s5 + $0x38] sm:$0xf]
    %v7738 = vld [vmem:[%s5 + $0x3c] sm:$0xf]
    %v7739 = vld [vmem:[%s5 + $0x40] sm:$0xf]
    %v7740 = vld [vmem:[%s5 + $0x44] sm:$0xf]
    %v7741 = vld [vmem:[%s5 + $0x48] sm:$0xf]
    %v7742 = vld [vmem:[%s5 + $0x4c] sm:$0xf]
    %v7745 = vunpack.c.l.s4 1966171168
    %v7746 = vunpack.c.0.s8 %v7745
    %v7747 = vlaneseq
    %v7748 = vshrl.u32 %v7747, 7
    %v7749 = vsub.s32 %v7746, %v7748
    %v7750 = vrot.slane %v7722, %v7749
    %v7751 = vcombine.high %v7750, %v7750
    %v7753 = vunpack.c.l.s4 1966171168
    %v7754 = vunpack.c.0.s8 %v7753
    %v7755 = vlaneseq
    %v7756 = vshrl.u32 %v7755, 7
    %v7757 = vsub.s32 %v7754, %v7756
    %v7758 = vrot.slane %v7750, %v7757
    %v7760 = vunpack.c.l.s4 1966171168
    %v7761 = vunpack.c.0.s8 %v7760
    %v7762 = vlaneseq
    %v7763 = vshrl.u32 %v7762, 7
    %v7764 = vsub.s32 %v7761, %v7763
    %v7765 = vrot.slane %v7751, %v7764
    %v7787 = vunpack.c.l.b16 %v7723
    %v7788 = vunpack.c.l.b16 %v7724
    %v7789 = vunpack.c.l.b16 %v7725
    %v7790 = vunpack.c.l.b16 %v7726
    %v7791 = vunpack.c.l.b16 %v7727
    %v7792 = vunpack.c.l.b16 %v7728
    %v7793 = vunpack.c.l.b16 %v7729
    %v7794 = vunpack.c.l.b16 %v7730
    %v7795 = vunpack.c.l.b16 %v7731
    %v7796 = vunpack.c.l.b16 %v7732
    %v7797 = vunpack.c.l.b16 %v7733
    %v7798 = vunpack.c.l.b16 %v7734
    %v7799 = vunpack.c.l.b16 %v7735
    %v7800 = vunpack.c.l.b16 %v7736
    %v7801 = vunpack.c.l.b16 %v7737
    %v7802 = vunpack.c.l.b16 %v7738
    %v7803 = vunpack.c.l.b16 %v7739
    %v7804 = vunpack.c.l.b16 %v7740
    %v7805 = vunpack.c.l.b16 %v7741
    %v7806 = vunpack.c.l.b16 %v7742
    %v7807 = vpack.c.b16 %v7788, %v7787
    %v7808 = vpack.c.b16 %v7790, %v7789
    %v7809 = vpack.c.b16 %v7792, %v7791
    %v7810 = vpack.c.b16 %v7794, %v7793
    %v7811 = vpack.c.b16 %v7796, %v7795
    %v7812 = vpack.c.b16 %v7798, %v7797
    %v7813 = vpack.c.b16 %v7800, %v7799
    %v7814 = vpack.c.b16 %v7802, %v7801
    %v7815 = vpack.c.b16 %v7804, %v7803
    %v7816 = vpack.c.b16 %v7806, %v7805
    %v7828 = vsel %vm348, %v7765, 0
    %7830 = vmatprep.subr.bf16.mxu0 0
    %7831 = vmatpush1.bf16.msra.mxu0 %v7807
    %7832 = vmatprep.subr.bf16.mxu0 0
    %7833 = vmatpush1.bf16.msra.mxu0 %v7808
    %7834 = vmatprep.subr.bf16.mxu0 0
    %7835 = vmatpush1.bf16.msra.mxu0 %v7809
    %7836 = vmatprep.subr.bf16.mxu0 0
    %7837 = vmatpush1.bf16.msra.mxu0 %v7810
    %7838 = vmatprep.subr.bf16.mxu0 0
    %7839 = vmatpush1.bf16.msra.mxu0 %v7811
    %7840 = vmatprep.subr.bf16.mxu0 0
    %7841 = vmatpush1.bf16.msra.mxu0 %v7812
    %7842 = vmatprep.subr.bf16.mxu0 0
    %7843 = vmatpush1.bf16.msra.mxu0 %v7813
    %7844 = vmatprep.subr.bf16.mxu0 0
    %7845 = vmatpush1.bf16.msra.mxu0 %v7814
    %7846 = vmatprep.subr.bf16.mxu0 0
    %7847 = vmatpush1.bf16.msra.mxu0 %v7815
    %7848 = vmatprep.subr.bf16.mxu0 0
    %7849 = vmatpush1.bf16.msra.mxu0 %v7816
    %7850 = vmatprep.subr.bf16.mxu0 0
    %7851 = vmatpush1.bf16.msra.mxu0 0
    %7852 = vmatprep.subr.bf16.mxu0 0
    %7853 = vmatpush1.bf16.msra.mxu0 0
    %7854 = vmatprep.subr.bf16.mxu0 0
    %7855 = vmatpush1.bf16.msra.mxu0 0
    %7856 = vmatprep.subr.bf16.mxu0 0
    %7857 = vmatpush1.bf16.msra.mxu0 0
    %7858 = vmatprep.subr.bf16.mxu0 0
    %7859 = vmatpush1.bf16.msra.mxu0 0
    %7860 = vmatprep.subr.bf16.mxu0 0
    %7861 = vmatpush1.bf16.msra.mxu0 0
    %7862 = vmatprep.mubr.bf16.mxu0 %v7828
    %7863 = vmatmul.mubr.bf16.gmra.mrb[0].mxu0 %v7758
    %v7864 = vpop.f32.mrb[0].mxu0
    %v7865 = vadd.f32 0.0, %v7864
    %v7866 = vpop.f32.mrb[0].mxu0
    %v7867 = vpop.f32.mrb[0].mxu0
    %v7868 = vpop.f32.mrb[0].mxu0
    %7869 = vdwg.mxu0
    %v7870 = vld [vmem:[#allocation4] sm:$0x3]
    %v7871 = vxor.u32 %v7865, 2147483648
    %v7872 = vmul.f32 %v7871, 1.442695
    %v7873 = vpow.pop %v7872
    %v7874 = vadd.f32 %v7873, 1.0
    %v7875 = vrcp.pop %v7874
    %v7876 = vmul.f32 1.0, %v7875
    %v7877 = vtanh.pop %v7865
    %7879 = vrot.lane.b32.xlu0 %v7870, 32
    %v7880 = vpop.permute.xlu0 %7879
    %v7882 = vmul.f32 %v7876, %v7880
    %7884 = vrot.lane.b32.xlu0 %v7877, 64
    %v7885 = vpop.permute.xlu0 %7884
    %v7887 = vmul.f32 %v7876, %v7885
    %7889 = vrot.lane.b32.xlu0 %v7887, 32
    %v7890 = vpop.permute.xlu0 %7889
    %v7892 = vadd.f32 %v7882, %v7890
    %v7893 = vtanh.pop %v7892
    %7895 = vrot.lane.b32.xlu0 %v7893, 64
    %v7896 = vpop.permute.xlu0 %7895
    %v7898 = vmul.f32 %v7876, %v7896
    %7900 = vrot.lane.b32.xlu0 %v7892, 96
    %v7901 = vpop.permute.xlu0 %7900
    %7903 = vst.msk [vmem:[#allocation4] sm:$0x3] %vm230, %v7901
    %v7904 = vpack.c.bf16 %v7898, %v7898
    %v7907 = vunpack.c.l.s4 1966171168
    %v7908 = vunpack.c.0.s8 %v7907
    %v7909 = vlaneseq
    %v7910 = vshrl.u32 %v7909, 7
    %v7911 = vsub.s32 %v7908, %v7910
    %v7912 = vrot.slane %v7904, %v7911
    %v7914 = vunpack.c.l.s4 1966171168
    %v7915 = vunpack.c.0.s8 %v7914
    %v7916 = vlaneseq
    %v7917 = vshrl.u32 %v7916, 7
    %v7918 = vsub.s32 %v7915, %v7917
    %v7919 = vrot.slane %v7912, %v7918
    %7920 = vrot.lane.b32.xlu0 %v7919, 32
    %v7921 = vpop.permute.xlu0 %7920
    %7923 = vst.msk [vmem:[#allocation2 + $0x1] sm:$0x1] %vm92, %v7921
    %7924 = vst.msk [vmem:[#allocation3] sm:$0x1] %vm92, %v7921
    %v7925 = vld [vmem:[#allocation3] sm:$0x1]
    %v7926 = vld [vmem:[%s6] sm:$0xf]
    %v7927 = vld [vmem:[%s6 + $0x4] sm:$0xf]
    %v7928 = vld [vmem:[%s6 + $0x8] sm:$0xf]
    %v7929 = vld [vmem:[%s6 + $0xc] sm:$0xf]
    %v7930 = vld [vmem:[%s6 + $0x10] sm:$0xf]
    %v7931 = vld [vmem:[%s6 + $0x14] sm:$0xf]
    %v7932 = vld [vmem:[%s6 + $0x18] sm:$0xf]
    %v7933 = vld [vmem:[%s6 + $0x1c] sm:$0xf]
    %v7934 = vld [vmem:[%s6 + $0x20] sm:$0x1]
    %v7944 = vunpack.c.l.b16 %v7926
    %v7945 = vunpack.c.l.b16 %v7927
    %v7946 = vunpack.c.l.b16 %v7928
    %v7947 = vunpack.c.l.b16 %v7929
    %v7948 = vunpack.c.l.b16 %v7930
    %v7949 = vunpack.c.l.b16 %v7931
    %v7950 = vunpack.c.l.b16 %v7932
    %v7951 = vunpack.c.l.b16 %v7933
    %v7952 = vunpack.c.l.b16 %v7934
    %v7953 = vpack.c.b16 %v7945, %v7944
    %v7954 = vpack.c.b16 %v7947, %v7946
    %v7955 = vpack.c.b16 %v7949, %v7948
    %v7956 = vpack.c.b16 %v7951, %v7950
    %v7957 = vpack.c.b16 %v7952, %v7952
    %v7963 = vsel %vm131, %v7925, 0
    %v7966 = vand.u32 %v7957, %v137
    %7968 = vmatprep.subr.bf16.mxu0 0
    %7969 = vmatpush1.bf16.msra.mxu0 %v7953
    %7970 = vmatprep.subr.bf16.mxu0 0
    %7971 = vmatpush1.bf16.msra.mxu0 %v7954
    %7972 = vmatprep.subr.bf16.mxu0 0
    %7973 = vmatpush1.bf16.msra.mxu0 %v7955
    %7974 = vmatprep.subr.bf16.mxu0 0
    %7975 = vmatpush1.bf16.msra.mxu0 %v7956
    %7976 = vmatprep.subr.bf16.mxu0 0
    %7977 = vmatpush1.bf16.msra.mxu0 %v7966
    %7978 = vmatprep.subr.bf16.mxu0 0
    %7979 = vmatpush1.bf16.msra.mxu0 0
    %7980 = vmatprep.subr.bf16.mxu0 0
    %7981 = vmatpush1.bf16.msra.mxu0 0
    %7982 = vmatprep.subr.bf16.mxu0 0
    %7983 = vmatpush1.bf16.msra.mxu0 0
    %7984 = vmatprep.subr.bf16.mxu0 0
    %7985 = vmatpush1.bf16.msra.mxu0 0
    %7986 = vmatprep.subr.bf16.mxu0 0
    %7987 = vmatpush1.bf16.msra.mxu0 0
    %7988 = vmatprep.subr.bf16.mxu0 0
    %7989 = vmatpush1.bf16.msra.mxu0 0
    %7990 = vmatprep.subr.bf16.mxu0 0
    %7991 = vmatpush1.bf16.msra.mxu0 0
    %7992 = vmatprep.subr.bf16.mxu0 0
    %7993 = vmatpush1.bf16.msra.mxu0 0
    %7994 = vmatprep.subr.bf16.mxu0 0
    %7995 = vmatpush1.bf16.msra.mxu0 0
    %7996 = vmatprep.subr.bf16.mxu0 0
    %7997 = vmatpush1.bf16.msra.mxu0 0
    %7998 = vmatprep.subr.bf16.mxu0 0
    %7999 = vmatpush1.bf16.msra.mxu0 0
    %8000 = vmatprep.mubr.bf16.mxu0 0
    %8001 = vmatmul.mubr.bf16.gmra.mrb[0].mxu0 %v7963
    %v8002 = vpop.f32.mrb[0].mxu0
    %v8003 = vadd.f32 0.0, %v8002
    %v8004 = vpop.f32.mrb[0].mxu0
    %v8005 = vpop.f32.mrb[0].mxu0
    %v8006 = vpop.f32.mrb[0].mxu0
    %8007 = vdwg.mxu0
    %v8008 = vld [vmem:[#allocation5] sm:$0x3]
    %v8009 = vxor.u32 %v8003, 2147483648
    %v8010 = vmul.f32 %v8009, 1.442695
    %v8011 = vpow.pop %v8010
    %v8012 = vadd.f32 %v8011, 1.0
    %v8013 = vrcp.pop %v8012
    %v8014 = vmul.f32 1.0, %v8013
    %v8015 = vtanh.pop %v8003
    %8017 = vrot.lane.b32.xlu0 %v8008, 32
    %v8018 = vpop.permute.xlu0 %8017
    %v8020 = vmul.f32 %v8014, %v8018
    %8022 = vrot.lane.b32.xlu0 %v8015, 64
    %v8023 = vpop.permute.xlu0 %8022
    %v8025 = vmul.f32 %v8014, %v8023
    %8027 = vrot.lane.b32.xlu0 %v8025, 32
    %v8028 = vpop.permute.xlu0 %8027
    %v8030 = vadd.f32 %v8020, %v8028
    %v8031 = vtanh.pop %v8030
    %8033 = vrot.lane.b32.xlu0 %v8031, 64
    %v8034 = vpop.permute.xlu0 %8033
    %v8036 = vmul.f32 %v8014, %v8034
    %8038 = vrot.lane.b32.xlu0 %v8030, 96
    %v8039 = vpop.permute.xlu0 %8038
    %8041 = vst.msk [vmem:[#allocation5] sm:$0x3] %vm230, %v8039
    %v8042 = vpack.c.bf16 %v8036, %v8036
    %v8045 = vunpack.c.l.s4 1966171168
    %v8046 = vunpack.c.0.s8 %v8045
    %v8047 = vlaneseq
    %v8048 = vshrl.u32 %v8047, 7
    %v8049 = vsub.s32 %v8046, %v8048
    %v8050 = vrot.slane %v8042, %v8049
    %v8052 = vunpack.c.l.s4 1966171168
    %v8053 = vunpack.c.0.s8 %v8052
    %v8054 = vlaneseq
    %v8055 = vshrl.u32 %v8054, 7
    %v8056 = vsub.s32 %v8053, %v8055
    %v8057 = vrot.slane %v8050, %v8056
    %8058 = vrot.lane.b32.xlu0 %v8057, 64
    %v8059 = vpop.permute.xlu0 %8058
    %8061 = vst.msk [vmem:[#allocation3] sm:$0x1] %vm224, %v8059
    %v8062 = vld [vmem:[%s7] sm:$0xf]
    %v8063 = vld [vmem:[%s7 + $0x4] sm:$0xf]
    %v8064 = vld [vmem:[%s7 + $0x8] sm:$0xf]
    %v8065 = vld [vmem:[%s7 + $0xc] sm:$0xf]
    %8066 = vrot.lane.b32.xlu0 %v8042, 32
    %v8067 = vpop.permute.xlu0 %8066
    %v8072 = vunpack.c.l.b16 %v8062
    %v8073 = vunpack.c.l.b16 %v8063
    %v8074 = vunpack.c.l.b16 %v8064
    %v8075 = vunpack.c.l.b16 %v8065
    %v8076 = vpack.c.b16 %v8073, %v8072
    %v8077 = vpack.c.b16 %v8075, %v8074
    %v8081 = vsel %vm348, %v8067, 0
    %8083 = vmatprep.subr.bf16.mxu0 0
    %8084 = vmatpush1.bf16.msra.mxu0 %v8076
    %8085 = vmatprep.subr.bf16.mxu0 0
    %8086 = vmatpush1.bf16.msra.mxu0 %v8077
    %8087 = vmatprep.subr.bf16.mxu0 0
    %8088 = vmatpush1.bf16.msra.mxu0 0
    %8089 = vmatprep.subr.bf16.mxu0 0
    %8090 = vmatpush1.bf16.msra.mxu0 0
    %8091 = vmatprep.subr.bf16.mxu0 0
    %8092 = vmatpush1.bf16.msra.mxu0 0
    %8093 = vmatprep.subr.bf16.mxu0 0
    %8094 = vmatpush1.bf16.msra.mxu0 0
    %8095 = vmatprep.subr.bf16.mxu0 0
    %8096 = vmatpush1.bf16.msra.mxu0 0
    %8097 = vmatprep.subr.bf16.mxu0 0
    %8098 = vmatpush1.bf16.msra.mxu0 0
    %8099 = vmatprep.subr.bf16.mxu0 0
    %8100 = vmatpush1.bf16.msra.mxu0 0
    %8101 = vmatprep.subr.bf16.mxu0 0
    %8102 = vmatpush1.bf16.msra.mxu0 0
    %8103 = vmatprep.subr.bf16.mxu0 0
    %8104 = vmatpush1.bf16.msra.mxu0 0
    %8105 = vmatprep.subr.bf16.mxu0 0
    %8106 = vmatpush1.bf16.msra.mxu0 0
    %8107 = vmatprep.subr.bf16.mxu0 0
    %8108 = vmatpush1.bf16.msra.mxu0 0
    %8109 = vmatprep.subr.bf16.mxu0 0
    %8110 = vmatpush1.bf16.msra.mxu0 0
    %8111 = vmatprep.subr.bf16.mxu0 0
    %8112 = vmatpush1.bf16.msra.mxu0 0
    %8113 = vmatprep.subr.bf16.mxu0 0
    %8114 = vmatpush1.bf16.msra.mxu0 0
    %8115 = vmatprep.mubr.bf16.mxu0 0
    %8116 = vmatmul.mubr.bf16.gmra.mrb[0].mxu0 %v8081
    %v8117 = vpop.f32.mrb[0].mxu0
    %v8118 = vadd.f32 0.0, %v8117
    %v8119 = vpop.f32.mrb[0].mxu0
    %v8120 = vpop.f32.mrb[0].mxu0
    %v8121 = vpop.f32.mrb[0].mxu0
    %8122 = vdwg.mxu0
    %v8123 = vld [vmem:[%s0] sm:$0xf]
    %v8124 = vld [vmem:[%s0 + $0x4] sm:$0xf]
    %v8125 = vld [vmem:[%s0 + $0x8] sm:$0xf]
    %v8126 = vld [vmem:[%s0 + $0xc] sm:$0xf]
    %v8127 = vld [vmem:[%s0 + $0x10] sm:$0xf]
    %v8128 = vld [vmem:[%s0 + $0x14] sm:$0xf]
    %v8129 = vld [vmem:[%s0 + $0x18] sm:$0xf]
    %v8130 = vld [vmem:[%s0 + $0x1c] sm:$0xf]
    %v8131 = vld [vmem:[%s0 + $0x20] sm:$0xf]
    %v8132 = vld [vmem:[%s0 + $0x24] sm:$0xf]
    %v8133 = vld [vmem:[%s0 + $0x28] sm:$0xf]
    %v8134 = vld [vmem:[%s0 + $0x2c] sm:$0xf]
    %v8135 = vld [vmem:[%s0 + $0x30] sm:$0xf]
    %v8136 = vld [vmem:[%s0 + $0x34] sm:$0xf]
    %v8137 = vld [vmem:[%s0 + $0x38] sm:$0xf]
    %v8138 = vld [vmem:[%s0 + $0x3c] sm:$0xf]
    %v8139 = vunpack.c.l.bf16 %v8123
    %v8140 = vunpack.c.l.bf16 %v8124
    %v8141 = vunpack.c.l.bf16 %v8125
    %v8142 = vunpack.c.l.bf16 %v8126
    %v8143 = vunpack.c.l.bf16 %v8127
    %v8144 = vunpack.c.l.bf16 %v8128
    %v8145 = vunpack.c.l.bf16 %v8129
    %v8146 = vunpack.c.l.bf16 %v8130
    %v8147 = vunpack.c.l.bf16 %v8131
    %v8148 = vunpack.c.l.bf16 %v8132
    %v8149 = vunpack.c.l.bf16 %v8133
    %v8150 = vunpack.c.l.bf16 %v8134
    %v8151 = vunpack.c.l.bf16 %v8135
    %v8152 = vunpack.c.l.bf16 %v8136
    %v8153 = vunpack.c.l.bf16 %v8137
    %v8154 = vunpack.c.l.bf16 %v8138
    %v8157 = vunpack.c.l.s4 1966171168
    %v8158 = vunpack.c.0.s8 %v8157
    %v8159 = vlaneseq
    %v8160 = vshrl.u32 %v8159, 7
    %v8161 = vsub.s32 %v8158, %v8160
    %v8162 = vrot.slane %v8118, %v8161
    %v8163 = vcombine.high %v8162, %v8162
    %v8165 = vunpack.c.l.s4 1966171168
    %v8166 = vunpack.c.0.s8 %v8165
    %v8167 = vlaneseq
    %v8168 = vshrl.u32 %v8167, 7
    %v8169 = vsub.s32 %v8166, %v8168
    %v8170 = vrot.slane %v8162, %v8169
    %v8172 = vunpack.c.l.s4 1966171168
    %v8173 = vunpack.c.0.s8 %v8172
    %v8174 = vlaneseq
    %v8175 = vshrl.u32 %v8174, 7
    %v8176 = vsub.s32 %v8173, %v8175
    %v8177 = vrot.slane %v8163, %v8176
    %v8178 = vlaneseq
    %v8179 = vshrl.u32 %v8178, 7
    %v8180 = vsub.s32 0, %v8179
    %v8181 = vrot.slane %v8170, %v8180
    %v8182 = vlaneseq
    %v8183 = vshrl.u32 %v8182, 7
    %v8184 = vsub.s32 0, %v8183
    %v8185 = vrot.slane %v8177, %v8184
    %v8188 = vadd.f32 %v8139, %v8181
    %v8189 = vadd.f32 %v8140, %v8181
    %v8190 = vadd.f32 %v8141, %v8181
    %v8191 = vadd.f32 %v8142, %v8181
    %v8192 = vadd.f32 %v8143, %v8181
    %v8193 = vadd.f32 %v8144, %v8181
    %v8194 = vadd.f32 %v8145, %v8181
    %v8195 = vadd.f32 %v8146, %v8181
    %v8196 = vadd.f32 %v8147, %v8185
    %v8197 = vadd.f32 %v8148, %v8185
    %v8198 = vadd.f32 %v8149, %v8185
    %v8199 = vadd.f32 %v8150, %v8185
    %v8200 = vadd.f32 %v8151, %v8185
    %v8201 = vadd.f32 %v8152, %v8185
    %v8202 = vadd.f32 %v8153, %v8185
    %v8203 = vadd.f32 %v8154, %v8185
    %v8204 = vtanh.pop %v8188
    %v8205 = vtanh.pop %v8189
    %v8206 = vtanh.pop %v8190
    %v8207 = vtanh.pop %v8191
    %v8208 = vtanh.pop %v8192
    %v8209 = vtanh.pop %v8193
    %v8210 = vtanh.pop %v8194
    %v8211 = vtanh.pop %v8195
    %v8212 = vtanh.pop %v8196
    %v8213 = vtanh.pop %v8197
    %v8214 = vtanh.pop %v8198
    %v8215 = vtanh.pop %v8199
    %v8216 = vtanh.pop %v8200
    %v8217 = vtanh.pop %v8201
    %v8218 = vtanh.pop %v8202
    %v8219 = vtanh.pop %v8203
    %v8220 = vld [vmem:[%s8] sm:$0x1]
    %v8222 = vlaneseq
    %v8223 = vshrl.u32 %v8222, 7
    %v8224 = vsub.s32 0, %v8223
    %v8225 = vrot.slane %v8220, %v8224
    %v8227 = vmul.f32 %v8204, %v8225
    %v8228 = vmul.f32 %v8205, %v8225
    %v8229 = vmul.f32 %v8206, %v8225
    %v8230 = vmul.f32 %v8207, %v8225
    %v8231 = vmul.f32 %v8208, %v8225
    %v8232 = vmul.f32 %v8209, %v8225
    %v8233 = vmul.f32 %v8210, %v8225
    %v8234 = vmul.f32 %v8211, %v8225
    %v8235 = vmul.f32 %v8212, %v8225
    %v8236 = vmul.f32 %v8213, %v8225
    %v8237 = vmul.f32 %v8214, %v8225
    %v8238 = vmul.f32 %v8215, %v8225
    %v8239 = vmul.f32 %v8216, %v8225
    %v8240 = vmul.f32 %v8217, %v8225
    %v8241 = vmul.f32 %v8218, %v8225
    %v8242 = vmul.f32 %v8219, %v8225
    %v8243 = vsel %vm765, %v8227, 0.0
    %8244 = vadd.xlane.f32.xlu0 %v8243
    %v8245 = vpop.xlane.xlu0 %8244
    %v8246 = vsel %vm765, %v8228, 0.0
    %8247 = vadd.xlane.f32.xlu0 %v8246
    %v8248 = vpop.xlane.xlu0 %8247
    %v8249 = vsel %vm765, %v8229, 0.0
    %8250 = vadd.xlane.f32.xlu0 %v8249
    %v8251 = vpop.xlane.xlu0 %8250
    %v8252 = vsel %vm765, %v8230, 0.0
    %8253 = vadd.xlane.f32.xlu0 %v8252
    %v8254 = vpop.xlane.xlu0 %8253
    %v8255 = vsel %vm765, %v8231, 0.0
    %8256 = vadd.xlane.f32.xlu0 %v8255
    %v8257 = vpop.xlane.xlu0 %8256
    %v8258 = vsel %vm765, %v8232, 0.0
    %8259 = vadd.xlane.f32.xlu0 %v8258
    %v8260 = vpop.xlane.xlu0 %8259
    %v8261 = vsel %vm765, %v8233, 0.0
    %8262 = vadd.xlane.f32.xlu0 %v8261
    %v8263 = vpop.xlane.xlu0 %8262
    %v8264 = vsel %vm765, %v8234, 0.0
    %8265 = vadd.xlane.f32.xlu0 %v8264
    %v8266 = vpop.xlane.xlu0 %8265
    %v8267 = vsel %vm765, %v8235, 0.0
    %8268 = vadd.xlane.f32.xlu0 %v8267
    %v8269 = vpop.xlane.xlu0 %8268
    %v8270 = vsel %vm765, %v8236, 0.0
    %8271 = vadd.xlane.f32.xlu0 %v8270
    %v8272 = vpop.xlane.xlu0 %8271
    %v8273 = vsel %vm765, %v8237, 0.0
    %8274 = vadd.xlane.f32.xlu0 %v8273
    %v8275 = vpop.xlane.xlu0 %8274
    %v8276 = vsel %vm765, %v8238, 0.0
    %8277 = vadd.xlane.f32.xlu0 %v8276
    %v8278 = vpop.xlane.xlu0 %8277
    %v8279 = vsel %vm765, %v8239, 0.0
    %8280 = vadd.xlane.f32.xlu0 %v8279
    %v8281 = vpop.xlane.xlu0 %8280
    %v8282 = vsel %vm765, %v8240, 0.0
    %8283 = vadd.xlane.f32.xlu0 %v8282
    %v8284 = vpop.xlane.xlu0 %8283
    %v8285 = vsel %vm765, %v8241, 0.0
    %8286 = vadd.xlane.f32.xlu0 %v8285
    %v8287 = vpop.xlane.xlu0 %8286
    %v8288 = vsel %vm765, %v8242, 0.0
    %8289 = vadd.xlane.f32.xlu0 %v8288
    %v8290 = vpop.xlane.xlu0 %8289
    %v8291 = vld [vmem:[%s3] sm:$0x3]
    %v8293 = vlaneseq
    %v8294 = vshrl.u32 %v8293, 7
    %v8295 = vsub.s32 0, %v8294
    %v8296 = vrot.slane %v8291, %v8295
    %8298 = vbcast.lane.b32.xlu0 %v8296, 256
    %v8299 = vpop.permute.xlu0 %8298
    %s8301 = sor.u32 256, 8
    %8302 = vbcast.lane.b32.xlu0 %v8296, %s8301
    %v8303 = vpop.permute.xlu0 %8302
    %s8305 = sor.u32 256, 16
    %8306 = vbcast.lane.b32.xlu0 %v8296, %s8305
    %v8307 = vpop.permute.xlu0 %8306
    %s8309 = sor.u32 256, 24
    %8310 = vbcast.lane.b32.xlu0 %v8296, %s8309
    %v8311 = vpop.permute.xlu0 %8310
    %s8313 = sor.u32 256, 32
    %8314 = vbcast.lane.b32.xlu0 %v8296, %s8313
    %v8315 = vpop.permute.xlu0 %8314
    %s8317 = sor.u32 256, 40
    %8318 = vbcast.lane.b32.xlu0 %v8296, %s8317
    %v8319 = vpop.permute.xlu0 %8318
    %s8321 = sor.u32 256, 48
    %8322 = vbcast.lane.b32.xlu0 %v8296, %s8321
    %v8323 = vpop.permute.xlu0 %8322
    %s8325 = sor.u32 256, 56
    %8326 = vbcast.lane.b32.xlu0 %v8296, %s8325
    %v8327 = vpop.permute.xlu0 %8326
    %v8328 = vlaneseq
    %v8329 = vshrl.u32 %v8328, 7
    %v8330 = vsub.s32 1, %v8329
    %v8331 = vrot.slane %v8291, %v8330
    %8333 = vbcast.lane.b32.xlu0 %v8331, 256
    %v8334 = vpop.permute.xlu0 %8333
    %s8336 = sor.u32 256, 8
    %8337 = vbcast.lane.b32.xlu0 %v8331, %s8336
    %v8338 = vpop.permute.xlu0 %8337
    %s8340 = sor.u32 256, 16
    %8341 = vbcast.lane.b32.xlu0 %v8331, %s8340
    %v8342 = vpop.permute.xlu0 %8341
    %s8344 = sor.u32 256, 24
    %8345 = vbcast.lane.b32.xlu0 %v8331, %s8344
    %v8346 = vpop.permute.xlu0 %8345
    %s8348 = sor.u32 256, 32
    %8349 = vbcast.lane.b32.xlu0 %v8331, %s8348
    %v8350 = vpop.permute.xlu0 %8349
    %s8352 = sor.u32 256, 40
    %8353 = vbcast.lane.b32.xlu0 %v8331, %s8352
    %v8354 = vpop.permute.xlu0 %8353
    %s8356 = sor.u32 256, 48
    %8357 = vbcast.lane.b32.xlu0 %v8331, %s8356
    %v8358 = vpop.permute.xlu0 %8357
    %s8360 = sor.u32 256, 56
    %8361 = vbcast.lane.b32.xlu0 %v8331, %s8360
    %v8362 = vpop.permute.xlu0 %8361
    %v8379 = vadd.f32 %v8245, %v8299
    %v8380 = vadd.f32 %v8248, %v8303
    %v8381 = vadd.f32 %v8251, %v8307
    %v8382 = vadd.f32 %v8254, %v8311
    %v8383 = vadd.f32 %v8257, %v8315
    %v8384 = vadd.f32 %v8260, %v8319
    %v8385 = vadd.f32 %v8263, %v8323
    %v8386 = vadd.f32 %v8266, %v8327
    %v8387 = vadd.f32 %v8269, %v8334
    %v8388 = vadd.f32 %v8272, %v8338
    %v8389 = vadd.f32 %v8275, %v8342
    %v8390 = vadd.f32 %v8278, %v8346
    %v8391 = vadd.f32 %v8281, %v8350
    %v8392 = vadd.f32 %v8284, %v8354
    %v8393 = vadd.f32 %v8287, %v8358
    %v8394 = vadd.f32 %v8290, %v8362
    %8411 = vset.pattern.permute.xlu0 0
    %8412 = vperm.xlu0 %8411, %v8379
    %v8413 = vpop.permute.xlu0 %8412
    %8414 = vset.pattern.permute.xlu0 0
    %8415 = vperm.xlu0 %8414, %v8380
    %v8416 = vpop.permute.xlu0 %8415
    %8417 = vset.pattern.permute.xlu0 0
    %8418 = vperm.xlu0 %8417, %v8381
    %v8419 = vpop.permute.xlu0 %8418
    %8420 = vset.pattern.permute.xlu0 0
    %8421 = vperm.xlu0 %8420, %v8382
    %v8422 = vpop.permute.xlu0 %8421
    %8423 = vset.pattern.permute.xlu0 0
    %8424 = vperm.xlu0 %8423, %v8383
    %v8425 = vpop.permute.xlu0 %8424
    %8426 = vset.pattern.permute.xlu0 0
    %8427 = vperm.xlu0 %8426, %v8384
    %v8428 = vpop.permute.xlu0 %8427
    %8429 = vset.pattern.permute.xlu0 0
    %8430 = vperm.xlu0 %8429, %v8385
    %v8431 = vpop.permute.xlu0 %8430
    %8432 = vset.pattern.permute.xlu0 0
    %8433 = vperm.xlu0 %8432, %v8386
    %v8434 = vpop.permute.xlu0 %8433
    %8435 = vset.pattern.permute.xlu0 0
    %8436 = vperm.xlu0 %8435, %v8387
    %v8437 = vpop.permute.xlu0 %8436
    %8438 = vset.pattern.permute.xlu0 0
    %8439 = vperm.xlu0 %8438, %v8388
    %v8440 = vpop.permute.xlu0 %8439
    %8441 = vset.pattern.permute.xlu0 0
    %8442 = vperm.xlu0 %8441, %v8389
    %v8443 = vpop.permute.xlu0 %8442
    %8444 = vset.pattern.permute.xlu0 0
    %8445 = vperm.xlu0 %8444, %v8390
    %v8446 = vpop.permute.xlu0 %8445
    %8447 = vset.pattern.permute.xlu0 0
    %8448 = vperm.xlu0 %8447, %v8391
    %v8449 = vpop.permute.xlu0 %8448
    %8450 = vset.pattern.permute.xlu0 0
    %8451 = vperm.xlu0 %8450, %v8392
    %v8452 = vpop.permute.xlu0 %8451
    %8453 = vset.pattern.permute.xlu0 0
    %8454 = vperm.xlu0 %8453, %v8393
    %v8455 = vpop.permute.xlu0 %8454
    %8456 = vset.pattern.permute.xlu0 0
    %8457 = vperm.xlu0 %8456, %v8394
    %v8458 = vpop.permute.xlu0 %8457
    %v8459 = vlaneseq
    %v8460 = vshrl.u32 %v8459, 7
    %v8461 = vsub.s32 %v41, %v8460
    %v8462 = vrot.slane %v8413, %v8461
    %v8463 = vlaneseq
    %v8464 = vshrl.u32 %v8463, 7
    %v8465 = vsub.s32 %v986, %v8464
    %v8466 = vrot.slane %v8416, %v8465
    %v8467 = vsel %vm991, %v8466, %v8462
    %v8468 = vlaneseq
    %v8469 = vshrl.u32 %v8468, 7
    %v8470 = vsub.s32 %v993, %v8469
    %v8471 = vrot.slane %v8419, %v8470
    %v8472 = vsel %vm998, %v8471, %v8467
    %v8473 = vlaneseq
    %v8474 = vshrl.u32 %v8473, 7
    %v8475 = vsub.s32 %v1000, %v8474
    %v8476 = vrot.slane %v8422, %v8475
    %v8477 = vsel %vm1005, %v8476, %v8472
    %v8478 = vlaneseq
    %v8479 = vshrl.u32 %v8478, 7
    %v8480 = vsub.s32 %v1007, %v8479
    %v8481 = vrot.slane %v8425, %v8480
    %v8482 = vsel %vm1012, %v8481, %v8477
    %v8483 = vlaneseq
    %v8484 = vshrl.u32 %v8483, 7
    %v8485 = vsub.s32 %v1014, %v8484
    %v8486 = vrot.slane %v8428, %v8485
    %v8487 = vsel %vm1019, %v8486, %v8482
    %v8488 = vlaneseq
    %v8489 = vshrl.u32 %v8488, 7
    %v8490 = vsub.s32 %v1021, %v8489
    %v8491 = vrot.slane %v8431, %v8490
    %v8492 = vsel %vm1026, %v8491, %v8487
    %v8493 = vlaneseq
    %v8494 = vshrl.u32 %v8493, 7
    %v8495 = vsub.s32 %v1028, %v8494
    %v8496 = vrot.slane %v8434, %v8495
    %v8497 = vsel %vm1033, %v8496, %v8492
    %v8498 = vlaneseq
    %v8499 = vshrl.u32 %v8498, 7
    %v8500 = vsub.s32 %v41, %v8499
    %v8501 = vrot.slane %v8437, %v8500
    %v8502 = vlaneseq
    %v8503 = vshrl.u32 %v8502, 7
    %v8504 = vsub.s32 %v986, %v8503
    %v8505 = vrot.slane %v8440, %v8504
    %v8506 = vsel %vm991, %v8505, %v8501
    %v8507 = vlaneseq
    %v8508 = vshrl.u32 %v8507, 7
    %v8509 = vsub.s32 %v993, %v8508
    %v8510 = vrot.slane %v8443, %v8509
    %v8511 = vsel %vm998, %v8510, %v8506
    %v8512 = vlaneseq
    %v8513 = vshrl.u32 %v8512, 7
    %v8514 = vsub.s32 %v1000, %v8513
    %v8515 = vrot.slane %v8446, %v8514
    %v8516 = vsel %vm1005, %v8515, %v8511
    %v8517 = vlaneseq
    %v8518 = vshrl.u32 %v8517, 7
    %v8519 = vsub.s32 %v1007, %v8518
    %v8520 = vrot.slane %v8449, %v8519
    %v8521 = vsel %vm1012, %v8520, %v8516
    %v8522 = vlaneseq
    %v8523 = vshrl.u32 %v8522, 7
    %v8524 = vsub.s32 %v1014, %v8523
    %v8525 = vrot.slane %v8452, %v8524
    %v8526 = vsel %vm1019, %v8525, %v8521
    %v8527 = vlaneseq
    %v8528 = vshrl.u32 %v8527, 7
    %v8529 = vsub.s32 %v1021, %v8528
    %v8530 = vrot.slane %v8455, %v8529
    %v8531 = vsel %vm1026, %v8530, %v8526
    %v8532 = vlaneseq
    %v8533 = vshrl.u32 %v8532, 7
    %v8534 = vsub.s32 %v1028, %v8533
    %v8535 = vrot.slane %v8458, %v8534
    %v8536 = vsel %vm1033, %v8535, %v8531
    %v8537 = vsel %vm1074, %v8536, %v8497
    %v8539 = vsel %vm1077, %v8537, -inf
    %8540 = vmax.xlane.f32.xlu0 %v8539
    %v8541 = vpop.xlane.xlu0 %8540
    %v8543 = vlaneseq
    %v8544 = vshrl.u32 %v8543, 7
    %v8545 = vsub.s32 0, %v8544
    %v8546 = vrot.slane %v8541, %v8545
    %v8547 = vlaneseq
    %v8548 = vshrl.u32 %v8547, 7
    %v8549 = vsub.s32 1, %v8548
    %v8550 = vrot.slane %v8541, %v8549
    %v8553 = vsub.f32 %v8379, %v8546
    %v8554 = vsub.f32 %v8380, %v8546
    %v8555 = vsub.f32 %v8381, %v8546
    %v8556 = vsub.f32 %v8382, %v8546
    %v8557 = vsub.f32 %v8383, %v8546
    %v8558 = vsub.f32 %v8384, %v8546
    %v8559 = vsub.f32 %v8385, %v8546
    %v8560 = vsub.f32 %v8386, %v8546
    %v8561 = vsub.f32 %v8387, %v8550
    %v8562 = vsub.f32 %v8388, %v8550
    %v8563 = vsub.f32 %v8389, %v8550
    %v8564 = vsub.f32 %v8390, %v8550
    %v8565 = vsub.f32 %v8391, %v8550
    %v8566 = vsub.f32 %v8392, %v8550
    %v8567 = vsub.f32 %v8393, %v8550
    %v8568 = vsub.f32 %v8394, %v8550
    %v8569 = vmul.f32 %v8553, 1.442695
    %v8570 = vpow.pop %v8569
    %v8571 = vmul.f32 %v8554, 1.442695
    %v8572 = vpow.pop %v8571
    %v8573 = vmul.f32 %v8555, 1.442695
    %v8574 = vpow.pop %v8573
    %v8575 = vmul.f32 %v8556, 1.442695
    %v8576 = vpow.pop %v8575
    %v8577 = vmul.f32 %v8557, 1.442695
    %v8578 = vpow.pop %v8577
    %v8579 = vmul.f32 %v8558, 1.442695
    %v8580 = vpow.pop %v8579
    %v8581 = vmul.f32 %v8559, 1.442695
    %v8582 = vpow.pop %v8581
    %v8583 = vmul.f32 %v8560, 1.442695
    %v8584 = vpow.pop %v8583
    %v8585 = vmul.f32 %v8561, 1.442695
    %v8586 = vpow.pop %v8585
    %v8587 = vmul.f32 %v8562, 1.442695
    %v8588 = vpow.pop %v8587
    %v8589 = vmul.f32 %v8563, 1.442695
    %v8590 = vpow.pop %v8589
    %v8591 = vmul.f32 %v8564, 1.442695
    %v8592 = vpow.pop %v8591
    %v8593 = vmul.f32 %v8565, 1.442695
    %v8594 = vpow.pop %v8593
    %v8595 = vmul.f32 %v8566, 1.442695
    %v8596 = vpow.pop %v8595
    %v8597 = vmul.f32 %v8567, 1.442695
    %v8598 = vpow.pop %v8597
    %v8599 = vmul.f32 %v8568, 1.442695
    %v8600 = vpow.pop %v8599
    %8617 = vset.pattern.permute.xlu0 0
    %8618 = vperm.xlu0 %8617, %v8570
    %v8619 = vpop.permute.xlu0 %8618
    %8620 = vset.pattern.permute.xlu0 0
    %8621 = vperm.xlu0 %8620, %v8572
    %v8622 = vpop.permute.xlu0 %8621
    %8623 = vset.pattern.permute.xlu0 0
    %8624 = vperm.xlu0 %8623, %v8574
    %v8625 = vpop.permute.xlu0 %8624
    %8626 = vset.pattern.permute.xlu0 0
    %8627 = vperm.xlu0 %8626, %v8576
    %v8628 = vpop.permute.xlu0 %8627
    %8629 = vset.pattern.permute.xlu0 0
    %8630 = vperm.xlu0 %8629, %v8578
    %v8631 = vpop.permute.xlu0 %8630
    %8632 = vset.pattern.permute.xlu0 0
    %8633 = vperm.xlu0 %8632, %v8580
    %v8634 = vpop.permute.xlu0 %8633
    %8635 = vset.pattern.permute.xlu0 0
    %8636 = vperm.xlu0 %8635, %v8582
    %v8637 = vpop.permute.xlu0 %8636
    %8638 = vset.pattern.permute.xlu0 0
    %8639 = vperm.xlu0 %8638, %v8584
    %v8640 = vpop.permute.xlu0 %8639
    %8641 = vset.pattern.permute.xlu0 0
    %8642 = vperm.xlu0 %8641, %v8586
    %v8643 = vpop.permute.xlu0 %8642
    %8644 = vset.pattern.permute.xlu0 0
    %8645 = vperm.xlu0 %8644, %v8588
    %v8646 = vpop.permute.xlu0 %8645
    %8647 = vset.pattern.permute.xlu0 0
    %8648 = vperm.xlu0 %8647, %v8590
    %v8649 = vpop.permute.xlu0 %8648
    %8650 = vset.pattern.permute.xlu0 0
    %8651 = vperm.xlu0 %8650, %v8592
    %v8652 = vpop.permute.xlu0 %8651
    %8653 = vset.pattern.permute.xlu0 0
    %8654 = vperm.xlu0 %8653, %v8594
    %v8655 = vpop.permute.xlu0 %8654
    %8656 = vset.pattern.permute.xlu0 0
    %8657 = vperm.xlu0 %8656, %v8596
    %v8658 = vpop.permute.xlu0 %8657
    %8659 = vset.pattern.permute.xlu0 0
    %8660 = vperm.xlu0 %8659, %v8598
    %v8661 = vpop.permute.xlu0 %8660
    %8662 = vset.pattern.permute.xlu0 0
    %8663 = vperm.xlu0 %8662, %v8600
    %v8664 = vpop.permute.xlu0 %8663
    %v8665 = vlaneseq
    %v8666 = vshrl.u32 %v8665, 7
    %v8667 = vsub.s32 %v41, %v8666
    %v8668 = vrot.slane %v8619, %v8667
    %v8669 = vlaneseq
    %v8670 = vshrl.u32 %v8669, 7
    %v8671 = vsub.s32 %v986, %v8670
    %v8672 = vrot.slane %v8622, %v8671
    %v8673 = vsel %vm991, %v8672, %v8668
    %v8674 = vlaneseq
    %v8675 = vshrl.u32 %v8674, 7
    %v8676 = vsub.s32 %v993, %v8675
    %v8677 = vrot.slane %v8625, %v8676
    %v8678 = vsel %vm998, %v8677, %v8673
    %v8679 = vlaneseq
    %v8680 = vshrl.u32 %v8679, 7
    %v8681 = vsub.s32 %v1000, %v8680
    %v8682 = vrot.slane %v8628, %v8681
    %v8683 = vsel %vm1005, %v8682, %v8678
    %v8684 = vlaneseq
    %v8685 = vshrl.u32 %v8684, 7
    %v8686 = vsub.s32 %v1007, %v8685
    %v8687 = vrot.slane %v8631, %v8686
    %v8688 = vsel %vm1012, %v8687, %v8683
    %v8689 = vlaneseq
    %v8690 = vshrl.u32 %v8689, 7
    %v8691 = vsub.s32 %v1014, %v8690
    %v8692 = vrot.slane %v8634, %v8691
    %v8693 = vsel %vm1019, %v8692, %v8688
    %v8694 = vlaneseq
    %v8695 = vshrl.u32 %v8694, 7
    %v8696 = vsub.s32 %v1021, %v8695
    %v8697 = vrot.slane %v8637, %v8696
    %v8698 = vsel %vm1026, %v8697, %v8693
    %v8699 = vlaneseq
    %v8700 = vshrl.u32 %v8699, 7
    %v8701 = vsub.s32 %v1028, %v8700
    %v8702 = vrot.slane %v8640, %v8701
    %v8703 = vsel %vm1033, %v8702, %v8698
    %v8704 = vlaneseq
    %v8705 = vshrl.u32 %v8704, 7
    %v8706 = vsub.s32 %v41, %v8705
    %v8707 = vrot.slane %v8643, %v8706
    %v8708 = vlaneseq
    %v8709 = vshrl.u32 %v8708, 7
    %v8710 = vsub.s32 %v986, %v8709
    %v8711 = vrot.slane %v8646, %v8710
    %v8712 = vsel %vm991, %v8711, %v8707
    %v8713 = vlaneseq
    %v8714 = vshrl.u32 %v8713, 7
    %v8715 = vsub.s32 %v993, %v8714
    %v8716 = vrot.slane %v8649, %v8715
    %v8717 = vsel %vm998, %v8716, %v8712
    %v8718 = vlaneseq
    %v8719 = vshrl.u32 %v8718, 7
    %v8720 = vsub.s32 %v1000, %v8719
    %v8721 = vrot.slane %v8652, %v8720
    %v8722 = vsel %vm1005, %v8721, %v8717
    %v8723 = vlaneseq
    %v8724 = vshrl.u32 %v8723, 7
    %v8725 = vsub.s32 %v1007, %v8724
    %v8726 = vrot.slane %v8655, %v8725
    %v8727 = vsel %vm1012, %v8726, %v8722
    %v8728 = vlaneseq
    %v8729 = vshrl.u32 %v8728, 7
    %v8730 = vsub.s32 %v1014, %v8729
    %v8731 = vrot.slane %v8658, %v8730
    %v8732 = vsel %vm1019, %v8731, %v8727
    %v8733 = vlaneseq
    %v8734 = vshrl.u32 %v8733, 7
    %v8735 = vsub.s32 %v1021, %v8734
    %v8736 = vrot.slane %v8661, %v8735
    %v8737 = vsel %vm1026, %v8736, %v8732
    %v8738 = vlaneseq
    %v8739 = vshrl.u32 %v8738, 7
    %v8740 = vsub.s32 %v1028, %v8739
    %v8741 = vrot.slane %v8664, %v8740
    %v8742 = vsel %vm1033, %v8741, %v8737
    %v8743 = vsel %vm1074, %v8742, %v8703
    %v8745 = vsel %vm1077, %v8743, 0.0
    %8746 = vadd.xlane.f32.xlu0 %v8745
    %v8747 = vpop.xlane.xlu0 %8746
    %v8748 = vrcp.pop %v8747
    %v8750 = vlaneseq
    %v8751 = vshrl.u32 %v8750, 7
    %v8752 = vsub.s32 0, %v8751
    %v8753 = vrot.slane %v8748, %v8752
    %v8754 = vlaneseq
    %v8755 = vshrl.u32 %v8754, 7
    %v8756 = vsub.s32 1, %v8755
    %v8757 = vrot.slane %v8748, %v8756
    %v8760 = vmul.f32 %v8570, %v8753
    %v8761 = vmul.f32 %v8572, %v8753
    %v8762 = vmul.f32 %v8574, %v8753
    %v8763 = vmul.f32 %v8576, %v8753
    %v8764 = vmul.f32 %v8578, %v8753
    %v8765 = vmul.f32 %v8580, %v8753
    %v8766 = vmul.f32 %v8582, %v8753
    %v8767 = vmul.f32 %v8584, %v8753
    %v8768 = vmul.f32 %v8586, %v8757
    %v8769 = vmul.f32 %v8588, %v8757
    %v8770 = vmul.f32 %v8590, %v8757
    %v8771 = vmul.f32 %v8592, %v8757
    %v8772 = vmul.f32 %v8594, %v8757
    %v8773 = vmul.f32 %v8596, %v8757
    %v8774 = vmul.f32 %v8598, %v8757
    %v8775 = vmul.f32 %v8600, %v8757
    %v8776 = vpack.c.bf16 %v8761, %v8760
    %v8777 = vpack.c.bf16 %v8763, %v8762
    %v8778 = vpack.c.bf16 %v8765, %v8764
    %v8779 = vpack.c.bf16 %v8767, %v8766
    %v8780 = vpack.c.bf16 %v8769, %v8768
    %v8781 = vpack.c.bf16 %v8771, %v8770
    %v8782 = vpack.c.bf16 %v8773, %v8772
    %v8783 = vpack.c.bf16 %v8775, %v8774
    %v8792 = vunpack.c.l.b16 %v8776
    %v8793 = vunpack.c.h.b16 %v8776
    %v8794 = vunpack.c.l.b16 %v8777
    %v8795 = vunpack.c.h.b16 %v8777
    %v8796 = vunpack.c.l.b16 %v8778
    %v8797 = vunpack.c.h.b16 %v8778
    %v8798 = vunpack.c.l.b16 %v8779
    %v8799 = vunpack.c.h.b16 %v8779
    %v8800 = vunpack.c.l.b16 %v8780
    %v8801 = vunpack.c.h.b16 %v8780
    %v8802 = vunpack.c.l.b16 %v8781
    %v8803 = vunpack.c.h.b16 %v8781
    %v8804 = vunpack.c.l.b16 %v8782
    %v8805 = vunpack.c.h.b16 %v8782
    %v8806 = vunpack.c.l.b16 %v8783
    %v8807 = vunpack.c.h.b16 %v8783
    %8808 = vset.pattern.permute.xlu0 0
    %8809 = vperm.xlu0 %8808, %v8792
    %v8810 = vpop.permute.xlu0 %8809
    %8811 = vset.pattern.permute.xlu0 0
    %8812 = vperm.xlu0 %8811, %v8793
    %v8813 = vpop.permute.xlu0 %8812
    %8814 = vset.pattern.permute.xlu0 0
    %8815 = vperm.xlu0 %8814, %v8794
    %v8816 = vpop.permute.xlu0 %8815
    %8817 = vset.pattern.permute.xlu0 0
    %8818 = vperm.xlu0 %8817, %v8795
    %v8819 = vpop.permute.xlu0 %8818
    %8820 = vset.pattern.permute.xlu0 0
    %8821 = vperm.xlu0 %8820, %v8796
    %v8822 = vpop.permute.xlu0 %8821
    %8823 = vset.pattern.permute.xlu0 0
    %8824 = vperm.xlu0 %8823, %v8797
    %v8825 = vpop.permute.xlu0 %8824
    %8826 = vset.pattern.permute.xlu0 0
    %8827 = vperm.xlu0 %8826, %v8798
    %v8828 = vpop.permute.xlu0 %8827
    %8829 = vset.pattern.permute.xlu0 0
    %8830 = vperm.xlu0 %8829, %v8799
    %v8831 = vpop.permute.xlu0 %8830
    %8832 = vset.pattern.permute.xlu0 0
    %8833 = vperm.xlu0 %8832, %v8800
    %v8834 = vpop.permute.xlu0 %8833
    %8835 = vset.pattern.permute.xlu0 0
    %8836 = vperm.xlu0 %8835, %v8801
    %v8837 = vpop.permute.xlu0 %8836
    %8838 = vset.pattern.permute.xlu0 0
    %8839 = vperm.xlu0 %8838, %v8802
    %v8840 = vpop.permute.xlu0 %8839
    %8841 = vset.pattern.permute.xlu0 0
    %8842 = vperm.xlu0 %8841, %v8803
    %v8843 = vpop.permute.xlu0 %8842
    %8844 = vset.pattern.permute.xlu0 0
    %8845 = vperm.xlu0 %8844, %v8804
    %v8846 = vpop.permute.xlu0 %8845
    %8847 = vset.pattern.permute.xlu0 0
    %8848 = vperm.xlu0 %8847, %v8805
    %v8849 = vpop.permute.xlu0 %8848
    %8850 = vset.pattern.permute.xlu0 0
    %8851 = vperm.xlu0 %8850, %v8806
    %v8852 = vpop.permute.xlu0 %8851
    %8853 = vset.pattern.permute.xlu0 0
    %8854 = vperm.xlu0 %8853, %v8807
    %v8855 = vpop.permute.xlu0 %8854
    %v8856 = vlaneseq
    %v8857 = vshrl.u32 %v8856, 7
    %v8858 = vsub.s32 %v41, %v8857
    %v8859 = vrot.slane %v8810, %v8858
    %v8860 = vlaneseq
    %v8861 = vshrl.u32 %v8860, 7
    %v8862 = vsub.s32 %v986, %v8861
    %v8863 = vrot.slane %v8813, %v8862
    %v8864 = vsel %vm991, %v8863, %v8859
    %v8865 = vlaneseq
    %v8866 = vshrl.u32 %v8865, 7
    %v8867 = vsub.s32 %v993, %v8866
    %v8868 = vrot.slane %v8816, %v8867
    %v8869 = vsel %vm998, %v8868, %v8864
    %v8870 = vlaneseq
    %v8871 = vshrl.u32 %v8870, 7
    %v8872 = vsub.s32 %v1000, %v8871
    %v8873 = vrot.slane %v8819, %v8872
    %v8874 = vsel %vm1005, %v8873, %v8869
    %v8875 = vlaneseq
    %v8876 = vshrl.u32 %v8875, 7
    %v8877 = vsub.s32 %v1007, %v8876
    %v8878 = vrot.slane %v8822, %v8877
    %v8879 = vsel %vm1012, %v8878, %v8874
    %v8880 = vlaneseq
    %v8881 = vshrl.u32 %v8880, 7
    %v8882 = vsub.s32 %v1014, %v8881
    %v8883 = vrot.slane %v8825, %v8882
    %v8884 = vsel %vm1019, %v8883, %v8879
    %v8885 = vlaneseq
    %v8886 = vshrl.u32 %v8885, 7
    %v8887 = vsub.s32 %v1021, %v8886
    %v8888 = vrot.slane %v8828, %v8887
    %v8889 = vsel %vm1026, %v8888, %v8884
    %v8890 = vlaneseq
    %v8891 = vshrl.u32 %v8890, 7
    %v8892 = vsub.s32 %v1028, %v8891
    %v8893 = vrot.slane %v8831, %v8892
    %v8894 = vsel %vm1033, %v8893, %v8889
    %v8895 = vlaneseq
    %v8896 = vshrl.u32 %v8895, 7
    %v8897 = vsub.s32 %v41, %v8896
    %v8898 = vrot.slane %v8834, %v8897
    %v8899 = vlaneseq
    %v8900 = vshrl.u32 %v8899, 7
    %v8901 = vsub.s32 %v986, %v8900
    %v8902 = vrot.slane %v8837, %v8901
    %v8903 = vsel %vm991, %v8902, %v8898
    %v8904 = vlaneseq
    %v8905 = vshrl.u32 %v8904, 7
    %v8906 = vsub.s32 %v993, %v8905
    %v8907 = vrot.slane %v8840, %v8906
    %v8908 = vsel %vm998, %v8907, %v8903
    %v8909 = vlaneseq
    %v8910 = vshrl.u32 %v8909, 7
    %v8911 = vsub.s32 %v1000, %v8910
    %v8912 = vrot.slane %v8843, %v8911
    %v8913 = vsel %vm1005, %v8912, %v8908
    %v8914 = vlaneseq
    %v8915 = vshrl.u32 %v8914, 7
    %v8916 = vsub.s32 %v1007, %v8915
    %v8917 = vrot.slane %v8846, %v8916
    %v8918 = vsel %vm1012, %v8917, %v8913
    %v8919 = vlaneseq
    %v8920 = vshrl.u32 %v8919, 7
    %v8921 = vsub.s32 %v1014, %v8920
    %v8922 = vrot.slane %v8849, %v8921
    %v8923 = vsel %vm1019, %v8922, %v8918
    %v8924 = vlaneseq
    %v8925 = vshrl.u32 %v8924, 7
    %v8926 = vsub.s32 %v1021, %v8925
    %v8927 = vrot.slane %v8852, %v8926
    %v8928 = vsel %vm1026, %v8927, %v8923
    %v8929 = vlaneseq
    %v8930 = vshrl.u32 %v8929, 7
    %v8931 = vsub.s32 %v1028, %v8930
    %v8932 = vrot.slane %v8855, %v8931
    %v8933 = vsel %vm1033, %v8932, %v8928
    %v8934 = vsel %vm1074, %v8933, %v8894
    %v8935 = vpack.c.b16 %v8934, %v8934
    %v8936 = vlaneseq
    %v8937 = vshrl.u32 %v8936, 7
    %v8938 = vsub.s32 %v1475, %v8937
    %v8939 = vrot.slane %v8810, %v8938
    %v8940 = vlaneseq
    %v8941 = vshrl.u32 %v8940, 7
    %v8942 = vsub.s32 %v1480, %v8941
    %v8943 = vrot.slane %v8813, %v8942
    %v8944 = vsel %vm1485, %v8943, %v8939
    %v8945 = vlaneseq
    %v8946 = vshrl.u32 %v8945, 7
    %v8947 = vsub.s32 %v1487, %v8946
    %v8948 = vrot.slane %v8816, %v8947
    %v8949 = vsel %vm1492, %v8948, %v8944
    %v8950 = vlaneseq
    %v8951 = vshrl.u32 %v8950, 7
    %v8952 = vsub.s32 %v1494, %v8951
    %v8953 = vrot.slane %v8819, %v8952
    %v8954 = vsel %vm1499, %v8953, %v8949
    %v8955 = vlaneseq
    %v8956 = vshrl.u32 %v8955, 7
    %v8957 = vsub.s32 %v1501, %v8956
    %v8958 = vrot.slane %v8822, %v8957
    %v8959 = vsel %vm1506, %v8958, %v8954
    %v8960 = vlaneseq
    %v8961 = vshrl.u32 %v8960, 7
    %v8962 = vsub.s32 %v1508, %v8961
    %v8963 = vrot.slane %v8825, %v8962
    %v8964 = vsel %vm1513, %v8963, %v8959
    %v8965 = vlaneseq
    %v8966 = vshrl.u32 %v8965, 7
    %v8967 = vsub.s32 %v1515, %v8966
    %v8968 = vrot.slane %v8828, %v8967
    %v8969 = vsel %vm1520, %v8968, %v8964
    %v8970 = vlaneseq
    %v8971 = vshrl.u32 %v8970, 7
    %v8972 = vsub.s32 %v1522, %v8971
    %v8973 = vrot.slane %v8831, %v8972
    %v8974 = vsel %vm1527, %v8973, %v8969
    %v8975 = vlaneseq
    %v8976 = vshrl.u32 %v8975, 7
    %v8977 = vsub.s32 %v1475, %v8976
    %v8978 = vrot.slane %v8834, %v8977
    %v8979 = vlaneseq
    %v8980 = vshrl.u32 %v8979, 7
    %v8981 = vsub.s32 %v1480, %v8980
    %v8982 = vrot.slane %v8837, %v8981
    %v8983 = vsel %vm1485, %v8982, %v8978
    %v8984 = vlaneseq
    %v8985 = vshrl.u32 %v8984, 7
    %v8986 = vsub.s32 %v1487, %v8985
    %v8987 = vrot.slane %v8840, %v8986
    %v8988 = vsel %vm1492, %v8987, %v8983
    %v8989 = vlaneseq
    %v8990 = vshrl.u32 %v8989, 7
    %v8991 = vsub.s32 %v1494, %v8990
    %v8992 = vrot.slane %v8843, %v8991
    %v8993 = vsel %vm1499, %v8992, %v8988
    %v8994 = vlaneseq
    %v8995 = vshrl.u32 %v8994, 7
    %v8996 = vsub.s32 %v1501, %v8995
    %v8997 = vrot.slane %v8846, %v8996
    %v8998 = vsel %vm1506, %v8997, %v8993
    %v8999 = vlaneseq
    %v9000 = vshrl.u32 %v8999, 7
    %v9001 = vsub.s32 %v1508, %v9000
    %v9002 = vrot.slane %v8849, %v9001
    %v9003 = vsel %vm1513, %v9002, %v8998
    %v9004 = vlaneseq
    %v9005 = vshrl.u32 %v9004, 7
    %v9006 = vsub.s32 %v1515, %v9005
    %v9007 = vrot.slane %v8852, %v9006
    %v9008 = vsel %vm1520, %v9007, %v9003
    %v9009 = vlaneseq
    %v9010 = vshrl.u32 %v9009, 7
    %v9011 = vsub.s32 %v1522, %v9010
    %v9012 = vrot.slane %v8855, %v9011
    %v9013 = vsel %vm1527, %v9012, %v9008
    %v9014 = vsel %vm1074, %v9013, %v8974
    %v9015 = vpack.c.b16 %v9014, %v9014
    %v9018 = vsel %vm1570, %v8935, %v9015
    %v9020 = vld [vmem:[%s2] sm:$0x1]
    %v9021 = vmul.bf16 %v9018, %v9020
    %v9022 = vld [vmem:[%s1] sm:$0xf]
    %v9023 = vld [vmem:[%s1 + $0x4] sm:$0xf]
    %v9024 = vld [vmem:[%s1 + $0x8] sm:$0xf]
    %v9025 = vld [vmem:[%s1 + $0xc] sm:$0xf]
    %v9026 = vld [vmem:[%s1 + $0x10] sm:$0xf]
    %v9027 = vld [vmem:[%s1 + $0x14] sm:$0xf]
    %v9028 = vld [vmem:[%s1 + $0x18] sm:$0xf]
    %v9029 = vld [vmem:[%s1 + $0x1c] sm:$0xf]
    %v9030 = vld [vmem:[%s1 + $0x20] sm:$0xf]
    %v9031 = vld [vmem:[%s1 + $0x24] sm:$0xf]
    %v9032 = vld [vmem:[%s1 + $0x28] sm:$0xf]
    %v9033 = vld [vmem:[%s1 + $0x2c] sm:$0xf]
    %v9034 = vld [vmem:[%s1 + $0x30] sm:$0xf]
    %v9035 = vld [vmem:[%s1 + $0x34] sm:$0xf]
    %v9036 = vld [vmem:[%s1 + $0x38] sm:$0xf]
    %v9037 = vld [vmem:[%s1 + $0x3c] sm:$0xf]
    %v9054 = vunpack.c.l.b16 %v9022
    %v9055 = vunpack.c.l.b16 %v9023
    %v9056 = vunpack.c.l.b16 %v9024
    %v9057 = vunpack.c.l.b16 %v9025
    %v9058 = vunpack.c.l.b16 %v9026
    %v9059 = vunpack.c.l.b16 %v9027
    %v9060 = vunpack.c.l.b16 %v9028
    %v9061 = vunpack.c.l.b16 %v9029
    %v9062 = vunpack.c.l.b16 %v9030
    %v9063 = vunpack.c.l.b16 %v9031
    %v9064 = vunpack.c.l.b16 %v9032
    %v9065 = vunpack.c.l.b16 %v9033
    %v9066 = vunpack.c.l.b16 %v9034
    %v9067 = vunpack.c.l.b16 %v9035
    %v9068 = vunpack.c.l.b16 %v9036
    %v9069 = vunpack.c.l.b16 %v9037
    %v9070 = vpack.c.b16 %v9055, %v9054
    %v9071 = vpack.c.b16 %v9057, %v9056
    %v9072 = vpack.c.b16 %v9059, %v9058
    %v9073 = vpack.c.b16 %v9061, %v9060
    %v9074 = vpack.c.b16 %v9063, %v9062
    %v9075 = vpack.c.b16 %v9065, %v9064
    %v9076 = vpack.c.b16 %v9067, %v9066
    %v9077 = vpack.c.b16 %v9069, %v9068
    %9086 = vmatprep.subr.bf16.mxu0 0
    %9087 = vmatpush1.bf16.msra.mxu0 %v9070
    %9088 = vmatprep.subr.bf16.mxu0 0
    %9089 = vmatpush1.bf16.msra.mxu0 %v9071
    %9090 = vmatprep.subr.bf16.mxu0 0
    %9091 = vmatpush1.bf16.msra.mxu0 %v9072
    %9092 = vmatprep.subr.bf16.mxu0 0
    %9093 = vmatpush1.bf16.msra.mxu0 %v9073
    %9094 = vmatprep.subr.bf16.mxu0 0
    %9095 = vmatpush1.bf16.msra.mxu0 %v9074
    %9096 = vmatprep.subr.bf16.mxu0 0
    %9097 = vmatpush1.bf16.msra.mxu0 %v9075
    %9098 = vmatprep.subr.bf16.mxu0 0
    %9099 = vmatpush1.bf16.msra.mxu0 %v9076
    %9100 = vmatprep.subr.bf16.mxu0 0
    %9101 = vmatpush1.bf16.msra.mxu0 %v9077
    %9102 = vmatprep.subr.bf16.mxu0 0
    %9103 = vmatpush1.bf16.msra.mxu0 0
    %9104 = vmatprep.subr.bf16.mxu0 0
    %9105 = vmatpush1.bf16.msra.mxu0 0
    %9106 = vmatprep.subr.bf16.mxu0 0
    %9107 = vmatpush1.bf16.msra.mxu0 0
    %9108 = vmatprep.subr.bf16.mxu0 0
    %9109 = vmatpush1.bf16.msra.mxu0 0
    %9110 = vmatprep.subr.bf16.mxu0 0
    %9111 = vmatpush1.bf16.msra.mxu0 0
    %9112 = vmatprep.subr.bf16.mxu0 0
    %9113 = vmatpush1.bf16.msra.mxu0 0
    %9114 = vmatprep.subr.bf16.mxu0 0
    %9115 = vmatpush1.bf16.msra.mxu0 0
    %9116 = vmatprep.subr.bf16.mxu0 0
    %9117 = vmatpush1.bf16.msra.mxu0 0
    %9118 = vmatprep.mubr.bf16.mxu0 0
    %9119 = vmatmul.mubr.bf16.gmra.mrb[0].mxu0 %v9021
    %v9120 = vpop.f32.mrb[0].mxu0
    %v9121 = vadd.f32 0.0, %v9120
    %v9122 = vpop.f32.mrb[0].mxu0
    %v9123 = vpop.f32.mrb[0].mxu0
    %v9124 = vpop.f32.mrb[0].mxu0
    %9125 = vdwg.mxu0
    %v9126 = vpack.c.bf16 %v9121, %v9121
    %v9127 = vld [vmem:[%s9] sm:$0xf]
    %v9128 = vld [vmem:[%s9 + $0x4] sm:$0xf]
    %v9129 = vld [vmem:[%s9 + $0x8] sm:$0xf]
    %v9130 = vld [vmem:[%s9 + $0xc] sm:$0xf]
    %v9131 = vld [vmem:[%s10] sm:$0x1]
    %v9133 = vlaneseq
    %v9134 = vshrl.u32 %v9133, 7
    %v9135 = vsub.s32 0, %v9134
    %v9136 = vrot.slane %v9131, %v9135
    %v9142 = vunpack.c.l.b16 %v9127
    %v9143 = vunpack.c.l.b16 %v9128
    %v9144 = vunpack.c.l.b16 %v9129
    %v9145 = vunpack.c.l.b16 %v9130
    %v9146 = vpack.c.b16 %v9143, %v9142
    %v9147 = vpack.c.b16 %v9145, %v9144
    %v9151 = vsel %vm348, %v9126, 0
    %9153 = vmatprep.subr.bf16.mxu0 0
    %9154 = vmatpush1.bf16.msra.mxu0 %v9146
    %9155 = vmatprep.subr.bf16.mxu0 0
    %9156 = vmatpush1.bf16.msra.mxu0 %v9147
    %9157 = vmatprep.subr.bf16.mxu0 0
    %9158 = vmatpush1.bf16.msra.mxu0 0
    %9159 = vmatprep.subr.bf16.mxu0 0
    %9160 = vmatpush1.bf16.msra.mxu0 0
    %9161 = vmatprep.subr.bf16.mxu0 0
    %9162 = vmatpush1.bf16.msra.mxu0 0
    %9163 = vmatprep.subr.bf16.mxu0 0
    %9164 = vmatpush1.bf16.msra.mxu0 0
    %9165 = vmatprep.subr.bf16.mxu0 0
    %9166 = vmatpush1.bf16.msra.mxu0 0
    %9167 = vmatprep.subr.bf16.mxu0 0
    %9168 = vmatpush1.bf16.msra.mxu0 0
    %9169 = vmatprep.subr.bf16.mxu0 0
    %9170 = vmatpush1.bf16.msra.mxu0 0
    %9171 = vmatprep.subr.bf16.mxu0 0
    %9172 = vmatpush1.bf16.msra.mxu0 0
    %9173 = vmatprep.subr.bf16.mxu0 0
    %9174 = vmatpush1.bf16.msra.mxu0 0
    %9175 = vmatprep.subr.bf16.mxu0 0
    %9176 = vmatpush1.bf16.msra.mxu0 0
    %9177 = vmatprep.subr.bf16.mxu0 0
    %9178 = vmatpush1.bf16.msra.mxu0 0
    %9179 = vmatprep.subr.bf16.mxu0 0
    %9180 = vmatpush1.bf16.msra.mxu0 0
    %9181 = vmatprep.subr.bf16.mxu0 0
    %9182 = vmatpush1.bf16.msra.mxu0 0
    %9183 = vmatprep.subr.bf16.mxu0 0
    %9184 = vmatpush1.bf16.msra.mxu0 0
    %9185 = vmatprep.mubr.bf16.mxu0 0
    %9186 = vmatmul.mubr.bf16.gmra.mrb[0].mxu0 %v9151
    %v9187 = vpop.f32.mrb[0].mxu0
    %v9188 = vadd.f32 %v9136, %v9187
    %v9189 = vpop.f32.mrb[0].mxu0
    %v9190 = vpop.f32.mrb[0].mxu0
    %v9191 = vpop.f32.mrb[0].mxu0
    %9192 = vdwg.mxu0
    %v9193 = vsel %vm1748, %v9188, -inf
    %9194 = vmax.xlane.f32.xlu0 %v9193
    %v9195 = vpop.xlane.xlu0 %9194
    %vm9196 = vcmp.eq.f32.partialorder %v9188, %v9195
    %v9197 = vsel %vm9196, 1, 0
    %v9198 = vcvt.s32.f32 %v9197
    %v9199 = vpack.c.bf16 %v9198, %v9198
    %9200 = vst [vmem:[#allocation2] sm:$0x1] %v9199
    %v9201 = vsub.f32 %v9188, %v9195
    %v9202 = vmul.f32 %v9201, 1.442695
    %v9203 = vpow.pop %v9202
    %v9204 = vsel %vm1748, %v9203, 0.0
    %9205 = vadd.xlane.f32.xlu0 %v9204
    %v9206 = vpop.xlane.xlu0 %9205
    %v9207 = vrcp.pop %v9206
    %v9208 = vmul.f32 %v9203, %v9207
    %s9209 = scalar_lea.vmem [#allocation6], 10
    %9210 = vst [vmem:[%s9209] sm:$0x3] %v9208
    // Predicated region
    $region46: #{tpu_custom_call.1} parent=1 // pred_check
      _
    $region47: #{tpu_custom_call.1} parent=1 // pred_check_branch
      %9212 = sbr.rel (0) target = $region49
    $region48: #{tpu_custom_call.1} parent=1 // pred_region
      %s9214 = ssub.s32 192, 192
      %9215 = vsyncadd [#allocation7], %s9214
      %s9216 = sshll.u32 [#allocation6], 4
      %s9217 = int_to_ptr.vmem [resolvable:$true] %s9216
      %9222 = dma.vmem_to_hbm [thread:$0]  %s9217, 192, %s11, [#allocation7], 32, 32, 2
    $region49: #{tpu_custom_call.1} parent=1 // pred_fallthru
      _
    // Predicated region
    $region50: #{tpu_custom_call.1} parent=1 // pred_check
      _
    $region51: #{tpu_custom_call.1} parent=1 // pred_check_branch
      %9224 = sbr.rel (0) target = $region53
    $region52: #{tpu_custom_call.1} parent=1 // pred_region
      %9225 = dma.done [#allocation7], 192
    $region53: #{tpu_custom_call.1} parent=1 // pred_fallthru
      _
    %9226 = vsyncpa [#allocation7], 1

</llo_original>
